<compile_context>
chip_gen: v7x
topology: tpu7x:2x2x1
jax: 0.10.0
libtpu: 0.0.40
codegen_flags: <defaults>
</compile_context>

<pallas_src>
import functools

import jax
import jax.numpy as jnp
from jax.experimental import pallas as pl
from jax.experimental.pallas import tpu as pltpu

NEG_SLOPE = 0.2
BN_EPS = 1e-5
LANE = 128          # pad Cout to the 128-lane vreg width
ROW_TILE_CAP = 512  # max rows per grid step


# ----------------------------- Pallas kernels ------------------------------

def _matmul_lrelu_kernel(p_ref, w_ref, o_ref):
    # conv (im2col matmul, f32 accumulate) fused with LeakyReLU(0.2)
    y = jnp.dot(p_ref[...], w_ref[...], preferred_element_type=jnp.float32)
    o_ref[...] = jnp.where(y > 0, y, NEG_SLOPE * y).astype(o_ref.dtype)


def _matmul_bn_lrelu_kernel(p_ref, w_ref, o_ref, sum_ref, ssq_ref, *, inv_m):
    # conv + BatchNorm2d (training-mode batch stats) + LeakyReLU(0.2)
    # grid = (pass, row_tile): pass 0 accumulates per-channel sum / sum-of-squares,
    # pass 1 recomputes the matmul and applies normalize + LeakyReLU.
    ph = pl.program_id(0)
    i = pl.program_id(1)
    is_acc = ph == 0

    y = jnp.dot(p_ref[...], w_ref[...], preferred_element_type=jnp.float32)

    @pl.when(jnp.logical_and(is_acc, i == 0))
    def _init():
        sum_ref[...] = jnp.zeros_like(sum_ref)
        ssq_ref[...] = jnp.zeros_like(ssq_ref)

    @pl.when(is_acc)
    def _accumulate():
        sum_ref[...] += jnp.sum(y, axis=0, keepdims=True)
        ssq_ref[...] += jnp.sum(y * y, axis=0, keepdims=True)

    @pl.when(jnp.logical_and(is_acc, i == pl.num_programs(1) - 1))
    def _finalize():
        mean = sum_ref[...] * inv_m
        # single-pass variance; clamp to >= 0 against catastrophic cancellation
        var = jnp.maximum(ssq_ref[...] * inv_m - mean * mean, 0.0)
        sum_ref[...] = mean                                # reuse: now holds mean
        ssq_ref[...] = jax.lax.rsqrt(var + BN_EPS)         # reuse: now holds 1/std

    @pl.when(jnp.logical_not(is_acc))
    def _normalize():
        yhat = (y - sum_ref[...]) * ssq_ref[...]
        o_ref[...] = jnp.where(yhat > 0, yhat, NEG_SLOPE * yhat).astype(o_ref.dtype)


def _matmul_sigmoid_kernel(p_ref, w_ref, o_ref):
    # final conv fused with Sigmoid (EUP reciprocal)
    y = jnp.dot(p_ref[...], w_ref[...], preferred_element_type=jnp.float32)
    o_ref[...] = pl.reciprocal(1.0 + jnp.exp(-y), approx=True).astype(o_ref.dtype)


# ------------------------------ pallas_call wrappers ------------------------------

def _row_tile(M, cap=ROW_TILE_CAP):
    """Largest row tile <= cap that divides M and respects the 8-sublane rule."""
    if M <= cap:
        return M
    t = cap
    while (M % t) or (t % 8):
        t //= 2
        if t < 8:
            return M
    return t


def conv_lrelu(patches, w_pad):
    """Row-independent layer: (M,K)bf16 @ (K,Cpad)bf16 + LeakyReLU, tiled over M."""
    M, K = patches.shape
    cpad = w_pad.shape[1]
    tm = _row_tile(M)
    return pl.pallas_call(
        _matmul_lrelu_kernel,
        out_shape=jax.ShapeDtypeStruct((M, cpad), jnp.bfloat16),
        grid=(M // tm,),
        in_specs=[
            pl.BlockSpec((tm, K), lambda i: (i, 0)),
            pl.BlockSpec((K, cpad), lambda i: (0, 0)),
        ],
        out_specs=pl.BlockSpec((tm, cpad), lambda i: (i, 0)),
        compiler_params=pltpu.CompilerParams(dimension_semantics=("parallel",)),
    )(patches, w_pad)


def conv_bn_lrelu(patches, w_pad):
    """Conv + BatchNorm(training stats) + LeakyReLU as a tiled two-pass kernel."""
    M, K = patches.shape
    cpad = w_pad.shape[1]
    tm = _row_tile(M)
    kernel = functools.partial(_matmul_bn_lrelu_kernel, inv_m=1.0 / M)
    return pl.pallas_call(
        kernel,
        out_shape=jax.ShapeDtypeStruct((M, cpad), jnp.bfloat16),
        grid=(2, M // tm),                 # pass axis outermost, row tiles inner
        in_specs=[
            pl.BlockSpec((tm, K), lambda p, i: (i, 0)),
            pl.BlockSpec((K, cpad), lambda p, i: (0, 0)),
        ],
        out_specs=pl.BlockSpec((tm, cpad), lambda p, i: (i, 0)),
        scratch_shapes=[
            pltpu.VMEM((1, cpad), jnp.float32),   # per-channel sum -> mean
            pltpu.VMEM((1, cpad), jnp.float32),   # per-channel sumsq -> 1/std
        ],
        compiler_params=pltpu.CompilerParams(
            dimension_semantics=("arbitrary", "arbitrary")),
    )(patches, w_pad)


def conv_sigmoid(patches, w_pad):
    """Final 1x1-output conv fused with sigmoid (M = batch, tiny)."""
    M, K = patches.shape
    cpad = w_pad.shape[1]
    return pl.pallas_call(
        _matmul_sigmoid_kernel,
        out_shape=jax.ShapeDtypeStruct((M, cpad), jnp.float32),
        grid=(1,),
        in_specs=[
            pl.BlockSpec((M, K), lambda i: (0, 0)),
            pl.BlockSpec((K, cpad), lambda i: (0, 0)),
        ],
        out_specs=pl.BlockSpec((M, cpad), lambda i: (0, 0)),
    )(patches, w_pad)


# ------------------------------ plain-JAX glue ------------------------------

def im2col(x_nhwc, k, stride, pad):
    """x: (N,H,W,C) -> patches (N*Hout*Wout, k*k*C), feature order (kh, kw, cin)."""
    x = jnp.pad(x_nhwc, ((0, 0), (pad, pad), (pad, pad), (0, 0)))
    N, H, W, C = x.shape
    Ho = (H - k) // stride + 1
    Wo = (W - k) // stride + 1
    pieces = []
    for i in range(k):
        for j in range(k):
            pieces.append(x[:, i:i + stride * Ho:stride, j:j + stride * Wo:stride, :])
    p = jnp.stack(pieces, axis=3)                 # (N, Ho, Wo, k*k, C)
    p = p.reshape(N * Ho * Wo, k * k * C)
    return p, Ho, Wo


def prepare_weights(weights):
    """PyTorch conv weights (Cout,Cin,kh,kw) f32 -> (kh*kw*Cin, Cpad) bf16, done ONCE."""
    prepped = []
    for w in weights:
        cout = w.shape[0]
        cpad = -(-cout // LANE) * LANE
        wm = jnp.transpose(w, (2, 3, 1, 0)).reshape(-1, cout)
        wm = jnp.pad(wm, ((0, 0), (0, cpad - cout)))
        prepped.append(wm.astype(jnp.bfloat16))
    return prepped


def discriminator_forward(x_nchw, w_pre, couts):
    """Forward of the (non-Wasserstein) Discriminator. Input NCHW f32, output (N,1,1,1) f32."""
    x = jnp.transpose(x_nchw, (0, 2, 3, 1)).astype(jnp.bfloat16)  # -> NHWC bf16
    N = x.shape[0]
    layer_cfg = [(1, conv_lrelu),      # conv1 + LeakyReLU
                 (1, conv_bn_lrelu),   # conv2 + BN + LeakyReLU
                 (1, conv_bn_lrelu),   # conv3 + BN + LeakyReLU
                 (1, conv_bn_lrelu),   # conv4 + BN + LeakyReLU
                 (0, conv_sigmoid)]    # conv5 + Sigmoid
    for (pad, fused_fn), wp, cout in zip(layer_cfg, w_pre, couts):
        patches, Ho, Wo = im2col(x, 4, 2, pad)       # jit-internal bf16 intermediate
        out = fused_fn(patches, wp)                  # (M, Cpad), lane-dense
        x = out[:, :cout].reshape(N, Ho, Wo, cout)
    return jnp.transpose(x.astype(jnp.float32), (0, 3, 1, 2))     # (N,1,1,1) NCHW


def reference_forward(x_nchw, weights):
    """Pure-JAX reference (lax.conv) with the same bf16-input / f32-accumulate policy."""
    x = jnp.transpose(x_nchw, (0, 2, 3, 1)).astype(jnp.bfloat16)
    pads = [1, 1, 1, 1, 0]
    for i, (w, pad) in enumerate(zip(weights, pads)):
        wk = jnp.transpose(w, (2, 3, 1, 0)).astype(jnp.bfloat16)  # HWIO
        y = jax.lax.conv_general_dilated(
            x, wk, (2, 2), ((pad, pad), (pad, pad)),
            dimension_numbers=('NHWC', 'HWIO', 'NHWC'),
            preferred_element_type=jnp.float32)
        if i in (1, 2, 3):
            mean = jnp.mean(y, axis=(0, 1, 2), keepdims=True)
            var = jnp.mean((y - mean) ** 2, axis=(0, 1, 2), keepdims=True)
            y = (y - mean) * jax.lax.rsqrt(var + BN_EPS)
        if i < 4:
            x = jnp.where(y > 0, y, NEG_SLOPE * y).astype(jnp.bfloat16)
        else:
            x = 1.0 / (1.0 + jnp.exp(-y))
    return jnp.transpose(x, (0, 3, 1, 2)).astype(jnp.float32)


def init_params(key, num_disc_feat=64, color_channels=1):
    """Deterministic DCGAN-style init (normal, std=0.02). PyTorch conv weight shapes."""
    shapes = [
        (num_disc_feat,     color_channels,     4, 4),
        (num_disc_feat * 2, num_disc_feat,      4, 4),
        (num_disc_feat * 4, num_disc_feat * 2,  4, 4),
        (num_disc_feat * 8, num_disc_feat * 4,  4, 4),
        (1,                 num_disc_feat * 8,  4, 4),
    ]
    weights = []
    for s in shapes:
        key, sub = jax.random.split(key)
        weights.append(0.02 * jax.random.normal(sub, s, jnp.float32))
    return weights


if __name__ == "__main__":
    key = jax.random.PRNGKey(0)
    key_x, key_w = jax.random.split(key)

    # Architecture forces 64x64 spatial input (64->32->16->8->4->1).
    # Small feature width (numDiscFeat=16) for a quick synthetic run.
    batch, color_channels, spatial, ndf = 2, 1, 64, 16
    x = jax.random.normal(key_x, (batch, color_channels, spatial, spatial), jnp.float32)
    weights = init_params(key_w, num_disc_feat=ndf, color_channels=color_channels)

    # Hoisted, one-time weight preprocessing (transpose + pad to 128 lanes + bf16).
    w_pre = prepare_weights(weights)
    couts = tuple(int(w.shape[0]) for w in weights)

    fwd = jax.jit(discriminator_forward, static_argnums=(2,))
    out = jax.block_until_ready(fwd(x, w_pre, couts))

    ref = jax.block_until_ready(reference_forward(x, weights))
    assert out.shape == (batch, 1, 1, 1), out.shape
    assert bool(jnp.all(jnp.isfinite(out)))
    # bf16 inputs on both paths; residual diff is accumulation order + approx reciprocal.
    assert jnp.allclose(out, ref, atol=5e-3, rtol=5e-3), (out, ref)

    print("KERNEL_OK")
</pallas_src>

<mosaic_0001>
module attributes {stable_mosaic.version = 11 : i64} {
  func.func @_matmul_lrelu_kernel(%arg0: i32, %arg1: memref<512x16xbf16, #tpu.memory_space<vmem>>, %arg2: memref<16x128xbf16, #tpu.memory_space<vmem>>, %arg3: memref<512x128xbf16, #tpu.memory_space<vmem>>) attributes {dimension_semantics = [#tpu.dimension_semantics<parallel>], iteration_bounds = array<i64: 4>, scalar_prefetch = 0 : i64, scratch_operands = 0 : i64, tpu.core_type = #tpu.core_type<tc>, window_params = [{transform_indices = @transform_0, window_bounds = array<i64: 512, 16>}, {pipeline_mode = #tpu.pipeline_mode<synchronous>, transform_indices = @transform_1, window_bounds = array<i64: 16, 128>}, {transform_indices = @transform_2, window_bounds = array<i64: 512, 128>}]} {
    %c0 = arith.constant 0 : index
    %c0_0 = arith.constant 0 : index
    %0 = vector.load %arg1[%c0, %c0_0] : memref<512x16xbf16, #tpu.memory_space<vmem>>, vector<512x16xbf16>
    %c0_1 = arith.constant 0 : index
    %c0_2 = arith.constant 0 : index
    %1 = vector.load %arg2[%c0_1, %c0_2] : memref<16x128xbf16, #tpu.memory_space<vmem>>, vector<16x128xbf16>
    %cst = arith.constant dense<0.000000e+00> : vector<512x128xf32>
    %2 = tpu.matmul %0, %1, %cst {dimension_numbers = #tpu.dot_dimension_numbers<[1], [0], [0], [1], [0, 0, 1, 1], [], []>} : vector<512x16xbf16>, vector<16x128xbf16>, vector<512x128xf32> -> vector<512x128xf32>
    %cst_3 = arith.constant 0.000000e+00 : f32
    %3 = vector.broadcast %cst_3 : f32 to vector<512x128xf32>
    %4 = arith.cmpf ogt, %2, %3 : vector<512x128xf32>
    %cst_4 = arith.constant 2.000000e-01 : f32
    %5 = vector.broadcast %cst_4 : f32 to vector<512x128xf32>
    %6 = arith.mulf %5, %2 : vector<512x128xf32>
    %7 = arith.select %4, %2, %6 : vector<512x128xi1>, vector<512x128xf32>
    %8 = arith.truncf %7 : vector<512x128xf32> to vector<512x128xbf16>
    %c0_5 = arith.constant 0 : index
    %c0_6 = arith.constant 0 : index
    %9 = vector.load %arg3[%c0_5, %c0_6] : memref<512x128xbf16, #tpu.memory_space<vmem>>, vector<512x128xbf16>
    tpu.vector_store %arg3[%c0_5, %c0_6], %8 {strides = array<i32>} : memref<512x128xbf16, #tpu.memory_space<vmem>>, vector<512x128xbf16>,
    return
  }
  func.func @transform_0(%arg0: i32) -> (i32, i32) {
    %c0_i32 = arith.constant 0 : i32
    %c0_i32_0 = arith.constant 0 : i32
    return %arg0, %c0_i32 : i32, i32
  }
  func.func @transform_1(%arg0: i32) -> (i32, i32) {
    %c0_i32 = arith.constant 0 : i32
    %c0_i32_0 = arith.constant 0 : i32
    %c0_i32_1 = arith.constant 0 : i32
    return %c0_i32, %c0_i32_0 : i32, i32
  }
  func.func @transform_2(%arg0: i32) -> (i32, i32) {
    %c0_i32 = arith.constant 0 : i32
    %c0_i32_0 = arith.constant 0 : i32
    return %arg0, %c0_i32 : i32, i32
  }
}

module attributes {stable_mosaic.version = 11 : i64} {
  func.func @_matmul_bn_lrelu_kernel(%arg0: i32, %arg1: i32, %arg2: memref<512x256xbf16, #tpu.memory_space<vmem>>, %arg3: memref<256x128xbf16, #tpu.memory_space<vmem>>, %arg4: memref<512x128xbf16, #tpu.memory_space<vmem>>, %arg5: memref<1x128xf32, #tpu.memory_space<vmem>>, %arg6: memref<1x128xf32, #tpu.memory_space<vmem>>) attributes {dimension_semantics = [#tpu.dimension_semantics<arbitrary>, #tpu.dimension_semantics<arbitrary>], iteration_bounds = array<i64: 2, 1>, scalar_prefetch = 0 : i64, scratch_operands = 2 : i64, tpu.core_type = #tpu.core_type<tc>, window_params = [{transform_indices = @transform_0, window_bounds = array<i64: 512, 256>}, {pipeline_mode = #tpu.pipeline_mode<synchronous>, transform_indices = @transform_1, window_bounds = array<i64: 256, 128>}, {transform_indices = @transform_2, window_bounds = array<i64: 512, 128>}]} {
    %c0_i32 = arith.constant 0 : i32
    %0 = arith.cmpi eq, %arg0, %c0_i32 : i32
    %c0 = arith.constant 0 : index
    %c0_0 = arith.constant 0 : index
    %1 = vector.load %arg2[%c0, %c0_0] : memref<512x256xbf16, #tpu.memory_space<vmem>>, vector<512x256xbf16>
    %c0_1 = arith.constant 0 : index
    %c0_2 = arith.constant 0 : index
    %2 = vector.load %arg3[%c0_1, %c0_2] : memref<256x128xbf16, #tpu.memory_space<vmem>>, vector<256x128xbf16>
    %cst = arith.constant dense<0.000000e+00> : vector<512x128xf32>
    %3 = tpu.matmul %1, %2, %cst {dimension_numbers = #tpu.dot_dimension_numbers<[1], [0], [0], [1], [0, 0, 1, 1], [], []>} : vector<512x256xbf16>, vector<256x128xbf16>, vector<512x128xf32> -> vector<512x128xf32>
    %c0_i32_3 = arith.constant 0 : i32
    %4 = arith.cmpi eq, %arg1, %c0_i32_3 : i32
    %5 = arith.andi %0, %4 : i1
    %6 = arith.extui %5 : i1 to i32
    %c0_i32_4 = arith.constant 0 : i32
    %7 = arith.cmpi ne, %6, %c0_i32_4 : i32
    scf.if %7 {
      %cst_9 = arith.constant 0.000000e+00 : f32
      %17 = vector.broadcast %cst_9 : f32 to vector<1x128xf32>
      %c0_10 = arith.constant 0 : index
      %c0_11 = arith.constant 0 : index
      %18 = vector.load %arg5[%c0_10, %c0_11] : memref<1x128xf32, #tpu.memory_space<vmem>>, vector<1x128xf32>
      tpu.vector_store %arg5[%c0_10, %c0_11], %17 {strides = array<i32>} : memref<1x128xf32, #tpu.memory_space<vmem>>, vector<1x128xf32>,
      %cst_12 = arith.constant 0.000000e+00 : f32
      %19 = vector.broadcast %cst_12 : f32 to vector<1x128xf32>
      %c0_13 = arith.constant 0 : index
      %c0_14 = arith.constant 0 : index
      %20 = vector.load %arg6[%c0_13, %c0_14] : memref<1x128xf32, #tpu.memory_space<vmem>>, vector<1x128xf32>
      tpu.vector_store %arg6[%c0_13, %c0_14], %19 {strides = array<i32>} : memref<1x128xf32, #tpu.memory_space<vmem>>, vector<1x128xf32>,
    } else {
    }
    %8 = arith.extui %0 : i1 to i32
    %c0_i32_5 = arith.constant 0 : i32
    %9 = arith.cmpi ne, %8, %c0_i32_5 : i32
    scf.if %9 {
      %c0_9 = arith.constant 0 : index
      %c0_10 = arith.constant 0 : index
      %17 = vector.load %arg5[%c0_9, %c0_10] : memref<1x128xf32, #tpu.memory_space<vmem>>, vector<1x128xf32>
      %cst_11 = arith.constant dense<0.000000e+00> : vector<128xf32>
      %18 = vector.multi_reduction <add>, %3, %cst_11 [0] : vector<512x128xf32> to vector<128xf32>
      %19 = vector.shape_cast %18 : vector<128xf32> to vector<1x128xf32>
      %20 = arith.addf %17, %19 : vector<1x128xf32>
      %c0_12 = arith.constant 0 : index
      %c0_13 = arith.constant 0 : index
      %21 = vector.load %arg5[%c0_12, %c0_13] : memref<1x128xf32, #tpu.memory_space<vmem>>, vector<1x128xf32>
      tpu.vector_store %arg5[%c0_12, %c0_13], %20 {strides = array<i32>} : memref<1x128xf32, #tpu.memory_space<vmem>>, vector<1x128xf32>,
      %c0_14 = arith.constant 0 : index
      %c0_15 = arith.constant 0 : index
      %22 = vector.load %arg6[%c0_14, %c0_15] : memref<1x128xf32, #tpu.memory_space<vmem>>, vector<1x128xf32>
      %23 = arith.mulf %3, %3 : vector<512x128xf32>
      %cst_16 = arith.constant dense<0.000000e+00> : vector<128xf32>
      %24 = vector.multi_reduction <add>, %23, %cst_16 [0] : vector<512x128xf32> to vector<128xf32>
      %25 = vector.shape_cast %24 : vector<128xf32> to vector<1x128xf32>
      %26 = arith.addf %22, %25 : vector<1x128xf32>
      %c0_17 = arith.constant 0 : index
      %c0_18 = arith.constant 0 : index
      %27 = vector.load %arg6[%c0_17, %c0_18] : memref<1x128xf32, #tpu.memory_space<vmem>>, vector<1x128xf32>
      tpu.vector_store %arg6[%c0_17, %c0_18], %26 {strides = array<i32>} : memref<1x128xf32, #tpu.memory_space<vmem>>, vector<1x128xf32>,
    } else {
    }
    %c0_i32_6 = arith.constant 0 : i32
    %10 = arith.cmpi eq, %arg1, %c0_i32_6 : i32
    %11 = arith.andi %0, %10 : i1
    %12 = arith.extui %11 : i1 to i32
    %c0_i32_7 = arith.constant 0 : i32
    %13 = arith.cmpi ne, %12, %c0_i32_7 : i32
    scf.if %13 {
      %c0_9 = arith.constant 0 : index
      %c0_10 = arith.constant 0 : index
      %17 = vector.load %arg5[%c0_9, %c0_10] : memref<1x128xf32, #tpu.memory_space<vmem>>, vector<1x128xf32>
      %cst_11 = arith.constant 0.001953125 : f32
      %18 = vector.broadcast %cst_11 : f32 to vector<1x128xf32>
      %19 = arith.mulf %17, %18 : vector<1x128xf32>
      %c0_12 = arith.constant 0 : index
      %c0_13 = arith.constant 0 : index
      %20 = vector.load %arg6[%c0_12, %c0_13] : memref<1x128xf32, #tpu.memory_space<vmem>>, vector<1x128xf32>
      %cst_14 = arith.constant 0.001953125 : f32
      %21 = vector.broadcast %cst_14 : f32 to vector<1x128xf32>
      %22 = arith.mulf %20, %21 : vector<1x128xf32>
      %23 = arith.mulf %19, %19 : vector<1x128xf32>
      %24 = arith.subf %22, %23 : vector<1x128xf32>
      %cst_15 = arith.constant 0.000000e+00 : f32
      %25 = vector.broadcast %cst_15 : f32 to vector<1x128xf32>
      %26 = arith.maximumf %24, %25 : vector<1x128xf32>
      %c0_16 = arith.constant 0 : index
      %c0_17 = arith.constant 0 : index
      %27 = vector.load %arg5[%c0_16, %c0_17] : memref<1x128xf32, #tpu.memory_space<vmem>>, vector<1x128xf32>
      tpu.vector_store %arg5[%c0_16, %c0_17], %19 {strides = array<i32>} : memref<1x128xf32, #tpu.memory_space<vmem>>, vector<1x128xf32>,
      %cst_18 = arith.constant 9.99999974E-6 : f32
      %28 = vector.broadcast %cst_18 : f32 to vector<1x128xf32>
      %29 = arith.addf %26, %28 : vector<1x128xf32>
      %30 = math.rsqrt %29 : vector<1x128xf32>
      %c0_19 = arith.constant 0 : index
      %c0_20 = arith.constant 0 : index
      %31 = vector.load %arg6[%c0_19, %c0_20] : memref<1x128xf32, #tpu.memory_space<vmem>>, vector<1x128xf32>
      tpu.vector_store %arg6[%c0_19, %c0_20], %30 {strides = array<i32>} : memref<1x128xf32, #tpu.memory_space<vmem>>, vector<1x128xf32>,
    } else {
    }
    %true = arith.constant true
    %14 = arith.xori %0, %true : i1
    %15 = arith.extui %14 : i1 to i32
    %c0_i32_8 = arith.constant 0 : i32
    %16 = arith.cmpi ne, %15, %c0_i32_8 : i32
    scf.if %16 {
      %c0_9 = arith.constant 0 : index
      %c0_10 = arith.constant 0 : index
      %17 = vector.load %arg5[%c0_9, %c0_10] : memref<1x128xf32, #tpu.memory_space<vmem>>, vector<1x128xf32>
      %18 = vector.broadcast %17 : vector<1x128xf32> to vector<512x128xf32>
      %19 = arith.subf %3, %18 : vector<512x128xf32>
      %c0_11 = arith.constant 0 : index
      %c0_12 = arith.constant 0 : index
      %20 = vector.load %arg6[%c0_11, %c0_12] : memref<1x128xf32, #tpu.memory_space<vmem>>, vector<1x128xf32>
      %21 = vector.broadcast %20 : vector<1x128xf32> to vector<512x128xf32>
      %22 = arith.mulf %19, %21 : vector<512x128xf32>
      %cst_13 = arith.constant 0.000000e+00 : f32
      %23 = vector.broadcast %cst_13 : f32 to vector<512x128xf32>
      %24 = arith.cmpf ogt, %22, %23 : vector<512x128xf32>
      %cst_14 = arith.constant 2.000000e-01 : f32
      %25 = vector.broadcast %cst_14 : f32 to vector<512x128xf32>
      %26 = arith.mulf %25, %22 : vector<512x128xf32>
      %27 = arith.select %24, %22, %26 : vector<512x128xi1>, vector<512x128xf32>
      %28 = arith.truncf %27 : vector<512x128xf32> to vector<512x128xbf16>
      %c0_15 = arith.constant 0 : index
      %c0_16 = arith.constant 0 : index
      %29 = vector.load %arg4[%c0_15, %c0_16] : memref<512x128xbf16, #tpu.memory_space<vmem>>, vector<512x128xbf16>
      tpu.vector_store %arg4[%c0_15, %c0_16], %28 {strides = array<i32>} : memref<512x128xbf16, #tpu.memory_space<vmem>>, vector<512x128xbf16>,
    } else {
    }
    return
  }
  func.func @transform_0(%arg0: i32, %arg1: i32) -> (i32, i32) {
    %c0_i32 = arith.constant 0 : i32
    %c0_i32_0 = arith.constant 0 : i32
    return %arg1, %c0_i32 : i32, i32
  }
  func.func @transform_1(%arg0: i32, %arg1: i32) -> (i32, i32) {
    %c0_i32 = arith.constant 0 : i32
    %c0_i32_0 = arith.constant 0 : i32
    %c0_i32_1 = arith.constant 0 : i32
    return %c0_i32, %c0_i32_0 : i32, i32
  }
  func.func @transform_2(%arg0: i32, %arg1: i32) -> (i32, i32) {
    %c0_i32 = arith.constant 0 : i32
    %c0_i32_0 = arith.constant 0 : i32
    return %arg1, %c0_i32 : i32, i32
  }
}

module attributes {stable_mosaic.version = 11 : i64} {
  func.func @_matmul_bn_lrelu_kernel(%arg0: i32, %arg1: i32, %arg2: memref<128x512xbf16, #tpu.memory_space<vmem>>, %arg3: memref<512x128xbf16, #tpu.memory_space<vmem>>, %arg4: memref<128x128xbf16, #tpu.memory_space<vmem>>, %arg5: memref<1x128xf32, #tpu.memory_space<vmem>>, %arg6: memref<1x128xf32, #tpu.memory_space<vmem>>) attributes {dimension_semantics = [#tpu.dimension_semantics<arbitrary>, #tpu.dimension_semantics<arbitrary>], iteration_bounds = array<i64: 2, 1>, scalar_prefetch = 0 : i64, scratch_operands = 2 : i64, tpu.core_type = #tpu.core_type<tc>, window_params = [{transform_indices = @transform_0, window_bounds = array<i64: 128, 512>}, {pipeline_mode = #tpu.pipeline_mode<synchronous>, transform_indices = @transform_1, window_bounds = array<i64: 512, 128>}, {transform_indices = @transform_2, window_bounds = array<i64: 128, 128>}]} {
    %c0_i32 = arith.constant 0 : i32
    %0 = arith.cmpi eq, %arg0, %c0_i32 : i32
    %c0 = arith.constant 0 : index
    %c0_0 = arith.constant 0 : index
    %1 = vector.load %arg2[%c0, %c0_0] : memref<128x512xbf16, #tpu.memory_space<vmem>>, vector<128x512xbf16>
    %c0_1 = arith.constant 0 : index
    %c0_2 = arith.constant 0 : index
    %2 = vector.load %arg3[%c0_1, %c0_2] : memref<512x128xbf16, #tpu.memory_space<vmem>>, vector<512x128xbf16>
    %cst = arith.constant dense<0.000000e+00> : vector<128x128xf32>
    %3 = tpu.matmul %1, %2, %cst {dimension_numbers = #tpu.dot_dimension_numbers<[1], [0], [0], [1], [0, 0, 1, 1], [], []>} : vector<128x512xbf16>, vector<512x128xbf16>, vector<128x128xf32> -> vector<128x128xf32>
    %c0_i32_3 = arith.constant 0 : i32
    %4 = arith.cmpi eq, %arg1, %c0_i32_3 : i32
    %5 = arith.andi %0, %4 : i1
    %6 = arith.extui %5 : i1 to i32
    %c0_i32_4 = arith.constant 0 : i32
    %7 = arith.cmpi ne, %6, %c0_i32_4 : i32
    scf.if %7 {
      %cst_9 = arith.constant 0.000000e+00 : f32
      %17 = vector.broadcast %cst_9 : f32 to vector<1x128xf32>
      %c0_10 = arith.constant 0 : index
      %c0_11 = arith.constant 0 : index
      %18 = vector.load %arg5[%c0_10, %c0_11] : memref<1x128xf32, #tpu.memory_space<vmem>>, vector<1x128xf32>
      tpu.vector_store %arg5[%c0_10, %c0_11], %17 {strides = array<i32>} : memref<1x128xf32, #tpu.memory_space<vmem>>, vector<1x128xf32>,
      %cst_12 = arith.constant 0.000000e+00 : f32
      %19 = vector.broadcast %cst_12 : f32 to vector<1x128xf32>
      %c0_13 = arith.constant 0 : index
      %c0_14 = arith.constant 0 : index
      %20 = vector.load %arg6[%c0_13, %c0_14] : memref<1x128xf32, #tpu.memory_space<vmem>>, vector<1x128xf32>
      tpu.vector_store %arg6[%c0_13, %c0_14], %19 {strides = array<i32>} : memref<1x128xf32, #tpu.memory_space<vmem>>, vector<1x128xf32>,
    } else {
    }
    %8 = arith.extui %0 : i1 to i32
    %c0_i32_5 = arith.constant 0 : i32
    %9 = arith.cmpi ne, %8, %c0_i32_5 : i32
    scf.if %9 {
      %c0_9 = arith.constant 0 : index
      %c0_10 = arith.constant 0 : index
      %17 = vector.load %arg5[%c0_9, %c0_10] : memref<1x128xf32, #tpu.memory_space<vmem>>, vector<1x128xf32>
      %cst_11 = arith.constant dense<0.000000e+00> : vector<128xf32>
      %18 = vector.multi_reduction <add>, %3, %cst_11 [0] : vector<128x128xf32> to vector<128xf32>
      %19 = vector.shape_cast %18 : vector<128xf32> to vector<1x128xf32>
      %20 = arith.addf %17, %19 : vector<1x128xf32>
      %c0_12 = arith.constant 0 : index
      %c0_13 = arith.constant 0 : index
      %21 = vector.load %arg5[%c0_12, %c0_13] : memref<1x128xf32, #tpu.memory_space<vmem>>, vector<1x128xf32>
      tpu.vector_store %arg5[%c0_12, %c0_13], %20 {strides = array<i32>} : memref<1x128xf32, #tpu.memory_space<vmem>>, vector<1x128xf32>,
      %c0_14 = arith.constant 0 : index
      %c0_15 = arith.constant 0 : index
      %22 = vector.load %arg6[%c0_14, %c0_15] : memref<1x128xf32, #tpu.memory_space<vmem>>, vector<1x128xf32>
      %23 = arith.mulf %3, %3 : vector<128x128xf32>
      %cst_16 = arith.constant dense<0.000000e+00> : vector<128xf32>
      %24 = vector.multi_reduction <add>, %23, %cst_16 [0] : vector<128x128xf32> to vector<128xf32>
      %25 = vector.shape_cast %24 : vector<128xf32> to vector<1x128xf32>
      %26 = arith.addf %22, %25 : vector<1x128xf32>
      %c0_17 = arith.constant 0 : index
      %c0_18 = arith.constant 0 : index
      %27 = vector.load %arg6[%c0_17, %c0_18] : memref<1x128xf32, #tpu.memory_space<vmem>>, vector<1x128xf32>
      tpu.vector_store %arg6[%c0_17, %c0_18], %26 {strides = array<i32>} : memref<1x128xf32, #tpu.memory_space<vmem>>, vector<1x128xf32>,
    } else {
    }
    %c0_i32_6 = arith.constant 0 : i32
    %10 = arith.cmpi eq, %arg1, %c0_i32_6 : i32
    %11 = arith.andi %0, %10 : i1
    %12 = arith.extui %11 : i1 to i32
    %c0_i32_7 = arith.constant 0 : i32
    %13 = arith.cmpi ne, %12, %c0_i32_7 : i32
    scf.if %13 {
      %c0_9 = arith.constant 0 : index
      %c0_10 = arith.constant 0 : index
      %17 = vector.load %arg5[%c0_9, %c0_10] : memref<1x128xf32, #tpu.memory_space<vmem>>, vector<1x128xf32>
      %cst_11 = arith.constant 7.812500e-03 : f32
      %18 = vector.broadcast %cst_11 : f32 to vector<1x128xf32>
      %19 = arith.mulf %17, %18 : vector<1x128xf32>
      %c0_12 = arith.constant 0 : index
      %c0_13 = arith.constant 0 : index
      %20 = vector.load %arg6[%c0_12, %c0_13] : memref<1x128xf32, #tpu.memory_space<vmem>>, vector<1x128xf32>
      %cst_14 = arith.constant 7.812500e-03 : f32
      %21 = vector.broadcast %cst_14 : f32 to vector<1x128xf32>
      %22 = arith.mulf %20, %21 : vector<1x128xf32>
      %23 = arith.mulf %19, %19 : vector<1x128xf32>
      %24 = arith.subf %22, %23 : vector<1x128xf32>
      %cst_15 = arith.constant 0.000000e+00 : f32
      %25 = vector.broadcast %cst_15 : f32 to vector<1x128xf32>
      %26 = arith.maximumf %24, %25 : vector<1x128xf32>
      %c0_16 = arith.constant 0 : index
      %c0_17 = arith.constant 0 : index
      %27 = vector.load %arg5[%c0_16, %c0_17] : memref<1x128xf32, #tpu.memory_space<vmem>>, vector<1x128xf32>
      tpu.vector_store %arg5[%c0_16, %c0_17], %19 {strides = array<i32>} : memref<1x128xf32, #tpu.memory_space<vmem>>, vector<1x128xf32>,
      %cst_18 = arith.constant 9.99999974E-6 : f32
      %28 = vector.broadcast %cst_18 : f32 to vector<1x128xf32>
      %29 = arith.addf %26, %28 : vector<1x128xf32>
      %30 = math.rsqrt %29 : vector<1x128xf32>
      %c0_19 = arith.constant 0 : index
      %c0_20 = arith.constant 0 : index
      %31 = vector.load %arg6[%c0_19, %c0_20] : memref<1x128xf32, #tpu.memory_space<vmem>>, vector<1x128xf32>
      tpu.vector_store %arg6[%c0_19, %c0_20], %30 {strides = array<i32>} : memref<1x128xf32, #tpu.memory_space<vmem>>, vector<1x128xf32>,
    } else {
    }
    %true = arith.constant true
    %14 = arith.xori %0, %true : i1
    %15 = arith.extui %14 : i1 to i32
    %c0_i32_8 = arith.constant 0 : i32
    %16 = arith.cmpi ne, %15, %c0_i32_8 : i32
    scf.if %16 {
      %c0_9 = arith.constant 0 : index
      %c0_10 = arith.constant 0 : index
      %17 = vector.load %arg5[%c0_9, %c0_10] : memref<1x128xf32, #tpu.memory_space<vmem>>, vector<1x128xf32>
      %18 = vector.broadcast %17 : vector<1x128xf32> to vector<128x128xf32>
      %19 = arith.subf %3, %18 : vector<128x128xf32>
      %c0_11 = arith.constant 0 : index
      %c0_12 = arith.constant 0 : index
      %20 = vector.load %arg6[%c0_11, %c0_12] : memref<1x128xf32, #tpu.memory_space<vmem>>, vector<1x128xf32>
      %21 = vector.broadcast %20 : vector<1x128xf32> to vector<128x128xf32>
      %22 = arith.mulf %19, %21 : vector<128x128xf32>
      %cst_13 = arith.constant 0.000000e+00 : f32
      %23 = vector.broadcast %cst_13 : f32 to vector<128x128xf32>
      %24 = arith.cmpf ogt, %22, %23 : vector<128x128xf32>
      %cst_14 = arith.constant 2.000000e-01 : f32
      %25 = vector.broadcast %cst_14 : f32 to vector<128x128xf32>
      %26 = arith.mulf %25, %22 : vector<128x128xf32>
      %27 = arith.select %24, %22, %26 : vector<128x128xi1>, vector<128x128xf32>
      %28 = arith.truncf %27 : vector<128x128xf32> to vector<128x128xbf16>
      %c0_15 = arith.constant 0 : index
      %c0_16 = arith.constant 0 : index
      %29 = vector.load %arg4[%c0_15, %c0_16] : memref<128x128xbf16, #tpu.memory_space<vmem>>, vector<128x128xbf16>
      tpu.vector_store %arg4[%c0_15, %c0_16], %28 {strides = array<i32>} : memref<128x128xbf16, #tpu.memory_space<vmem>>, vector<128x128xbf16>,
    } else {
    }
    return
  }
  func.func @transform_0(%arg0: i32, %arg1: i32) -> (i32, i32) {
    %c0_i32 = arith.constant 0 : i32
    %c0_i32_0 = arith.constant 0 : i32
    return %arg1, %c0_i32 : i32, i32
  }
  func.func @transform_1(%arg0: i32, %arg1: i32) -> (i32, i32) {
    %c0_i32 = arith.constant 0 : i32
    %c0_i32_0 = arith.constant 0 : i32
    %c0_i32_1 = arith.constant 0 : i32
    return %c0_i32, %c0_i32_0 : i32, i32
  }
  func.func @transform_2(%arg0: i32, %arg1: i32) -> (i32, i32) {
    %c0_i32 = arith.constant 0 : i32
    %c0_i32_0 = arith.constant 0 : i32
    return %arg1, %c0_i32 : i32, i32
  }
}

module attributes {stable_mosaic.version = 11 : i64} {
  func.func @_matmul_bn_lrelu_kernel(%arg0: i32, %arg1: i32, %arg2: memref<32x1024xbf16, #tpu.memory_space<vmem>>, %arg3: memref<1024x128xbf16, #tpu.memory_space<vmem>>, %arg4: memref<32x128xbf16, #tpu.memory_space<vmem>>, %arg5: memref<1x128xf32, #tpu.memory_space<vmem>>, %arg6: memref<1x128xf32, #tpu.memory_space<vmem>>) attributes {dimension_semantics = [#tpu.dimension_semantics<arbitrary>, #tpu.dimension_semantics<arbitrary>], iteration_bounds = array<i64: 2, 1>, scalar_prefetch = 0 : i64, scratch_operands = 2 : i64, tpu.core_type = #tpu.core_type<tc>, window_params = [{transform_indices = @transform_0, window_bounds = array<i64: 32, 1024>}, {pipeline_mode = #tpu.pipeline_mode<synchronous>, transform_indices = @transform_1, window_bounds = array<i64: 1024, 128>}, {transform_indices = @transform_2, window_bounds = array<i64: 32, 128>}]} {
    %c0_i32 = arith.constant 0 : i32
    %0 = arith.cmpi eq, %arg0, %c0_i32 : i32
    %c0 = arith.constant 0 : index
    %c0_0 = arith.constant 0 : index
    %1 = vector.load %arg2[%c0, %c0_0] : memref<32x1024xbf16, #tpu.memory_space<vmem>>, vector<32x1024xbf16>
    %c0_1 = arith.constant 0 : index
    %c0_2 = arith.constant 0 : index
    %2 = vector.load %arg3[%c0_1, %c0_2] : memref<1024x128xbf16, #tpu.memory_space<vmem>>, vector<1024x128xbf16>
    %cst = arith.constant dense<0.000000e+00> : vector<32x128xf32>
    %3 = tpu.matmul %1, %2, %cst {dimension_numbers = #tpu.dot_dimension_numbers<[1], [0], [0], [1], [0, 0, 1, 1], [], []>} : vector<32x1024xbf16>, vector<1024x128xbf16>, vector<32x128xf32> -> vector<32x128xf32>
    %c0_i32_3 = arith.constant 0 : i32
    %4 = arith.cmpi eq, %arg1, %c0_i32_3 : i32
    %5 = arith.andi %0, %4 : i1
    %6 = arith.extui %5 : i1 to i32
    %c0_i32_4 = arith.constant 0 : i32
    %7 = arith.cmpi ne, %6, %c0_i32_4 : i32
    scf.if %7 {
      %cst_9 = arith.constant 0.000000e+00 : f32
      %17 = vector.broadcast %cst_9 : f32 to vector<1x128xf32>
      %c0_10 = arith.constant 0 : index
      %c0_11 = arith.constant 0 : index
      %18 = vector.load %arg5[%c0_10, %c0_11] : memref<1x128xf32, #tpu.memory_space<vmem>>, vector<1x128xf32>
      tpu.vector_store %arg5[%c0_10, %c0_11], %17 {strides = array<i32>} : memref<1x128xf32, #tpu.memory_space<vmem>>, vector<1x128xf32>,
      %cst_12 = arith.constant 0.000000e+00 : f32
      %19 = vector.broadcast %cst_12 : f32 to vector<1x128xf32>
      %c0_13 = arith.constant 0 : index
      %c0_14 = arith.constant 0 : index
      %20 = vector.load %arg6[%c0_13, %c0_14] : memref<1x128xf32, #tpu.memory_space<vmem>>, vector<1x128xf32>
      tpu.vector_store %arg6[%c0_13, %c0_14], %19 {strides = array<i32>} : memref<1x128xf32, #tpu.memory_space<vmem>>, vector<1x128xf32>,
    } else {
    }
    %8 = arith.extui %0 : i1 to i32
    %c0_i32_5 = arith.constant 0 : i32
    %9 = arith.cmpi ne, %8, %c0_i32_5 : i32
    scf.if %9 {
      %c0_9 = arith.constant 0 : index
      %c0_10 = arith.constant 0 : index
      %17 = vector.load %arg5[%c0_9, %c0_10] : memref<1x128xf32, #tpu.memory_space<vmem>>, vector<1x128xf32>
      %cst_11 = arith.constant dense<0.000000e+00> : vector<128xf32>
      %18 = vector.multi_reduction <add>, %3, %cst_11 [0] : vector<32x128xf32> to vector<128xf32>
      %19 = vector.shape_cast %18 : vector<128xf32> to vector<1x128xf32>
      %20 = arith.addf %17, %19 : vector<1x128xf32>
      %c0_12 = arith.constant 0 : index
      %c0_13 = arith.constant 0 : index
      %21 = vector.load %arg5[%c0_12, %c0_13] : memref<1x128xf32, #tpu.memory_space<vmem>>, vector<1x128xf32>
      tpu.vector_store %arg5[%c0_12, %c0_13], %20 {strides = array<i32>} : memref<1x128xf32, #tpu.memory_space<vmem>>, vector<1x128xf32>,
      %c0_14 = arith.constant 0 : index
      %c0_15 = arith.constant 0 : index
      %22 = vector.load %arg6[%c0_14, %c0_15] : memref<1x128xf32, #tpu.memory_space<vmem>>, vector<1x128xf32>
      %23 = arith.mulf %3, %3 : vector<32x128xf32>
      %cst_16 = arith.constant dense<0.000000e+00> : vector<128xf32>
      %24 = vector.multi_reduction <add>, %23, %cst_16 [0] : vector<32x128xf32> to vector<128xf32>
      %25 = vector.shape_cast %24 : vector<128xf32> to vector<1x128xf32>
      %26 = arith.addf %22, %25 : vector<1x128xf32>
      %c0_17 = arith.constant 0 : index
      %c0_18 = arith.constant 0 : index
      %27 = vector.load %arg6[%c0_17, %c0_18] : memref<1x128xf32, #tpu.memory_space<vmem>>, vector<1x128xf32>
      tpu.vector_store %arg6[%c0_17, %c0_18], %26 {strides = array<i32>} : memref<1x128xf32, #tpu.memory_space<vmem>>, vector<1x128xf32>,
    } else {
    }
    %c0_i32_6 = arith.constant 0 : i32
    %10 = arith.cmpi eq, %arg1, %c0_i32_6 : i32
    %11 = arith.andi %0, %10 : i1
    %12 = arith.extui %11 : i1 to i32
    %c0_i32_7 = arith.constant 0 : i32
    %13 = arith.cmpi ne, %12, %c0_i32_7 : i32
    scf.if %13 {
      %c0_9 = arith.constant 0 : index
      %c0_10 = arith.constant 0 : index
      %17 = vector.load %arg5[%c0_9, %c0_10] : memref<1x128xf32, #tpu.memory_space<vmem>>, vector<1x128xf32>
      %cst_11 = arith.constant 3.125000e-02 : f32
      %18 = vector.broadcast %cst_11 : f32 to vector<1x128xf32>
      %19 = arith.mulf %17, %18 : vector<1x128xf32>
      %c0_12 = arith.constant 0 : index
      %c0_13 = arith.constant 0 : index
      %20 = vector.load %arg6[%c0_12, %c0_13] : memref<1x128xf32, #tpu.memory_space<vmem>>, vector<1x128xf32>
      %cst_14 = arith.constant 3.125000e-02 : f32
      %21 = vector.broadcast %cst_14 : f32 to vector<1x128xf32>
      %22 = arith.mulf %20, %21 : vector<1x128xf32>
      %23 = arith.mulf %19, %19 : vector<1x128xf32>
      %24 = arith.subf %22, %23 : vector<1x128xf32>
      %cst_15 = arith.constant 0.000000e+00 : f32
      %25 = vector.broadcast %cst_15 : f32 to vector<1x128xf32>
      %26 = arith.maximumf %24, %25 : vector<1x128xf32>
      %c0_16 = arith.constant 0 : index
      %c0_17 = arith.constant 0 : index
      %27 = vector.load %arg5[%c0_16, %c0_17] : memref<1x128xf32, #tpu.memory_space<vmem>>, vector<1x128xf32>
      tpu.vector_store %arg5[%c0_16, %c0_17], %19 {strides = array<i32>} : memref<1x128xf32, #tpu.memory_space<vmem>>, vector<1x128xf32>,
      %cst_18 = arith.constant 9.99999974E-6 : f32
      %28 = vector.broadcast %cst_18 : f32 to vector<1x128xf32>
      %29 = arith.addf %26, %28 : vector<1x128xf32>
      %30 = math.rsqrt %29 : vector<1x128xf32>
      %c0_19 = arith.constant 0 : index
      %c0_20 = arith.constant 0 : index
      %31 = vector.load %arg6[%c0_19, %c0_20] : memref<1x128xf32, #tpu.memory_space<vmem>>, vector<1x128xf32>
      tpu.vector_store %arg6[%c0_19, %c0_20], %30 {strides = array<i32>} : memref<1x128xf32, #tpu.memory_space<vmem>>, vector<1x128xf32>,
    } else {
    }
    %true = arith.constant true
    %14 = arith.xori %0, %true : i1
    %15 = arith.extui %14 : i1 to i32
    %c0_i32_8 = arith.constant 0 : i32
    %16 = arith.cmpi ne, %15, %c0_i32_8 : i32
    scf.if %16 {
      %c0_9 = arith.constant 0 : index
      %c0_10 = arith.constant 0 : index
      %17 = vector.load %arg5[%c0_9, %c0_10] : memref<1x128xf32, #tpu.memory_space<vmem>>, vector<1x128xf32>
      %18 = vector.broadcast %17 : vector<1x128xf32> to vector<32x128xf32>
      %19 = arith.subf %3, %18 : vector<32x128xf32>
      %c0_11 = arith.constant 0 : index
      %c0_12 = arith.constant 0 : index
      %20 = vector.load %arg6[%c0_11, %c0_12] : memref<1x128xf32, #tpu.memory_space<vmem>>, vector<1x128xf32>
      %21 = vector.broadcast %20 : vector<1x128xf32> to vector<32x128xf32>
      %22 = arith.mulf %19, %21 : vector<32x128xf32>
      %cst_13 = arith.constant 0.000000e+00 : f32
      %23 = vector.broadcast %cst_13 : f32 to vector<32x128xf32>
      %24 = arith.cmpf ogt, %22, %23 : vector<32x128xf32>
      %cst_14 = arith.constant 2.000000e-01 : f32
      %25 = vector.broadcast %cst_14 : f32 to vector<32x128xf32>
      %26 = arith.mulf %25, %22 : vector<32x128xf32>
      %27 = arith.select %24, %22, %26 : vector<32x128xi1>, vector<32x128xf32>
      %28 = arith.truncf %27 : vector<32x128xf32> to vector<32x128xbf16>
      %c0_15 = arith.constant 0 : index
      %c0_16 = arith.constant 0 : index
      %29 = vector.load %arg4[%c0_15, %c0_16] : memref<32x128xbf16, #tpu.memory_space<vmem>>, vector<32x128xbf16>
      tpu.vector_store %arg4[%c0_15, %c0_16], %28 {strides = array<i32>} : memref<32x128xbf16, #tpu.memory_space<vmem>>, vector<32x128xbf16>,
    } else {
    }
    return
  }
  func.func @transform_0(%arg0: i32, %arg1: i32) -> (i32, i32) {
    %c0_i32 = arith.constant 0 : i32
    %c0_i32_0 = arith.constant 0 : i32
    return %arg1, %c0_i32 : i32, i32
  }
  func.func @transform_1(%arg0: i32, %arg1: i32) -> (i32, i32) {
    %c0_i32 = arith.constant 0 : i32
    %c0_i32_0 = arith.constant 0 : i32
    %c0_i32_1 = arith.constant 0 : i32
    return %c0_i32, %c0_i32_0 : i32, i32
  }
  func.func @transform_2(%arg0: i32, %arg1: i32) -> (i32, i32) {
    %c0_i32 = arith.constant 0 : i32
    %c0_i32_0 = arith.constant 0 : i32
    return %arg1, %c0_i32 : i32, i32
  }
}

module attributes {stable_mosaic.version = 11 : i64} {
  func.func @_matmul_sigmoid_kernel(%arg0: i32, %arg1: memref<2x2048xbf16, #tpu.memory_space<vmem>>, %arg2: memref<2048x128xbf16, #tpu.memory_space<vmem>>, %arg3: memref<2x128xf32, #tpu.memory_space<vmem>>) attributes {dimension_semantics = [#tpu.dimension_semantics<arbitrary>], iteration_bounds = array<i64: 1>, scalar_prefetch = 0 : i64, scratch_operands = 0 : i64, tpu.core_type = #tpu.core_type<tc>, window_params = [{pipeline_mode = #tpu.pipeline_mode<synchronous>, transform_indices = @transform_0, window_bounds = array<i64: 2, 2048>}, {pipeline_mode = #tpu.pipeline_mode<synchronous>, transform_indices = @transform_1, window_bounds = array<i64: 2048, 128>}, {pipeline_mode = #tpu.pipeline_mode<synchronous>, transform_indices = @transform_2, window_bounds = array<i64: 2, 128>}]} {
    %c0 = arith.constant 0 : index
    %c0_0 = arith.constant 0 : index
    %0 = vector.load %arg1[%c0, %c0_0] : memref<2x2048xbf16, #tpu.memory_space<vmem>>, vector<2x2048xbf16>
    %c0_1 = arith.constant 0 : index
    %c0_2 = arith.constant 0 : index
    %1 = vector.load %arg2[%c0_1, %c0_2] : memref<2048x128xbf16, #tpu.memory_space<vmem>>, vector<2048x128xbf16>
    %cst = arith.constant dense<0.000000e+00> : vector<2x128xf32>
    %2 = tpu.matmul %0, %1, %cst {dimension_numbers = #tpu.dot_dimension_numbers<[1], [0], [0], [1], [0, 0, 1, 1], [], []>} : vector<2x2048xbf16>, vector<2048x128xbf16>, vector<2x128xf32> -> vector<2x128xf32>
    %cst_3 = arith.constant 0.000000e+00 : f32
    %3 = vector.broadcast %cst_3 : f32 to vector<2x128xf32>
    %4 = arith.subf %3, %2 : vector<2x128xf32>
    %5 = math.exp %4 : vector<2x128xf32>
    %cst_4 = arith.constant 1.000000e+00 : f32
    %6 = vector.broadcast %cst_4 : f32 to vector<2x128xf32>
    %7 = arith.addf %6, %5 : vector<2x128xf32>
    %8 = tpu.reciprocal %7 {approx = true} : vector<2x128xf32> -> vector<2x128xf32>
    %c0_5 = arith.constant 0 : index
    %c0_6 = arith.constant 0 : index
    %9 = vector.load %arg3[%c0_5, %c0_6] : memref<2x128xf32, #tpu.memory_space<vmem>>, vector<2x128xf32>
    tpu.vector_store %arg3[%c0_5, %c0_6], %8 {strides = array<i32>} : memref<2x128xf32, #tpu.memory_space<vmem>>, vector<2x128xf32>,
    return
  }
  func.func @transform_0(%arg0: i32) -> (i32, i32) {
    %c0_i32 = arith.constant 0 : i32
    %c0_i32_0 = arith.constant 0 : i32
    %c0_i32_1 = arith.constant 0 : i32
    return %c0_i32, %c0_i32_0 : i32, i32
  }
  func.func @transform_1(%arg0: i32) -> (i32, i32) {
    %c0_i32 = arith.constant 0 : i32
    %c0_i32_0 = arith.constant 0 : i32
    %c0_i32_1 = arith.constant 0 : i32
    return %c0_i32, %c0_i32_0 : i32, i32
  }
  func.func @transform_2(%arg0: i32) -> (i32, i32) {
    %c0_i32 = arith.constant 0 : i32
    %c0_i32_0 = arith.constant 0 : i32
    %c0_i32_1 = arith.constant 0 : i32
    return %c0_i32, %c0_i32_0 : i32, i32
  }
}

</mosaic_0001>

<llo_original>
// kernel: discriminator_forward.5
$region0: #{discriminator_forward.5}
  #allocation0 [shape = 'u32[]', space=smem, size = 0x4, offset = 0x4, fixed_abs, tag = 'smem constant byte address 0x4 - core index']
  #allocation1 [shape = 'u32[144,128]{1,0:T(1,128)}', space=vmem, size = 0x12000, scoped, tag = 'internal scratch']
  %s0 = inlined_call_operand.vmem [shape: bf16[2048,16], index: 0, kind: input, shape index: {}]
  %s1 = inlined_call_operand.hbm [shape: bf16[16,128], index: 1, kind: input, shape index: {}]
  %s2 = inlined_call_operand.vmem [shape: bf16[2048,128], index: 2, kind: output, shape index: {}]
  %s3 = sld [smem:[#allocation0]]
  $region45: #{discriminator_forward.5} parent=0
    _
  %s5 = ssub.s32 1, %s3
  %s6 = scalar_select 0, %s5, %s3
  $region1: #{discriminator_forward.5} parent=0
    #allocation2 [shape = 'u8[4096]{0}', space=vmem, size = 0x1000, scoped, tag = 'input window, operand 1, single buffered']
    #allocation3 [shape = 's32[2]{0}', space=sflag, size = 0x8, scoped, tag = 'scoped memory for discriminator_forward.5']
    %7 = vsyncpa [#allocation3], 0
    loop: start=0, step=1, limit=6
    $region2: #{discriminator_forward.5} parent=1 // loop_pre_header
      _
    $region3: #{discriminator_forward.5} parent=1 // loop_header
      %s9 = sphi 0, %s13
      %p10 = scmp.ge.s32.totalorder %s9, 6
      %s19 = sphi 0, %s21
      %s22 = sphi 0, %s19
      %s23 = sphi 0, %s22
      %s39 = sphi 0, %s23
      %s43 = sphi 0, %s43
      %s45 = sphi 0, %s43
      %s46 = sphi 0, %s45
      %s60 = sphi 0, %s46
      %s66 = sphi 0, %s68
      %s69 = sphi 0, %s66
      %s70 = sphi 0, %s69
      %s86 = sphi 0, %s70
    $region4: #{discriminator_forward.5} parent=1 // loop_header_branch
      %12 = sbr.rel (%p10) target = $region8
    $region5: #{discriminator_forward.5} parent=1 // loop_body
      %s14 = ssub.s32 %s9, 1
      %s15 = ssub.s32 %s9, 2
      %s16 = sadd.s32 %s9, 1
      %s17 = ssub.s32 %s9, %s16
      %p18 = scmp.eq.s32.totalorder %s17, 0
      %s20 = sadd.s32 %s19, 1
      %s21 = scalar_select %p18, %s19, %s20
      %p24 = pneg %p18
      %p25 = scmp.eq.s32.totalorder %s9, 3
      %p26 = por %p24, %p25
      %p27 = scmp.ne.s32.totalorder %s19, %s22
      %p28 = scmp.eq.s32.totalorder %s9, 0
      %p29 = por %p27, %p28
      %p30 = scmp.ne.s32.totalorder %s19, %s22
      %p31 = scmp.eq.s32.totalorder %s14, 3
      %p32 = por %p30, %p31
      %p33 = scmp.ne.s32.totalorder %s22, %s23
      %p34 = scmp.eq.s32.totalorder %s14, 0
      %p35 = por %p33, %p34
      %p36 = scmp.ne.s32.totalorder %s22, %s23
      %p37 = scmp.eq.s32.totalorder %s15, 3
      %p38 = por %p36, %p37
      %p40 = scmp.ne.s32.totalorder %s23, %s39
      %p41 = scmp.eq.s32.totalorder %s15, 0
      %p42 = por %p40, %p41
      %s44 = sadd.s32 %s43, 1
      %p47 = scmp.eq.s32.totalorder %s9, 3
      %p48 = scmp.ne.s32.totalorder %s43, %s45
      %p49 = scmp.eq.s32.totalorder %s9, 0
      %p50 = por %p48, %p49
      %p51 = scmp.ne.s32.totalorder %s43, %s45
      %p52 = scmp.eq.s32.totalorder %s14, 3
      %p53 = por %p51, %p52
      %p54 = scmp.ne.s32.totalorder %s45, %s46
      %p55 = scmp.eq.s32.totalorder %s14, 0
      %p56 = por %p54, %p55
      %p57 = scmp.ne.s32.totalorder %s45, %s46
      %p58 = scmp.eq.s32.totalorder %s15, 3
      %p59 = por %p57, %p58
      %p61 = scmp.ne.s32.totalorder %s46, %s60
      %p62 = scmp.eq.s32.totalorder %s15, 0
      %p63 = por %p61, %p62
      %s64 = ssub.s32 %s9, %s16
      %p65 = scmp.eq.s32.totalorder %s64, 0
      %s67 = sadd.s32 %s66, 1
      %s68 = scalar_select %p65, %s66, %s67
      %p71 = pneg %p65
      %p72 = scmp.eq.s32.totalorder %s9, 3
      %p73 = por %p71, %p72
      %p74 = scmp.ne.s32.totalorder %s66, %s69
      %p75 = scmp.eq.s32.totalorder %s9, 0
      %p76 = por %p74, %p75
      %p77 = scmp.ne.s32.totalorder %s66, %s69
      %p78 = scmp.eq.s32.totalorder %s14, 3
      %p79 = por %p77, %p78
      %p80 = scmp.ne.s32.totalorder %s69, %s70
      %p81 = scmp.eq.s32.totalorder %s14, 0
      %p82 = por %p80, %p81
      %p83 = scmp.ne.s32.totalorder %s69, %s70
      %p84 = scmp.eq.s32.totalorder %s15, 3
      %p85 = por %p83, %p84
      %p87 = scmp.ne.s32.totalorder %s70, %s86
      %p88 = scmp.eq.s32.totalorder %s15, 0
      %p89 = por %p87, %p88
      %p90 = scmp.le.s32.totalorder 1, %s9
      %p91 = scmp.lt.s32.totalorder %s9, 5
      %p92 = pnand %p90, %p91
      %p93 = pneg %p92
      // Predicated region
      $region9: #{discriminator_forward.5} parent=5 // pred_check
        _
      $region10: #{discriminator_forward.5} parent=5 // pred_check_branch
        %95 = sbr.rel (%p92) target = $region12
      $region11: #{discriminator_forward.5} parent=5 // pred_region
        %s96 = ssub.s32 %s9, 1
        // Predicated region
        $region13: #{discriminator_forward.5} parent=11 // pred_check
          %p97 = pneg %p56
        $region14: #{discriminator_forward.5} parent=11 // pred_check_branch
          %99 = sbr.rel (%p97) target = $region16
        $region15: #{discriminator_forward.5} parent=11 // pred_region
          %s101 = ssub.s32 128, 128
          %102 = vsyncadd [#allocation3], %s101
          %s103 = sshll.u32 [#allocation2], 4
          %s104 = int_to_ptr.vmem [resolvable:$true] %s103
          %109 = dma.hbm_to_vmem [thread:$0]  %s1, 128, %s104, [#allocation3], 64, 64, 4
        $region16: #{discriminator_forward.5} parent=11 // pred_fallthru
          _
      $region12: #{discriminator_forward.5} parent=5 // pred_fallthru
        _
      %p110 = scmp.lt.s32.totalorder %s9, 4
      // Predicated region
      $region17: #{discriminator_forward.5} parent=5 // pred_check
        %p111 = pneg %p110
      $region18: #{discriminator_forward.5} parent=5 // pred_check_branch
        %113 = sbr.rel (%p111) target = $region20
      $region19: #{discriminator_forward.5} parent=5 // pred_region
        // Predicated region
        $region21: #{discriminator_forward.5} parent=19 // pred_check
          %p114 = pneg %p29
        $region22: #{discriminator_forward.5} parent=19 // pred_check_branch
          %116 = sbr.rel (%p114) target = $region24
        $region23: #{discriminator_forward.5} parent=19 // pred_region
          %s117 = smul.u32 64, %s9
          %p118 = scmp.lt.s32.totalorder %s117, 255
          %s119 = scalar_select %p118, %s117, 255
          %s120 = smul.addr %s119, 4
          %s121 = scalar_lea.vmem %s0, %s120
          %s122 = smul.u32 64, %s9
        $region24: #{discriminator_forward.5} parent=19 // pred_fallthru
          _
      $region20: #{discriminator_forward.5} parent=5 // pred_fallthru
        _
      %p123 = scmp.le.s32.totalorder 1, %s9
      %p124 = scmp.lt.s32.totalorder %s9, 5
      %p125 = pnand %p123, %p124
      %p126 = pneg %p125
      // Predicated region
      $region25: #{discriminator_forward.5} parent=5 // pred_check
        _
      $region26: #{discriminator_forward.5} parent=5 // pred_check_branch
        %128 = sbr.rel (%p125) target = $region28
      $region27: #{discriminator_forward.5} parent=5 // pred_region
        %s129 = ssub.s32 %s9, 1
        // Predicated region
        $region29: #{discriminator_forward.5} parent=27 // pred_check
          %p130 = pneg %p56
        $region30: #{discriminator_forward.5} parent=27 // pred_check_branch
          %132 = sbr.rel (%p130) target = $region32
        $region31: #{discriminator_forward.5} parent=27 // pred_region
          %133 = dma.done [#allocation3], 128
        $region32: #{discriminator_forward.5} parent=27 // pred_fallthru
          _
        %s134 = smul.u32 64, %s14
        %p135 = scmp.lt.s32.totalorder %s134, 255
        %s136 = scalar_select %p135, %s134, 255
        %s137 = smul.addr %s136, 4
        %s138 = scalar_lea.vmem %s0, %s137
        %p139 = pneg %p35
        %p140 = pneg %p32
        %p141 = pneg %p56
        %p142 = pneg %p53
        %p143 = pneg %p82
        %p144 = pneg %p79
        %s145 = smul.u32 64, %s14
        %p146 = scmp.lt.s32.totalorder %s145, 255
        %s147 = scalar_select %p146, %s145, 255
        %s148 = smul.addr %s147, 4
        %s149 = scalar_lea.vmem %s2, %s148
        %s150 = smul.u32 64, %s14
        %p151 = scmp.lt.s32.totalorder %s150, 255
        %s152 = scalar_select %p151, %s150, 255
        %s153 = smul.addr %s152, 4
        %s154 = scalar_lea.vmem %s0, %s153
        %s155 = smul.u32 64, %s14
        %s156 = smul.u32 64, %s14
        %p157 = scmp.lt.s32.totalorder %s156, 255
        %s158 = scalar_select %p157, %s156, 255
        %s159 = smul.addr %s158, 4
        %s160 = scalar_lea.vmem %s2, %s159
        %s161 = smul.u32 64, %s14
        %v163 = vld [vmem:[%s154] sm:$0xf]
        %v164 = vld [vmem:[%s154 + $0x4] sm:$0xf]
        %v165 = vld [vmem:[%s154 + $0x8] sm:$0xf]
        %v166 = vld [vmem:[%s154 + $0xc] sm:$0xf]
        %v167 = vld [vmem:[%s154 + $0x10] sm:$0xf]
        %v168 = vld [vmem:[%s154 + $0x14] sm:$0xf]
        %v169 = vld [vmem:[%s154 + $0x18] sm:$0xf]
        %v170 = vld [vmem:[%s154 + $0x1c] sm:$0xf]
        %v171 = vld [vmem:[%s154 + $0x20] sm:$0xf]
        %v172 = vld [vmem:[%s154 + $0x24] sm:$0xf]
        %v173 = vld [vmem:[%s154 + $0x28] sm:$0xf]
        %v174 = vld [vmem:[%s154 + $0x2c] sm:$0xf]
        %v175 = vld [vmem:[%s154 + $0x30] sm:$0xf]
        %v176 = vld [vmem:[%s154 + $0x34] sm:$0xf]
        %v177 = vld [vmem:[%s154 + $0x38] sm:$0xf]
        %v178 = vld [vmem:[%s154 + $0x3c] sm:$0xf]
        %v179 = vld [vmem:[%s154 + $0x40] sm:$0xf]
        %v180 = vld [vmem:[%s154 + $0x44] sm:$0xf]
        %v181 = vld [vmem:[%s154 + $0x48] sm:$0xf]
        %v182 = vld [vmem:[%s154 + $0x4c] sm:$0xf]
        %v183 = vld [vmem:[%s154 + $0x50] sm:$0xf]
        %v184 = vld [vmem:[%s154 + $0x54] sm:$0xf]
        %v185 = vld [vmem:[%s154 + $0x58] sm:$0xf]
        %v186 = vld [vmem:[%s154 + $0x5c] sm:$0xf]
        %v187 = vld [vmem:[%s154 + $0x60] sm:$0xf]
        %v188 = vld [vmem:[%s154 + $0x64] sm:$0xf]
        %v189 = vld [vmem:[%s154 + $0x68] sm:$0xf]
        %v190 = vld [vmem:[%s154 + $0x6c] sm:$0xf]
        %v191 = vld [vmem:[%s154 + $0x70] sm:$0xf]
        %v192 = vld [vmem:[%s154 + $0x74] sm:$0xf]
        %v193 = vld [vmem:[%s154 + $0x78] sm:$0xf]
        %v194 = vld [vmem:[%s154 + $0x7c] sm:$0xf]
        %v195 = vld [vmem:[%s154 + $0x80] sm:$0xf]
        %v196 = vld [vmem:[%s154 + $0x84] sm:$0xf]
        %v197 = vld [vmem:[%s154 + $0x88] sm:$0xf]
        %v198 = vld [vmem:[%s154 + $0x8c] sm:$0xf]
        %v199 = vld [vmem:[%s154 + $0x90] sm:$0xf]
        %v200 = vld [vmem:[%s154 + $0x94] sm:$0xf]
        %v201 = vld [vmem:[%s154 + $0x98] sm:$0xf]
        %v202 = vld [vmem:[%s154 + $0x9c] sm:$0xf]
        %v203 = vld [vmem:[%s154 + $0xa0] sm:$0xf]
        %v204 = vld [vmem:[%s154 + $0xa4] sm:$0xf]
        %v205 = vld [vmem:[%s154 + $0xa8] sm:$0xf]
        %v206 = vld [vmem:[%s154 + $0xac] sm:$0xf]
        %v207 = vld [vmem:[%s154 + $0xb0] sm:$0xf]
        %v208 = vld [vmem:[%s154 + $0xb4] sm:$0xf]
        %v209 = vld [vmem:[%s154 + $0xb8] sm:$0xf]
        %v210 = vld [vmem:[%s154 + $0xbc] sm:$0xf]
        %v211 = vld [vmem:[%s154 + $0xc0] sm:$0xf]
        %v212 = vld [vmem:[%s154 + $0xc4] sm:$0xf]
        %v213 = vld [vmem:[%s154 + $0xc8] sm:$0xf]
        %v214 = vld [vmem:[%s154 + $0xcc] sm:$0xf]
        %v215 = vld [vmem:[%s154 + $0xd0] sm:$0xf]
        %v216 = vld [vmem:[%s154 + $0xd4] sm:$0xf]
        %v217 = vld [vmem:[%s154 + $0xd8] sm:$0xf]
        %v218 = vld [vmem:[%s154 + $0xdc] sm:$0xf]
        %v219 = vld [vmem:[%s154 + $0xe0] sm:$0xf]
        %v220 = vld [vmem:[%s154 + $0xe4] sm:$0xf]
        %v221 = vld [vmem:[%s154 + $0xe8] sm:$0xf]
        %v222 = vld [vmem:[%s154 + $0xec] sm:$0xf]
        %v223 = vld [vmem:[%s154 + $0xf0] sm:$0xf]
        %v224 = vld [vmem:[%s154 + $0xf4] sm:$0xf]
        %v225 = vld [vmem:[%s154 + $0xf8] sm:$0xf]
        %v226 = vld [vmem:[%s154 + $0xfc] sm:$0xf]
        %v227 = vld [vmem:[#allocation2] sm:$0xf]
        %v228 = vld [vmem:[#allocation2 + $0x4] sm:$0xf]
        %v293 = vunpack.c.l.b16 %v163
        %v294 = vunpack.c.l.b16 %v164
        %v295 = vunpack.c.l.b16 %v165
        %v296 = vunpack.c.l.b16 %v166
        %v297 = vunpack.c.l.b16 %v167
        %v298 = vunpack.c.l.b16 %v168
        %v299 = vunpack.c.l.b16 %v169
        %v300 = vunpack.c.l.b16 %v170
        %v301 = vunpack.c.l.b16 %v171
        %v302 = vunpack.c.l.b16 %v172
        %v303 = vunpack.c.l.b16 %v173
        %v304 = vunpack.c.l.b16 %v174
        %v305 = vunpack.c.l.b16 %v175
        %v306 = vunpack.c.l.b16 %v176
        %v307 = vunpack.c.l.b16 %v177
        %v308 = vunpack.c.l.b16 %v178
        %v309 = vunpack.c.l.b16 %v179
        %v310 = vunpack.c.l.b16 %v180
        %v311 = vunpack.c.l.b16 %v181
        %v312 = vunpack.c.l.b16 %v182
        %v313 = vunpack.c.l.b16 %v183
        %v314 = vunpack.c.l.b16 %v184
        %v315 = vunpack.c.l.b16 %v185
        %v316 = vunpack.c.l.b16 %v186
        %v317 = vunpack.c.l.b16 %v187
        %v318 = vunpack.c.l.b16 %v188
        %v319 = vunpack.c.l.b16 %v189
        %v320 = vunpack.c.l.b16 %v190
        %v321 = vunpack.c.l.b16 %v191
        %v322 = vunpack.c.l.b16 %v192
        %v323 = vunpack.c.l.b16 %v193
        %v324 = vunpack.c.l.b16 %v194
        %v325 = vunpack.c.l.b16 %v195
        %v326 = vunpack.c.l.b16 %v196
        %v327 = vunpack.c.l.b16 %v197
        %v328 = vunpack.c.l.b16 %v198
        %v329 = vunpack.c.l.b16 %v199
        %v330 = vunpack.c.l.b16 %v200
        %v331 = vunpack.c.l.b16 %v201
        %v332 = vunpack.c.l.b16 %v202
        %v333 = vunpack.c.l.b16 %v203
        %v334 = vunpack.c.l.b16 %v204
        %v335 = vunpack.c.l.b16 %v205
        %v336 = vunpack.c.l.b16 %v206
        %v337 = vunpack.c.l.b16 %v207
        %v338 = vunpack.c.l.b16 %v208
        %v339 = vunpack.c.l.b16 %v209
        %v340 = vunpack.c.l.b16 %v210
        %v341 = vunpack.c.l.b16 %v211
        %v342 = vunpack.c.l.b16 %v212
        %v343 = vunpack.c.l.b16 %v213
        %v344 = vunpack.c.l.b16 %v214
        %v345 = vunpack.c.l.b16 %v215
        %v346 = vunpack.c.l.b16 %v216
        %v347 = vunpack.c.l.b16 %v217
        %v348 = vunpack.c.l.b16 %v218
        %v349 = vunpack.c.l.b16 %v219
        %v350 = vunpack.c.l.b16 %v220
        %v351 = vunpack.c.l.b16 %v221
        %v352 = vunpack.c.l.b16 %v222
        %v353 = vunpack.c.l.b16 %v223
        %v354 = vunpack.c.l.b16 %v224
        %v355 = vunpack.c.l.b16 %v225
        %v356 = vunpack.c.l.b16 %v226
        %v357 = vpack.c.b16 %v294, %v293
        %v358 = vpack.c.b16 %v296, %v295
        %v359 = vpack.c.b16 %v298, %v297
        %v360 = vpack.c.b16 %v300, %v299
        %v361 = vpack.c.b16 %v302, %v301
        %v362 = vpack.c.b16 %v304, %v303
        %v363 = vpack.c.b16 %v306, %v305
        %v364 = vpack.c.b16 %v308, %v307
        %v365 = vpack.c.b16 %v310, %v309
        %v366 = vpack.c.b16 %v312, %v311
        %v367 = vpack.c.b16 %v314, %v313
        %v368 = vpack.c.b16 %v316, %v315
        %v369 = vpack.c.b16 %v318, %v317
        %v370 = vpack.c.b16 %v320, %v319
        %v371 = vpack.c.b16 %v322, %v321
        %v372 = vpack.c.b16 %v324, %v323
        %v373 = vpack.c.b16 %v326, %v325
        %v374 = vpack.c.b16 %v328, %v327
        %v375 = vpack.c.b16 %v330, %v329
        %v376 = vpack.c.b16 %v332, %v331
        %v377 = vpack.c.b16 %v334, %v333
        %v378 = vpack.c.b16 %v336, %v335
        %v379 = vpack.c.b16 %v338, %v337
        %v380 = vpack.c.b16 %v340, %v339
        %v381 = vpack.c.b16 %v342, %v341
        %v382 = vpack.c.b16 %v344, %v343
        %v383 = vpack.c.b16 %v346, %v345
        %v384 = vpack.c.b16 %v348, %v347
        %v385 = vpack.c.b16 %v350, %v349
        %v386 = vpack.c.b16 %v352, %v351
        %v387 = vpack.c.b16 %v354, %v353
        %v388 = vpack.c.b16 %v356, %v355
        %v391 = vunpack.c.l.b16 %v227
        %v392 = vunpack.c.l.b16 %v228
        %v393 = vpack.c.b16 %v392, %v391
        %vm395 = vcmask 130048
        %v397 = vsel %vm395, %v357, 0
        %v400 = vsel %vm395, %v358, 0
        %v403 = vsel %vm395, %v359, 0
        %v406 = vsel %vm395, %v360, 0
        %v409 = vsel %vm395, %v361, 0
        %v412 = vsel %vm395, %v362, 0
        %v415 = vsel %vm395, %v363, 0
        %v418 = vsel %vm395, %v364, 0
        %v421 = vsel %vm395, %v365, 0
        %v424 = vsel %vm395, %v366, 0
        %v427 = vsel %vm395, %v367, 0
        %v430 = vsel %vm395, %v368, 0
        %v433 = vsel %vm395, %v369, 0
        %v436 = vsel %vm395, %v370, 0
        %v439 = vsel %vm395, %v371, 0
        %v442 = vsel %vm395, %v372, 0
        %v445 = vsel %vm395, %v373, 0
        %v448 = vsel %vm395, %v374, 0
        %v451 = vsel %vm395, %v375, 0
        %v454 = vsel %vm395, %v376, 0
        %v457 = vsel %vm395, %v377, 0
        %v460 = vsel %vm395, %v378, 0
        %v463 = vsel %vm395, %v379, 0
        %v466 = vsel %vm395, %v380, 0
        %v469 = vsel %vm395, %v381, 0
        %v472 = vsel %vm395, %v382, 0
        %v475 = vsel %vm395, %v383, 0
        %v478 = vsel %vm395, %v384, 0
        %v481 = vsel %vm395, %v385, 0
        %v484 = vsel %vm395, %v386, 0
        %v487 = vsel %vm395, %v387, 0
        %v490 = vsel %vm395, %v388, 0
        %492 = vmatprep.subr.bf16.mxu0 0
        %493 = vmatpush1.bf16.msra.mxu0 %v393
        %494 = vmatprep.subr.bf16.mxu0 0
        %495 = vmatpush1.bf16.msra.mxu0 0
        %496 = vmatprep.subr.bf16.mxu0 0
        %497 = vmatpush1.bf16.msra.mxu0 0
        %498 = vmatprep.subr.bf16.mxu0 0
        %499 = vmatpush1.bf16.msra.mxu0 0
        %500 = vmatprep.subr.bf16.mxu0 0
        %501 = vmatpush1.bf16.msra.mxu0 0
        %502 = vmatprep.subr.bf16.mxu0 0
        %503 = vmatpush1.bf16.msra.mxu0 0
        %504 = vmatprep.subr.bf16.mxu0 0
        %505 = vmatpush1.bf16.msra.mxu0 0
        %506 = vmatprep.subr.bf16.mxu0 0
        %507 = vmatpush1.bf16.msra.mxu0 0
        %508 = vmatprep.subr.bf16.mxu0 0
        %509 = vmatpush1.bf16.msra.mxu0 0
        %510 = vmatprep.subr.bf16.mxu0 0
        %511 = vmatpush1.bf16.msra.mxu0 0
        %512 = vmatprep.subr.bf16.mxu0 0
        %513 = vmatpush1.bf16.msra.mxu0 0
        %514 = vmatprep.subr.bf16.mxu0 0
        %515 = vmatpush1.bf16.msra.mxu0 0
        %516 = vmatprep.subr.bf16.mxu0 0
        %517 = vmatpush1.bf16.msra.mxu0 0
        %518 = vmatprep.subr.bf16.mxu0 0
        %519 = vmatpush1.bf16.msra.mxu0 0
        %520 = vmatprep.subr.bf16.mxu0 0
        %521 = vmatpush1.bf16.msra.mxu0 0
        %522 = vmatprep.subr.bf16.mxu0 0
        %523 = vmatpush1.bf16.msra.mxu0 0
        %524 = vmatprep.mubr.bf16.mxu0 0
        %525 = vmatmul.mubr.bf16.gmra.mrb[0].mxu0 %v397
        %v526 = vpop.f32.mrb[0].mxu0
        %v527 = vadd.f32 0.0, %v526
        %v528 = vpop.f32.mrb[0].mxu0
        %v529 = vpop.f32.mrb[0].mxu0
        %v530 = vadd.f32 0.0, %v529
        %v531 = vpop.f32.mrb[0].mxu0
        %532 = vmatprep.mubr.bf16.mxu0 0
        %533 = vmatmul.mubr.bf16.gmra.mrb[0].mxu0 %v400
        %v534 = vpop.f32.mrb[0].mxu0
        %v535 = vadd.f32 0.0, %v534
        %v536 = vpop.f32.mrb[0].mxu0
        %v537 = vpop.f32.mrb[0].mxu0
        %v538 = vadd.f32 0.0, %v537
        %v539 = vpop.f32.mrb[0].mxu0
        %540 = vmatprep.mubr.bf16.mxu0 0
        %541 = vmatmul.mubr.bf16.gmra.mrb[0].mxu0 %v403
        %v542 = vpop.f32.mrb[0].mxu0
        %v543 = vadd.f32 0.0, %v542
        %v544 = vpop.f32.mrb[0].mxu0
        %v545 = vpop.f32.mrb[0].mxu0
        %v546 = vadd.f32 0.0, %v545
        %v547 = vpop.f32.mrb[0].mxu0
        %548 = vmatprep.mubr.bf16.mxu0 0
        %549 = vmatmul.mubr.bf16.gmra.mrb[0].mxu0 %v406
        %v550 = vpop.f32.mrb[0].mxu0
        %v551 = vadd.f32 0.0, %v550
        %v552 = vpop.f32.mrb[0].mxu0
        %v553 = vpop.f32.mrb[0].mxu0
        %v554 = vadd.f32 0.0, %v553
        %v555 = vpop.f32.mrb[0].mxu0
        %556 = vmatprep.mubr.bf16.mxu0 0
        %557 = vmatmul.mubr.bf16.gmra.mrb[0].mxu0 %v409
        %v558 = vpop.f32.mrb[0].mxu0
        %v559 = vadd.f32 0.0, %v558
        %v560 = vpop.f32.mrb[0].mxu0
        %v561 = vpop.f32.mrb[0].mxu0
        %v562 = vadd.f32 0.0, %v561
        %v563 = vpop.f32.mrb[0].mxu0
        %564 = vmatprep.mubr.bf16.mxu0 0
        %565 = vmatmul.mubr.bf16.gmra.mrb[0].mxu0 %v412
        %v566 = vpop.f32.mrb[0].mxu0
        %v567 = vadd.f32 0.0, %v566
        %v568 = vpop.f32.mrb[0].mxu0
        %v569 = vpop.f32.mrb[0].mxu0
        %v570 = vadd.f32 0.0, %v569
        %v571 = vpop.f32.mrb[0].mxu0
        %572 = vmatprep.mubr.bf16.mxu0 0
        %573 = vmatmul.mubr.bf16.gmra.mrb[0].mxu0 %v415
        %v574 = vpop.f32.mrb[0].mxu0
        %v575 = vadd.f32 0.0, %v574
        %v576 = vpop.f32.mrb[0].mxu0
        %v577 = vpop.f32.mrb[0].mxu0
        %v578 = vadd.f32 0.0, %v577
        %v579 = vpop.f32.mrb[0].mxu0
        %580 = vmatprep.mubr.bf16.mxu0 0
        %581 = vmatmul.mubr.bf16.gmra.mrb[0].mxu0 %v418
        %v582 = vpop.f32.mrb[0].mxu0
        %v583 = vadd.f32 0.0, %v582
        %v584 = vpop.f32.mrb[0].mxu0
        %v585 = vpop.f32.mrb[0].mxu0
        %v586 = vadd.f32 0.0, %v585
        %v587 = vpop.f32.mrb[0].mxu0
        %588 = vmatprep.mubr.bf16.mxu0 0
        %589 = vmatmul.mubr.bf16.gmra.mrb[0].mxu0 %v421
        %v590 = vpop.f32.mrb[0].mxu0
        %v591 = vadd.f32 0.0, %v590
        %v592 = vpop.f32.mrb[0].mxu0
        %v593 = vpop.f32.mrb[0].mxu0
        %v594 = vadd.f32 0.0, %v593
        %v595 = vpop.f32.mrb[0].mxu0
        %596 = vmatprep.mubr.bf16.mxu0 0
        %597 = vmatmul.mubr.bf16.gmra.mrb[0].mxu0 %v424
        %v598 = vpop.f32.mrb[0].mxu0
        %v599 = vadd.f32 0.0, %v598
        %v600 = vpop.f32.mrb[0].mxu0
        %v601 = vpop.f32.mrb[0].mxu0
        %v602 = vadd.f32 0.0, %v601
        %v603 = vpop.f32.mrb[0].mxu0
        %604 = vmatprep.mubr.bf16.mxu0 0
        %605 = vmatmul.mubr.bf16.gmra.mrb[0].mxu0 %v427
        %v606 = vpop.f32.mrb[0].mxu0
        %v607 = vadd.f32 0.0, %v606
        %v608 = vpop.f32.mrb[0].mxu0
        %v609 = vpop.f32.mrb[0].mxu0
        %v610 = vadd.f32 0.0, %v609
        %v611 = vpop.f32.mrb[0].mxu0
        %612 = vmatprep.mubr.bf16.mxu0 0
        %613 = vmatmul.mubr.bf16.gmra.mrb[0].mxu0 %v430
        %v614 = vpop.f32.mrb[0].mxu0
        %v615 = vadd.f32 0.0, %v614
        %v616 = vpop.f32.mrb[0].mxu0
        %v617 = vpop.f32.mrb[0].mxu0
        %v618 = vadd.f32 0.0, %v617
        %v619 = vpop.f32.mrb[0].mxu0
        %620 = vmatprep.mubr.bf16.mxu0 0
        %621 = vmatmul.mubr.bf16.gmra.mrb[0].mxu0 %v433
        %v622 = vpop.f32.mrb[0].mxu0
        %v623 = vadd.f32 0.0, %v622
        %v624 = vpop.f32.mrb[0].mxu0
        %v625 = vpop.f32.mrb[0].mxu0
        %v626 = vadd.f32 0.0, %v625
        %v627 = vpop.f32.mrb[0].mxu0
        %628 = vmatprep.mubr.bf16.mxu0 0
        %629 = vmatmul.mubr.bf16.gmra.mrb[0].mxu0 %v436
        %v630 = vpop.f32.mrb[0].mxu0
        %v631 = vadd.f32 0.0, %v630
        %v632 = vpop.f32.mrb[0].mxu0
        %v633 = vpop.f32.mrb[0].mxu0
        %v634 = vadd.f32 0.0, %v633
        %v635 = vpop.f32.mrb[0].mxu0
        %636 = vmatprep.mubr.bf16.mxu0 0
        %637 = vmatmul.mubr.bf16.gmra.mrb[0].mxu0 %v439
        %v638 = vpop.f32.mrb[0].mxu0
        %v639 = vadd.f32 0.0, %v638
        %v640 = vpop.f32.mrb[0].mxu0
        %v641 = vpop.f32.mrb[0].mxu0
        %v642 = vadd.f32 0.0, %v641
        %v643 = vpop.f32.mrb[0].mxu0
        %644 = vmatprep.mubr.bf16.mxu0 0
        %645 = vmatmul.mubr.bf16.gmra.mrb[0].mxu0 %v442
        %v646 = vpop.f32.mrb[0].mxu0
        %v647 = vadd.f32 0.0, %v646
        %v648 = vpop.f32.mrb[0].mxu0
        %v649 = vpop.f32.mrb[0].mxu0
        %v650 = vadd.f32 0.0, %v649
        %v651 = vpop.f32.mrb[0].mxu0
        %652 = vmatprep.mubr.bf16.mxu0 0
        %653 = vmatmul.mubr.bf16.gmra.mrb[0].mxu0 %v445
        %v654 = vpop.f32.mrb[0].mxu0
        %v655 = vadd.f32 0.0, %v654
        %v656 = vpop.f32.mrb[0].mxu0
        %v657 = vpop.f32.mrb[0].mxu0
        %v658 = vadd.f32 0.0, %v657
        %v659 = vpop.f32.mrb[0].mxu0
        %660 = vmatprep.mubr.bf16.mxu0 0
        %661 = vmatmul.mubr.bf16.gmra.mrb[0].mxu0 %v448
        %v662 = vpop.f32.mrb[0].mxu0
        %v663 = vadd.f32 0.0, %v662
        %v664 = vpop.f32.mrb[0].mxu0
        %v665 = vpop.f32.mrb[0].mxu0
        %v666 = vadd.f32 0.0, %v665
        %v667 = vpop.f32.mrb[0].mxu0
        %668 = vmatprep.mubr.bf16.mxu0 0
        %669 = vmatmul.mubr.bf16.gmra.mrb[0].mxu0 %v451
        %v670 = vpop.f32.mrb[0].mxu0
        %v671 = vadd.f32 0.0, %v670
        %v672 = vpop.f32.mrb[0].mxu0
        %v673 = vpop.f32.mrb[0].mxu0
        %v674 = vadd.f32 0.0, %v673
        %v675 = vpop.f32.mrb[0].mxu0
        %676 = vmatprep.mubr.bf16.mxu0 0
        %677 = vmatmul.mubr.bf16.gmra.mrb[0].mxu0 %v454
        %v678 = vpop.f32.mrb[0].mxu0
        %v679 = vadd.f32 0.0, %v678
        %v680 = vpop.f32.mrb[0].mxu0
        %v681 = vpop.f32.mrb[0].mxu0
        %v682 = vadd.f32 0.0, %v681
        %v683 = vpop.f32.mrb[0].mxu0
        %684 = vmatprep.mubr.bf16.mxu0 0
        %685 = vmatmul.mubr.bf16.gmra.mrb[0].mxu0 %v457
        %v686 = vpop.f32.mrb[0].mxu0
        %v687 = vadd.f32 0.0, %v686
        %v688 = vpop.f32.mrb[0].mxu0
        %v689 = vpop.f32.mrb[0].mxu0
        %v690 = vadd.f32 0.0, %v689
        %v691 = vpop.f32.mrb[0].mxu0
        %692 = vmatprep.mubr.bf16.mxu0 0
        %693 = vmatmul.mubr.bf16.gmra.mrb[0].mxu0 %v460
        %v694 = vpop.f32.mrb[0].mxu0
        %v695 = vadd.f32 0.0, %v694
        %v696 = vpop.f32.mrb[0].mxu0
        %v697 = vpop.f32.mrb[0].mxu0
        %v698 = vadd.f32 0.0, %v697
        %v699 = vpop.f32.mrb[0].mxu0
        %700 = vmatprep.mubr.bf16.mxu0 0
        %701 = vmatmul.mubr.bf16.gmra.mrb[0].mxu0 %v463
        %v702 = vpop.f32.mrb[0].mxu0
        %v703 = vadd.f32 0.0, %v702
        %v704 = vpop.f32.mrb[0].mxu0
        %v705 = vpop.f32.mrb[0].mxu0
        %v706 = vadd.f32 0.0, %v705
        %v707 = vpop.f32.mrb[0].mxu0
        %708 = vmatprep.mubr.bf16.mxu0 0
        %709 = vmatmul.mubr.bf16.gmra.mrb[0].mxu0 %v466
        %v710 = vpop.f32.mrb[0].mxu0
        %v711 = vadd.f32 0.0, %v710
        %v712 = vpop.f32.mrb[0].mxu0
        %v713 = vpop.f32.mrb[0].mxu0
        %v714 = vadd.f32 0.0, %v713
        %v715 = vpop.f32.mrb[0].mxu0
        %716 = vmatprep.mubr.bf16.mxu0 0
        %717 = vmatmul.mubr.bf16.gmra.mrb[0].mxu0 %v469
        %v718 = vpop.f32.mrb[0].mxu0
        %v719 = vadd.f32 0.0, %v718
        %v720 = vpop.f32.mrb[0].mxu0
        %v721 = vpop.f32.mrb[0].mxu0
        %v722 = vadd.f32 0.0, %v721
        %v723 = vpop.f32.mrb[0].mxu0
        %724 = vmatprep.mubr.bf16.mxu0 0
        %725 = vmatmul.mubr.bf16.gmra.mrb[0].mxu0 %v472
        %v726 = vpop.f32.mrb[0].mxu0
        %v727 = vadd.f32 0.0, %v726
        %v728 = vpop.f32.mrb[0].mxu0
        %v729 = vpop.f32.mrb[0].mxu0
        %v730 = vadd.f32 0.0, %v729
        %v731 = vpop.f32.mrb[0].mxu0
        %732 = vmatprep.mubr.bf16.mxu0 0
        %733 = vmatmul.mubr.bf16.gmra.mrb[0].mxu0 %v475
        %v734 = vpop.f32.mrb[0].mxu0
        %v735 = vadd.f32 0.0, %v734
        %v736 = vpop.f32.mrb[0].mxu0
        %v737 = vpop.f32.mrb[0].mxu0
        %v738 = vadd.f32 0.0, %v737
        %v739 = vpop.f32.mrb[0].mxu0
        %740 = vmatprep.mubr.bf16.mxu0 0
        %741 = vmatmul.mubr.bf16.gmra.mrb[0].mxu0 %v478
        %v742 = vpop.f32.mrb[0].mxu0
        %v743 = vadd.f32 0.0, %v742
        %v744 = vpop.f32.mrb[0].mxu0
        %v745 = vpop.f32.mrb[0].mxu0
        %v746 = vadd.f32 0.0, %v745
        %v747 = vpop.f32.mrb[0].mxu0
        %748 = vmatprep.mubr.bf16.mxu0 0
        %749 = vmatmul.mubr.bf16.gmra.mrb[0].mxu0 %v481
        %v750 = vpop.f32.mrb[0].mxu0
        %v751 = vadd.f32 0.0, %v750
        %v752 = vpop.f32.mrb[0].mxu0
        %v753 = vpop.f32.mrb[0].mxu0
        %v754 = vadd.f32 0.0, %v753
        %v755 = vpop.f32.mrb[0].mxu0
        %756 = vmatprep.mubr.bf16.mxu0 0
        %757 = vmatmul.mubr.bf16.gmra.mrb[0].mxu0 %v484
        %v758 = vpop.f32.mrb[0].mxu0
        %v759 = vadd.f32 0.0, %v758
        %v760 = vpop.f32.mrb[0].mxu0
        %v761 = vpop.f32.mrb[0].mxu0
        %v762 = vadd.f32 0.0, %v761
        %v763 = vpop.f32.mrb[0].mxu0
        %764 = vmatprep.mubr.bf16.mxu0 0
        %765 = vmatmul.mubr.bf16.gmra.mrb[0].mxu0 %v487
        %v766 = vpop.f32.mrb[0].mxu0
        %v767 = vadd.f32 0.0, %v766
        %v768 = vpop.f32.mrb[0].mxu0
        %v769 = vpop.f32.mrb[0].mxu0
        %v770 = vadd.f32 0.0, %v769
        %v771 = vpop.f32.mrb[0].mxu0
        %772 = vmatprep.mubr.bf16.mxu0 0
        %773 = vmatmul.mubr.bf16.gmra.mrb[0].mxu0 %v490
        %v774 = vpop.f32.mrb[0].mxu0
        %v775 = vadd.f32 0.0, %v774
        %v776 = vpop.f32.mrb[0].mxu0
        %v777 = vpop.f32.mrb[0].mxu0
        %v778 = vadd.f32 0.0, %v777
        %v779 = vpop.f32.mrb[0].mxu0
        %780 = vdwg.mxu0
        %vm781 = vcmp.gt.f32.partialorder %v527, 0.0
        %vm782 = vcmp.gt.f32.partialorder %v530, 0.0
        %vm783 = vcmp.gt.f32.partialorder %v535, 0.0
        %vm784 = vcmp.gt.f32.partialorder %v538, 0.0
        %vm785 = vcmp.gt.f32.partialorder %v543, 0.0
        %vm786 = vcmp.gt.f32.partialorder %v546, 0.0
        %vm787 = vcmp.gt.f32.partialorder %v551, 0.0
        %vm788 = vcmp.gt.f32.partialorder %v554, 0.0
        %vm789 = vcmp.gt.f32.partialorder %v559, 0.0
        %vm790 = vcmp.gt.f32.partialorder %v562, 0.0
        %vm791 = vcmp.gt.f32.partialorder %v567, 0.0
        %vm792 = vcmp.gt.f32.partialorder %v570, 0.0
        %vm793 = vcmp.gt.f32.partialorder %v575, 0.0
        %vm794 = vcmp.gt.f32.partialorder %v578, 0.0
        %vm795 = vcmp.gt.f32.partialorder %v583, 0.0
        %vm796 = vcmp.gt.f32.partialorder %v586, 0.0
        %vm797 = vcmp.gt.f32.partialorder %v591, 0.0
        %vm798 = vcmp.gt.f32.partialorder %v594, 0.0
        %vm799 = vcmp.gt.f32.partialorder %v599, 0.0
        %vm800 = vcmp.gt.f32.partialorder %v602, 0.0
        %vm801 = vcmp.gt.f32.partialorder %v607, 0.0
        %vm802 = vcmp.gt.f32.partialorder %v610, 0.0
        %vm803 = vcmp.gt.f32.partialorder %v615, 0.0
        %vm804 = vcmp.gt.f32.partialorder %v618, 0.0
        %vm805 = vcmp.gt.f32.partialorder %v623, 0.0
        %vm806 = vcmp.gt.f32.partialorder %v626, 0.0
        %vm807 = vcmp.gt.f32.partialorder %v631, 0.0
        %vm808 = vcmp.gt.f32.partialorder %v634, 0.0
        %vm809 = vcmp.gt.f32.partialorder %v639, 0.0
        %vm810 = vcmp.gt.f32.partialorder %v642, 0.0
        %vm811 = vcmp.gt.f32.partialorder %v647, 0.0
        %vm812 = vcmp.gt.f32.partialorder %v650, 0.0
        %vm813 = vcmp.gt.f32.partialorder %v655, 0.0
        %vm814 = vcmp.gt.f32.partialorder %v658, 0.0
        %vm815 = vcmp.gt.f32.partialorder %v663, 0.0
        %vm816 = vcmp.gt.f32.partialorder %v666, 0.0
        %vm817 = vcmp.gt.f32.partialorder %v671, 0.0
        %vm818 = vcmp.gt.f32.partialorder %v674, 0.0
        %vm819 = vcmp.gt.f32.partialorder %v679, 0.0
        %vm820 = vcmp.gt.f32.partialorder %v682, 0.0
        %vm821 = vcmp.gt.f32.partialorder %v687, 0.0
        %vm822 = vcmp.gt.f32.partialorder %v690, 0.0
        %vm823 = vcmp.gt.f32.partialorder %v695, 0.0
        %vm824 = vcmp.gt.f32.partialorder %v698, 0.0
        %vm825 = vcmp.gt.f32.partialorder %v703, 0.0
        %vm826 = vcmp.gt.f32.partialorder %v706, 0.0
        %vm827 = vcmp.gt.f32.partialorder %v711, 0.0
        %vm828 = vcmp.gt.f32.partialorder %v714, 0.0
        %vm829 = vcmp.gt.f32.partialorder %v719, 0.0
        %vm830 = vcmp.gt.f32.partialorder %v722, 0.0
        %vm831 = vcmp.gt.f32.partialorder %v727, 0.0
        %vm832 = vcmp.gt.f32.partialorder %v730, 0.0
        %vm833 = vcmp.gt.f32.partialorder %v735, 0.0
        %vm834 = vcmp.gt.f32.partialorder %v738, 0.0
        %vm835 = vcmp.gt.f32.partialorder %v743, 0.0
        %vm836 = vcmp.gt.f32.partialorder %v746, 0.0
        %vm837 = vcmp.gt.f32.partialorder %v751, 0.0
        %vm838 = vcmp.gt.f32.partialorder %v754, 0.0
        %vm839 = vcmp.gt.f32.partialorder %v759, 0.0
        %vm840 = vcmp.gt.f32.partialorder %v762, 0.0
        %vm841 = vcmp.gt.f32.partialorder %v767, 0.0
        %vm842 = vcmp.gt.f32.partialorder %v770, 0.0
        %vm843 = vcmp.gt.f32.partialorder %v775, 0.0
        %vm844 = vcmp.gt.f32.partialorder %v778, 0.0
        %v845 = vmul.f32 %v527, 0.2
        %v846 = vmul.f32 %v530, 0.2
        %v847 = vmul.f32 %v535, 0.2
        %v848 = vmul.f32 %v538, 0.2
        %v849 = vmul.f32 %v543, 0.2
        %v850 = vmul.f32 %v546, 0.2
        %v851 = vmul.f32 %v551, 0.2
        %v852 = vmul.f32 %v554, 0.2
        %v853 = vmul.f32 %v559, 0.2
        %v854 = vmul.f32 %v562, 0.2
        %v855 = vmul.f32 %v567, 0.2
        %v856 = vmul.f32 %v570, 0.2
        %v857 = vmul.f32 %v575, 0.2
        %v858 = vmul.f32 %v578, 0.2
        %v859 = vmul.f32 %v583, 0.2
        %v860 = vmul.f32 %v586, 0.2
        %v861 = vmul.f32 %v591, 0.2
        %v862 = vmul.f32 %v594, 0.2
        %v863 = vmul.f32 %v599, 0.2
        %v864 = vmul.f32 %v602, 0.2
        %v865 = vmul.f32 %v607, 0.2
        %v866 = vmul.f32 %v610, 0.2
        %v867 = vmul.f32 %v615, 0.2
        %v868 = vmul.f32 %v618, 0.2
        %v869 = vmul.f32 %v623, 0.2
        %v870 = vmul.f32 %v626, 0.2
        %v871 = vmul.f32 %v631, 0.2
        %v872 = vmul.f32 %v634, 0.2
        %v873 = vmul.f32 %v639, 0.2
        %v874 = vmul.f32 %v642, 0.2
        %v875 = vmul.f32 %v647, 0.2
        %v876 = vmul.f32 %v650, 0.2
        %v877 = vmul.f32 %v655, 0.2
        %v878 = vmul.f32 %v658, 0.2
        %v879 = vmul.f32 %v663, 0.2
        %v880 = vmul.f32 %v666, 0.2
        %v881 = vmul.f32 %v671, 0.2
        %v882 = vmul.f32 %v674, 0.2
        %v883 = vmul.f32 %v679, 0.2
        %v884 = vmul.f32 %v682, 0.2
        %v885 = vmul.f32 %v687, 0.2
        %v886 = vmul.f32 %v690, 0.2
        %v887 = vmul.f32 %v695, 0.2
        %v888 = vmul.f32 %v698, 0.2
        %v889 = vmul.f32 %v703, 0.2
        %v890 = vmul.f32 %v706, 0.2
        %v891 = vmul.f32 %v711, 0.2
        %v892 = vmul.f32 %v714, 0.2
        %v893 = vmul.f32 %v719, 0.2
        %v894 = vmul.f32 %v722, 0.2
        %v895 = vmul.f32 %v727, 0.2
        %v896 = vmul.f32 %v730, 0.2
        %v897 = vmul.f32 %v735, 0.2
        %v898 = vmul.f32 %v738, 0.2
        %v899 = vmul.f32 %v743, 0.2
        %v900 = vmul.f32 %v746, 0.2
        %v901 = vmul.f32 %v751, 0.2
        %v902 = vmul.f32 %v754, 0.2
        %v903 = vmul.f32 %v759, 0.2
        %v904 = vmul.f32 %v762, 0.2
        %v905 = vmul.f32 %v767, 0.2
        %v906 = vmul.f32 %v770, 0.2
        %v907 = vmul.f32 %v775, 0.2
        %v908 = vmul.f32 %v778, 0.2
        %v909 = vsel %vm781, %v527, %v845
        %v910 = vsel %vm782, %v530, %v846
        %v911 = vsel %vm783, %v535, %v847
        %v912 = vsel %vm784, %v538, %v848
        %v913 = vsel %vm785, %v543, %v849
        %v914 = vsel %vm786, %v546, %v850
        %v915 = vsel %vm787, %v551, %v851
        %v916 = vsel %vm788, %v554, %v852
        %v917 = vsel %vm789, %v559, %v853
        %v918 = vsel %vm790, %v562, %v854
        %v919 = vsel %vm791, %v567, %v855
        %v920 = vsel %vm792, %v570, %v856
        %v921 = vsel %vm793, %v575, %v857
        %v922 = vsel %vm794, %v578, %v858
        %v923 = vsel %vm795, %v583, %v859
        %v924 = vsel %vm796, %v586, %v860
        %v925 = vsel %vm797, %v591, %v861
        %v926 = vsel %vm798, %v594, %v862
        %v927 = vsel %vm799, %v599, %v863
        %v928 = vsel %vm800, %v602, %v864
        %v929 = vsel %vm801, %v607, %v865
        %v930 = vsel %vm802, %v610, %v866
        %v931 = vsel %vm803, %v615, %v867
        %v932 = vsel %vm804, %v618, %v868
        %v933 = vsel %vm805, %v623, %v869
        %v934 = vsel %vm806, %v626, %v870
        %v935 = vsel %vm807, %v631, %v871
        %v936 = vsel %vm808, %v634, %v872
        %v937 = vsel %vm809, %v639, %v873
        %v938 = vsel %vm810, %v642, %v874
        %v939 = vsel %vm811, %v647, %v875
        %v940 = vsel %vm812, %v650, %v876
        %v941 = vsel %vm813, %v655, %v877
        %v942 = vsel %vm814, %v658, %v878
        %v943 = vsel %vm815, %v663, %v879
        %v944 = vsel %vm816, %v666, %v880
        %v945 = vsel %vm817, %v671, %v881
        %v946 = vsel %vm818, %v674, %v882
        %v947 = vsel %vm819, %v679, %v883
        %v948 = vsel %vm820, %v682, %v884
        %v949 = vsel %vm821, %v687, %v885
        %v950 = vsel %vm822, %v690, %v886
        %v951 = vsel %vm823, %v695, %v887
        %v952 = vsel %vm824, %v698, %v888
        %v953 = vsel %vm825, %v703, %v889
        %v954 = vsel %vm826, %v706, %v890
        %v955 = vsel %vm827, %v711, %v891
        %v956 = vsel %vm828, %v714, %v892
        %v957 = vsel %vm829, %v719, %v893
        %v958 = vsel %vm830, %v722, %v894
        %v959 = vsel %vm831, %v727, %v895
        %v960 = vsel %vm832, %v730, %v896
        %v961 = vsel %vm833, %v735, %v897
        %v962 = vsel %vm834, %v738, %v898
        %v963 = vsel %vm835, %v743, %v899
        %v964 = vsel %vm836, %v746, %v900
        %v965 = vsel %vm837, %v751, %v901
        %v966 = vsel %vm838, %v754, %v902
        %v967 = vsel %vm839, %v759, %v903
        %v968 = vsel %vm840, %v762, %v904
        %v969 = vsel %vm841, %v767, %v905
        %v970 = vsel %vm842, %v770, %v906
        %v971 = vsel %vm843, %v775, %v907
        %v972 = vsel %vm844, %v778, %v908
        %v973 = vpack.c.bf16 %v910, %v909
        %v974 = vpack.c.bf16 %v912, %v911
        %v975 = vpack.c.bf16 %v914, %v913
        %v976 = vpack.c.bf16 %v916, %v915
        %v977 = vpack.c.bf16 %v918, %v917
        %v978 = vpack.c.bf16 %v920, %v919
        %v979 = vpack.c.bf16 %v922, %v921
        %v980 = vpack.c.bf16 %v924, %v923
        %v981 = vpack.c.bf16 %v926, %v925
        %v982 = vpack.c.bf16 %v928, %v927
        %v983 = vpack.c.bf16 %v930, %v929
        %v984 = vpack.c.bf16 %v932, %v931
        %v985 = vpack.c.bf16 %v934, %v933
        %v986 = vpack.c.bf16 %v936, %v935
        %v987 = vpack.c.bf16 %v938, %v937
        %v988 = vpack.c.bf16 %v940, %v939
        %v989 = vpack.c.bf16 %v942, %v941
        %v990 = vpack.c.bf16 %v944, %v943
        %v991 = vpack.c.bf16 %v946, %v945
        %v992 = vpack.c.bf16 %v948, %v947
        %v993 = vpack.c.bf16 %v950, %v949
        %v994 = vpack.c.bf16 %v952, %v951
        %v995 = vpack.c.bf16 %v954, %v953
        %v996 = vpack.c.bf16 %v956, %v955
        %v997 = vpack.c.bf16 %v958, %v957
        %v998 = vpack.c.bf16 %v960, %v959
        %v999 = vpack.c.bf16 %v962, %v961
        %v1000 = vpack.c.bf16 %v964, %v963
        %v1001 = vpack.c.bf16 %v966, %v965
        %v1002 = vpack.c.bf16 %v968, %v967
        %v1003 = vpack.c.bf16 %v970, %v969
        %v1004 = vpack.c.bf16 %v972, %v971
        %v1037 = vunpack.c.l.b16 %v973
        %v1038 = vunpack.c.h.b16 %v973
        %v1039 = vunpack.c.l.b16 %v974
        %v1040 = vunpack.c.h.b16 %v974
        %v1041 = vunpack.c.l.b16 %v975
        %v1042 = vunpack.c.h.b16 %v975
        %v1043 = vunpack.c.l.b16 %v976
        %v1044 = vunpack.c.h.b16 %v976
        %v1045 = vunpack.c.l.b16 %v977
        %v1046 = vunpack.c.h.b16 %v977
        %v1047 = vunpack.c.l.b16 %v978
        %v1048 = vunpack.c.h.b16 %v978
        %v1049 = vunpack.c.l.b16 %v979
        %v1050 = vunpack.c.h.b16 %v979
        %v1051 = vunpack.c.l.b16 %v980
        %v1052 = vunpack.c.h.b16 %v980
        %v1053 = vunpack.c.l.b16 %v981
        %v1054 = vunpack.c.h.b16 %v981
        %v1055 = vunpack.c.l.b16 %v982
        %v1056 = vunpack.c.h.b16 %v982
        %v1057 = vunpack.c.l.b16 %v983
        %v1058 = vunpack.c.h.b16 %v983
        %v1059 = vunpack.c.l.b16 %v984
        %v1060 = vunpack.c.h.b16 %v984
        %v1061 = vunpack.c.l.b16 %v985
        %v1062 = vunpack.c.h.b16 %v985
        %v1063 = vunpack.c.l.b16 %v986
        %v1064 = vunpack.c.h.b16 %v986
        %v1065 = vunpack.c.l.b16 %v987
        %v1066 = vunpack.c.h.b16 %v987
        %v1067 = vunpack.c.l.b16 %v988
        %v1068 = vunpack.c.h.b16 %v988
        %v1069 = vunpack.c.l.b16 %v989
        %v1070 = vunpack.c.h.b16 %v989
        %v1071 = vunpack.c.l.b16 %v990
        %v1072 = vunpack.c.h.b16 %v990
        %v1073 = vunpack.c.l.b16 %v991
        %v1074 = vunpack.c.h.b16 %v991
        %v1075 = vunpack.c.l.b16 %v992
        %v1076 = vunpack.c.h.b16 %v992
        %v1077 = vunpack.c.l.b16 %v993
        %v1078 = vunpack.c.h.b16 %v993
        %v1079 = vunpack.c.l.b16 %v994
        %v1080 = vunpack.c.h.b16 %v994
        %v1081 = vunpack.c.l.b16 %v995
        %v1082 = vunpack.c.h.b16 %v995
        %v1083 = vunpack.c.l.b16 %v996
        %v1084 = vunpack.c.h.b16 %v996
        %v1085 = vunpack.c.l.b16 %v997
        %v1086 = vunpack.c.h.b16 %v997
        %v1087 = vunpack.c.l.b16 %v998
        %v1088 = vunpack.c.h.b16 %v998
        %v1089 = vunpack.c.l.b16 %v999
        %v1090 = vunpack.c.h.b16 %v999
        %v1091 = vunpack.c.l.b16 %v1000
        %v1092 = vunpack.c.h.b16 %v1000
        %v1093 = vunpack.c.l.b16 %v1001
        %v1094 = vunpack.c.h.b16 %v1001
        %v1095 = vunpack.c.l.b16 %v1002
        %v1096 = vunpack.c.h.b16 %v1002
        %v1097 = vunpack.c.l.b16 %v1003
        %v1098 = vunpack.c.h.b16 %v1003
        %v1099 = vunpack.c.l.b16 %v1004
        %v1100 = vunpack.c.h.b16 %v1004
        %v1101 = vpack.c.b16 %v1037, %v1037
        %v1102 = vpack.c.b16 %v1038, %v1038
        %v1103 = vpack.c.b16 %v1039, %v1039
        %v1104 = vpack.c.b16 %v1040, %v1040
        %v1105 = vpack.c.b16 %v1041, %v1041
        %v1106 = vpack.c.b16 %v1042, %v1042
        %v1107 = vpack.c.b16 %v1043, %v1043
        %v1108 = vpack.c.b16 %v1044, %v1044
        %v1109 = vpack.c.b16 %v1045, %v1045
        %v1110 = vpack.c.b16 %v1046, %v1046
        %v1111 = vpack.c.b16 %v1047, %v1047
        %v1112 = vpack.c.b16 %v1048, %v1048
        %v1113 = vpack.c.b16 %v1049, %v1049
        %v1114 = vpack.c.b16 %v1050, %v1050
        %v1115 = vpack.c.b16 %v1051, %v1051
        %v1116 = vpack.c.b16 %v1052, %v1052
        %v1117 = vpack.c.b16 %v1053, %v1053
        %v1118 = vpack.c.b16 %v1054, %v1054
        %v1119 = vpack.c.b16 %v1055, %v1055
        %v1120 = vpack.c.b16 %v1056, %v1056
        %v1121 = vpack.c.b16 %v1057, %v1057
        %v1122 = vpack.c.b16 %v1058, %v1058
        %v1123 = vpack.c.b16 %v1059, %v1059
        %v1124 = vpack.c.b16 %v1060, %v1060
        %v1125 = vpack.c.b16 %v1061, %v1061
        %v1126 = vpack.c.b16 %v1062, %v1062
        %v1127 = vpack.c.b16 %v1063, %v1063
        %v1128 = vpack.c.b16 %v1064, %v1064
        %v1129 = vpack.c.b16 %v1065, %v1065
        %v1130 = vpack.c.b16 %v1066, %v1066
        %v1131 = vpack.c.b16 %v1067, %v1067
        %v1132 = vpack.c.b16 %v1068, %v1068
        %v1133 = vpack.c.b16 %v1069, %v1069
        %v1134 = vpack.c.b16 %v1070, %v1070
        %v1135 = vpack.c.b16 %v1071, %v1071
        %v1136 = vpack.c.b16 %v1072, %v1072
        %v1137 = vpack.c.b16 %v1073, %v1073
        %v1138 = vpack.c.b16 %v1074, %v1074
        %v1139 = vpack.c.b16 %v1075, %v1075
        %v1140 = vpack.c.b16 %v1076, %v1076
        %v1141 = vpack.c.b16 %v1077, %v1077
        %v1142 = vpack.c.b16 %v1078, %v1078
        %v1143 = vpack.c.b16 %v1079, %v1079
        %v1144 = vpack.c.b16 %v1080, %v1080
        %v1145 = vpack.c.b16 %v1081, %v1081
        %v1146 = vpack.c.b16 %v1082, %v1082
        %v1147 = vpack.c.b16 %v1083, %v1083
        %v1148 = vpack.c.b16 %v1084, %v1084
        %v1149 = vpack.c.b16 %v1085, %v1085
        %v1150 = vpack.c.b16 %v1086, %v1086
        %v1151 = vpack.c.b16 %v1087, %v1087
        %v1152 = vpack.c.b16 %v1088, %v1088
        %v1153 = vpack.c.b16 %v1089, %v1089
        %v1154 = vpack.c.b16 %v1090, %v1090
        %v1155 = vpack.c.b16 %v1091, %v1091
        %v1156 = vpack.c.b16 %v1092, %v1092
        %v1157 = vpack.c.b16 %v1093, %v1093
        %v1158 = vpack.c.b16 %v1094, %v1094
        %v1159 = vpack.c.b16 %v1095, %v1095
        %v1160 = vpack.c.b16 %v1096, %v1096
        %v1161 = vpack.c.b16 %v1097, %v1097
        %v1162 = vpack.c.b16 %v1098, %v1098
        %v1163 = vpack.c.b16 %v1099, %v1099
        %v1164 = vpack.c.b16 %v1100, %v1100
        %1229 = vst [vmem:[%s160] sm:$0xf] %v1101
        %1230 = vst [vmem:[%s160 + $0x4] sm:$0xf] %v1102
        %1231 = vst [vmem:[%s160 + $0x8] sm:$0xf] %v1103
        %1232 = vst [vmem:[%s160 + $0xc] sm:$0xf] %v1104
        %1233 = vst [vmem:[%s160 + $0x10] sm:$0xf] %v1105
        %1234 = vst [vmem:[%s160 + $0x14] sm:$0xf] %v1106
        %1235 = vst [vmem:[%s160 + $0x18] sm:$0xf] %v1107
        %1236 = vst [vmem:[%s160 + $0x1c] sm:$0xf] %v1108
        %1237 = vst [vmem:[%s160 + $0x20] sm:$0xf] %v1109
        %1238 = vst [vmem:[%s160 + $0x24] sm:$0xf] %v1110
        %1239 = vst [vmem:[%s160 + $0x28] sm:$0xf] %v1111
        %1240 = vst [vmem:[%s160 + $0x2c] sm:$0xf] %v1112
        %1241 = vst [vmem:[%s160 + $0x30] sm:$0xf] %v1113
        %1242 = vst [vmem:[%s160 + $0x34] sm:$0xf] %v1114
        %1243 = vst [vmem:[%s160 + $0x38] sm:$0xf] %v1115
        %1244 = vst [vmem:[%s160 + $0x3c] sm:$0xf] %v1116
        %1245 = vst [vmem:[%s160 + $0x40] sm:$0xf] %v1117
        %1246 = vst [vmem:[%s160 + $0x44] sm:$0xf] %v1118
        %1247 = vst [vmem:[%s160 + $0x48] sm:$0xf] %v1119
        %1248 = vst [vmem:[%s160 + $0x4c] sm:$0xf] %v1120
        %1249 = vst [vmem:[%s160 + $0x50] sm:$0xf] %v1121
        %1250 = vst [vmem:[%s160 + $0x54] sm:$0xf] %v1122
        %1251 = vst [vmem:[%s160 + $0x58] sm:$0xf] %v1123
        %1252 = vst [vmem:[%s160 + $0x5c] sm:$0xf] %v1124
        %1253 = vst [vmem:[%s160 + $0x60] sm:$0xf] %v1125
        %1254 = vst [vmem:[%s160 + $0x64] sm:$0xf] %v1126
        %1255 = vst [vmem:[%s160 + $0x68] sm:$0xf] %v1127
        %1256 = vst [vmem:[%s160 + $0x6c] sm:$0xf] %v1128
        %1257 = vst [vmem:[%s160 + $0x70] sm:$0xf] %v1129
        %1258 = vst [vmem:[%s160 + $0x74] sm:$0xf] %v1130
        %1259 = vst [vmem:[%s160 + $0x78] sm:$0xf] %v1131
        %1260 = vst [vmem:[%s160 + $0x7c] sm:$0xf] %v1132
        %1261 = vst [vmem:[%s160 + $0x80] sm:$0xf] %v1133
        %1262 = vst [vmem:[%s160 + $0x84] sm:$0xf] %v1134
        %1263 = vst [vmem:[%s160 + $0x88] sm:$0xf] %v1135
        %1264 = vst [vmem:[%s160 + $0x8c] sm:$0xf] %v1136
        %1265 = vst [vmem:[%s160 + $0x90] sm:$0xf] %v1137
        %1266 = vst [vmem:[%s160 + $0x94] sm:$0xf] %v1138
        %1267 = vst [vmem:[%s160 + $0x98] sm:$0xf] %v1139
        %1268 = vst [vmem:[%s160 + $0x9c] sm:$0xf] %v1140
        %1269 = vst [vmem:[%s160 + $0xa0] sm:$0xf] %v1141
        %1270 = vst [vmem:[%s160 + $0xa4] sm:$0xf] %v1142
        %1271 = vst [vmem:[%s160 + $0xa8] sm:$0xf] %v1143
        %1272 = vst [vmem:[%s160 + $0xac] sm:$0xf] %v1144
        %1273 = vst [vmem:[%s160 + $0xb0] sm:$0xf] %v1145
        %1274 = vst [vmem:[%s160 + $0xb4] sm:$0xf] %v1146
        %1275 = vst [vmem:[%s160 + $0xb8] sm:$0xf] %v1147
        %1276 = vst [vmem:[%s160 + $0xbc] sm:$0xf] %v1148
        %1277 = vst [vmem:[%s160 + $0xc0] sm:$0xf] %v1149
        %1278 = vst [vmem:[%s160 + $0xc4] sm:$0xf] %v1150
        %1279 = vst [vmem:[%s160 + $0xc8] sm:$0xf] %v1151
        %1280 = vst [vmem:[%s160 + $0xcc] sm:$0xf] %v1152
        %1281 = vst [vmem:[%s160 + $0xd0] sm:$0xf] %v1153
        %1282 = vst [vmem:[%s160 + $0xd4] sm:$0xf] %v1154
        %1283 = vst [vmem:[%s160 + $0xd8] sm:$0xf] %v1155
        %1284 = vst [vmem:[%s160 + $0xdc] sm:$0xf] %v1156
        %1285 = vst [vmem:[%s160 + $0xe0] sm:$0xf] %v1157
        %1286 = vst [vmem:[%s160 + $0xe4] sm:$0xf] %v1158
        %1287 = vst [vmem:[%s160 + $0xe8] sm:$0xf] %v1159
        %1288 = vst [vmem:[%s160 + $0xec] sm:$0xf] %v1160
        %1289 = vst [vmem:[%s160 + $0xf0] sm:$0xf] %v1161
        %1290 = vst [vmem:[%s160 + $0xf4] sm:$0xf] %v1162
        %1291 = vst [vmem:[%s160 + $0xf8] sm:$0xf] %v1163
        %1292 = vst [vmem:[%s160 + $0xfc] sm:$0xf] %v1164
        %s1293 = smul.u32 64, %s14
        %p1294 = scmp.lt.s32.totalorder %s1293, 255
        %s1295 = scalar_select %p1294, %s1293, 255
        %s1296 = smul.addr %s1295, 4
        %s1297 = scalar_lea.vmem %s2, %s1296
        // Predicated region
        $region33: #{discriminator_forward.5} parent=27 // pred_check
          %p1298 = pneg %p79
        $region34: #{discriminator_forward.5} parent=27 // pred_check_branch
          %1300 = sbr.rel (%p1298) target = $region36
        $region35: #{discriminator_forward.5} parent=27 // pred_region
          %s1301 = smul.u32 64, %s14
        $region36: #{discriminator_forward.5} parent=27 // pred_fallthru
          _
      $region28: #{discriminator_forward.5} parent=5 // pred_fallthru
        _
      %p1302 = scmp.le.s32.totalorder 2, %s9
      // Predicated region
      $region37: #{discriminator_forward.5} parent=5 // pred_check
        %p1303 = pneg %p1302
      $region38: #{discriminator_forward.5} parent=5 // pred_check_branch
        %1305 = sbr.rel (%p1303) target = $region40
      $region39: #{discriminator_forward.5} parent=5 // pred_region
        %s1306 = ssub.s32 %s9, 2
        // Predicated region
        $region41: #{discriminator_forward.5} parent=39 // pred_check
          %p1307 = pneg %p85
        $region42: #{discriminator_forward.5} parent=39 // pred_check_branch
          %1309 = sbr.rel (%p1307) target = $region44
        $region43: #{discriminator_forward.5} parent=39 // pred_region
          %s1310 = smul.u32 64, %s15
          %p1311 = scmp.lt.s32.totalorder %s1310, 255
          %s1312 = scalar_select %p1311, %s1310, 255
          %s1313 = smul.addr %s1312, 4
          %s1314 = scalar_lea.vmem %s2, %s1313
        $region44: #{discriminator_forward.5} parent=39 // pred_fallthru
          _
      $region40: #{discriminator_forward.5} parent=5 // pred_fallthru
        _
    $region6: #{discriminator_forward.5} parent=1 // loop_footer
      %s13 = sadd.s32 1, %s9
    $region7: #{discriminator_forward.5} parent=1 // loop_footer_branch
      %8 = sbr.rel target = $region3
    $region8: #{discriminator_forward.5} parent=1 // loop_exit
      _
    %1315 = vsyncpa [#allocation3], 1
    %s1316 = scalar_lea.sflag [#allocation3], 1
    %1317 = vsyncpa %s1316, 1

// kernel: discriminator_forward.6
$region0: #{discriminator_forward.6}
  #allocation0 [shape = 'u32[]', space=smem, size = 0x4, offset = 0x4, fixed_abs, tag = 'smem constant byte address 0x4 - core index']
  #allocation1 [shape = 'u32[144,128]{1,0:T(1,128)}', space=vmem, size = 0x12000, scoped, tag = 'internal scratch']
  #allocation2 [shape = 'f32[1,128]{1,0:T(1,128)}', space=vmem, size = 0x200, scoped, tag = 'scratch operand']
  #allocation3 [shape = 'f32[1,128]{1,0:T(1,128)}', space=vmem, size = 0x200, scoped, tag = 'scratch operand']
  %s0 = inlined_call_operand.vmem [shape: bf16[512,256], index: 0, kind: input, shape index: {}]
  %s1 = inlined_call_operand.vmem [shape: bf16[256,128], index: 1, kind: input, shape index: {}]
  %s2 = inlined_call_operand.vmem [shape: bf16[512,128], index: 2, kind: output, shape index: {}]
  %s3 = sld [smem:[#allocation0]]
  $region57: #{discriminator_forward.6} parent=0
    _
  %s5 = ssub.s32 1, %s3
  %s6 = scalar_select 0, %s5, %s3
  loop: start=0, step=1, limit=4
  $region2: #{discriminator_forward.6} parent=0 // loop_pre_header
    _
  $region3: #{discriminator_forward.6} parent=0 // loop_header
    %s8 = sphi 0, %s12
    %p9 = scmp.ge.s32.totalorder %s8, 4
    %s15 = sphi 0, %s27
    %s16 = sphi 0, %s23
    %s17 = sphi 0, %s15
    %s18 = sphi 0, %s16
    %s19 = sphi 0, %s17
    %s20 = sphi 0, %s18
    %s30 = sphi 0, %s32
    %s33 = sphi 0, %s30
    %s34 = sphi 0, %s33
    %s50 = sphi 0, %s34
    %s54 = sphi 0, %s54
    %s56 = sphi 0, %s54
    %s57 = sphi 0, %s56
    %s71 = sphi 0, %s57
    %s77 = sphi 0, %s79
    %s80 = sphi 0, %s77
    %s81 = sphi 0, %s80
    %s97 = sphi 0, %s81
  $region4: #{discriminator_forward.6} parent=0 // loop_header_branch
    %11 = sbr.rel (%p9) target = $region8
  $region5: #{discriminator_forward.6} parent=0 // loop_body
    %s13 = ssub.s32 %s8, 1
    %s14 = ssub.s32 %s8, 2
    %s21 = sadd.s32 1, %s16
    %p22 = scmp.ge.s32.totalorder %s21, 1
    %s23 = scalar_select %p22, 0, %s21
    %s24 = sadd.s32 1, %s15
    %s25 = scalar_select %p22, %s24, %s15
    %p26 = scmp.ge.s32.totalorder %s25, 2
    %s27 = scalar_select %p26, 0, %s25
    %s28 = ssub.s32 %s16, %s23
    %p29 = scmp.eq.s32.totalorder %s28, 0
    %s31 = sadd.s32 %s30, 1
    %s32 = scalar_select %p29, %s30, %s31
    %p35 = pneg %p29
    %p36 = scmp.eq.s32.totalorder %s8, 1
    %p37 = por %p35, %p36
    %p38 = scmp.ne.s32.totalorder %s30, %s33
    %p39 = scmp.eq.s32.totalorder %s8, 0
    %p40 = por %p38, %p39
    %p41 = scmp.ne.s32.totalorder %s30, %s33
    %p42 = scmp.eq.s32.totalorder %s13, 1
    %p43 = por %p41, %p42
    %p44 = scmp.ne.s32.totalorder %s33, %s34
    %p45 = scmp.eq.s32.totalorder %s13, 0
    %p46 = por %p44, %p45
    %p47 = scmp.ne.s32.totalorder %s33, %s34
    %p48 = scmp.eq.s32.totalorder %s14, 1
    %p49 = por %p47, %p48
    %p51 = scmp.ne.s32.totalorder %s34, %s50
    %p52 = scmp.eq.s32.totalorder %s14, 0
    %p53 = por %p51, %p52
    %s55 = sadd.s32 %s54, 1
    %p58 = scmp.eq.s32.totalorder %s8, 1
    %p59 = scmp.ne.s32.totalorder %s54, %s56
    %p60 = scmp.eq.s32.totalorder %s8, 0
    %p61 = por %p59, %p60
    %p62 = scmp.ne.s32.totalorder %s54, %s56
    %p63 = scmp.eq.s32.totalorder %s13, 1
    %p64 = por %p62, %p63
    %p65 = scmp.ne.s32.totalorder %s56, %s57
    %p66 = scmp.eq.s32.totalorder %s13, 0
    %p67 = por %p65, %p66
    %p68 = scmp.ne.s32.totalorder %s56, %s57
    %p69 = scmp.eq.s32.totalorder %s14, 1
    %p70 = por %p68, %p69
    %p72 = scmp.ne.s32.totalorder %s57, %s71
    %p73 = scmp.eq.s32.totalorder %s14, 0
    %p74 = por %p72, %p73
    %s75 = ssub.s32 %s16, %s23
    %p76 = scmp.eq.s32.totalorder %s75, 0
    %s78 = sadd.s32 %s77, 1
    %s79 = scalar_select %p76, %s77, %s78
    %p82 = pneg %p76
    %p83 = scmp.eq.s32.totalorder %s8, 1
    %p84 = por %p82, %p83
    %p85 = scmp.ne.s32.totalorder %s77, %s80
    %p86 = scmp.eq.s32.totalorder %s8, 0
    %p87 = por %p85, %p86
    %p88 = scmp.ne.s32.totalorder %s77, %s80
    %p89 = scmp.eq.s32.totalorder %s13, 1
    %p90 = por %p88, %p89
    %p91 = scmp.ne.s32.totalorder %s80, %s81
    %p92 = scmp.eq.s32.totalorder %s13, 0
    %p93 = por %p91, %p92
    %p94 = scmp.ne.s32.totalorder %s80, %s81
    %p95 = scmp.eq.s32.totalorder %s14, 1
    %p96 = por %p94, %p95
    %p98 = scmp.ne.s32.totalorder %s81, %s97
    %p99 = scmp.eq.s32.totalorder %s14, 0
    %p100 = por %p98, %p99
    %p101 = scmp.le.s32.totalorder 1, %s8
    %p102 = scmp.lt.s32.totalorder %s8, 3
    %p103 = pnand %p101, %p102
    %p104 = pneg %p103
    // Predicated region
    $region9: #{discriminator_forward.6} parent=5 // pred_check
      _
    $region10: #{discriminator_forward.6} parent=5 // pred_check_branch
      %106 = sbr.rel (%p103) target = $region12
    $region11: #{discriminator_forward.6} parent=5 // pred_region
      %s107 = ssub.s32 %s8, 1
      // Predicated region
      $region13: #{discriminator_forward.6} parent=11 // pred_check
        %p108 = pneg %p46
      $region14: #{discriminator_forward.6} parent=11 // pred_check_branch
        %110 = sbr.rel (%p108) target = $region16
      $region15: #{discriminator_forward.6} parent=11 // pred_region
        %s111 = smul.u32 64, %s18
        %p112 = scmp.lt.s32.totalorder %s111, 63
        %s113 = scalar_select %p112, %s111, 63
        %s114 = smul.addr %s113, 2
        %s115 = smul.addr %s114, 4
        %s116 = scalar_lea.vmem %s0, %s115
        %s117 = smul.u32 64, %s18
      $region16: #{discriminator_forward.6} parent=11 // pred_fallthru
        _
      // Predicated region
      $region17: #{discriminator_forward.6} parent=11 // pred_check
        %p118 = pneg %p67
      $region18: #{discriminator_forward.6} parent=11 // pred_check_branch
        %120 = sbr.rel (%p118) target = $region20
      $region19: #{discriminator_forward.6} parent=11 // pred_region
        _
      $region20: #{discriminator_forward.6} parent=11 // pred_fallthru
        _
    $region12: #{discriminator_forward.6} parent=5 // pred_fallthru
      _
    %p121 = scmp.lt.s32.totalorder %s8, 2
    // Predicated region
    $region21: #{discriminator_forward.6} parent=5 // pred_check
      %p122 = pneg %p121
    $region22: #{discriminator_forward.6} parent=5 // pred_check_branch
      %124 = sbr.rel (%p122) target = $region24
    $region23: #{discriminator_forward.6} parent=5 // pred_region
      _
    $region24: #{discriminator_forward.6} parent=5 // pred_fallthru
      _
    %p125 = scmp.le.s32.totalorder 1, %s8
    %p126 = scmp.lt.s32.totalorder %s8, 3
    %p127 = pnand %p125, %p126
    %p128 = pneg %p127
    // Predicated region
    $region25: #{discriminator_forward.6} parent=5 // pred_check
      _
    $region26: #{discriminator_forward.6} parent=5 // pred_check_branch
      %130 = sbr.rel (%p127) target = $region28
    $region27: #{discriminator_forward.6} parent=5 // pred_region
      %s131 = ssub.s32 %s8, 1
      %s132 = smul.u32 64, %s18
      %p133 = scmp.lt.s32.totalorder %s132, 63
      %s134 = scalar_select %p133, %s132, 63
      %s135 = smul.addr %s134, 2
      %s136 = smul.addr %s135, 4
      %s137 = scalar_lea.vmem %s0, %s136
      %p138 = pneg %p46
      %p139 = pneg %p43
      %p140 = pneg %p67
      %p141 = pneg %p64
      %p142 = pneg %p93
      %p143 = pneg %p90
      %s144 = smul.u32 64, %s18
      %p145 = scmp.lt.s32.totalorder %s144, 63
      %s146 = scalar_select %p145, %s144, 63
      %s147 = smul.addr %s146, 4
      %s148 = scalar_lea.vmem %s2, %s147
      %s149 = smul.u32 64, %s18
      %p150 = scmp.lt.s32.totalorder %s149, 63
      %s151 = scalar_select %p150, %s149, 63
      %s152 = smul.addr %s151, 2
      %s153 = smul.addr %s152, 4
      %s154 = scalar_lea.vmem %s0, %s153
      %s155 = smul.u32 64, %s18
      %s156 = smul.u32 64, %s18
      %p157 = scmp.lt.s32.totalorder %s156, 63
      %s158 = scalar_select %p157, %s156, 63
      %s159 = smul.addr %s158, 4
      %s160 = scalar_lea.vmem %s2, %s159
      %s161 = smul.u32 64, %s18
      %p163 = scmp.eq.s32.totalorder %s17, 0
      %v164 = vld [vmem:[%s154] sm:$0xff]
      %v165 = vld [vmem:[%s154 + $0x8] sm:$0xff]
      %v166 = vld [vmem:[%s154 + $0x10] sm:$0xff]
      %v167 = vld [vmem:[%s154 + $0x18] sm:$0xff]
      %v168 = vld [vmem:[%s154 + $0x20] sm:$0xff]
      %v169 = vld [vmem:[%s154 + $0x28] sm:$0xff]
      %v170 = vld [vmem:[%s154 + $0x30] sm:$0xff]
      %v171 = vld [vmem:[%s154 + $0x38] sm:$0xff]
      %v172 = vld [vmem:[%s154 + $0x40] sm:$0xff]
      %v173 = vld [vmem:[%s154 + $0x48] sm:$0xff]
      %v174 = vld [vmem:[%s154 + $0x50] sm:$0xff]
      %v175 = vld [vmem:[%s154 + $0x58] sm:$0xff]
      %v176 = vld [vmem:[%s154 + $0x60] sm:$0xff]
      %v177 = vld [vmem:[%s154 + $0x68] sm:$0xff]
      %v178 = vld [vmem:[%s154 + $0x70] sm:$0xff]
      %v179 = vld [vmem:[%s154 + $0x78] sm:$0xff]
      %v180 = vld [vmem:[%s154 + $0x80] sm:$0xff]
      %v181 = vld [vmem:[%s154 + $0x88] sm:$0xff]
      %v182 = vld [vmem:[%s154 + $0x90] sm:$0xff]
      %v183 = vld [vmem:[%s154 + $0x98] sm:$0xff]
      %v184 = vld [vmem:[%s154 + $0xa0] sm:$0xff]
      %v185 = vld [vmem:[%s154 + $0xa8] sm:$0xff]
      %v186 = vld [vmem:[%s154 + $0xb0] sm:$0xff]
      %v187 = vld [vmem:[%s154 + $0xb8] sm:$0xff]
      %v188 = vld [vmem:[%s154 + $0xc0] sm:$0xff]
      %v189 = vld [vmem:[%s154 + $0xc8] sm:$0xff]
      %v190 = vld [vmem:[%s154 + $0xd0] sm:$0xff]
      %v191 = vld [vmem:[%s154 + $0xd8] sm:$0xff]
      %v192 = vld [vmem:[%s154 + $0xe0] sm:$0xff]
      %v193 = vld [vmem:[%s154 + $0xe8] sm:$0xff]
      %v194 = vld [vmem:[%s154 + $0xf0] sm:$0xff]
      %v195 = vld [vmem:[%s154 + $0xf8] sm:$0xff]
      %v196 = vld [vmem:[%s154 + $0x100] sm:$0xff]
      %v197 = vld [vmem:[%s154 + $0x108] sm:$0xff]
      %v198 = vld [vmem:[%s154 + $0x110] sm:$0xff]
      %v199 = vld [vmem:[%s154 + $0x118] sm:$0xff]
      %v200 = vld [vmem:[%s154 + $0x120] sm:$0xff]
      %v201 = vld [vmem:[%s154 + $0x128] sm:$0xff]
      %v202 = vld [vmem:[%s154 + $0x130] sm:$0xff]
      %v203 = vld [vmem:[%s154 + $0x138] sm:$0xff]
      %v204 = vld [vmem:[%s154 + $0x140] sm:$0xff]
      %v205 = vld [vmem:[%s154 + $0x148] sm:$0xff]
      %v206 = vld [vmem:[%s154 + $0x150] sm:$0xff]
      %v207 = vld [vmem:[%s154 + $0x158] sm:$0xff]
      %v208 = vld [vmem:[%s154 + $0x160] sm:$0xff]
      %v209 = vld [vmem:[%s154 + $0x168] sm:$0xff]
      %v210 = vld [vmem:[%s154 + $0x170] sm:$0xff]
      %v211 = vld [vmem:[%s154 + $0x178] sm:$0xff]
      %v212 = vld [vmem:[%s154 + $0x180] sm:$0xff]
      %v213 = vld [vmem:[%s154 + $0x188] sm:$0xff]
      %v214 = vld [vmem:[%s154 + $0x190] sm:$0xff]
      %v215 = vld [vmem:[%s154 + $0x198] sm:$0xff]
      %v216 = vld [vmem:[%s154 + $0x1a0] sm:$0xff]
      %v217 = vld [vmem:[%s154 + $0x1a8] sm:$0xff]
      %v218 = vld [vmem:[%s154 + $0x1b0] sm:$0xff]
      %v219 = vld [vmem:[%s154 + $0x1b8] sm:$0xff]
      %v220 = vld [vmem:[%s154 + $0x1c0] sm:$0xff]
      %v221 = vld [vmem:[%s154 + $0x1c8] sm:$0xff]
      %v222 = vld [vmem:[%s154 + $0x1d0] sm:$0xff]
      %v223 = vld [vmem:[%s154 + $0x1d8] sm:$0xff]
      %v224 = vld [vmem:[%s154 + $0x1e0] sm:$0xff]
      %v225 = vld [vmem:[%s154 + $0x1e8] sm:$0xff]
      %v226 = vld [vmem:[%s154 + $0x1f0] sm:$0xff]
      %v227 = vld [vmem:[%s154 + $0x1f8] sm:$0xff]
      %v228 = vld [vmem:[%s1] sm:$0xf]
      %v229 = vld [vmem:[%s1 + $0x4] sm:$0xf]
      %v230 = vld [vmem:[%s1 + $0x8] sm:$0xf]
      %v231 = vld [vmem:[%s1 + $0xc] sm:$0xf]
      %v232 = vld [vmem:[%s1 + $0x10] sm:$0xf]
      %v233 = vld [vmem:[%s1 + $0x14] sm:$0xf]
      %v234 = vld [vmem:[%s1 + $0x18] sm:$0xf]
      %v235 = vld [vmem:[%s1 + $0x1c] sm:$0xf]
      %v236 = vld [vmem:[%s1 + $0x20] sm:$0xf]
      %v237 = vld [vmem:[%s1 + $0x24] sm:$0xf]
      %v238 = vld [vmem:[%s1 + $0x28] sm:$0xf]
      %v239 = vld [vmem:[%s1 + $0x2c] sm:$0xf]
      %v240 = vld [vmem:[%s1 + $0x30] sm:$0xf]
      %v241 = vld [vmem:[%s1 + $0x34] sm:$0xf]
      %v242 = vld [vmem:[%s1 + $0x38] sm:$0xf]
      %v243 = vld [vmem:[%s1 + $0x3c] sm:$0xf]
      %v244 = vld [vmem:[%s1 + $0x40] sm:$0xf]
      %v245 = vld [vmem:[%s1 + $0x44] sm:$0xf]
      %v246 = vld [vmem:[%s1 + $0x48] sm:$0xf]
      %v247 = vld [vmem:[%s1 + $0x4c] sm:$0xf]
      %v248 = vld [vmem:[%s1 + $0x50] sm:$0xf]
      %v249 = vld [vmem:[%s1 + $0x54] sm:$0xf]
      %v250 = vld [vmem:[%s1 + $0x58] sm:$0xf]
      %v251 = vld [vmem:[%s1 + $0x5c] sm:$0xf]
      %v252 = vld [vmem:[%s1 + $0x60] sm:$0xf]
      %v253 = vld [vmem:[%s1 + $0x64] sm:$0xf]
      %v254 = vld [vmem:[%s1 + $0x68] sm:$0xf]
      %v255 = vld [vmem:[%s1 + $0x6c] sm:$0xf]
      %v256 = vld [vmem:[%s1 + $0x70] sm:$0xf]
      %v257 = vld [vmem:[%s1 + $0x74] sm:$0xf]
      %v258 = vld [vmem:[%s1 + $0x78] sm:$0xf]
      %v259 = vld [vmem:[%s1 + $0x7c] sm:$0xf]
      %v324 = vunpack.c.l.b16 %v164
      %v325 = vunpack.c.h.b16 %v164
      %v326 = vunpack.c.l.b16 %v165
      %v327 = vunpack.c.h.b16 %v165
      %v328 = vunpack.c.l.b16 %v166
      %v329 = vunpack.c.h.b16 %v166
      %v330 = vunpack.c.l.b16 %v167
      %v331 = vunpack.c.h.b16 %v167
      %v332 = vunpack.c.l.b16 %v168
      %v333 = vunpack.c.h.b16 %v168
      %v334 = vunpack.c.l.b16 %v169
      %v335 = vunpack.c.h.b16 %v169
      %v336 = vunpack.c.l.b16 %v170
      %v337 = vunpack.c.h.b16 %v170
      %v338 = vunpack.c.l.b16 %v171
      %v339 = vunpack.c.h.b16 %v171
      %v340 = vunpack.c.l.b16 %v172
      %v341 = vunpack.c.h.b16 %v172
      %v342 = vunpack.c.l.b16 %v173
      %v343 = vunpack.c.h.b16 %v173
      %v344 = vunpack.c.l.b16 %v174
      %v345 = vunpack.c.h.b16 %v174
      %v346 = vunpack.c.l.b16 %v175
      %v347 = vunpack.c.h.b16 %v175
      %v348 = vunpack.c.l.b16 %v176
      %v349 = vunpack.c.h.b16 %v176
      %v350 = vunpack.c.l.b16 %v177
      %v351 = vunpack.c.h.b16 %v177
      %v352 = vunpack.c.l.b16 %v178
      %v353 = vunpack.c.h.b16 %v178
      %v354 = vunpack.c.l.b16 %v179
      %v355 = vunpack.c.h.b16 %v179
      %v356 = vunpack.c.l.b16 %v180
      %v357 = vunpack.c.h.b16 %v180
      %v358 = vunpack.c.l.b16 %v181
      %v359 = vunpack.c.h.b16 %v181
      %v360 = vunpack.c.l.b16 %v182
      %v361 = vunpack.c.h.b16 %v182
      %v362 = vunpack.c.l.b16 %v183
      %v363 = vunpack.c.h.b16 %v183
      %v364 = vunpack.c.l.b16 %v184
      %v365 = vunpack.c.h.b16 %v184
      %v366 = vunpack.c.l.b16 %v185
      %v367 = vunpack.c.h.b16 %v185
      %v368 = vunpack.c.l.b16 %v186
      %v369 = vunpack.c.h.b16 %v186
      %v370 = vunpack.c.l.b16 %v187
      %v371 = vunpack.c.h.b16 %v187
      %v372 = vunpack.c.l.b16 %v188
      %v373 = vunpack.c.h.b16 %v188
      %v374 = vunpack.c.l.b16 %v189
      %v375 = vunpack.c.h.b16 %v189
      %v376 = vunpack.c.l.b16 %v190
      %v377 = vunpack.c.h.b16 %v190
      %v378 = vunpack.c.l.b16 %v191
      %v379 = vunpack.c.h.b16 %v191
      %v380 = vunpack.c.l.b16 %v192
      %v381 = vunpack.c.h.b16 %v192
      %v382 = vunpack.c.l.b16 %v193
      %v383 = vunpack.c.h.b16 %v193
      %v384 = vunpack.c.l.b16 %v194
      %v385 = vunpack.c.h.b16 %v194
      %v386 = vunpack.c.l.b16 %v195
      %v387 = vunpack.c.h.b16 %v195
      %v388 = vunpack.c.l.b16 %v196
      %v389 = vunpack.c.h.b16 %v196
      %v390 = vunpack.c.l.b16 %v197
      %v391 = vunpack.c.h.b16 %v197
      %v392 = vunpack.c.l.b16 %v198
      %v393 = vunpack.c.h.b16 %v198
      %v394 = vunpack.c.l.b16 %v199
      %v395 = vunpack.c.h.b16 %v199
      %v396 = vunpack.c.l.b16 %v200
      %v397 = vunpack.c.h.b16 %v200
      %v398 = vunpack.c.l.b16 %v201
      %v399 = vunpack.c.h.b16 %v201
      %v400 = vunpack.c.l.b16 %v202
      %v401 = vunpack.c.h.b16 %v202
      %v402 = vunpack.c.l.b16 %v203
      %v403 = vunpack.c.h.b16 %v203
      %v404 = vunpack.c.l.b16 %v204
      %v405 = vunpack.c.h.b16 %v204
      %v406 = vunpack.c.l.b16 %v205
      %v407 = vunpack.c.h.b16 %v205
      %v408 = vunpack.c.l.b16 %v206
      %v409 = vunpack.c.h.b16 %v206
      %v410 = vunpack.c.l.b16 %v207
      %v411 = vunpack.c.h.b16 %v207
      %v412 = vunpack.c.l.b16 %v208
      %v413 = vunpack.c.h.b16 %v208
      %v414 = vunpack.c.l.b16 %v209
      %v415 = vunpack.c.h.b16 %v209
      %v416 = vunpack.c.l.b16 %v210
      %v417 = vunpack.c.h.b16 %v210
      %v418 = vunpack.c.l.b16 %v211
      %v419 = vunpack.c.h.b16 %v211
      %v420 = vunpack.c.l.b16 %v212
      %v421 = vunpack.c.h.b16 %v212
      %v422 = vunpack.c.l.b16 %v213
      %v423 = vunpack.c.h.b16 %v213
      %v424 = vunpack.c.l.b16 %v214
      %v425 = vunpack.c.h.b16 %v214
      %v426 = vunpack.c.l.b16 %v215
      %v427 = vunpack.c.h.b16 %v215
      %v428 = vunpack.c.l.b16 %v216
      %v429 = vunpack.c.h.b16 %v216
      %v430 = vunpack.c.l.b16 %v217
      %v431 = vunpack.c.h.b16 %v217
      %v432 = vunpack.c.l.b16 %v218
      %v433 = vunpack.c.h.b16 %v218
      %v434 = vunpack.c.l.b16 %v219
      %v435 = vunpack.c.h.b16 %v219
      %v436 = vunpack.c.l.b16 %v220
      %v437 = vunpack.c.h.b16 %v220
      %v438 = vunpack.c.l.b16 %v221
      %v439 = vunpack.c.h.b16 %v221
      %v440 = vunpack.c.l.b16 %v222
      %v441 = vunpack.c.h.b16 %v222
      %v442 = vunpack.c.l.b16 %v223
      %v443 = vunpack.c.h.b16 %v223
      %v444 = vunpack.c.l.b16 %v224
      %v445 = vunpack.c.h.b16 %v224
      %v446 = vunpack.c.l.b16 %v225
      %v447 = vunpack.c.h.b16 %v225
      %v448 = vunpack.c.l.b16 %v226
      %v449 = vunpack.c.h.b16 %v226
      %v450 = vunpack.c.l.b16 %v227
      %v451 = vunpack.c.h.b16 %v227
      %v452 = vpack.c.b16 %v326, %v324
      %v453 = vpack.c.b16 %v327, %v325
      %v454 = vpack.c.b16 %v330, %v328
      %v455 = vpack.c.b16 %v331, %v329
      %v456 = vpack.c.b16 %v334, %v332
      %v457 = vpack.c.b16 %v335, %v333
      %v458 = vpack.c.b16 %v338, %v336
      %v459 = vpack.c.b16 %v339, %v337
      %v460 = vpack.c.b16 %v342, %v340
      %v461 = vpack.c.b16 %v343, %v341
      %v462 = vpack.c.b16 %v346, %v344
      %v463 = vpack.c.b16 %v347, %v345
      %v464 = vpack.c.b16 %v350, %v348
      %v465 = vpack.c.b16 %v351, %v349
      %v466 = vpack.c.b16 %v354, %v352
      %v467 = vpack.c.b16 %v355, %v353
      %v468 = vpack.c.b16 %v358, %v356
      %v469 = vpack.c.b16 %v359, %v357
      %v470 = vpack.c.b16 %v362, %v360
      %v471 = vpack.c.b16 %v363, %v361
      %v472 = vpack.c.b16 %v366, %v364
      %v473 = vpack.c.b16 %v367, %v365
      %v474 = vpack.c.b16 %v370, %v368
      %v475 = vpack.c.b16 %v371, %v369
      %v476 = vpack.c.b16 %v374, %v372
      %v477 = vpack.c.b16 %v375, %v373
      %v478 = vpack.c.b16 %v378, %v376
      %v479 = vpack.c.b16 %v379, %v377
      %v480 = vpack.c.b16 %v382, %v380
      %v481 = vpack.c.b16 %v383, %v381
      %v482 = vpack.c.b16 %v386, %v384
      %v483 = vpack.c.b16 %v387, %v385
      %v484 = vpack.c.b16 %v390, %v388
      %v485 = vpack.c.b16 %v391, %v389
      %v486 = vpack.c.b16 %v394, %v392
      %v487 = vpack.c.b16 %v395, %v393
      %v488 = vpack.c.b16 %v398, %v396
      %v489 = vpack.c.b16 %v399, %v397
      %v490 = vpack.c.b16 %v402, %v400
      %v491 = vpack.c.b16 %v403, %v401
      %v492 = vpack.c.b16 %v406, %v404
      %v493 = vpack.c.b16 %v407, %v405
      %v494 = vpack.c.b16 %v410, %v408
      %v495 = vpack.c.b16 %v411, %v409
      %v496 = vpack.c.b16 %v414, %v412
      %v497 = vpack.c.b16 %v415, %v413
      %v498 = vpack.c.b16 %v418, %v416
      %v499 = vpack.c.b16 %v419, %v417
      %v500 = vpack.c.b16 %v422, %v420
      %v501 = vpack.c.b16 %v423, %v421
      %v502 = vpack.c.b16 %v426, %v424
      %v503 = vpack.c.b16 %v427, %v425
      %v504 = vpack.c.b16 %v430, %v428
      %v505 = vpack.c.b16 %v431, %v429
      %v506 = vpack.c.b16 %v434, %v432
      %v507 = vpack.c.b16 %v435, %v433
      %v508 = vpack.c.b16 %v438, %v436
      %v509 = vpack.c.b16 %v439, %v437
      %v510 = vpack.c.b16 %v442, %v440
      %v511 = vpack.c.b16 %v443, %v441
      %v512 = vpack.c.b16 %v446, %v444
      %v513 = vpack.c.b16 %v447, %v445
      %v514 = vpack.c.b16 %v450, %v448
      %v515 = vpack.c.b16 %v451, %v449
      %v612 = vunpack.c.l.b16 %v228
      %v613 = vunpack.c.l.b16 %v229
      %v614 = vunpack.c.l.b16 %v230
      %v615 = vunpack.c.l.b16 %v231
      %v616 = vunpack.c.l.b16 %v232
      %v617 = vunpack.c.l.b16 %v233
      %v618 = vunpack.c.l.b16 %v234
      %v619 = vunpack.c.l.b16 %v235
      %v620 = vunpack.c.l.b16 %v236
      %v621 = vunpack.c.l.b16 %v237
      %v622 = vunpack.c.l.b16 %v238
      %v623 = vunpack.c.l.b16 %v239
      %v624 = vunpack.c.l.b16 %v240
      %v625 = vunpack.c.l.b16 %v241
      %v626 = vunpack.c.l.b16 %v242
      %v627 = vunpack.c.l.b16 %v243
      %v628 = vunpack.c.l.b16 %v244
      %v629 = vunpack.c.l.b16 %v245
      %v630 = vunpack.c.l.b16 %v246
      %v631 = vunpack.c.l.b16 %v247
      %v632 = vunpack.c.l.b16 %v248
      %v633 = vunpack.c.l.b16 %v249
      %v634 = vunpack.c.l.b16 %v250
      %v635 = vunpack.c.l.b16 %v251
      %v636 = vunpack.c.l.b16 %v252
      %v637 = vunpack.c.l.b16 %v253
      %v638 = vunpack.c.l.b16 %v254
      %v639 = vunpack.c.l.b16 %v255
      %v640 = vunpack.c.l.b16 %v256
      %v641 = vunpack.c.l.b16 %v257
      %v642 = vunpack.c.l.b16 %v258
      %v643 = vunpack.c.l.b16 %v259
      %v644 = vpack.c.b16 %v613, %v612
      %v645 = vpack.c.b16 %v615, %v614
      %v646 = vpack.c.b16 %v617, %v616
      %v647 = vpack.c.b16 %v619, %v618
      %v648 = vpack.c.b16 %v621, %v620
      %v649 = vpack.c.b16 %v623, %v622
      %v650 = vpack.c.b16 %v625, %v624
      %v651 = vpack.c.b16 %v627, %v626
      %v652 = vpack.c.b16 %v629, %v628
      %v653 = vpack.c.b16 %v631, %v630
      %v654 = vpack.c.b16 %v633, %v632
      %v655 = vpack.c.b16 %v635, %v634
      %v656 = vpack.c.b16 %v637, %v636
      %v657 = vpack.c.b16 %v639, %v638
      %v658 = vpack.c.b16 %v641, %v640
      %v659 = vpack.c.b16 %v643, %v642
      %676 = vmatprep.subr.bf16.mxu0 0
      %677 = vmatpush1.bf16.msra.mxu0 %v644
      %678 = vmatprep.subr.bf16.mxu0 0
      %679 = vmatpush1.bf16.msra.mxu0 %v645
      %680 = vmatprep.subr.bf16.mxu0 0
      %681 = vmatpush1.bf16.msra.mxu0 %v646
      %682 = vmatprep.subr.bf16.mxu0 0
      %683 = vmatpush1.bf16.msra.mxu0 %v647
      %684 = vmatprep.subr.bf16.mxu0 0
      %685 = vmatpush1.bf16.msra.mxu0 %v648
      %686 = vmatprep.subr.bf16.mxu0 0
      %687 = vmatpush1.bf16.msra.mxu0 %v649
      %688 = vmatprep.subr.bf16.mxu0 0
      %689 = vmatpush1.bf16.msra.mxu0 %v650
      %690 = vmatprep.subr.bf16.mxu0 0
      %691 = vmatpush1.bf16.msra.mxu0 %v651
      %692 = vmatprep.subr.bf16.mxu0 0
      %693 = vmatpush1.bf16.msra.mxu0 %v652
      %694 = vmatprep.subr.bf16.mxu0 0
      %695 = vmatpush1.bf16.msra.mxu0 %v653
      %696 = vmatprep.subr.bf16.mxu0 0
      %697 = vmatpush1.bf16.msra.mxu0 %v654
      %698 = vmatprep.subr.bf16.mxu0 0
      %699 = vmatpush1.bf16.msra.mxu0 %v655
      %700 = vmatprep.subr.bf16.mxu0 0
      %701 = vmatpush1.bf16.msra.mxu0 %v656
      %702 = vmatprep.subr.bf16.mxu0 0
      %703 = vmatpush1.bf16.msra.mxu0 %v657
      %704 = vmatprep.subr.bf16.mxu0 0
      %705 = vmatpush1.bf16.msra.mxu0 %v658
      %706 = vmatprep.subr.bf16.mxu0 0
      %707 = vmatpush1.bf16.msra.mxu0 %v659
      %708 = vmatprep.mubr.bf16.mxu0 %v453
      %709 = vmatmul.mubr.bf16.gmra.mrb[0].mxu0 %v452
      %v710 = vpop.f32.mrb[0].mxu0
      %v711 = vadd.f32 0.0, %v710
      %v712 = vpop.f32.mrb[0].mxu0
      %v713 = vpop.f32.mrb[0].mxu0
      %v714 = vadd.f32 0.0, %v713
      %v715 = vpop.f32.mrb[0].mxu0
      %716 = vmatprep.mubr.bf16.mxu0 %v455
      %717 = vmatmul.mubr.bf16.gmra.mrb[0].mxu0 %v454
      %v718 = vpop.f32.mrb[0].mxu0
      %v719 = vadd.f32 0.0, %v718
      %v720 = vpop.f32.mrb[0].mxu0
      %v721 = vpop.f32.mrb[0].mxu0
      %v722 = vadd.f32 0.0, %v721
      %v723 = vpop.f32.mrb[0].mxu0
      %724 = vmatprep.mubr.bf16.mxu0 %v457
      %725 = vmatmul.mubr.bf16.gmra.mrb[0].mxu0 %v456
      %v726 = vpop.f32.mrb[0].mxu0
      %v727 = vadd.f32 0.0, %v726
      %v728 = vpop.f32.mrb[0].mxu0
      %v729 = vpop.f32.mrb[0].mxu0
      %v730 = vadd.f32 0.0, %v729
      %v731 = vpop.f32.mrb[0].mxu0
      %732 = vmatprep.mubr.bf16.mxu0 %v459
      %733 = vmatmul.mubr.bf16.gmra.mrb[0].mxu0 %v458
      %v734 = vpop.f32.mrb[0].mxu0
      %v735 = vadd.f32 0.0, %v734
      %v736 = vpop.f32.mrb[0].mxu0
      %v737 = vpop.f32.mrb[0].mxu0
      %v738 = vadd.f32 0.0, %v737
      %v739 = vpop.f32.mrb[0].mxu0
      %740 = vmatprep.mubr.bf16.mxu0 %v461
      %741 = vmatmul.mubr.bf16.gmra.mrb[0].mxu0 %v460
      %v742 = vpop.f32.mrb[0].mxu0
      %v743 = vadd.f32 0.0, %v742
      %v744 = vpop.f32.mrb[0].mxu0
      %v745 = vpop.f32.mrb[0].mxu0
      %v746 = vadd.f32 0.0, %v745
      %v747 = vpop.f32.mrb[0].mxu0
      %748 = vmatprep.mubr.bf16.mxu0 %v463
      %749 = vmatmul.mubr.bf16.gmra.mrb[0].mxu0 %v462
      %v750 = vpop.f32.mrb[0].mxu0
      %v751 = vadd.f32 0.0, %v750
      %v752 = vpop.f32.mrb[0].mxu0
      %v753 = vpop.f32.mrb[0].mxu0
      %v754 = vadd.f32 0.0, %v753
      %v755 = vpop.f32.mrb[0].mxu0
      %756 = vmatprep.mubr.bf16.mxu0 %v465
      %757 = vmatmul.mubr.bf16.gmra.mrb[0].mxu0 %v464
      %v758 = vpop.f32.mrb[0].mxu0
      %v759 = vadd.f32 0.0, %v758
      %v760 = vpop.f32.mrb[0].mxu0
      %v761 = vpop.f32.mrb[0].mxu0
      %v762 = vadd.f32 0.0, %v761
      %v763 = vpop.f32.mrb[0].mxu0
      %764 = vmatprep.mubr.bf16.mxu0 %v467
      %765 = vmatmul.mubr.bf16.gmra.mrb[0].mxu0 %v466
      %v766 = vpop.f32.mrb[0].mxu0
      %v767 = vadd.f32 0.0, %v766
      %v768 = vpop.f32.mrb[0].mxu0
      %v769 = vpop.f32.mrb[0].mxu0
      %v770 = vadd.f32 0.0, %v769
      %v771 = vpop.f32.mrb[0].mxu0
      %772 = vmatprep.mubr.bf16.mxu0 %v469
      %773 = vmatmul.mubr.bf16.gmra.mrb[0].mxu0 %v468
      %v774 = vpop.f32.mrb[0].mxu0
      %v775 = vadd.f32 0.0, %v774
      %v776 = vpop.f32.mrb[0].mxu0
      %v777 = vpop.f32.mrb[0].mxu0
      %v778 = vadd.f32 0.0, %v777
      %v779 = vpop.f32.mrb[0].mxu0
      %780 = vmatprep.mubr.bf16.mxu0 %v471
      %781 = vmatmul.mubr.bf16.gmra.mrb[0].mxu0 %v470
      %v782 = vpop.f32.mrb[0].mxu0
      %v783 = vadd.f32 0.0, %v782
      %v784 = vpop.f32.mrb[0].mxu0
      %v785 = vpop.f32.mrb[0].mxu0
      %v786 = vadd.f32 0.0, %v785
      %v787 = vpop.f32.mrb[0].mxu0
      %788 = vmatprep.mubr.bf16.mxu0 %v473
      %789 = vmatmul.mubr.bf16.gmra.mrb[0].mxu0 %v472
      %v790 = vpop.f32.mrb[0].mxu0
      %v791 = vadd.f32 0.0, %v790
      %v792 = vpop.f32.mrb[0].mxu0
      %v793 = vpop.f32.mrb[0].mxu0
      %v794 = vadd.f32 0.0, %v793
      %v795 = vpop.f32.mrb[0].mxu0
      %796 = vmatprep.mubr.bf16.mxu0 %v475
      %797 = vmatmul.mubr.bf16.gmra.mrb[0].mxu0 %v474
      %v798 = vpop.f32.mrb[0].mxu0
      %v799 = vadd.f32 0.0, %v798
      %v800 = vpop.f32.mrb[0].mxu0
      %v801 = vpop.f32.mrb[0].mxu0
      %v802 = vadd.f32 0.0, %v801
      %v803 = vpop.f32.mrb[0].mxu0
      %804 = vmatprep.mubr.bf16.mxu0 %v477
      %805 = vmatmul.mubr.bf16.gmra.mrb[0].mxu0 %v476
      %v806 = vpop.f32.mrb[0].mxu0
      %v807 = vadd.f32 0.0, %v806
      %v808 = vpop.f32.mrb[0].mxu0
      %v809 = vpop.f32.mrb[0].mxu0
      %v810 = vadd.f32 0.0, %v809
      %v811 = vpop.f32.mrb[0].mxu0
      %812 = vmatprep.mubr.bf16.mxu0 %v479
      %813 = vmatmul.mubr.bf16.gmra.mrb[0].mxu0 %v478
      %v814 = vpop.f32.mrb[0].mxu0
      %v815 = vadd.f32 0.0, %v814
      %v816 = vpop.f32.mrb[0].mxu0
      %v817 = vpop.f32.mrb[0].mxu0
      %v818 = vadd.f32 0.0, %v817
      %v819 = vpop.f32.mrb[0].mxu0
      %820 = vmatprep.mubr.bf16.mxu0 %v481
      %821 = vmatmul.mubr.bf16.gmra.mrb[0].mxu0 %v480
      %v822 = vpop.f32.mrb[0].mxu0
      %v823 = vadd.f32 0.0, %v822
      %v824 = vpop.f32.mrb[0].mxu0
      %v825 = vpop.f32.mrb[0].mxu0
      %v826 = vadd.f32 0.0, %v825
      %v827 = vpop.f32.mrb[0].mxu0
      %828 = vmatprep.mubr.bf16.mxu0 %v483
      %829 = vmatmul.mubr.bf16.gmra.mrb[0].mxu0 %v482
      %v830 = vpop.f32.mrb[0].mxu0
      %v831 = vadd.f32 0.0, %v830
      %v832 = vpop.f32.mrb[0].mxu0
      %v833 = vpop.f32.mrb[0].mxu0
      %v834 = vadd.f32 0.0, %v833
      %v835 = vpop.f32.mrb[0].mxu0
      %836 = vmatprep.mubr.bf16.mxu0 %v485
      %837 = vmatmul.mubr.bf16.gmra.mrb[0].mxu0 %v484
      %v838 = vpop.f32.mrb[0].mxu0
      %v839 = vadd.f32 0.0, %v838
      %v840 = vpop.f32.mrb[0].mxu0
      %v841 = vpop.f32.mrb[0].mxu0
      %v842 = vadd.f32 0.0, %v841
      %v843 = vpop.f32.mrb[0].mxu0
      %844 = vmatprep.mubr.bf16.mxu0 %v487
      %845 = vmatmul.mubr.bf16.gmra.mrb[0].mxu0 %v486
      %v846 = vpop.f32.mrb[0].mxu0
      %v847 = vadd.f32 0.0, %v846
      %v848 = vpop.f32.mrb[0].mxu0
      %v849 = vpop.f32.mrb[0].mxu0
      %v850 = vadd.f32 0.0, %v849
      %v851 = vpop.f32.mrb[0].mxu0
      %852 = vmatprep.mubr.bf16.mxu0 %v489
      %853 = vmatmul.mubr.bf16.gmra.mrb[0].mxu0 %v488
      %v854 = vpop.f32.mrb[0].mxu0
      %v855 = vadd.f32 0.0, %v854
      %v856 = vpop.f32.mrb[0].mxu0
      %v857 = vpop.f32.mrb[0].mxu0
      %v858 = vadd.f32 0.0, %v857
      %v859 = vpop.f32.mrb[0].mxu0
      %860 = vmatprep.mubr.bf16.mxu0 %v491
      %861 = vmatmul.mubr.bf16.gmra.mrb[0].mxu0 %v490
      %v862 = vpop.f32.mrb[0].mxu0
      %v863 = vadd.f32 0.0, %v862
      %v864 = vpop.f32.mrb[0].mxu0
      %v865 = vpop.f32.mrb[0].mxu0
      %v866 = vadd.f32 0.0, %v865
      %v867 = vpop.f32.mrb[0].mxu0
      %868 = vmatprep.mubr.bf16.mxu0 %v493
      %869 = vmatmul.mubr.bf16.gmra.mrb[0].mxu0 %v492
      %v870 = vpop.f32.mrb[0].mxu0
      %v871 = vadd.f32 0.0, %v870
      %v872 = vpop.f32.mrb[0].mxu0
      %v873 = vpop.f32.mrb[0].mxu0
      %v874 = vadd.f32 0.0, %v873
      %v875 = vpop.f32.mrb[0].mxu0
      %876 = vmatprep.mubr.bf16.mxu0 %v495
      %877 = vmatmul.mubr.bf16.gmra.mrb[0].mxu0 %v494
      %v878 = vpop.f32.mrb[0].mxu0
      %v879 = vadd.f32 0.0, %v878
      %v880 = vpop.f32.mrb[0].mxu0
      %v881 = vpop.f32.mrb[0].mxu0
      %v882 = vadd.f32 0.0, %v881
      %v883 = vpop.f32.mrb[0].mxu0
      %884 = vmatprep.mubr.bf16.mxu0 %v497
      %885 = vmatmul.mubr.bf16.gmra.mrb[0].mxu0 %v496
      %v886 = vpop.f32.mrb[0].mxu0
      %v887 = vadd.f32 0.0, %v886
      %v888 = vpop.f32.mrb[0].mxu0
      %v889 = vpop.f32.mrb[0].mxu0
      %v890 = vadd.f32 0.0, %v889
      %v891 = vpop.f32.mrb[0].mxu0
      %892 = vmatprep.mubr.bf16.mxu0 %v499
      %893 = vmatmul.mubr.bf16.gmra.mrb[0].mxu0 %v498
      %v894 = vpop.f32.mrb[0].mxu0
      %v895 = vadd.f32 0.0, %v894
      %v896 = vpop.f32.mrb[0].mxu0
      %v897 = vpop.f32.mrb[0].mxu0
      %v898 = vadd.f32 0.0, %v897
      %v899 = vpop.f32.mrb[0].mxu0
      %900 = vmatprep.mubr.bf16.mxu0 %v501
      %901 = vmatmul.mubr.bf16.gmra.mrb[0].mxu0 %v500
      %v902 = vpop.f32.mrb[0].mxu0
      %v903 = vadd.f32 0.0, %v902
      %v904 = vpop.f32.mrb[0].mxu0
      %v905 = vpop.f32.mrb[0].mxu0
      %v906 = vadd.f32 0.0, %v905
      %v907 = vpop.f32.mrb[0].mxu0
      %908 = vmatprep.mubr.bf16.mxu0 %v503
      %909 = vmatmul.mubr.bf16.gmra.mrb[0].mxu0 %v502
      %v910 = vpop.f32.mrb[0].mxu0
      %v911 = vadd.f32 0.0, %v910
      %v912 = vpop.f32.mrb[0].mxu0
      %v913 = vpop.f32.mrb[0].mxu0
      %v914 = vadd.f32 0.0, %v913
      %v915 = vpop.f32.mrb[0].mxu0
      %916 = vmatprep.mubr.bf16.mxu0 %v505
      %917 = vmatmul.mubr.bf16.gmra.mrb[0].mxu0 %v504
      %v918 = vpop.f32.mrb[0].mxu0
      %v919 = vadd.f32 0.0, %v918
      %v920 = vpop.f32.mrb[0].mxu0
      %v921 = vpop.f32.mrb[0].mxu0
      %v922 = vadd.f32 0.0, %v921
      %v923 = vpop.f32.mrb[0].mxu0
      %924 = vmatprep.mubr.bf16.mxu0 %v507
      %925 = vmatmul.mubr.bf16.gmra.mrb[0].mxu0 %v506
      %v926 = vpop.f32.mrb[0].mxu0
      %v927 = vadd.f32 0.0, %v926
      %v928 = vpop.f32.mrb[0].mxu0
      %v929 = vpop.f32.mrb[0].mxu0
      %v930 = vadd.f32 0.0, %v929
      %v931 = vpop.f32.mrb[0].mxu0
      %932 = vmatprep.mubr.bf16.mxu0 %v509
      %933 = vmatmul.mubr.bf16.gmra.mrb[0].mxu0 %v508
      %v934 = vpop.f32.mrb[0].mxu0
      %v935 = vadd.f32 0.0, %v934
      %v936 = vpop.f32.mrb[0].mxu0
      %v937 = vpop.f32.mrb[0].mxu0
      %v938 = vadd.f32 0.0, %v937
      %v939 = vpop.f32.mrb[0].mxu0
      %940 = vmatprep.mubr.bf16.mxu0 %v511
      %941 = vmatmul.mubr.bf16.gmra.mrb[0].mxu0 %v510
      %v942 = vpop.f32.mrb[0].mxu0
      %v943 = vadd.f32 0.0, %v942
      %v944 = vpop.f32.mrb[0].mxu0
      %v945 = vpop.f32.mrb[0].mxu0
      %v946 = vadd.f32 0.0, %v945
      %v947 = vpop.f32.mrb[0].mxu0
      %948 = vmatprep.mubr.bf16.mxu0 %v513
      %949 = vmatmul.mubr.bf16.gmra.mrb[0].mxu0 %v512
      %v950 = vpop.f32.mrb[0].mxu0
      %v951 = vadd.f32 0.0, %v950
      %v952 = vpop.f32.mrb[0].mxu0
      %v953 = vpop.f32.mrb[0].mxu0
      %v954 = vadd.f32 0.0, %v953
      %v955 = vpop.f32.mrb[0].mxu0
      %956 = vmatprep.mubr.bf16.mxu0 %v515
      %957 = vmatmul.mubr.bf16.gmra.mrb[0].mxu0 %v514
      %v958 = vpop.f32.mrb[0].mxu0
      %v959 = vadd.f32 0.0, %v958
      %v960 = vpop.f32.mrb[0].mxu0
      %v961 = vpop.f32.mrb[0].mxu0
      %v962 = vadd.f32 0.0, %v961
      %v963 = vpop.f32.mrb[0].mxu0
      %964 = vdwg.mxu0
      %p965 = scmp.eq.s32.totalorder %s18, 0
      %p966 = pnand %p163, %p965
      %p967 = pneg %p966
      // Predicated region
      $region29: #{discriminator_forward.6} parent=27 // pred_check
        _
      $region30: #{discriminator_forward.6} parent=27 // pred_check_branch
        %969 = sbr.rel (%p966) target = $region32
      $region31: #{discriminator_forward.6} parent=27 // pred_region
        %970 = vst [vmem:[#allocation2] sm:$0x1] 0.0
        %971 = vst [vmem:[#allocation3] sm:$0x1] 0.0
      $region32: #{discriminator_forward.6} parent=27 // pred_fallthru
        _
      // Predicated region
      $region33: #{discriminator_forward.6} parent=27 // pred_check
        %p972 = pneg %p163
      $region34: #{discriminator_forward.6} parent=27 // pred_check_branch
        %974 = sbr.rel (%p972) target = $region36
      $region35: #{discriminator_forward.6} parent=27 // pred_region
        %v975 = vld [vmem:[#allocation2] sm:$0x1]
        %v976 = vadd.f32 %v711, %v714
        %v977 = vadd.f32 %v976, %v719
        %v978 = vadd.f32 %v977, %v722
        %v979 = vadd.f32 %v978, %v727
        %v980 = vadd.f32 %v979, %v730
        %v981 = vadd.f32 %v980, %v735
        %v982 = vadd.f32 %v981, %v738
        %v983 = vadd.f32 %v982, %v743
        %v984 = vadd.f32 %v983, %v746
        %v985 = vadd.f32 %v984, %v751
        %v986 = vadd.f32 %v985, %v754
        %v987 = vadd.f32 %v986, %v759
        %v988 = vadd.f32 %v987, %v762
        %v989 = vadd.f32 %v988, %v767
        %v990 = vadd.f32 %v989, %v770
        %v991 = vadd.f32 %v990, %v775
        %v992 = vadd.f32 %v991, %v778
        %v993 = vadd.f32 %v992, %v783
        %v994 = vadd.f32 %v993, %v786
        %v995 = vadd.f32 %v994, %v791
        %v996 = vadd.f32 %v995, %v794
        %v997 = vadd.f32 %v996, %v799
        %v998 = vadd.f32 %v997, %v802
        %v999 = vadd.f32 %v998, %v807
        %v1000 = vadd.f32 %v999, %v810
        %v1001 = vadd.f32 %v1000, %v815
        %v1002 = vadd.f32 %v1001, %v818
        %v1003 = vadd.f32 %v1002, %v823
        %v1004 = vadd.f32 %v1003, %v826
        %v1005 = vadd.f32 %v1004, %v831
        %v1006 = vadd.f32 %v1005, %v834
        %v1007 = vadd.f32 %v1006, %v839
        %v1008 = vadd.f32 %v1007, %v842
        %v1009 = vadd.f32 %v1008, %v847
        %v1010 = vadd.f32 %v1009, %v850
        %v1011 = vadd.f32 %v1010, %v855
        %v1012 = vadd.f32 %v1011, %v858
        %v1013 = vadd.f32 %v1012, %v863
        %v1014 = vadd.f32 %v1013, %v866
        %v1015 = vadd.f32 %v1014, %v871
        %v1016 = vadd.f32 %v1015, %v874
        %v1017 = vadd.f32 %v1016, %v879
        %v1018 = vadd.f32 %v1017, %v882
        %v1019 = vadd.f32 %v1018, %v887
        %v1020 = vadd.f32 %v1019, %v890
        %v1021 = vadd.f32 %v1020, %v895
        %v1022 = vadd.f32 %v1021, %v898
        %v1023 = vadd.f32 %v1022, %v903
        %v1024 = vadd.f32 %v1023, %v906
        %v1025 = vadd.f32 %v1024, %v911
        %v1026 = vadd.f32 %v1025, %v914
        %v1027 = vadd.f32 %v1026, %v919
        %v1028 = vadd.f32 %v1027, %v922
        %v1029 = vadd.f32 %v1028, %v927
        %v1030 = vadd.f32 %v1029, %v930
        %v1031 = vadd.f32 %v1030, %v935
        %v1032 = vadd.f32 %v1031, %v938
        %v1033 = vadd.f32 %v1032, %v943
        %v1034 = vadd.f32 %v1033, %v946
        %v1035 = vadd.f32 %v1034, %v951
        %v1036 = vadd.f32 %v1035, %v954
        %v1037 = vadd.f32 %v1036, %v959
        %v1038 = vadd.f32 %v1037, %v962
        %v1039 = vrot.slane %v1038, 4
        %v1040 = vadd.f32 %v1038, %v1039
        %v1041 = vrot.slane %v1040, 2
        %v1042 = vadd.f32 %v1040, %v1041
        %v1043 = vrot.slane %v1042, 1
        %v1044 = vadd.f32 %v1042, %v1043
        %v1045 = vadd.f32 %v975, %v1044
        %1046 = vst [vmem:[#allocation2] sm:$0x1] %v1045
        %v1047 = vld [vmem:[#allocation3] sm:$0x1]
        %v1048 = vmul.f32 %v711, %v711
        %v1049 = vmul.f32 %v714, %v714
        %v1050 = vmul.f32 %v719, %v719
        %v1051 = vmul.f32 %v722, %v722
        %v1052 = vmul.f32 %v727, %v727
        %v1053 = vmul.f32 %v730, %v730
        %v1054 = vmul.f32 %v735, %v735
        %v1055 = vmul.f32 %v738, %v738
        %v1056 = vmul.f32 %v743, %v743
        %v1057 = vmul.f32 %v746, %v746
        %v1058 = vmul.f32 %v751, %v751
        %v1059 = vmul.f32 %v754, %v754
        %v1060 = vmul.f32 %v759, %v759
        %v1061 = vmul.f32 %v762, %v762
        %v1062 = vmul.f32 %v767, %v767
        %v1063 = vmul.f32 %v770, %v770
        %v1064 = vmul.f32 %v775, %v775
        %v1065 = vmul.f32 %v778, %v778
        %v1066 = vmul.f32 %v783, %v783
        %v1067 = vmul.f32 %v786, %v786
        %v1068 = vmul.f32 %v791, %v791
        %v1069 = vmul.f32 %v794, %v794
        %v1070 = vmul.f32 %v799, %v799
        %v1071 = vmul.f32 %v802, %v802
        %v1072 = vmul.f32 %v807, %v807
        %v1073 = vmul.f32 %v810, %v810
        %v1074 = vmul.f32 %v815, %v815
        %v1075 = vmul.f32 %v818, %v818
        %v1076 = vmul.f32 %v823, %v823
        %v1077 = vmul.f32 %v826, %v826
        %v1078 = vmul.f32 %v831, %v831
        %v1079 = vmul.f32 %v834, %v834
        %v1080 = vmul.f32 %v839, %v839
        %v1081 = vmul.f32 %v842, %v842
        %v1082 = vmul.f32 %v847, %v847
        %v1083 = vmul.f32 %v850, %v850
        %v1084 = vmul.f32 %v855, %v855
        %v1085 = vmul.f32 %v858, %v858
        %v1086 = vmul.f32 %v863, %v863
        %v1087 = vmul.f32 %v866, %v866
        %v1088 = vmul.f32 %v871, %v871
        %v1089 = vmul.f32 %v874, %v874
        %v1090 = vmul.f32 %v879, %v879
        %v1091 = vmul.f32 %v882, %v882
        %v1092 = vmul.f32 %v887, %v887
        %v1093 = vmul.f32 %v890, %v890
        %v1094 = vmul.f32 %v895, %v895
        %v1095 = vmul.f32 %v898, %v898
        %v1096 = vmul.f32 %v903, %v903
        %v1097 = vmul.f32 %v906, %v906
        %v1098 = vmul.f32 %v911, %v911
        %v1099 = vmul.f32 %v914, %v914
        %v1100 = vmul.f32 %v919, %v919
        %v1101 = vmul.f32 %v922, %v922
        %v1102 = vmul.f32 %v927, %v927
        %v1103 = vmul.f32 %v930, %v930
        %v1104 = vmul.f32 %v935, %v935
        %v1105 = vmul.f32 %v938, %v938
        %v1106 = vmul.f32 %v943, %v943
        %v1107 = vmul.f32 %v946, %v946
        %v1108 = vmul.f32 %v951, %v951
        %v1109 = vmul.f32 %v954, %v954
        %v1110 = vmul.f32 %v959, %v959
        %v1111 = vmul.f32 %v962, %v962
        %v1112 = vadd.f32 %v1048, %v1049
        %v1113 = vadd.f32 %v1112, %v1050
        %v1114 = vadd.f32 %v1113, %v1051
        %v1115 = vadd.f32 %v1114, %v1052
        %v1116 = vadd.f32 %v1115, %v1053
        %v1117 = vadd.f32 %v1116, %v1054
        %v1118 = vadd.f32 %v1117, %v1055
        %v1119 = vadd.f32 %v1118, %v1056
        %v1120 = vadd.f32 %v1119, %v1057
        %v1121 = vadd.f32 %v1120, %v1058
        %v1122 = vadd.f32 %v1121, %v1059
        %v1123 = vadd.f32 %v1122, %v1060
        %v1124 = vadd.f32 %v1123, %v1061
        %v1125 = vadd.f32 %v1124, %v1062
        %v1126 = vadd.f32 %v1125, %v1063
        %v1127 = vadd.f32 %v1126, %v1064
        %v1128 = vadd.f32 %v1127, %v1065
        %v1129 = vadd.f32 %v1128, %v1066
        %v1130 = vadd.f32 %v1129, %v1067
        %v1131 = vadd.f32 %v1130, %v1068
        %v1132 = vadd.f32 %v1131, %v1069
        %v1133 = vadd.f32 %v1132, %v1070
        %v1134 = vadd.f32 %v1133, %v1071
        %v1135 = vadd.f32 %v1134, %v1072
        %v1136 = vadd.f32 %v1135, %v1073
        %v1137 = vadd.f32 %v1136, %v1074
        %v1138 = vadd.f32 %v1137, %v1075
        %v1139 = vadd.f32 %v1138, %v1076
        %v1140 = vadd.f32 %v1139, %v1077
        %v1141 = vadd.f32 %v1140, %v1078
        %v1142 = vadd.f32 %v1141, %v1079
        %v1143 = vadd.f32 %v1142, %v1080
        %v1144 = vadd.f32 %v1143, %v1081
        %v1145 = vadd.f32 %v1144, %v1082
        %v1146 = vadd.f32 %v1145, %v1083
        %v1147 = vadd.f32 %v1146, %v1084
        %v1148 = vadd.f32 %v1147, %v1085
        %v1149 = vadd.f32 %v1148, %v1086
        %v1150 = vadd.f32 %v1149, %v1087
        %v1151 = vadd.f32 %v1150, %v1088
        %v1152 = vadd.f32 %v1151, %v1089
        %v1153 = vadd.f32 %v1152, %v1090
        %v1154 = vadd.f32 %v1153, %v1091
        %v1155 = vadd.f32 %v1154, %v1092
        %v1156 = vadd.f32 %v1155, %v1093
        %v1157 = vadd.f32 %v1156, %v1094
        %v1158 = vadd.f32 %v1157, %v1095
        %v1159 = vadd.f32 %v1158, %v1096
        %v1160 = vadd.f32 %v1159, %v1097
        %v1161 = vadd.f32 %v1160, %v1098
        %v1162 = vadd.f32 %v1161, %v1099
        %v1163 = vadd.f32 %v1162, %v1100
        %v1164 = vadd.f32 %v1163, %v1101
        %v1165 = vadd.f32 %v1164, %v1102
        %v1166 = vadd.f32 %v1165, %v1103
        %v1167 = vadd.f32 %v1166, %v1104
        %v1168 = vadd.f32 %v1167, %v1105
        %v1169 = vadd.f32 %v1168, %v1106
        %v1170 = vadd.f32 %v1169, %v1107
        %v1171 = vadd.f32 %v1170, %v1108
        %v1172 = vadd.f32 %v1171, %v1109
        %v1173 = vadd.f32 %v1172, %v1110
        %v1174 = vadd.f32 %v1173, %v1111
        %v1175 = vrot.slane %v1174, 4
        %v1176 = vadd.f32 %v1174, %v1175
        %v1177 = vrot.slane %v1176, 2
        %v1178 = vadd.f32 %v1176, %v1177
        %v1179 = vrot.slane %v1178, 1
        %v1180 = vadd.f32 %v1178, %v1179
        %v1181 = vadd.f32 %v1047, %v1180
        %1182 = vst [vmem:[#allocation3] sm:$0x1] %v1181
      $region36: #{discriminator_forward.6} parent=27 // pred_fallthru
        _
      // Predicated region
      $region37: #{discriminator_forward.6} parent=27 // pred_check
        _
      $region38: #{discriminator_forward.6} parent=27 // pred_check_branch
        %1184 = sbr.rel (%p966) target = $region40
      $region39: #{discriminator_forward.6} parent=27 // pred_region
        %v1185 = vld [vmem:[#allocation2] sm:$0x1]
        %v1186 = vmul.f32 %v1185, 0.001953125
        %v1187 = vld [vmem:[#allocation3] sm:$0x1]
        %v1188 = vmul.f32 %v1187, 0.001953125
        %v1189 = vmul.f32 %v1186, %v1186
        %v1190 = vsub.f32 %v1188, %v1189
        %v1191 = vmax.f32 %v1190, 0.0
        %1192 = vst [vmem:[#allocation2] sm:$0x1] %v1186
        %v1193 = vadd.f32 %v1191, 1e-05
        %v1194 = vrsqrt.pop %v1193
        %1195 = vst [vmem:[#allocation3] sm:$0x1] %v1194
      $region40: #{discriminator_forward.6} parent=27 // pred_fallthru
        _
      %p1196 = scmp.ne.s32.totalorder %s17, 0
      // Predicated region
      $region41: #{discriminator_forward.6} parent=27 // pred_check
        %p1197 = pneg %p1196
      $region42: #{discriminator_forward.6} parent=27 // pred_check_branch
        %1199 = sbr.rel (%p1197) target = $region44
      $region43: #{discriminator_forward.6} parent=27 // pred_region
        %v1200 = vld [vmem:[#allocation2] sm:$0x1]
        %v1202 = vlaneseq
        %v1203 = vshrl.u32 %v1202, 7
        %v1204 = vsub.s32 0, %v1203
        %v1205 = vrot.slane %v1200, %v1204
        %v1207 = vsub.f32 %v711, %v1205
        %v1208 = vsub.f32 %v714, %v1205
        %v1209 = vsub.f32 %v719, %v1205
        %v1210 = vsub.f32 %v722, %v1205
        %v1211 = vsub.f32 %v727, %v1205
        %v1212 = vsub.f32 %v730, %v1205
        %v1213 = vsub.f32 %v735, %v1205
        %v1214 = vsub.f32 %v738, %v1205
        %v1215 = vsub.f32 %v743, %v1205
        %v1216 = vsub.f32 %v746, %v1205
        %v1217 = vsub.f32 %v751, %v1205
        %v1218 = vsub.f32 %v754, %v1205
        %v1219 = vsub.f32 %v759, %v1205
        %v1220 = vsub.f32 %v762, %v1205
        %v1221 = vsub.f32 %v767, %v1205
        %v1222 = vsub.f32 %v770, %v1205
        %v1223 = vsub.f32 %v775, %v1205
        %v1224 = vsub.f32 %v778, %v1205
        %v1225 = vsub.f32 %v783, %v1205
        %v1226 = vsub.f32 %v786, %v1205
        %v1227 = vsub.f32 %v791, %v1205
        %v1228 = vsub.f32 %v794, %v1205
        %v1229 = vsub.f32 %v799, %v1205
        %v1230 = vsub.f32 %v802, %v1205
        %v1231 = vsub.f32 %v807, %v1205
        %v1232 = vsub.f32 %v810, %v1205
        %v1233 = vsub.f32 %v815, %v1205
        %v1234 = vsub.f32 %v818, %v1205
        %v1235 = vsub.f32 %v823, %v1205
        %v1236 = vsub.f32 %v826, %v1205
        %v1237 = vsub.f32 %v831, %v1205
        %v1238 = vsub.f32 %v834, %v1205
        %v1239 = vsub.f32 %v839, %v1205
        %v1240 = vsub.f32 %v842, %v1205
        %v1241 = vsub.f32 %v847, %v1205
        %v1242 = vsub.f32 %v850, %v1205
        %v1243 = vsub.f32 %v855, %v1205
        %v1244 = vsub.f32 %v858, %v1205
        %v1245 = vsub.f32 %v863, %v1205
        %v1246 = vsub.f32 %v866, %v1205
        %v1247 = vsub.f32 %v871, %v1205
        %v1248 = vsub.f32 %v874, %v1205
        %v1249 = vsub.f32 %v879, %v1205
        %v1250 = vsub.f32 %v882, %v1205
        %v1251 = vsub.f32 %v887, %v1205
        %v1252 = vsub.f32 %v890, %v1205
        %v1253 = vsub.f32 %v895, %v1205
        %v1254 = vsub.f32 %v898, %v1205
        %v1255 = vsub.f32 %v903, %v1205
        %v1256 = vsub.f32 %v906, %v1205
        %v1257 = vsub.f32 %v911, %v1205
        %v1258 = vsub.f32 %v914, %v1205
        %v1259 = vsub.f32 %v919, %v1205
        %v1260 = vsub.f32 %v922, %v1205
        %v1261 = vsub.f32 %v927, %v1205
        %v1262 = vsub.f32 %v930, %v1205
        %v1263 = vsub.f32 %v935, %v1205
        %v1264 = vsub.f32 %v938, %v1205
        %v1265 = vsub.f32 %v943, %v1205
        %v1266 = vsub.f32 %v946, %v1205
        %v1267 = vsub.f32 %v951, %v1205
        %v1268 = vsub.f32 %v954, %v1205
        %v1269 = vsub.f32 %v959, %v1205
        %v1270 = vsub.f32 %v962, %v1205
        %v1271 = vld [vmem:[#allocation3] sm:$0x1]
        %v1273 = vlaneseq
        %v1274 = vshrl.u32 %v1273, 7
        %v1275 = vsub.s32 0, %v1274
        %v1276 = vrot.slane %v1271, %v1275
        %v1278 = vmul.f32 %v1207, %v1276
        %v1279 = vmul.f32 %v1208, %v1276
        %v1280 = vmul.f32 %v1209, %v1276
        %v1281 = vmul.f32 %v1210, %v1276
        %v1282 = vmul.f32 %v1211, %v1276
        %v1283 = vmul.f32 %v1212, %v1276
        %v1284 = vmul.f32 %v1213, %v1276
        %v1285 = vmul.f32 %v1214, %v1276
        %v1286 = vmul.f32 %v1215, %v1276
        %v1287 = vmul.f32 %v1216, %v1276
        %v1288 = vmul.f32 %v1217, %v1276
        %v1289 = vmul.f32 %v1218, %v1276
        %v1290 = vmul.f32 %v1219, %v1276
        %v1291 = vmul.f32 %v1220, %v1276
        %v1292 = vmul.f32 %v1221, %v1276
        %v1293 = vmul.f32 %v1222, %v1276
        %v1294 = vmul.f32 %v1223, %v1276
        %v1295 = vmul.f32 %v1224, %v1276
        %v1296 = vmul.f32 %v1225, %v1276
        %v1297 = vmul.f32 %v1226, %v1276
        %v1298 = vmul.f32 %v1227, %v1276
        %v1299 = vmul.f32 %v1228, %v1276
        %v1300 = vmul.f32 %v1229, %v1276
        %v1301 = vmul.f32 %v1230, %v1276
        %v1302 = vmul.f32 %v1231, %v1276
        %v1303 = vmul.f32 %v1232, %v1276
        %v1304 = vmul.f32 %v1233, %v1276
        %v1305 = vmul.f32 %v1234, %v1276
        %v1306 = vmul.f32 %v1235, %v1276
        %v1307 = vmul.f32 %v1236, %v1276
        %v1308 = vmul.f32 %v1237, %v1276
        %v1309 = vmul.f32 %v1238, %v1276
        %v1310 = vmul.f32 %v1239, %v1276
        %v1311 = vmul.f32 %v1240, %v1276
        %v1312 = vmul.f32 %v1241, %v1276
        %v1313 = vmul.f32 %v1242, %v1276
        %v1314 = vmul.f32 %v1243, %v1276
        %v1315 = vmul.f32 %v1244, %v1276
        %v1316 = vmul.f32 %v1245, %v1276
        %v1317 = vmul.f32 %v1246, %v1276
        %v1318 = vmul.f32 %v1247, %v1276
        %v1319 = vmul.f32 %v1248, %v1276
        %v1320 = vmul.f32 %v1249, %v1276
        %v1321 = vmul.f32 %v1250, %v1276
        %v1322 = vmul.f32 %v1251, %v1276
        %v1323 = vmul.f32 %v1252, %v1276
        %v1324 = vmul.f32 %v1253, %v1276
        %v1325 = vmul.f32 %v1254, %v1276
        %v1326 = vmul.f32 %v1255, %v1276
        %v1327 = vmul.f32 %v1256, %v1276
        %v1328 = vmul.f32 %v1257, %v1276
        %v1329 = vmul.f32 %v1258, %v1276
        %v1330 = vmul.f32 %v1259, %v1276
        %v1331 = vmul.f32 %v1260, %v1276
        %v1332 = vmul.f32 %v1261, %v1276
        %v1333 = vmul.f32 %v1262, %v1276
        %v1334 = vmul.f32 %v1263, %v1276
        %v1335 = vmul.f32 %v1264, %v1276
        %v1336 = vmul.f32 %v1265, %v1276
        %v1337 = vmul.f32 %v1266, %v1276
        %v1338 = vmul.f32 %v1267, %v1276
        %v1339 = vmul.f32 %v1268, %v1276
        %v1340 = vmul.f32 %v1269, %v1276
        %v1341 = vmul.f32 %v1270, %v1276
        %vm1342 = vcmp.gt.f32.partialorder %v1278, 0.0
        %vm1343 = vcmp.gt.f32.partialorder %v1279, 0.0
        %vm1344 = vcmp.gt.f32.partialorder %v1280, 0.0
        %vm1345 = vcmp.gt.f32.partialorder %v1281, 0.0
        %vm1346 = vcmp.gt.f32.partialorder %v1282, 0.0
        %vm1347 = vcmp.gt.f32.partialorder %v1283, 0.0
        %vm1348 = vcmp.gt.f32.partialorder %v1284, 0.0
        %vm1349 = vcmp.gt.f32.partialorder %v1285, 0.0
        %vm1350 = vcmp.gt.f32.partialorder %v1286, 0.0
        %vm1351 = vcmp.gt.f32.partialorder %v1287, 0.0
        %vm1352 = vcmp.gt.f32.partialorder %v1288, 0.0
        %vm1353 = vcmp.gt.f32.partialorder %v1289, 0.0
        %vm1354 = vcmp.gt.f32.partialorder %v1290, 0.0
        %vm1355 = vcmp.gt.f32.partialorder %v1291, 0.0
        %vm1356 = vcmp.gt.f32.partialorder %v1292, 0.0
        %vm1357 = vcmp.gt.f32.partialorder %v1293, 0.0
        %vm1358 = vcmp.gt.f32.partialorder %v1294, 0.0
        %vm1359 = vcmp.gt.f32.partialorder %v1295, 0.0
        %vm1360 = vcmp.gt.f32.partialorder %v1296, 0.0
        %vm1361 = vcmp.gt.f32.partialorder %v1297, 0.0
        %vm1362 = vcmp.gt.f32.partialorder %v1298, 0.0
        %vm1363 = vcmp.gt.f32.partialorder %v1299, 0.0
        %vm1364 = vcmp.gt.f32.partialorder %v1300, 0.0
        %vm1365 = vcmp.gt.f32.partialorder %v1301, 0.0
        %vm1366 = vcmp.gt.f32.partialorder %v1302, 0.0
        %vm1367 = vcmp.gt.f32.partialorder %v1303, 0.0
        %vm1368 = vcmp.gt.f32.partialorder %v1304, 0.0
        %vm1369 = vcmp.gt.f32.partialorder %v1305, 0.0
        %vm1370 = vcmp.gt.f32.partialorder %v1306, 0.0
        %vm1371 = vcmp.gt.f32.partialorder %v1307, 0.0
        %vm1372 = vcmp.gt.f32.partialorder %v1308, 0.0
        %vm1373 = vcmp.gt.f32.partialorder %v1309, 0.0
        %vm1374 = vcmp.gt.f32.partialorder %v1310, 0.0
        %vm1375 = vcmp.gt.f32.partialorder %v1311, 0.0
        %vm1376 = vcmp.gt.f32.partialorder %v1312, 0.0
        %vm1377 = vcmp.gt.f32.partialorder %v1313, 0.0
        %vm1378 = vcmp.gt.f32.partialorder %v1314, 0.0
        %vm1379 = vcmp.gt.f32.partialorder %v1315, 0.0
        %vm1380 = vcmp.gt.f32.partialorder %v1316, 0.0
        %vm1381 = vcmp.gt.f32.partialorder %v1317, 0.0
        %vm1382 = vcmp.gt.f32.partialorder %v1318, 0.0
        %vm1383 = vcmp.gt.f32.partialorder %v1319, 0.0
        %vm1384 = vcmp.gt.f32.partialorder %v1320, 0.0
        %vm1385 = vcmp.gt.f32.partialorder %v1321, 0.0
        %vm1386 = vcmp.gt.f32.partialorder %v1322, 0.0
        %vm1387 = vcmp.gt.f32.partialorder %v1323, 0.0
        %vm1388 = vcmp.gt.f32.partialorder %v1324, 0.0
        %vm1389 = vcmp.gt.f32.partialorder %v1325, 0.0
        %vm1390 = vcmp.gt.f32.partialorder %v1326, 0.0
        %vm1391 = vcmp.gt.f32.partialorder %v1327, 0.0
        %vm1392 = vcmp.gt.f32.partialorder %v1328, 0.0
        %vm1393 = vcmp.gt.f32.partialorder %v1329, 0.0
        %vm1394 = vcmp.gt.f32.partialorder %v1330, 0.0
        %vm1395 = vcmp.gt.f32.partialorder %v1331, 0.0
        %vm1396 = vcmp.gt.f32.partialorder %v1332, 0.0
        %vm1397 = vcmp.gt.f32.partialorder %v1333, 0.0
        %vm1398 = vcmp.gt.f32.partialorder %v1334, 0.0
        %vm1399 = vcmp.gt.f32.partialorder %v1335, 0.0
        %vm1400 = vcmp.gt.f32.partialorder %v1336, 0.0
        %vm1401 = vcmp.gt.f32.partialorder %v1337, 0.0
        %vm1402 = vcmp.gt.f32.partialorder %v1338, 0.0
        %vm1403 = vcmp.gt.f32.partialorder %v1339, 0.0
        %vm1404 = vcmp.gt.f32.partialorder %v1340, 0.0
        %vm1405 = vcmp.gt.f32.partialorder %v1341, 0.0
        %v1406 = vmul.f32 %v1278, 0.2
        %v1407 = vmul.f32 %v1279, 0.2
        %v1408 = vmul.f32 %v1280, 0.2
        %v1409 = vmul.f32 %v1281, 0.2
        %v1410 = vmul.f32 %v1282, 0.2
        %v1411 = vmul.f32 %v1283, 0.2
        %v1412 = vmul.f32 %v1284, 0.2
        %v1413 = vmul.f32 %v1285, 0.2
        %v1414 = vmul.f32 %v1286, 0.2
        %v1415 = vmul.f32 %v1287, 0.2
        %v1416 = vmul.f32 %v1288, 0.2
        %v1417 = vmul.f32 %v1289, 0.2
        %v1418 = vmul.f32 %v1290, 0.2
        %v1419 = vmul.f32 %v1291, 0.2
        %v1420 = vmul.f32 %v1292, 0.2
        %v1421 = vmul.f32 %v1293, 0.2
        %v1422 = vmul.f32 %v1294, 0.2
        %v1423 = vmul.f32 %v1295, 0.2
        %v1424 = vmul.f32 %v1296, 0.2
        %v1425 = vmul.f32 %v1297, 0.2
        %v1426 = vmul.f32 %v1298, 0.2
        %v1427 = vmul.f32 %v1299, 0.2
        %v1428 = vmul.f32 %v1300, 0.2
        %v1429 = vmul.f32 %v1301, 0.2
        %v1430 = vmul.f32 %v1302, 0.2
        %v1431 = vmul.f32 %v1303, 0.2
        %v1432 = vmul.f32 %v1304, 0.2
        %v1433 = vmul.f32 %v1305, 0.2
        %v1434 = vmul.f32 %v1306, 0.2
        %v1435 = vmul.f32 %v1307, 0.2
        %v1436 = vmul.f32 %v1308, 0.2
        %v1437 = vmul.f32 %v1309, 0.2
        %v1438 = vmul.f32 %v1310, 0.2
        %v1439 = vmul.f32 %v1311, 0.2
        %v1440 = vmul.f32 %v1312, 0.2
        %v1441 = vmul.f32 %v1313, 0.2
        %v1442 = vmul.f32 %v1314, 0.2
        %v1443 = vmul.f32 %v1315, 0.2
        %v1444 = vmul.f32 %v1316, 0.2
        %v1445 = vmul.f32 %v1317, 0.2
        %v1446 = vmul.f32 %v1318, 0.2
        %v1447 = vmul.f32 %v1319, 0.2
        %v1448 = vmul.f32 %v1320, 0.2
        %v1449 = vmul.f32 %v1321, 0.2
        %v1450 = vmul.f32 %v1322, 0.2
        %v1451 = vmul.f32 %v1323, 0.2
        %v1452 = vmul.f32 %v1324, 0.2
        %v1453 = vmul.f32 %v1325, 0.2
        %v1454 = vmul.f32 %v1326, 0.2
        %v1455 = vmul.f32 %v1327, 0.2
        %v1456 = vmul.f32 %v1328, 0.2
        %v1457 = vmul.f32 %v1329, 0.2
        %v1458 = vmul.f32 %v1330, 0.2
        %v1459 = vmul.f32 %v1331, 0.2
        %v1460 = vmul.f32 %v1332, 0.2
        %v1461 = vmul.f32 %v1333, 0.2
        %v1462 = vmul.f32 %v1334, 0.2
        %v1463 = vmul.f32 %v1335, 0.2
        %v1464 = vmul.f32 %v1336, 0.2
        %v1465 = vmul.f32 %v1337, 0.2
        %v1466 = vmul.f32 %v1338, 0.2
        %v1467 = vmul.f32 %v1339, 0.2
        %v1468 = vmul.f32 %v1340, 0.2
        %v1469 = vmul.f32 %v1341, 0.2
        %v1470 = vsel %vm1342, %v1278, %v1406
        %v1471 = vsel %vm1343, %v1279, %v1407
        %v1472 = vsel %vm1344, %v1280, %v1408
        %v1473 = vsel %vm1345, %v1281, %v1409
        %v1474 = vsel %vm1346, %v1282, %v1410
        %v1475 = vsel %vm1347, %v1283, %v1411
        %v1476 = vsel %vm1348, %v1284, %v1412
        %v1477 = vsel %vm1349, %v1285, %v1413
        %v1478 = vsel %vm1350, %v1286, %v1414
        %v1479 = vsel %vm1351, %v1287, %v1415
        %v1480 = vsel %vm1352, %v1288, %v1416
        %v1481 = vsel %vm1353, %v1289, %v1417
        %v1482 = vsel %vm1354, %v1290, %v1418
        %v1483 = vsel %vm1355, %v1291, %v1419
        %v1484 = vsel %vm1356, %v1292, %v1420
        %v1485 = vsel %vm1357, %v1293, %v1421
        %v1486 = vsel %vm1358, %v1294, %v1422
        %v1487 = vsel %vm1359, %v1295, %v1423
        %v1488 = vsel %vm1360, %v1296, %v1424
        %v1489 = vsel %vm1361, %v1297, %v1425
        %v1490 = vsel %vm1362, %v1298, %v1426
        %v1491 = vsel %vm1363, %v1299, %v1427
        %v1492 = vsel %vm1364, %v1300, %v1428
        %v1493 = vsel %vm1365, %v1301, %v1429
        %v1494 = vsel %vm1366, %v1302, %v1430
        %v1495 = vsel %vm1367, %v1303, %v1431
        %v1496 = vsel %vm1368, %v1304, %v1432
        %v1497 = vsel %vm1369, %v1305, %v1433
        %v1498 = vsel %vm1370, %v1306, %v1434
        %v1499 = vsel %vm1371, %v1307, %v1435
        %v1500 = vsel %vm1372, %v1308, %v1436
        %v1501 = vsel %vm1373, %v1309, %v1437
        %v1502 = vsel %vm1374, %v1310, %v1438
        %v1503 = vsel %vm1375, %v1311, %v1439
        %v1504 = vsel %vm1376, %v1312, %v1440
        %v1505 = vsel %vm1377, %v1313, %v1441
        %v1506 = vsel %vm1378, %v1314, %v1442
        %v1507 = vsel %vm1379, %v1315, %v1443
        %v1508 = vsel %vm1380, %v1316, %v1444
        %v1509 = vsel %vm1381, %v1317, %v1445
        %v1510 = vsel %vm1382, %v1318, %v1446
        %v1511 = vsel %vm1383, %v1319, %v1447
        %v1512 = vsel %vm1384, %v1320, %v1448
        %v1513 = vsel %vm1385, %v1321, %v1449
        %v1514 = vsel %vm1386, %v1322, %v1450
        %v1515 = vsel %vm1387, %v1323, %v1451
        %v1516 = vsel %vm1388, %v1324, %v1452
        %v1517 = vsel %vm1389, %v1325, %v1453
        %v1518 = vsel %vm1390, %v1326, %v1454
        %v1519 = vsel %vm1391, %v1327, %v1455
        %v1520 = vsel %vm1392, %v1328, %v1456
        %v1521 = vsel %vm1393, %v1329, %v1457
        %v1522 = vsel %vm1394, %v1330, %v1458
        %v1523 = vsel %vm1395, %v1331, %v1459
        %v1524 = vsel %vm1396, %v1332, %v1460
        %v1525 = vsel %vm1397, %v1333, %v1461
        %v1526 = vsel %vm1398, %v1334, %v1462
        %v1527 = vsel %vm1399, %v1335, %v1463
        %v1528 = vsel %vm1400, %v1336, %v1464
        %v1529 = vsel %vm1401, %v1337, %v1465
        %v1530 = vsel %vm1402, %v1338, %v1466
        %v1531 = vsel %vm1403, %v1339, %v1467
        %v1532 = vsel %vm1404, %v1340, %v1468
        %v1533 = vsel %vm1405, %v1341, %v1469
        %v1534 = vpack.c.bf16 %v1471, %v1470
        %v1535 = vpack.c.bf16 %v1473, %v1472
        %v1536 = vpack.c.bf16 %v1475, %v1474
        %v1537 = vpack.c.bf16 %v1477, %v1476
        %v1538 = vpack.c.bf16 %v1479, %v1478
        %v1539 = vpack.c.bf16 %v1481, %v1480
        %v1540 = vpack.c.bf16 %v1483, %v1482
        %v1541 = vpack.c.bf16 %v1485, %v1484
        %v1542 = vpack.c.bf16 %v1487, %v1486
        %v1543 = vpack.c.bf16 %v1489, %v1488
        %v1544 = vpack.c.bf16 %v1491, %v1490
        %v1545 = vpack.c.bf16 %v1493, %v1492
        %v1546 = vpack.c.bf16 %v1495, %v1494
        %v1547 = vpack.c.bf16 %v1497, %v1496
        %v1548 = vpack.c.bf16 %v1499, %v1498
        %v1549 = vpack.c.bf16 %v1501, %v1500
        %v1550 = vpack.c.bf16 %v1503, %v1502
        %v1551 = vpack.c.bf16 %v1505, %v1504
        %v1552 = vpack.c.bf16 %v1507, %v1506
        %v1553 = vpack.c.bf16 %v1509, %v1508
        %v1554 = vpack.c.bf16 %v1511, %v1510
        %v1555 = vpack.c.bf16 %v1513, %v1512
        %v1556 = vpack.c.bf16 %v1515, %v1514
        %v1557 = vpack.c.bf16 %v1517, %v1516
        %v1558 = vpack.c.bf16 %v1519, %v1518
        %v1559 = vpack.c.bf16 %v1521, %v1520
        %v1560 = vpack.c.bf16 %v1523, %v1522
        %v1561 = vpack.c.bf16 %v1525, %v1524
        %v1562 = vpack.c.bf16 %v1527, %v1526
        %v1563 = vpack.c.bf16 %v1529, %v1528
        %v1564 = vpack.c.bf16 %v1531, %v1530
        %v1565 = vpack.c.bf16 %v1533, %v1532
        %v1598 = vunpack.c.l.b16 %v1534
        %v1599 = vunpack.c.h.b16 %v1534
        %v1600 = vunpack.c.l.b16 %v1535
        %v1601 = vunpack.c.h.b16 %v1535
        %v1602 = vunpack.c.l.b16 %v1536
        %v1603 = vunpack.c.h.b16 %v1536
        %v1604 = vunpack.c.l.b16 %v1537
        %v1605 = vunpack.c.h.b16 %v1537
        %v1606 = vunpack.c.l.b16 %v1538
        %v1607 = vunpack.c.h.b16 %v1538
        %v1608 = vunpack.c.l.b16 %v1539
        %v1609 = vunpack.c.h.b16 %v1539
        %v1610 = vunpack.c.l.b16 %v1540
        %v1611 = vunpack.c.h.b16 %v1540
        %v1612 = vunpack.c.l.b16 %v1541
        %v1613 = vunpack.c.h.b16 %v1541
        %v1614 = vunpack.c.l.b16 %v1542
        %v1615 = vunpack.c.h.b16 %v1542
        %v1616 = vunpack.c.l.b16 %v1543
        %v1617 = vunpack.c.h.b16 %v1543
        %v1618 = vunpack.c.l.b16 %v1544
        %v1619 = vunpack.c.h.b16 %v1544
        %v1620 = vunpack.c.l.b16 %v1545
        %v1621 = vunpack.c.h.b16 %v1545
        %v1622 = vunpack.c.l.b16 %v1546
        %v1623 = vunpack.c.h.b16 %v1546
        %v1624 = vunpack.c.l.b16 %v1547
        %v1625 = vunpack.c.h.b16 %v1547
        %v1626 = vunpack.c.l.b16 %v1548
        %v1627 = vunpack.c.h.b16 %v1548
        %v1628 = vunpack.c.l.b16 %v1549
        %v1629 = vunpack.c.h.b16 %v1549
        %v1630 = vunpack.c.l.b16 %v1550
        %v1631 = vunpack.c.h.b16 %v1550
        %v1632 = vunpack.c.l.b16 %v1551
        %v1633 = vunpack.c.h.b16 %v1551
        %v1634 = vunpack.c.l.b16 %v1552
        %v1635 = vunpack.c.h.b16 %v1552
        %v1636 = vunpack.c.l.b16 %v1553
        %v1637 = vunpack.c.h.b16 %v1553
        %v1638 = vunpack.c.l.b16 %v1554
        %v1639 = vunpack.c.h.b16 %v1554
        %v1640 = vunpack.c.l.b16 %v1555
        %v1641 = vunpack.c.h.b16 %v1555
        %v1642 = vunpack.c.l.b16 %v1556
        %v1643 = vunpack.c.h.b16 %v1556
        %v1644 = vunpack.c.l.b16 %v1557
        %v1645 = vunpack.c.h.b16 %v1557
        %v1646 = vunpack.c.l.b16 %v1558
        %v1647 = vunpack.c.h.b16 %v1558
        %v1648 = vunpack.c.l.b16 %v1559
        %v1649 = vunpack.c.h.b16 %v1559
        %v1650 = vunpack.c.l.b16 %v1560
        %v1651 = vunpack.c.h.b16 %v1560
        %v1652 = vunpack.c.l.b16 %v1561
        %v1653 = vunpack.c.h.b16 %v1561
        %v1654 = vunpack.c.l.b16 %v1562
        %v1655 = vunpack.c.h.b16 %v1562
        %v1656 = vunpack.c.l.b16 %v1563
        %v1657 = vunpack.c.h.b16 %v1563
        %v1658 = vunpack.c.l.b16 %v1564
        %v1659 = vunpack.c.h.b16 %v1564
        %v1660 = vunpack.c.l.b16 %v1565
        %v1661 = vunpack.c.h.b16 %v1565
        %v1662 = vpack.c.b16 %v1598, %v1598
        %v1663 = vpack.c.b16 %v1599, %v1599
        %v1664 = vpack.c.b16 %v1600, %v1600
        %v1665 = vpack.c.b16 %v1601, %v1601
        %v1666 = vpack.c.b16 %v1602, %v1602
        %v1667 = vpack.c.b16 %v1603, %v1603
        %v1668 = vpack.c.b16 %v1604, %v1604
        %v1669 = vpack.c.b16 %v1605, %v1605
        %v1670 = vpack.c.b16 %v1606, %v1606
        %v1671 = vpack.c.b16 %v1607, %v1607
        %v1672 = vpack.c.b16 %v1608, %v1608
        %v1673 = vpack.c.b16 %v1609, %v1609
        %v1674 = vpack.c.b16 %v1610, %v1610
        %v1675 = vpack.c.b16 %v1611, %v1611
        %v1676 = vpack.c.b16 %v1612, %v1612
        %v1677 = vpack.c.b16 %v1613, %v1613
        %v1678 = vpack.c.b16 %v1614, %v1614
        %v1679 = vpack.c.b16 %v1615, %v1615
        %v1680 = vpack.c.b16 %v1616, %v1616
        %v1681 = vpack.c.b16 %v1617, %v1617
        %v1682 = vpack.c.b16 %v1618, %v1618
        %v1683 = vpack.c.b16 %v1619, %v1619
        %v1684 = vpack.c.b16 %v1620, %v1620
        %v1685 = vpack.c.b16 %v1621, %v1621
        %v1686 = vpack.c.b16 %v1622, %v1622
        %v1687 = vpack.c.b16 %v1623, %v1623
        %v1688 = vpack.c.b16 %v1624, %v1624
        %v1689 = vpack.c.b16 %v1625, %v1625
        %v1690 = vpack.c.b16 %v1626, %v1626
        %v1691 = vpack.c.b16 %v1627, %v1627
        %v1692 = vpack.c.b16 %v1628, %v1628
        %v1693 = vpack.c.b16 %v1629, %v1629
        %v1694 = vpack.c.b16 %v1630, %v1630
        %v1695 = vpack.c.b16 %v1631, %v1631
        %v1696 = vpack.c.b16 %v1632, %v1632
        %v1697 = vpack.c.b16 %v1633, %v1633
        %v1698 = vpack.c.b16 %v1634, %v1634
        %v1699 = vpack.c.b16 %v1635, %v1635
        %v1700 = vpack.c.b16 %v1636, %v1636
        %v1701 = vpack.c.b16 %v1637, %v1637
        %v1702 = vpack.c.b16 %v1638, %v1638
        %v1703 = vpack.c.b16 %v1639, %v1639
        %v1704 = vpack.c.b16 %v1640, %v1640
        %v1705 = vpack.c.b16 %v1641, %v1641
        %v1706 = vpack.c.b16 %v1642, %v1642
        %v1707 = vpack.c.b16 %v1643, %v1643
        %v1708 = vpack.c.b16 %v1644, %v1644
        %v1709 = vpack.c.b16 %v1645, %v1645
        %v1710 = vpack.c.b16 %v1646, %v1646
        %v1711 = vpack.c.b16 %v1647, %v1647
        %v1712 = vpack.c.b16 %v1648, %v1648
        %v1713 = vpack.c.b16 %v1649, %v1649
        %v1714 = vpack.c.b16 %v1650, %v1650
        %v1715 = vpack.c.b16 %v1651, %v1651
        %v1716 = vpack.c.b16 %v1652, %v1652
        %v1717 = vpack.c.b16 %v1653, %v1653
        %v1718 = vpack.c.b16 %v1654, %v1654
        %v1719 = vpack.c.b16 %v1655, %v1655
        %v1720 = vpack.c.b16 %v1656, %v1656
        %v1721 = vpack.c.b16 %v1657, %v1657
        %v1722 = vpack.c.b16 %v1658, %v1658
        %v1723 = vpack.c.b16 %v1659, %v1659
        %v1724 = vpack.c.b16 %v1660, %v1660
        %v1725 = vpack.c.b16 %v1661, %v1661
        %1790 = vst [vmem:[%s160] sm:$0xf] %v1662
        %1791 = vst [vmem:[%s160 + $0x4] sm:$0xf] %v1663
        %1792 = vst [vmem:[%s160 + $0x8] sm:$0xf] %v1664
        %1793 = vst [vmem:[%s160 + $0xc] sm:$0xf] %v1665
        %1794 = vst [vmem:[%s160 + $0x10] sm:$0xf] %v1666
        %1795 = vst [vmem:[%s160 + $0x14] sm:$0xf] %v1667
        %1796 = vst [vmem:[%s160 + $0x18] sm:$0xf] %v1668
        %1797 = vst [vmem:[%s160 + $0x1c] sm:$0xf] %v1669
        %1798 = vst [vmem:[%s160 + $0x20] sm:$0xf] %v1670
        %1799 = vst [vmem:[%s160 + $0x24] sm:$0xf] %v1671
        %1800 = vst [vmem:[%s160 + $0x28] sm:$0xf] %v1672
        %1801 = vst [vmem:[%s160 + $0x2c] sm:$0xf] %v1673
        %1802 = vst [vmem:[%s160 + $0x30] sm:$0xf] %v1674
        %1803 = vst [vmem:[%s160 + $0x34] sm:$0xf] %v1675
        %1804 = vst [vmem:[%s160 + $0x38] sm:$0xf] %v1676
        %1805 = vst [vmem:[%s160 + $0x3c] sm:$0xf] %v1677
        %1806 = vst [vmem:[%s160 + $0x40] sm:$0xf] %v1678
        %1807 = vst [vmem:[%s160 + $0x44] sm:$0xf] %v1679
        %1808 = vst [vmem:[%s160 + $0x48] sm:$0xf] %v1680
        %1809 = vst [vmem:[%s160 + $0x4c] sm:$0xf] %v1681
        %1810 = vst [vmem:[%s160 + $0x50] sm:$0xf] %v1682
        %1811 = vst [vmem:[%s160 + $0x54] sm:$0xf] %v1683
        %1812 = vst [vmem:[%s160 + $0x58] sm:$0xf] %v1684
        %1813 = vst [vmem:[%s160 + $0x5c] sm:$0xf] %v1685
        %1814 = vst [vmem:[%s160 + $0x60] sm:$0xf] %v1686
        %1815 = vst [vmem:[%s160 + $0x64] sm:$0xf] %v1687
        %1816 = vst [vmem:[%s160 + $0x68] sm:$0xf] %v1688
        %1817 = vst [vmem:[%s160 + $0x6c] sm:$0xf] %v1689
        %1818 = vst [vmem:[%s160 + $0x70] sm:$0xf] %v1690
        %1819 = vst [vmem:[%s160 + $0x74] sm:$0xf] %v1691
        %1820 = vst [vmem:[%s160 + $0x78] sm:$0xf] %v1692
        %1821 = vst [vmem:[%s160 + $0x7c] sm:$0xf] %v1693
        %1822 = vst [vmem:[%s160 + $0x80] sm:$0xf] %v1694
        %1823 = vst [vmem:[%s160 + $0x84] sm:$0xf] %v1695
        %1824 = vst [vmem:[%s160 + $0x88] sm:$0xf] %v1696
        %1825 = vst [vmem:[%s160 + $0x8c] sm:$0xf] %v1697
        %1826 = vst [vmem:[%s160 + $0x90] sm:$0xf] %v1698
        %1827 = vst [vmem:[%s160 + $0x94] sm:$0xf] %v1699
        %1828 = vst [vmem:[%s160 + $0x98] sm:$0xf] %v1700
        %1829 = vst [vmem:[%s160 + $0x9c] sm:$0xf] %v1701
        %1830 = vst [vmem:[%s160 + $0xa0] sm:$0xf] %v1702
        %1831 = vst [vmem:[%s160 + $0xa4] sm:$0xf] %v1703
        %1832 = vst [vmem:[%s160 + $0xa8] sm:$0xf] %v1704
        %1833 = vst [vmem:[%s160 + $0xac] sm:$0xf] %v1705
        %1834 = vst [vmem:[%s160 + $0xb0] sm:$0xf] %v1706
        %1835 = vst [vmem:[%s160 + $0xb4] sm:$0xf] %v1707
        %1836 = vst [vmem:[%s160 + $0xb8] sm:$0xf] %v1708
        %1837 = vst [vmem:[%s160 + $0xbc] sm:$0xf] %v1709
        %1838 = vst [vmem:[%s160 + $0xc0] sm:$0xf] %v1710
        %1839 = vst [vmem:[%s160 + $0xc4] sm:$0xf] %v1711
        %1840 = vst [vmem:[%s160 + $0xc8] sm:$0xf] %v1712
        %1841 = vst [vmem:[%s160 + $0xcc] sm:$0xf] %v1713
        %1842 = vst [vmem:[%s160 + $0xd0] sm:$0xf] %v1714
        %1843 = vst [vmem:[%s160 + $0xd4] sm:$0xf] %v1715
        %1844 = vst [vmem:[%s160 + $0xd8] sm:$0xf] %v1716
        %1845 = vst [vmem:[%s160 + $0xdc] sm:$0xf] %v1717
        %1846 = vst [vmem:[%s160 + $0xe0] sm:$0xf] %v1718
        %1847 = vst [vmem:[%s160 + $0xe4] sm:$0xf] %v1719
        %1848 = vst [vmem:[%s160 + $0xe8] sm:$0xf] %v1720
        %1849 = vst [vmem:[%s160 + $0xec] sm:$0xf] %v1721
        %1850 = vst [vmem:[%s160 + $0xf0] sm:$0xf] %v1722
        %1851 = vst [vmem:[%s160 + $0xf4] sm:$0xf] %v1723
        %1852 = vst [vmem:[%s160 + $0xf8] sm:$0xf] %v1724
        %1853 = vst [vmem:[%s160 + $0xfc] sm:$0xf] %v1725
      $region44: #{discriminator_forward.6} parent=27 // pred_fallthru
        _
      %s1854 = smul.u32 64, %s18
      %p1855 = scmp.lt.s32.totalorder %s1854, 63
      %s1856 = scalar_select %p1855, %s1854, 63
      %s1857 = smul.addr %s1856, 4
      %s1858 = scalar_lea.vmem %s2, %s1857
      // Predicated region
      $region45: #{discriminator_forward.6} parent=27 // pred_check
        %p1859 = pneg %p90
      $region46: #{discriminator_forward.6} parent=27 // pred_check_branch
        %1861 = sbr.rel (%p1859) target = $region48
      $region47: #{discriminator_forward.6} parent=27 // pred_region
        %s1862 = smul.u32 64, %s18
      $region48: #{discriminator_forward.6} parent=27 // pred_fallthru
        _
      // Predicated region
      $region49: #{discriminator_forward.6} parent=27 // pred_check
        %p1863 = pneg %p90
      $region50: #{discriminator_forward.6} parent=27 // pred_check_branch
        %1865 = sbr.rel (%p1863) target = $region52
      $region51: #{discriminator_forward.6} parent=27 // pred_region
        %s1866 = smul.u32 64, %s18
        %p1867 = scmp.lt.s32.totalorder %s1866, 63
        %s1868 = scalar_select %p1867, %s1866, 63
        %s1869 = smul.addr %s1868, 4
        %s1870 = scalar_lea.vmem %s2, %s1869
      $region52: #{discriminator_forward.6} parent=27 // pred_fallthru
        _
    $region28: #{discriminator_forward.6} parent=5 // pred_fallthru
      _
    %p1871 = scmp.le.s32.totalorder 2, %s8
    // Predicated region
    $region53: #{discriminator_forward.6} parent=5 // pred_check
      %p1872 = pneg %p1871
    $region54: #{discriminator_forward.6} parent=5 // pred_check_branch
      %1874 = sbr.rel (%p1872) target = $region56
    $region55: #{discriminator_forward.6} parent=5 // pred_region
      %s1875 = ssub.s32 %s8, 2
    $region56: #{discriminator_forward.6} parent=5 // pred_fallthru
      _
  $region6: #{discriminator_forward.6} parent=0 // loop_footer
    %s12 = sadd.s32 1, %s8
  $region7: #{discriminator_forward.6} parent=0 // loop_footer_branch
    %7 = sbr.rel target = $region3
  $region8: #{discriminator_forward.6} parent=0 // loop_exit
    _

// kernel: discriminator_forward.7
$region0: #{discriminator_forward.7}
  #allocation0 [shape = 'u32[]', space=smem, size = 0x4, offset = 0x4, fixed_abs, tag = 'smem constant byte address 0x4 - core index']
  #allocation1 [shape = 'u32[144,128]{1,0:T(1,128)}', space=vmem, size = 0x12000, scoped, tag = 'internal scratch']
  #allocation2 [shape = 'f32[1,128]{1,0:T(1,128)}', space=vmem, size = 0x200, scoped, tag = 'scratch operand']
  #allocation3 [shape = 'f32[1,128]{1,0:T(1,128)}', space=vmem, size = 0x200, scoped, tag = 'scratch operand']
  %s0 = inlined_call_operand.vmem [shape: bf16[128,512], index: 0, kind: input, shape index: {}]
  %s1 = inlined_call_operand.vmem [shape: bf16[512,128], index: 1, kind: input, shape index: {}]
  %s2 = inlined_call_operand.vmem [shape: bf16[128,128], index: 2, kind: output, shape index: {}]
  %s3 = sld [smem:[#allocation0]]
  $region57: #{discriminator_forward.7} parent=0
    _
  %s5 = ssub.s32 1, %s3
  %s6 = scalar_select 0, %s5, %s3
  loop: start=0, step=1, limit=4
  $region2: #{discriminator_forward.7} parent=0 // loop_pre_header
    _
  $region3: #{discriminator_forward.7} parent=0 // loop_header
    %s8 = sphi 0, %s12
    %p9 = scmp.ge.s32.totalorder %s8, 4
    %s15 = sphi 0, %s27
    %s16 = sphi 0, %s23
    %s17 = sphi 0, %s15
    %s18 = sphi 0, %s16
    %s19 = sphi 0, %s17
    %s20 = sphi 0, %s18
    %s30 = sphi 0, %s32
    %s33 = sphi 0, %s30
    %s34 = sphi 0, %s33
    %s50 = sphi 0, %s34
    %s54 = sphi 0, %s54
    %s56 = sphi 0, %s54
    %s57 = sphi 0, %s56
    %s71 = sphi 0, %s57
    %s77 = sphi 0, %s79
    %s80 = sphi 0, %s77
    %s81 = sphi 0, %s80
    %s97 = sphi 0, %s81
  $region4: #{discriminator_forward.7} parent=0 // loop_header_branch
    %11 = sbr.rel (%p9) target = $region8
  $region5: #{discriminator_forward.7} parent=0 // loop_body
    %s13 = ssub.s32 %s8, 1
    %s14 = ssub.s32 %s8, 2
    %s21 = sadd.s32 1, %s16
    %p22 = scmp.ge.s32.totalorder %s21, 1
    %s23 = scalar_select %p22, 0, %s21
    %s24 = sadd.s32 1, %s15
    %s25 = scalar_select %p22, %s24, %s15
    %p26 = scmp.ge.s32.totalorder %s25, 2
    %s27 = scalar_select %p26, 0, %s25
    %s28 = ssub.s32 %s16, %s23
    %p29 = scmp.eq.s32.totalorder %s28, 0
    %s31 = sadd.s32 %s30, 1
    %s32 = scalar_select %p29, %s30, %s31
    %p35 = pneg %p29
    %p36 = scmp.eq.s32.totalorder %s8, 1
    %p37 = por %p35, %p36
    %p38 = scmp.ne.s32.totalorder %s30, %s33
    %p39 = scmp.eq.s32.totalorder %s8, 0
    %p40 = por %p38, %p39
    %p41 = scmp.ne.s32.totalorder %s30, %s33
    %p42 = scmp.eq.s32.totalorder %s13, 1
    %p43 = por %p41, %p42
    %p44 = scmp.ne.s32.totalorder %s33, %s34
    %p45 = scmp.eq.s32.totalorder %s13, 0
    %p46 = por %p44, %p45
    %p47 = scmp.ne.s32.totalorder %s33, %s34
    %p48 = scmp.eq.s32.totalorder %s14, 1
    %p49 = por %p47, %p48
    %p51 = scmp.ne.s32.totalorder %s34, %s50
    %p52 = scmp.eq.s32.totalorder %s14, 0
    %p53 = por %p51, %p52
    %s55 = sadd.s32 %s54, 1
    %p58 = scmp.eq.s32.totalorder %s8, 1
    %p59 = scmp.ne.s32.totalorder %s54, %s56
    %p60 = scmp.eq.s32.totalorder %s8, 0
    %p61 = por %p59, %p60
    %p62 = scmp.ne.s32.totalorder %s54, %s56
    %p63 = scmp.eq.s32.totalorder %s13, 1
    %p64 = por %p62, %p63
    %p65 = scmp.ne.s32.totalorder %s56, %s57
    %p66 = scmp.eq.s32.totalorder %s13, 0
    %p67 = por %p65, %p66
    %p68 = scmp.ne.s32.totalorder %s56, %s57
    %p69 = scmp.eq.s32.totalorder %s14, 1
    %p70 = por %p68, %p69
    %p72 = scmp.ne.s32.totalorder %s57, %s71
    %p73 = scmp.eq.s32.totalorder %s14, 0
    %p74 = por %p72, %p73
    %s75 = ssub.s32 %s16, %s23
    %p76 = scmp.eq.s32.totalorder %s75, 0
    %s78 = sadd.s32 %s77, 1
    %s79 = scalar_select %p76, %s77, %s78
    %p82 = pneg %p76
    %p83 = scmp.eq.s32.totalorder %s8, 1
    %p84 = por %p82, %p83
    %p85 = scmp.ne.s32.totalorder %s77, %s80
    %p86 = scmp.eq.s32.totalorder %s8, 0
    %p87 = por %p85, %p86
    %p88 = scmp.ne.s32.totalorder %s77, %s80
    %p89 = scmp.eq.s32.totalorder %s13, 1
    %p90 = por %p88, %p89
    %p91 = scmp.ne.s32.totalorder %s80, %s81
    %p92 = scmp.eq.s32.totalorder %s13, 0
    %p93 = por %p91, %p92
    %p94 = scmp.ne.s32.totalorder %s80, %s81
    %p95 = scmp.eq.s32.totalorder %s14, 1
    %p96 = por %p94, %p95
    %p98 = scmp.ne.s32.totalorder %s81, %s97
    %p99 = scmp.eq.s32.totalorder %s14, 0
    %p100 = por %p98, %p99
    %p101 = scmp.le.s32.totalorder 1, %s8
    %p102 = scmp.lt.s32.totalorder %s8, 3
    %p103 = pnand %p101, %p102
    %p104 = pneg %p103
    // Predicated region
    $region9: #{discriminator_forward.7} parent=5 // pred_check
      _
    $region10: #{discriminator_forward.7} parent=5 // pred_check_branch
      %106 = sbr.rel (%p103) target = $region12
    $region11: #{discriminator_forward.7} parent=5 // pred_region
      %s107 = ssub.s32 %s8, 1
      // Predicated region
      $region13: #{discriminator_forward.7} parent=11 // pred_check
        %p108 = pneg %p46
      $region14: #{discriminator_forward.7} parent=11 // pred_check_branch
        %110 = sbr.rel (%p108) target = $region16
      $region15: #{discriminator_forward.7} parent=11 // pred_region
        %s111 = smul.u32 16, %s18
        %p112 = scmp.lt.s32.totalorder %s111, 15
        %s113 = scalar_select %p112, %s111, 15
        %s114 = smul.addr %s113, 4
        %s115 = smul.addr %s114, 4
        %s116 = scalar_lea.vmem %s0, %s115
        %s117 = smul.u32 16, %s18
      $region16: #{discriminator_forward.7} parent=11 // pred_fallthru
        _
      // Predicated region
      $region17: #{discriminator_forward.7} parent=11 // pred_check
        %p118 = pneg %p67
      $region18: #{discriminator_forward.7} parent=11 // pred_check_branch
        %120 = sbr.rel (%p118) target = $region20
      $region19: #{discriminator_forward.7} parent=11 // pred_region
        _
      $region20: #{discriminator_forward.7} parent=11 // pred_fallthru
        _
    $region12: #{discriminator_forward.7} parent=5 // pred_fallthru
      _
    %p121 = scmp.lt.s32.totalorder %s8, 2
    // Predicated region
    $region21: #{discriminator_forward.7} parent=5 // pred_check
      %p122 = pneg %p121
    $region22: #{discriminator_forward.7} parent=5 // pred_check_branch
      %124 = sbr.rel (%p122) target = $region24
    $region23: #{discriminator_forward.7} parent=5 // pred_region
      _
    $region24: #{discriminator_forward.7} parent=5 // pred_fallthru
      _
    %p125 = scmp.le.s32.totalorder 1, %s8
    %p126 = scmp.lt.s32.totalorder %s8, 3
    %p127 = pnand %p125, %p126
    %p128 = pneg %p127
    // Predicated region
    $region25: #{discriminator_forward.7} parent=5 // pred_check
      _
    $region26: #{discriminator_forward.7} parent=5 // pred_check_branch
      %130 = sbr.rel (%p127) target = $region28
    $region27: #{discriminator_forward.7} parent=5 // pred_region
      %s131 = ssub.s32 %s8, 1
      %s132 = smul.u32 16, %s18
      %p133 = scmp.lt.s32.totalorder %s132, 15
      %s134 = scalar_select %p133, %s132, 15
      %s135 = smul.addr %s134, 4
      %s136 = smul.addr %s135, 4
      %s137 = scalar_lea.vmem %s0, %s136
      %p138 = pneg %p46
      %p139 = pneg %p43
      %p140 = pneg %p67
      %p141 = pneg %p64
      %p142 = pneg %p93
      %p143 = pneg %p90
      %s144 = smul.u32 16, %s18
      %p145 = scmp.lt.s32.totalorder %s144, 15
      %s146 = scalar_select %p145, %s144, 15
      %s147 = smul.addr %s146, 4
      %s148 = scalar_lea.vmem %s2, %s147
      %s149 = smul.u32 16, %s18
      %p150 = scmp.lt.s32.totalorder %s149, 15
      %s151 = scalar_select %p150, %s149, 15
      %s152 = smul.addr %s151, 4
      %s153 = smul.addr %s152, 4
      %s154 = scalar_lea.vmem %s0, %s153
      %s155 = smul.u32 16, %s18
      %s156 = smul.u32 16, %s18
      %p157 = scmp.lt.s32.totalorder %s156, 15
      %s158 = scalar_select %p157, %s156, 15
      %s159 = smul.addr %s158, 4
      %s160 = scalar_lea.vmem %s2, %s159
      %s161 = smul.u32 16, %s18
      %p163 = scmp.eq.s32.totalorder %s17, 0
      %v164 = vld [vmem:[%s154] sm:$0xff]
      %v165 = vld [vmem:[%s154 + $0x8] sm:$0xff]
      %v166 = vld [vmem:[%s154 + $0x10] sm:$0xff]
      %v167 = vld [vmem:[%s154 + $0x18] sm:$0xff]
      %v168 = vld [vmem:[%s154 + $0x20] sm:$0xff]
      %v169 = vld [vmem:[%s154 + $0x28] sm:$0xff]
      %v170 = vld [vmem:[%s154 + $0x30] sm:$0xff]
      %v171 = vld [vmem:[%s154 + $0x38] sm:$0xff]
      %v172 = vld [vmem:[%s154 + $0x40] sm:$0xff]
      %v173 = vld [vmem:[%s154 + $0x48] sm:$0xff]
      %v174 = vld [vmem:[%s154 + $0x50] sm:$0xff]
      %v175 = vld [vmem:[%s154 + $0x58] sm:$0xff]
      %v176 = vld [vmem:[%s154 + $0x60] sm:$0xff]
      %v177 = vld [vmem:[%s154 + $0x68] sm:$0xff]
      %v178 = vld [vmem:[%s154 + $0x70] sm:$0xff]
      %v179 = vld [vmem:[%s154 + $0x78] sm:$0xff]
      %v180 = vld [vmem:[%s154 + $0x80] sm:$0xff]
      %v181 = vld [vmem:[%s154 + $0x88] sm:$0xff]
      %v182 = vld [vmem:[%s154 + $0x90] sm:$0xff]
      %v183 = vld [vmem:[%s154 + $0x98] sm:$0xff]
      %v184 = vld [vmem:[%s154 + $0xa0] sm:$0xff]
      %v185 = vld [vmem:[%s154 + $0xa8] sm:$0xff]
      %v186 = vld [vmem:[%s154 + $0xb0] sm:$0xff]
      %v187 = vld [vmem:[%s154 + $0xb8] sm:$0xff]
      %v188 = vld [vmem:[%s154 + $0xc0] sm:$0xff]
      %v189 = vld [vmem:[%s154 + $0xc8] sm:$0xff]
      %v190 = vld [vmem:[%s154 + $0xd0] sm:$0xff]
      %v191 = vld [vmem:[%s154 + $0xd8] sm:$0xff]
      %v192 = vld [vmem:[%s154 + $0xe0] sm:$0xff]
      %v193 = vld [vmem:[%s154 + $0xe8] sm:$0xff]
      %v194 = vld [vmem:[%s154 + $0xf0] sm:$0xff]
      %v195 = vld [vmem:[%s154 + $0xf8] sm:$0xff]
      %v196 = vld [vmem:[%s1] sm:$0xf]
      %v197 = vld [vmem:[%s1 + $0x4] sm:$0xf]
      %v198 = vld [vmem:[%s1 + $0x8] sm:$0xf]
      %v199 = vld [vmem:[%s1 + $0xc] sm:$0xf]
      %v200 = vld [vmem:[%s1 + $0x10] sm:$0xf]
      %v201 = vld [vmem:[%s1 + $0x14] sm:$0xf]
      %v202 = vld [vmem:[%s1 + $0x18] sm:$0xf]
      %v203 = vld [vmem:[%s1 + $0x1c] sm:$0xf]
      %v204 = vld [vmem:[%s1 + $0x20] sm:$0xf]
      %v205 = vld [vmem:[%s1 + $0x24] sm:$0xf]
      %v206 = vld [vmem:[%s1 + $0x28] sm:$0xf]
      %v207 = vld [vmem:[%s1 + $0x2c] sm:$0xf]
      %v208 = vld [vmem:[%s1 + $0x30] sm:$0xf]
      %v209 = vld [vmem:[%s1 + $0x34] sm:$0xf]
      %v210 = vld [vmem:[%s1 + $0x38] sm:$0xf]
      %v211 = vld [vmem:[%s1 + $0x3c] sm:$0xf]
      %v212 = vld [vmem:[%s1 + $0x40] sm:$0xf]
      %v213 = vld [vmem:[%s1 + $0x44] sm:$0xf]
      %v214 = vld [vmem:[%s1 + $0x48] sm:$0xf]
      %v215 = vld [vmem:[%s1 + $0x4c] sm:$0xf]
      %v216 = vld [vmem:[%s1 + $0x50] sm:$0xf]
      %v217 = vld [vmem:[%s1 + $0x54] sm:$0xf]
      %v218 = vld [vmem:[%s1 + $0x58] sm:$0xf]
      %v219 = vld [vmem:[%s1 + $0x5c] sm:$0xf]
      %v220 = vld [vmem:[%s1 + $0x60] sm:$0xf]
      %v221 = vld [vmem:[%s1 + $0x64] sm:$0xf]
      %v222 = vld [vmem:[%s1 + $0x68] sm:$0xf]
      %v223 = vld [vmem:[%s1 + $0x6c] sm:$0xf]
      %v224 = vld [vmem:[%s1 + $0x70] sm:$0xf]
      %v225 = vld [vmem:[%s1 + $0x74] sm:$0xf]
      %v226 = vld [vmem:[%s1 + $0x78] sm:$0xf]
      %v227 = vld [vmem:[%s1 + $0x7c] sm:$0xf]
      %v228 = vld [vmem:[%s1 + $0x80] sm:$0xf]
      %v229 = vld [vmem:[%s1 + $0x84] sm:$0xf]
      %v230 = vld [vmem:[%s1 + $0x88] sm:$0xf]
      %v231 = vld [vmem:[%s1 + $0x8c] sm:$0xf]
      %v232 = vld [vmem:[%s1 + $0x90] sm:$0xf]
      %v233 = vld [vmem:[%s1 + $0x94] sm:$0xf]
      %v234 = vld [vmem:[%s1 + $0x98] sm:$0xf]
      %v235 = vld [vmem:[%s1 + $0x9c] sm:$0xf]
      %v236 = vld [vmem:[%s1 + $0xa0] sm:$0xf]
      %v237 = vld [vmem:[%s1 + $0xa4] sm:$0xf]
      %v238 = vld [vmem:[%s1 + $0xa8] sm:$0xf]
      %v239 = vld [vmem:[%s1 + $0xac] sm:$0xf]
      %v240 = vld [vmem:[%s1 + $0xb0] sm:$0xf]
      %v241 = vld [vmem:[%s1 + $0xb4] sm:$0xf]
      %v242 = vld [vmem:[%s1 + $0xb8] sm:$0xf]
      %v243 = vld [vmem:[%s1 + $0xbc] sm:$0xf]
      %v244 = vld [vmem:[%s1 + $0xc0] sm:$0xf]
      %v245 = vld [vmem:[%s1 + $0xc4] sm:$0xf]
      %v246 = vld [vmem:[%s1 + $0xc8] sm:$0xf]
      %v247 = vld [vmem:[%s1 + $0xcc] sm:$0xf]
      %v248 = vld [vmem:[%s1 + $0xd0] sm:$0xf]
      %v249 = vld [vmem:[%s1 + $0xd4] sm:$0xf]
      %v250 = vld [vmem:[%s1 + $0xd8] sm:$0xf]
      %v251 = vld [vmem:[%s1 + $0xdc] sm:$0xf]
      %v252 = vld [vmem:[%s1 + $0xe0] sm:$0xf]
      %v253 = vld [vmem:[%s1 + $0xe4] sm:$0xf]
      %v254 = vld [vmem:[%s1 + $0xe8] sm:$0xf]
      %v255 = vld [vmem:[%s1 + $0xec] sm:$0xf]
      %v256 = vld [vmem:[%s1 + $0xf0] sm:$0xf]
      %v257 = vld [vmem:[%s1 + $0xf4] sm:$0xf]
      %v258 = vld [vmem:[%s1 + $0xf8] sm:$0xf]
      %v259 = vld [vmem:[%s1 + $0xfc] sm:$0xf]
      %v292 = vunpack.c.l.b16 %v164
      %v293 = vunpack.c.h.b16 %v164
      %v294 = vunpack.c.l.b16 %v165
      %v295 = vunpack.c.h.b16 %v165
      %v296 = vunpack.c.l.b16 %v166
      %v297 = vunpack.c.h.b16 %v166
      %v298 = vunpack.c.l.b16 %v167
      %v299 = vunpack.c.h.b16 %v167
      %v300 = vunpack.c.l.b16 %v168
      %v301 = vunpack.c.h.b16 %v168
      %v302 = vunpack.c.l.b16 %v169
      %v303 = vunpack.c.h.b16 %v169
      %v304 = vunpack.c.l.b16 %v170
      %v305 = vunpack.c.h.b16 %v170
      %v306 = vunpack.c.l.b16 %v171
      %v307 = vunpack.c.h.b16 %v171
      %v308 = vunpack.c.l.b16 %v172
      %v309 = vunpack.c.h.b16 %v172
      %v310 = vunpack.c.l.b16 %v173
      %v311 = vunpack.c.h.b16 %v173
      %v312 = vunpack.c.l.b16 %v174
      %v313 = vunpack.c.h.b16 %v174
      %v314 = vunpack.c.l.b16 %v175
      %v315 = vunpack.c.h.b16 %v175
      %v316 = vunpack.c.l.b16 %v176
      %v317 = vunpack.c.h.b16 %v176
      %v318 = vunpack.c.l.b16 %v177
      %v319 = vunpack.c.h.b16 %v177
      %v320 = vunpack.c.l.b16 %v178
      %v321 = vunpack.c.h.b16 %v178
      %v322 = vunpack.c.l.b16 %v179
      %v323 = vunpack.c.h.b16 %v179
      %v324 = vunpack.c.l.b16 %v180
      %v325 = vunpack.c.h.b16 %v180
      %v326 = vunpack.c.l.b16 %v181
      %v327 = vunpack.c.h.b16 %v181
      %v328 = vunpack.c.l.b16 %v182
      %v329 = vunpack.c.h.b16 %v182
      %v330 = vunpack.c.l.b16 %v183
      %v331 = vunpack.c.h.b16 %v183
      %v332 = vunpack.c.l.b16 %v184
      %v333 = vunpack.c.h.b16 %v184
      %v334 = vunpack.c.l.b16 %v185
      %v335 = vunpack.c.h.b16 %v185
      %v336 = vunpack.c.l.b16 %v186
      %v337 = vunpack.c.h.b16 %v186
      %v338 = vunpack.c.l.b16 %v187
      %v339 = vunpack.c.h.b16 %v187
      %v340 = vunpack.c.l.b16 %v188
      %v341 = vunpack.c.h.b16 %v188
      %v342 = vunpack.c.l.b16 %v189
      %v343 = vunpack.c.h.b16 %v189
      %v344 = vunpack.c.l.b16 %v190
      %v345 = vunpack.c.h.b16 %v190
      %v346 = vunpack.c.l.b16 %v191
      %v347 = vunpack.c.h.b16 %v191
      %v348 = vunpack.c.l.b16 %v192
      %v349 = vunpack.c.h.b16 %v192
      %v350 = vunpack.c.l.b16 %v193
      %v351 = vunpack.c.h.b16 %v193
      %v352 = vunpack.c.l.b16 %v194
      %v353 = vunpack.c.h.b16 %v194
      %v354 = vunpack.c.l.b16 %v195
      %v355 = vunpack.c.h.b16 %v195
      %v356 = vpack.c.b16 %v296, %v292
      %v357 = vpack.c.b16 %v297, %v293
      %v358 = vpack.c.b16 %v298, %v294
      %v359 = vpack.c.b16 %v299, %v295
      %v360 = vpack.c.b16 %v304, %v300
      %v361 = vpack.c.b16 %v305, %v301
      %v362 = vpack.c.b16 %v306, %v302
      %v363 = vpack.c.b16 %v307, %v303
      %v364 = vpack.c.b16 %v312, %v308
      %v365 = vpack.c.b16 %v313, %v309
      %v366 = vpack.c.b16 %v314, %v310
      %v367 = vpack.c.b16 %v315, %v311
      %v368 = vpack.c.b16 %v320, %v316
      %v369 = vpack.c.b16 %v321, %v317
      %v370 = vpack.c.b16 %v322, %v318
      %v371 = vpack.c.b16 %v323, %v319
      %v372 = vpack.c.b16 %v328, %v324
      %v373 = vpack.c.b16 %v329, %v325
      %v374 = vpack.c.b16 %v330, %v326
      %v375 = vpack.c.b16 %v331, %v327
      %v376 = vpack.c.b16 %v336, %v332
      %v377 = vpack.c.b16 %v337, %v333
      %v378 = vpack.c.b16 %v338, %v334
      %v379 = vpack.c.b16 %v339, %v335
      %v380 = vpack.c.b16 %v344, %v340
      %v381 = vpack.c.b16 %v345, %v341
      %v382 = vpack.c.b16 %v346, %v342
      %v383 = vpack.c.b16 %v347, %v343
      %v384 = vpack.c.b16 %v352, %v348
      %v385 = vpack.c.b16 %v353, %v349
      %v386 = vpack.c.b16 %v354, %v350
      %v387 = vpack.c.b16 %v355, %v351
      %v484 = vunpack.c.l.b16 %v196
      %v485 = vunpack.c.l.b16 %v197
      %v486 = vunpack.c.l.b16 %v198
      %v487 = vunpack.c.l.b16 %v199
      %v488 = vunpack.c.l.b16 %v200
      %v489 = vunpack.c.l.b16 %v201
      %v490 = vunpack.c.l.b16 %v202
      %v491 = vunpack.c.l.b16 %v203
      %v492 = vunpack.c.l.b16 %v204
      %v493 = vunpack.c.l.b16 %v205
      %v494 = vunpack.c.l.b16 %v206
      %v495 = vunpack.c.l.b16 %v207
      %v496 = vunpack.c.l.b16 %v208
      %v497 = vunpack.c.l.b16 %v209
      %v498 = vunpack.c.l.b16 %v210
      %v499 = vunpack.c.l.b16 %v211
      %v500 = vunpack.c.l.b16 %v212
      %v501 = vunpack.c.l.b16 %v213
      %v502 = vunpack.c.l.b16 %v214
      %v503 = vunpack.c.l.b16 %v215
      %v504 = vunpack.c.l.b16 %v216
      %v505 = vunpack.c.l.b16 %v217
      %v506 = vunpack.c.l.b16 %v218
      %v507 = vunpack.c.l.b16 %v219
      %v508 = vunpack.c.l.b16 %v220
      %v509 = vunpack.c.l.b16 %v221
      %v510 = vunpack.c.l.b16 %v222
      %v511 = vunpack.c.l.b16 %v223
      %v512 = vunpack.c.l.b16 %v224
      %v513 = vunpack.c.l.b16 %v225
      %v514 = vunpack.c.l.b16 %v226
      %v515 = vunpack.c.l.b16 %v227
      %v516 = vunpack.c.l.b16 %v228
      %v517 = vunpack.c.l.b16 %v229
      %v518 = vunpack.c.l.b16 %v230
      %v519 = vunpack.c.l.b16 %v231
      %v520 = vunpack.c.l.b16 %v232
      %v521 = vunpack.c.l.b16 %v233
      %v522 = vunpack.c.l.b16 %v234
      %v523 = vunpack.c.l.b16 %v235
      %v524 = vunpack.c.l.b16 %v236
      %v525 = vunpack.c.l.b16 %v237
      %v526 = vunpack.c.l.b16 %v238
      %v527 = vunpack.c.l.b16 %v239
      %v528 = vunpack.c.l.b16 %v240
      %v529 = vunpack.c.l.b16 %v241
      %v530 = vunpack.c.l.b16 %v242
      %v531 = vunpack.c.l.b16 %v243
      %v532 = vunpack.c.l.b16 %v244
      %v533 = vunpack.c.l.b16 %v245
      %v534 = vunpack.c.l.b16 %v246
      %v535 = vunpack.c.l.b16 %v247
      %v536 = vunpack.c.l.b16 %v248
      %v537 = vunpack.c.l.b16 %v249
      %v538 = vunpack.c.l.b16 %v250
      %v539 = vunpack.c.l.b16 %v251
      %v540 = vunpack.c.l.b16 %v252
      %v541 = vunpack.c.l.b16 %v253
      %v542 = vunpack.c.l.b16 %v254
      %v543 = vunpack.c.l.b16 %v255
      %v544 = vunpack.c.l.b16 %v256
      %v545 = vunpack.c.l.b16 %v257
      %v546 = vunpack.c.l.b16 %v258
      %v547 = vunpack.c.l.b16 %v259
      %v548 = vpack.c.b16 %v485, %v484
      %v549 = vpack.c.b16 %v487, %v486
      %v550 = vpack.c.b16 %v489, %v488
      %v551 = vpack.c.b16 %v491, %v490
      %v552 = vpack.c.b16 %v493, %v492
      %v553 = vpack.c.b16 %v495, %v494
      %v554 = vpack.c.b16 %v497, %v496
      %v555 = vpack.c.b16 %v499, %v498
      %v556 = vpack.c.b16 %v501, %v500
      %v557 = vpack.c.b16 %v503, %v502
      %v558 = vpack.c.b16 %v505, %v504
      %v559 = vpack.c.b16 %v507, %v506
      %v560 = vpack.c.b16 %v509, %v508
      %v561 = vpack.c.b16 %v511, %v510
      %v562 = vpack.c.b16 %v513, %v512
      %v563 = vpack.c.b16 %v515, %v514
      %v564 = vpack.c.b16 %v517, %v516
      %v565 = vpack.c.b16 %v519, %v518
      %v566 = vpack.c.b16 %v521, %v520
      %v567 = vpack.c.b16 %v523, %v522
      %v568 = vpack.c.b16 %v525, %v524
      %v569 = vpack.c.b16 %v527, %v526
      %v570 = vpack.c.b16 %v529, %v528
      %v571 = vpack.c.b16 %v531, %v530
      %v572 = vpack.c.b16 %v533, %v532
      %v573 = vpack.c.b16 %v535, %v534
      %v574 = vpack.c.b16 %v537, %v536
      %v575 = vpack.c.b16 %v539, %v538
      %v576 = vpack.c.b16 %v541, %v540
      %v577 = vpack.c.b16 %v543, %v542
      %v578 = vpack.c.b16 %v545, %v544
      %v579 = vpack.c.b16 %v547, %v546
      %612 = vmatprep.subr.bf16.mxu0 0
      %613 = vmatpush1.bf16.msra.mxu0 %v548
      %614 = vmatprep.subr.bf16.mxu0 0
      %615 = vmatpush1.bf16.msra.mxu0 %v549
      %616 = vmatprep.subr.bf16.mxu0 0
      %617 = vmatpush1.bf16.msra.mxu0 %v550
      %618 = vmatprep.subr.bf16.mxu0 0
      %619 = vmatpush1.bf16.msra.mxu0 %v551
      %620 = vmatprep.subr.bf16.mxu0 0
      %621 = vmatpush1.bf16.msra.mxu0 %v552
      %622 = vmatprep.subr.bf16.mxu0 0
      %623 = vmatpush1.bf16.msra.mxu0 %v553
      %624 = vmatprep.subr.bf16.mxu0 0
      %625 = vmatpush1.bf16.msra.mxu0 %v554
      %626 = vmatprep.subr.bf16.mxu0 0
      %627 = vmatpush1.bf16.msra.mxu0 %v555
      %628 = vmatprep.subr.bf16.mxu0 0
      %629 = vmatpush1.bf16.msra.mxu0 %v556
      %630 = vmatprep.subr.bf16.mxu0 0
      %631 = vmatpush1.bf16.msra.mxu0 %v557
      %632 = vmatprep.subr.bf16.mxu0 0
      %633 = vmatpush1.bf16.msra.mxu0 %v558
      %634 = vmatprep.subr.bf16.mxu0 0
      %635 = vmatpush1.bf16.msra.mxu0 %v559
      %636 = vmatprep.subr.bf16.mxu0 0
      %637 = vmatpush1.bf16.msra.mxu0 %v560
      %638 = vmatprep.subr.bf16.mxu0 0
      %639 = vmatpush1.bf16.msra.mxu0 %v561
      %640 = vmatprep.subr.bf16.mxu0 0
      %641 = vmatpush1.bf16.msra.mxu0 %v562
      %642 = vmatprep.subr.bf16.mxu0 0
      %643 = vmatpush1.bf16.msra.mxu0 %v563
      %644 = vmatprep.mubr.bf16.mxu0 %v357
      %645 = vmatmul.mubr.bf16.gmra.mrb[0].mxu0 %v356
      %v646 = vpop.f32.mrb[0].mxu0
      %v647 = vadd.f32 0.0, %v646
      %v648 = vpop.f32.mrb[0].mxu0
      %v649 = vpop.f32.mrb[0].mxu0
      %v650 = vadd.f32 0.0, %v649
      %v651 = vpop.f32.mrb[0].mxu0
      %652 = vmatprep.mubr.bf16.mxu0 %v361
      %653 = vmatmul.mubr.bf16.gmra.mrb[0].mxu0 %v360
      %v654 = vpop.f32.mrb[0].mxu0
      %v655 = vadd.f32 0.0, %v654
      %v656 = vpop.f32.mrb[0].mxu0
      %v657 = vpop.f32.mrb[0].mxu0
      %v658 = vadd.f32 0.0, %v657
      %v659 = vpop.f32.mrb[0].mxu0
      %660 = vmatprep.mubr.bf16.mxu0 %v365
      %661 = vmatmul.mubr.bf16.gmra.mrb[0].mxu0 %v364
      %v662 = vpop.f32.mrb[0].mxu0
      %v663 = vadd.f32 0.0, %v662
      %v664 = vpop.f32.mrb[0].mxu0
      %v665 = vpop.f32.mrb[0].mxu0
      %v666 = vadd.f32 0.0, %v665
      %v667 = vpop.f32.mrb[0].mxu0
      %668 = vmatprep.mubr.bf16.mxu0 %v369
      %669 = vmatmul.mubr.bf16.gmra.mrb[0].mxu0 %v368
      %v670 = vpop.f32.mrb[0].mxu0
      %v671 = vadd.f32 0.0, %v670
      %v672 = vpop.f32.mrb[0].mxu0
      %v673 = vpop.f32.mrb[0].mxu0
      %v674 = vadd.f32 0.0, %v673
      %v675 = vpop.f32.mrb[0].mxu0
      %676 = vmatprep.mubr.bf16.mxu0 %v373
      %677 = vmatmul.mubr.bf16.gmra.mrb[0].mxu0 %v372
      %v678 = vpop.f32.mrb[0].mxu0
      %v679 = vadd.f32 0.0, %v678
      %v680 = vpop.f32.mrb[0].mxu0
      %v681 = vpop.f32.mrb[0].mxu0
      %v682 = vadd.f32 0.0, %v681
      %v683 = vpop.f32.mrb[0].mxu0
      %684 = vmatprep.mubr.bf16.mxu0 %v377
      %685 = vmatmul.mubr.bf16.gmra.mrb[0].mxu0 %v376
      %v686 = vpop.f32.mrb[0].mxu0
      %v687 = vadd.f32 0.0, %v686
      %v688 = vpop.f32.mrb[0].mxu0
      %v689 = vpop.f32.mrb[0].mxu0
      %v690 = vadd.f32 0.0, %v689
      %v691 = vpop.f32.mrb[0].mxu0
      %692 = vmatprep.mubr.bf16.mxu0 %v381
      %693 = vmatmul.mubr.bf16.gmra.mrb[0].mxu0 %v380
      %v694 = vpop.f32.mrb[0].mxu0
      %v695 = vadd.f32 0.0, %v694
      %v696 = vpop.f32.mrb[0].mxu0
      %v697 = vpop.f32.mrb[0].mxu0
      %v698 = vadd.f32 0.0, %v697
      %v699 = vpop.f32.mrb[0].mxu0
      %700 = vmatprep.mubr.bf16.mxu0 %v385
      %701 = vmatmul.mubr.bf16.gmra.mrb[0].mxu0 %v384
      %v702 = vpop.f32.mrb[0].mxu0
      %v703 = vadd.f32 0.0, %v702
      %v704 = vpop.f32.mrb[0].mxu0
      %v705 = vpop.f32.mrb[0].mxu0
      %v706 = vadd.f32 0.0, %v705
      %v707 = vpop.f32.mrb[0].mxu0
      %708 = vdwg.mxu0
      %709 = vmatprep.subr.bf16.mxu0 0
      %710 = vmatpush1.bf16.msra.mxu0 %v564
      %711 = vmatprep.subr.bf16.mxu0 0
      %712 = vmatpush1.bf16.msra.mxu0 %v565
      %713 = vmatprep.subr.bf16.mxu0 0
      %714 = vmatpush1.bf16.msra.mxu0 %v566
      %715 = vmatprep.subr.bf16.mxu0 0
      %716 = vmatpush1.bf16.msra.mxu0 %v567
      %717 = vmatprep.subr.bf16.mxu0 0
      %718 = vmatpush1.bf16.msra.mxu0 %v568
      %719 = vmatprep.subr.bf16.mxu0 0
      %720 = vmatpush1.bf16.msra.mxu0 %v569
      %721 = vmatprep.subr.bf16.mxu0 0
      %722 = vmatpush1.bf16.msra.mxu0 %v570
      %723 = vmatprep.subr.bf16.mxu0 0
      %724 = vmatpush1.bf16.msra.mxu0 %v571
      %725 = vmatprep.subr.bf16.mxu0 0
      %726 = vmatpush1.bf16.msra.mxu0 %v572
      %727 = vmatprep.subr.bf16.mxu0 0
      %728 = vmatpush1.bf16.msra.mxu0 %v573
      %729 = vmatprep.subr.bf16.mxu0 0
      %730 = vmatpush1.bf16.msra.mxu0 %v574
      %731 = vmatprep.subr.bf16.mxu0 0
      %732 = vmatpush1.bf16.msra.mxu0 %v575
      %733 = vmatprep.subr.bf16.mxu0 0
      %734 = vmatpush1.bf16.msra.mxu0 %v576
      %735 = vmatprep.subr.bf16.mxu0 0
      %736 = vmatpush1.bf16.msra.mxu0 %v577
      %737 = vmatprep.subr.bf16.mxu0 0
      %738 = vmatpush1.bf16.msra.mxu0 %v578
      %739 = vmatprep.subr.bf16.mxu0 0
      %740 = vmatpush1.bf16.msra.mxu0 %v579
      %741 = vmatprep.mubr.bf16.mxu0 %v359
      %742 = vmatmul.mubr.bf16.gmra.mrb[0].mxu0 %v358
      %v743 = vpop.f32.mrb[0].mxu0
      %v744 = vadd.f32 %v647, %v743
      %v745 = vpop.f32.mrb[0].mxu0
      %v746 = vpop.f32.mrb[0].mxu0
      %v747 = vadd.f32 %v650, %v746
      %v748 = vpop.f32.mrb[0].mxu0
      %749 = vmatprep.mubr.bf16.mxu0 %v363
      %750 = vmatmul.mubr.bf16.gmra.mrb[0].mxu0 %v362
      %v751 = vpop.f32.mrb[0].mxu0
      %v752 = vadd.f32 %v655, %v751
      %v753 = vpop.f32.mrb[0].mxu0
      %v754 = vpop.f32.mrb[0].mxu0
      %v755 = vadd.f32 %v658, %v754
      %v756 = vpop.f32.mrb[0].mxu0
      %757 = vmatprep.mubr.bf16.mxu0 %v367
      %758 = vmatmul.mubr.bf16.gmra.mrb[0].mxu0 %v366
      %v759 = vpop.f32.mrb[0].mxu0
      %v760 = vadd.f32 %v663, %v759
      %v761 = vpop.f32.mrb[0].mxu0
      %v762 = vpop.f32.mrb[0].mxu0
      %v763 = vadd.f32 %v666, %v762
      %v764 = vpop.f32.mrb[0].mxu0
      %765 = vmatprep.mubr.bf16.mxu0 %v371
      %766 = vmatmul.mubr.bf16.gmra.mrb[0].mxu0 %v370
      %v767 = vpop.f32.mrb[0].mxu0
      %v768 = vadd.f32 %v671, %v767
      %v769 = vpop.f32.mrb[0].mxu0
      %v770 = vpop.f32.mrb[0].mxu0
      %v771 = vadd.f32 %v674, %v770
      %v772 = vpop.f32.mrb[0].mxu0
      %773 = vmatprep.mubr.bf16.mxu0 %v375
      %774 = vmatmul.mubr.bf16.gmra.mrb[0].mxu0 %v374
      %v775 = vpop.f32.mrb[0].mxu0
      %v776 = vadd.f32 %v679, %v775
      %v777 = vpop.f32.mrb[0].mxu0
      %v778 = vpop.f32.mrb[0].mxu0
      %v779 = vadd.f32 %v682, %v778
      %v780 = vpop.f32.mrb[0].mxu0
      %781 = vmatprep.mubr.bf16.mxu0 %v379
      %782 = vmatmul.mubr.bf16.gmra.mrb[0].mxu0 %v378
      %v783 = vpop.f32.mrb[0].mxu0
      %v784 = vadd.f32 %v687, %v783
      %v785 = vpop.f32.mrb[0].mxu0
      %v786 = vpop.f32.mrb[0].mxu0
      %v787 = vadd.f32 %v690, %v786
      %v788 = vpop.f32.mrb[0].mxu0
      %789 = vmatprep.mubr.bf16.mxu0 %v383
      %790 = vmatmul.mubr.bf16.gmra.mrb[0].mxu0 %v382
      %v791 = vpop.f32.mrb[0].mxu0
      %v792 = vadd.f32 %v695, %v791
      %v793 = vpop.f32.mrb[0].mxu0
      %v794 = vpop.f32.mrb[0].mxu0
      %v795 = vadd.f32 %v698, %v794
      %v796 = vpop.f32.mrb[0].mxu0
      %797 = vmatprep.mubr.bf16.mxu0 %v387
      %798 = vmatmul.mubr.bf16.gmra.mrb[0].mxu0 %v386
      %v799 = vpop.f32.mrb[0].mxu0
      %v800 = vadd.f32 %v703, %v799
      %v801 = vpop.f32.mrb[0].mxu0
      %v802 = vpop.f32.mrb[0].mxu0
      %v803 = vadd.f32 %v706, %v802
      %v804 = vpop.f32.mrb[0].mxu0
      %805 = vdwg.mxu0
      %p806 = scmp.eq.s32.totalorder %s18, 0
      %p807 = pnand %p163, %p806
      %p808 = pneg %p807
      // Predicated region
      $region29: #{discriminator_forward.7} parent=27 // pred_check
        _
      $region30: #{discriminator_forward.7} parent=27 // pred_check_branch
        %810 = sbr.rel (%p807) target = $region32
      $region31: #{discriminator_forward.7} parent=27 // pred_region
        %811 = vst [vmem:[#allocation2] sm:$0x1] 0.0
        %812 = vst [vmem:[#allocation3] sm:$0x1] 0.0
      $region32: #{discriminator_forward.7} parent=27 // pred_fallthru
        _
      // Predicated region
      $region33: #{discriminator_forward.7} parent=27 // pred_check
        %p813 = pneg %p163
      $region34: #{discriminator_forward.7} parent=27 // pred_check_branch
        %815 = sbr.rel (%p813) target = $region36
      $region35: #{discriminator_forward.7} parent=27 // pred_region
        %v816 = vld [vmem:[#allocation2] sm:$0x1]
        %v817 = vadd.f32 %v744, %v747
        %v818 = vadd.f32 %v817, %v752
        %v819 = vadd.f32 %v818, %v755
        %v820 = vadd.f32 %v819, %v760
        %v821 = vadd.f32 %v820, %v763
        %v822 = vadd.f32 %v821, %v768
        %v823 = vadd.f32 %v822, %v771
        %v824 = vadd.f32 %v823, %v776
        %v825 = vadd.f32 %v824, %v779
        %v826 = vadd.f32 %v825, %v784
        %v827 = vadd.f32 %v826, %v787
        %v828 = vadd.f32 %v827, %v792
        %v829 = vadd.f32 %v828, %v795
        %v830 = vadd.f32 %v829, %v800
        %v831 = vadd.f32 %v830, %v803
        %v832 = vrot.slane %v831, 4
        %v833 = vadd.f32 %v831, %v832
        %v834 = vrot.slane %v833, 2
        %v835 = vadd.f32 %v833, %v834
        %v836 = vrot.slane %v835, 1
        %v837 = vadd.f32 %v835, %v836
        %v838 = vadd.f32 %v816, %v837
        %839 = vst [vmem:[#allocation2] sm:$0x1] %v838
        %v840 = vld [vmem:[#allocation3] sm:$0x1]
        %v841 = vmul.f32 %v744, %v744
        %v842 = vmul.f32 %v747, %v747
        %v843 = vmul.f32 %v752, %v752
        %v844 = vmul.f32 %v755, %v755
        %v845 = vmul.f32 %v760, %v760
        %v846 = vmul.f32 %v763, %v763
        %v847 = vmul.f32 %v768, %v768
        %v848 = vmul.f32 %v771, %v771
        %v849 = vmul.f32 %v776, %v776
        %v850 = vmul.f32 %v779, %v779
        %v851 = vmul.f32 %v784, %v784
        %v852 = vmul.f32 %v787, %v787
        %v853 = vmul.f32 %v792, %v792
        %v854 = vmul.f32 %v795, %v795
        %v855 = vmul.f32 %v800, %v800
        %v856 = vmul.f32 %v803, %v803
        %v857 = vadd.f32 %v841, %v842
        %v858 = vadd.f32 %v857, %v843
        %v859 = vadd.f32 %v858, %v844
        %v860 = vadd.f32 %v859, %v845
        %v861 = vadd.f32 %v860, %v846
        %v862 = vadd.f32 %v861, %v847
        %v863 = vadd.f32 %v862, %v848
        %v864 = vadd.f32 %v863, %v849
        %v865 = vadd.f32 %v864, %v850
        %v866 = vadd.f32 %v865, %v851
        %v867 = vadd.f32 %v866, %v852
        %v868 = vadd.f32 %v867, %v853
        %v869 = vadd.f32 %v868, %v854
        %v870 = vadd.f32 %v869, %v855
        %v871 = vadd.f32 %v870, %v856
        %v872 = vrot.slane %v871, 4
        %v873 = vadd.f32 %v871, %v872
        %v874 = vrot.slane %v873, 2
        %v875 = vadd.f32 %v873, %v874
        %v876 = vrot.slane %v875, 1
        %v877 = vadd.f32 %v875, %v876
        %v878 = vadd.f32 %v840, %v877
        %879 = vst [vmem:[#allocation3] sm:$0x1] %v878
      $region36: #{discriminator_forward.7} parent=27 // pred_fallthru
        _
      // Predicated region
      $region37: #{discriminator_forward.7} parent=27 // pred_check
        _
      $region38: #{discriminator_forward.7} parent=27 // pred_check_branch
        %881 = sbr.rel (%p807) target = $region40
      $region39: #{discriminator_forward.7} parent=27 // pred_region
        %v882 = vld [vmem:[#allocation2] sm:$0x1]
        %v883 = vmul.f32 %v882, 0.0078125
        %v884 = vld [vmem:[#allocation3] sm:$0x1]
        %v885 = vmul.f32 %v884, 0.0078125
        %v886 = vmul.f32 %v883, %v883
        %v887 = vsub.f32 %v885, %v886
        %v888 = vmax.f32 %v887, 0.0
        %889 = vst [vmem:[#allocation2] sm:$0x1] %v883
        %v890 = vadd.f32 %v888, 1e-05
        %v891 = vrsqrt.pop %v890
        %892 = vst [vmem:[#allocation3] sm:$0x1] %v891
      $region40: #{discriminator_forward.7} parent=27 // pred_fallthru
        _
      %p893 = scmp.ne.s32.totalorder %s17, 0
      // Predicated region
      $region41: #{discriminator_forward.7} parent=27 // pred_check
        %p894 = pneg %p893
      $region42: #{discriminator_forward.7} parent=27 // pred_check_branch
        %896 = sbr.rel (%p894) target = $region44
      $region43: #{discriminator_forward.7} parent=27 // pred_region
        %v897 = vld [vmem:[#allocation2] sm:$0x1]
        %v899 = vlaneseq
        %v900 = vshrl.u32 %v899, 7
        %v901 = vsub.s32 0, %v900
        %v902 = vrot.slane %v897, %v901
        %v904 = vsub.f32 %v744, %v902
        %v905 = vsub.f32 %v747, %v902
        %v906 = vsub.f32 %v752, %v902
        %v907 = vsub.f32 %v755, %v902
        %v908 = vsub.f32 %v760, %v902
        %v909 = vsub.f32 %v763, %v902
        %v910 = vsub.f32 %v768, %v902
        %v911 = vsub.f32 %v771, %v902
        %v912 = vsub.f32 %v776, %v902
        %v913 = vsub.f32 %v779, %v902
        %v914 = vsub.f32 %v784, %v902
        %v915 = vsub.f32 %v787, %v902
        %v916 = vsub.f32 %v792, %v902
        %v917 = vsub.f32 %v795, %v902
        %v918 = vsub.f32 %v800, %v902
        %v919 = vsub.f32 %v803, %v902
        %v920 = vld [vmem:[#allocation3] sm:$0x1]
        %v922 = vlaneseq
        %v923 = vshrl.u32 %v922, 7
        %v924 = vsub.s32 0, %v923
        %v925 = vrot.slane %v920, %v924
        %v927 = vmul.f32 %v904, %v925
        %v928 = vmul.f32 %v905, %v925
        %v929 = vmul.f32 %v906, %v925
        %v930 = vmul.f32 %v907, %v925
        %v931 = vmul.f32 %v908, %v925
        %v932 = vmul.f32 %v909, %v925
        %v933 = vmul.f32 %v910, %v925
        %v934 = vmul.f32 %v911, %v925
        %v935 = vmul.f32 %v912, %v925
        %v936 = vmul.f32 %v913, %v925
        %v937 = vmul.f32 %v914, %v925
        %v938 = vmul.f32 %v915, %v925
        %v939 = vmul.f32 %v916, %v925
        %v940 = vmul.f32 %v917, %v925
        %v941 = vmul.f32 %v918, %v925
        %v942 = vmul.f32 %v919, %v925
        %vm943 = vcmp.gt.f32.partialorder %v927, 0.0
        %vm944 = vcmp.gt.f32.partialorder %v928, 0.0
        %vm945 = vcmp.gt.f32.partialorder %v929, 0.0
        %vm946 = vcmp.gt.f32.partialorder %v930, 0.0
        %vm947 = vcmp.gt.f32.partialorder %v931, 0.0
        %vm948 = vcmp.gt.f32.partialorder %v932, 0.0
        %vm949 = vcmp.gt.f32.partialorder %v933, 0.0
        %vm950 = vcmp.gt.f32.partialorder %v934, 0.0
        %vm951 = vcmp.gt.f32.partialorder %v935, 0.0
        %vm952 = vcmp.gt.f32.partialorder %v936, 0.0
        %vm953 = vcmp.gt.f32.partialorder %v937, 0.0
        %vm954 = vcmp.gt.f32.partialorder %v938, 0.0
        %vm955 = vcmp.gt.f32.partialorder %v939, 0.0
        %vm956 = vcmp.gt.f32.partialorder %v940, 0.0
        %vm957 = vcmp.gt.f32.partialorder %v941, 0.0
        %vm958 = vcmp.gt.f32.partialorder %v942, 0.0
        %v959 = vmul.f32 %v927, 0.2
        %v960 = vmul.f32 %v928, 0.2
        %v961 = vmul.f32 %v929, 0.2
        %v962 = vmul.f32 %v930, 0.2
        %v963 = vmul.f32 %v931, 0.2
        %v964 = vmul.f32 %v932, 0.2
        %v965 = vmul.f32 %v933, 0.2
        %v966 = vmul.f32 %v934, 0.2
        %v967 = vmul.f32 %v935, 0.2
        %v968 = vmul.f32 %v936, 0.2
        %v969 = vmul.f32 %v937, 0.2
        %v970 = vmul.f32 %v938, 0.2
        %v971 = vmul.f32 %v939, 0.2
        %v972 = vmul.f32 %v940, 0.2
        %v973 = vmul.f32 %v941, 0.2
        %v974 = vmul.f32 %v942, 0.2
        %v975 = vsel %vm943, %v927, %v959
        %v976 = vsel %vm944, %v928, %v960
        %v977 = vsel %vm945, %v929, %v961
        %v978 = vsel %vm946, %v930, %v962
        %v979 = vsel %vm947, %v931, %v963
        %v980 = vsel %vm948, %v932, %v964
        %v981 = vsel %vm949, %v933, %v965
        %v982 = vsel %vm950, %v934, %v966
        %v983 = vsel %vm951, %v935, %v967
        %v984 = vsel %vm952, %v936, %v968
        %v985 = vsel %vm953, %v937, %v969
        %v986 = vsel %vm954, %v938, %v970
        %v987 = vsel %vm955, %v939, %v971
        %v988 = vsel %vm956, %v940, %v972
        %v989 = vsel %vm957, %v941, %v973
        %v990 = vsel %vm958, %v942, %v974
        %v991 = vpack.c.bf16 %v976, %v975
        %v992 = vpack.c.bf16 %v978, %v977
        %v993 = vpack.c.bf16 %v980, %v979
        %v994 = vpack.c.bf16 %v982, %v981
        %v995 = vpack.c.bf16 %v984, %v983
        %v996 = vpack.c.bf16 %v986, %v985
        %v997 = vpack.c.bf16 %v988, %v987
        %v998 = vpack.c.bf16 %v990, %v989
        %v1007 = vunpack.c.l.b16 %v991
        %v1008 = vunpack.c.h.b16 %v991
        %v1009 = vunpack.c.l.b16 %v992
        %v1010 = vunpack.c.h.b16 %v992
        %v1011 = vunpack.c.l.b16 %v993
        %v1012 = vunpack.c.h.b16 %v993
        %v1013 = vunpack.c.l.b16 %v994
        %v1014 = vunpack.c.h.b16 %v994
        %v1015 = vunpack.c.l.b16 %v995
        %v1016 = vunpack.c.h.b16 %v995
        %v1017 = vunpack.c.l.b16 %v996
        %v1018 = vunpack.c.h.b16 %v996
        %v1019 = vunpack.c.l.b16 %v997
        %v1020 = vunpack.c.h.b16 %v997
        %v1021 = vunpack.c.l.b16 %v998
        %v1022 = vunpack.c.h.b16 %v998
        %v1023 = vpack.c.b16 %v1007, %v1007
        %v1024 = vpack.c.b16 %v1008, %v1008
        %v1025 = vpack.c.b16 %v1009, %v1009
        %v1026 = vpack.c.b16 %v1010, %v1010
        %v1027 = vpack.c.b16 %v1011, %v1011
        %v1028 = vpack.c.b16 %v1012, %v1012
        %v1029 = vpack.c.b16 %v1013, %v1013
        %v1030 = vpack.c.b16 %v1014, %v1014
        %v1031 = vpack.c.b16 %v1015, %v1015
        %v1032 = vpack.c.b16 %v1016, %v1016
        %v1033 = vpack.c.b16 %v1017, %v1017
        %v1034 = vpack.c.b16 %v1018, %v1018
        %v1035 = vpack.c.b16 %v1019, %v1019
        %v1036 = vpack.c.b16 %v1020, %v1020
        %v1037 = vpack.c.b16 %v1021, %v1021
        %v1038 = vpack.c.b16 %v1022, %v1022
        %1055 = vst [vmem:[%s160] sm:$0xf] %v1023
        %1056 = vst [vmem:[%s160 + $0x4] sm:$0xf] %v1024
        %1057 = vst [vmem:[%s160 + $0x8] sm:$0xf] %v1025
        %1058 = vst [vmem:[%s160 + $0xc] sm:$0xf] %v1026
        %1059 = vst [vmem:[%s160 + $0x10] sm:$0xf] %v1027
        %1060 = vst [vmem:[%s160 + $0x14] sm:$0xf] %v1028
        %1061 = vst [vmem:[%s160 + $0x18] sm:$0xf] %v1029
        %1062 = vst [vmem:[%s160 + $0x1c] sm:$0xf] %v1030
        %1063 = vst [vmem:[%s160 + $0x20] sm:$0xf] %v1031
        %1064 = vst [vmem:[%s160 + $0x24] sm:$0xf] %v1032
        %1065 = vst [vmem:[%s160 + $0x28] sm:$0xf] %v1033
        %1066 = vst [vmem:[%s160 + $0x2c] sm:$0xf] %v1034
        %1067 = vst [vmem:[%s160 + $0x30] sm:$0xf] %v1035
        %1068 = vst [vmem:[%s160 + $0x34] sm:$0xf] %v1036
        %1069 = vst [vmem:[%s160 + $0x38] sm:$0xf] %v1037
        %1070 = vst [vmem:[%s160 + $0x3c] sm:$0xf] %v1038
      $region44: #{discriminator_forward.7} parent=27 // pred_fallthru
        _
      %s1071 = smul.u32 16, %s18
      %p1072 = scmp.lt.s32.totalorder %s1071, 15
      %s1073 = scalar_select %p1072, %s1071, 15
      %s1074 = smul.addr %s1073, 4
      %s1075 = scalar_lea.vmem %s2, %s1074
      // Predicated region
      $region45: #{discriminator_forward.7} parent=27 // pred_check
        %p1076 = pneg %p90
      $region46: #{discriminator_forward.7} parent=27 // pred_check_branch
        %1078 = sbr.rel (%p1076) target = $region48
      $region47: #{discriminator_forward.7} parent=27 // pred_region
        %s1079 = smul.u32 16, %s18
      $region48: #{discriminator_forward.7} parent=27 // pred_fallthru
        _
      // Predicated region
      $region49: #{discriminator_forward.7} parent=27 // pred_check
        %p1080 = pneg %p90
      $region50: #{discriminator_forward.7} parent=27 // pred_check_branch
        %1082 = sbr.rel (%p1080) target = $region52
      $region51: #{discriminator_forward.7} parent=27 // pred_region
        %s1083 = smul.u32 16, %s18
        %p1084 = scmp.lt.s32.totalorder %s1083, 15
        %s1085 = scalar_select %p1084, %s1083, 15
        %s1086 = smul.addr %s1085, 4
        %s1087 = scalar_lea.vmem %s2, %s1086
      $region52: #{discriminator_forward.7} parent=27 // pred_fallthru
        _
    $region28: #{discriminator_forward.7} parent=5 // pred_fallthru
      _
    %p1088 = scmp.le.s32.totalorder 2, %s8
    // Predicated region
    $region53: #{discriminator_forward.7} parent=5 // pred_check
      %p1089 = pneg %p1088
    $region54: #{discriminator_forward.7} parent=5 // pred_check_branch
      %1091 = sbr.rel (%p1089) target = $region56
    $region55: #{discriminator_forward.7} parent=5 // pred_region
      %s1092 = ssub.s32 %s8, 2
    $region56: #{discriminator_forward.7} parent=5 // pred_fallthru
      _
  $region6: #{discriminator_forward.7} parent=0 // loop_footer
    %s12 = sadd.s32 1, %s8
  $region7: #{discriminator_forward.7} parent=0 // loop_footer_branch
    %7 = sbr.rel target = $region3
  $region8: #{discriminator_forward.7} parent=0 // loop_exit
    _

// kernel: discriminator_forward.8
$region0: #{discriminator_forward.8}
  #allocation0 [shape = 'u32[]', space=smem, size = 0x4, offset = 0x4, fixed_abs, tag = 'smem constant byte address 0x4 - core index']
  #allocation1 [shape = 'u32[144,128]{1,0:T(1,128)}', space=vmem, size = 0x12000, scoped, tag = 'internal scratch']
  #allocation2 [shape = 'f32[1,128]{1,0:T(1,128)}', space=vmem, size = 0x200, scoped, tag = 'scratch operand']
  #allocation3 [shape = 'f32[1,128]{1,0:T(1,128)}', space=vmem, size = 0x200, scoped, tag = 'scratch operand']
  %s0 = inlined_call_operand.vmem [shape: bf16[32,1024], index: 0, kind: input, shape index: {}]
  %s1 = inlined_call_operand.vmem [shape: bf16[1024,128], index: 1, kind: input, shape index: {}]
  %s2 = inlined_call_operand.vmem [shape: bf16[32,128], index: 2, kind: output, shape index: {}]
  %s3 = sld [smem:[#allocation0]]
  $region57: #{discriminator_forward.8} parent=0
    _
  %s5 = ssub.s32 1, %s3
  %s6 = scalar_select 0, %s5, %s3
  loop: start=0, step=1, limit=4
  $region2: #{discriminator_forward.8} parent=0 // loop_pre_header
    _
  $region3: #{discriminator_forward.8} parent=0 // loop_header
    %s8 = sphi 0, %s12
    %p9 = scmp.ge.s32.totalorder %s8, 4
    %s15 = sphi 0, %s27
    %s16 = sphi 0, %s23
    %s17 = sphi 0, %s15
    %s18 = sphi 0, %s16
    %s19 = sphi 0, %s17
    %s20 = sphi 0, %s18
    %s30 = sphi 0, %s32
    %s33 = sphi 0, %s30
    %s34 = sphi 0, %s33
    %s50 = sphi 0, %s34
    %s54 = sphi 0, %s54
    %s56 = sphi 0, %s54
    %s57 = sphi 0, %s56
    %s71 = sphi 0, %s57
    %s77 = sphi 0, %s79
    %s80 = sphi 0, %s77
    %s81 = sphi 0, %s80
    %s97 = sphi 0, %s81
  $region4: #{discriminator_forward.8} parent=0 // loop_header_branch
    %11 = sbr.rel (%p9) target = $region8
  $region5: #{discriminator_forward.8} parent=0 // loop_body
    %s13 = ssub.s32 %s8, 1
    %s14 = ssub.s32 %s8, 2
    %s21 = sadd.s32 1, %s16
    %p22 = scmp.ge.s32.totalorder %s21, 1
    %s23 = scalar_select %p22, 0, %s21
    %s24 = sadd.s32 1, %s15
    %s25 = scalar_select %p22, %s24, %s15
    %p26 = scmp.ge.s32.totalorder %s25, 2
    %s27 = scalar_select %p26, 0, %s25
    %s28 = ssub.s32 %s16, %s23
    %p29 = scmp.eq.s32.totalorder %s28, 0
    %s31 = sadd.s32 %s30, 1
    %s32 = scalar_select %p29, %s30, %s31
    %p35 = pneg %p29
    %p36 = scmp.eq.s32.totalorder %s8, 1
    %p37 = por %p35, %p36
    %p38 = scmp.ne.s32.totalorder %s30, %s33
    %p39 = scmp.eq.s32.totalorder %s8, 0
    %p40 = por %p38, %p39
    %p41 = scmp.ne.s32.totalorder %s30, %s33
    %p42 = scmp.eq.s32.totalorder %s13, 1
    %p43 = por %p41, %p42
    %p44 = scmp.ne.s32.totalorder %s33, %s34
    %p45 = scmp.eq.s32.totalorder %s13, 0
    %p46 = por %p44, %p45
    %p47 = scmp.ne.s32.totalorder %s33, %s34
    %p48 = scmp.eq.s32.totalorder %s14, 1
    %p49 = por %p47, %p48
    %p51 = scmp.ne.s32.totalorder %s34, %s50
    %p52 = scmp.eq.s32.totalorder %s14, 0
    %p53 = por %p51, %p52
    %s55 = sadd.s32 %s54, 1
    %p58 = scmp.eq.s32.totalorder %s8, 1
    %p59 = scmp.ne.s32.totalorder %s54, %s56
    %p60 = scmp.eq.s32.totalorder %s8, 0
    %p61 = por %p59, %p60
    %p62 = scmp.ne.s32.totalorder %s54, %s56
    %p63 = scmp.eq.s32.totalorder %s13, 1
    %p64 = por %p62, %p63
    %p65 = scmp.ne.s32.totalorder %s56, %s57
    %p66 = scmp.eq.s32.totalorder %s13, 0
    %p67 = por %p65, %p66
    %p68 = scmp.ne.s32.totalorder %s56, %s57
    %p69 = scmp.eq.s32.totalorder %s14, 1
    %p70 = por %p68, %p69
    %p72 = scmp.ne.s32.totalorder %s57, %s71
    %p73 = scmp.eq.s32.totalorder %s14, 0
    %p74 = por %p72, %p73
    %s75 = ssub.s32 %s16, %s23
    %p76 = scmp.eq.s32.totalorder %s75, 0
    %s78 = sadd.s32 %s77, 1
    %s79 = scalar_select %p76, %s77, %s78
    %p82 = pneg %p76
    %p83 = scmp.eq.s32.totalorder %s8, 1
    %p84 = por %p82, %p83
    %p85 = scmp.ne.s32.totalorder %s77, %s80
    %p86 = scmp.eq.s32.totalorder %s8, 0
    %p87 = por %p85, %p86
    %p88 = scmp.ne.s32.totalorder %s77, %s80
    %p89 = scmp.eq.s32.totalorder %s13, 1
    %p90 = por %p88, %p89
    %p91 = scmp.ne.s32.totalorder %s80, %s81
    %p92 = scmp.eq.s32.totalorder %s13, 0
    %p93 = por %p91, %p92
    %p94 = scmp.ne.s32.totalorder %s80, %s81
    %p95 = scmp.eq.s32.totalorder %s14, 1
    %p96 = por %p94, %p95
    %p98 = scmp.ne.s32.totalorder %s81, %s97
    %p99 = scmp.eq.s32.totalorder %s14, 0
    %p100 = por %p98, %p99
    %p101 = scmp.le.s32.totalorder 1, %s8
    %p102 = scmp.lt.s32.totalorder %s8, 3
    %p103 = pnand %p101, %p102
    %p104 = pneg %p103
    // Predicated region
    $region9: #{discriminator_forward.8} parent=5 // pred_check
      _
    $region10: #{discriminator_forward.8} parent=5 // pred_check_branch
      %106 = sbr.rel (%p103) target = $region12
    $region11: #{discriminator_forward.8} parent=5 // pred_region
      %s107 = ssub.s32 %s8, 1
      // Predicated region
      $region13: #{discriminator_forward.8} parent=11 // pred_check
        %p108 = pneg %p46
      $region14: #{discriminator_forward.8} parent=11 // pred_check_branch
        %110 = sbr.rel (%p108) target = $region16
      $region15: #{discriminator_forward.8} parent=11 // pred_region
        %s111 = smul.u32 4, %s18
        %p112 = scmp.lt.s32.totalorder %s111, 3
        %s113 = scalar_select %p112, %s111, 3
        %s114 = smul.addr %s113, 8
        %s115 = smul.addr %s114, 4
        %s116 = scalar_lea.vmem %s0, %s115
        %s117 = smul.u32 4, %s18
      $region16: #{discriminator_forward.8} parent=11 // pred_fallthru
        _
      // Predicated region
      $region17: #{discriminator_forward.8} parent=11 // pred_check
        %p118 = pneg %p67
      $region18: #{discriminator_forward.8} parent=11 // pred_check_branch
        %120 = sbr.rel (%p118) target = $region20
      $region19: #{discriminator_forward.8} parent=11 // pred_region
        _
      $region20: #{discriminator_forward.8} parent=11 // pred_fallthru
        _
    $region12: #{discriminator_forward.8} parent=5 // pred_fallthru
      _
    %p121 = scmp.lt.s32.totalorder %s8, 2
    // Predicated region
    $region21: #{discriminator_forward.8} parent=5 // pred_check
      %p122 = pneg %p121
    $region22: #{discriminator_forward.8} parent=5 // pred_check_branch
      %124 = sbr.rel (%p122) target = $region24
    $region23: #{discriminator_forward.8} parent=5 // pred_region
      _
    $region24: #{discriminator_forward.8} parent=5 // pred_fallthru
      _
    %p125 = scmp.le.s32.totalorder 1, %s8
    %p126 = scmp.lt.s32.totalorder %s8, 3
    %p127 = pnand %p125, %p126
    %p128 = pneg %p127
    // Predicated region
    $region25: #{discriminator_forward.8} parent=5 // pred_check
      _
    $region26: #{discriminator_forward.8} parent=5 // pred_check_branch
      %130 = sbr.rel (%p127) target = $region28
    $region27: #{discriminator_forward.8} parent=5 // pred_region
      %s131 = ssub.s32 %s8, 1
      %s132 = smul.u32 4, %s18
      %p133 = scmp.lt.s32.totalorder %s132, 3
      %s134 = scalar_select %p133, %s132, 3
      %s135 = smul.addr %s134, 8
      %s136 = smul.addr %s135, 4
      %s137 = scalar_lea.vmem %s0, %s136
      %p138 = pneg %p46
      %p139 = pneg %p43
      %p140 = pneg %p67
      %p141 = pneg %p64
      %p142 = pneg %p93
      %p143 = pneg %p90
      %s144 = smul.u32 4, %s18
      %p145 = scmp.lt.s32.totalorder %s144, 3
      %s146 = scalar_select %p145, %s144, 3
      %s147 = smul.addr %s146, 4
      %s148 = scalar_lea.vmem %s2, %s147
      %s149 = smul.u32 4, %s18
      %p150 = scmp.lt.s32.totalorder %s149, 3
      %s151 = scalar_select %p150, %s149, 3
      %s152 = smul.addr %s151, 8
      %s153 = smul.addr %s152, 4
      %s154 = scalar_lea.vmem %s0, %s153
      %s155 = smul.u32 4, %s18
      %s156 = smul.u32 4, %s18
      %p157 = scmp.lt.s32.totalorder %s156, 3
      %s158 = scalar_select %p157, %s156, 3
      %s159 = smul.addr %s158, 4
      %s160 = scalar_lea.vmem %s2, %s159
      %s161 = smul.u32 4, %s18
      %p163 = scmp.eq.s32.totalorder %s17, 0
      %v164 = vld [vmem:[%s154] sm:$0xff]
      %v165 = vld [vmem:[%s154 + $0x8] sm:$0xff]
      %v166 = vld [vmem:[%s154 + $0x10] sm:$0xff]
      %v167 = vld [vmem:[%s154 + $0x18] sm:$0xff]
      %v168 = vld [vmem:[%s154 + $0x20] sm:$0xff]
      %v169 = vld [vmem:[%s154 + $0x28] sm:$0xff]
      %v170 = vld [vmem:[%s154 + $0x30] sm:$0xff]
      %v171 = vld [vmem:[%s154 + $0x38] sm:$0xff]
      %v172 = vld [vmem:[%s154 + $0x40] sm:$0xff]
      %v173 = vld [vmem:[%s154 + $0x48] sm:$0xff]
      %v174 = vld [vmem:[%s154 + $0x50] sm:$0xff]
      %v175 = vld [vmem:[%s154 + $0x58] sm:$0xff]
      %v176 = vld [vmem:[%s154 + $0x60] sm:$0xff]
      %v177 = vld [vmem:[%s154 + $0x68] sm:$0xff]
      %v178 = vld [vmem:[%s154 + $0x70] sm:$0xff]
      %v179 = vld [vmem:[%s154 + $0x78] sm:$0xff]
      %v180 = vld [vmem:[%s1] sm:$0xf]
      %v181 = vld [vmem:[%s1 + $0x4] sm:$0xf]
      %v182 = vld [vmem:[%s1 + $0x8] sm:$0xf]
      %v183 = vld [vmem:[%s1 + $0xc] sm:$0xf]
      %v184 = vld [vmem:[%s1 + $0x10] sm:$0xf]
      %v185 = vld [vmem:[%s1 + $0x14] sm:$0xf]
      %v186 = vld [vmem:[%s1 + $0x18] sm:$0xf]
      %v187 = vld [vmem:[%s1 + $0x1c] sm:$0xf]
      %v188 = vld [vmem:[%s1 + $0x20] sm:$0xf]
      %v189 = vld [vmem:[%s1 + $0x24] sm:$0xf]
      %v190 = vld [vmem:[%s1 + $0x28] sm:$0xf]
      %v191 = vld [vmem:[%s1 + $0x2c] sm:$0xf]
      %v192 = vld [vmem:[%s1 + $0x30] sm:$0xf]
      %v193 = vld [vmem:[%s1 + $0x34] sm:$0xf]
      %v194 = vld [vmem:[%s1 + $0x38] sm:$0xf]
      %v195 = vld [vmem:[%s1 + $0x3c] sm:$0xf]
      %v196 = vld [vmem:[%s1 + $0x40] sm:$0xf]
      %v197 = vld [vmem:[%s1 + $0x44] sm:$0xf]
      %v198 = vld [vmem:[%s1 + $0x48] sm:$0xf]
      %v199 = vld [vmem:[%s1 + $0x4c] sm:$0xf]
      %v200 = vld [vmem:[%s1 + $0x50] sm:$0xf]
      %v201 = vld [vmem:[%s1 + $0x54] sm:$0xf]
      %v202 = vld [vmem:[%s1 + $0x58] sm:$0xf]
      %v203 = vld [vmem:[%s1 + $0x5c] sm:$0xf]
      %v204 = vld [vmem:[%s1 + $0x60] sm:$0xf]
      %v205 = vld [vmem:[%s1 + $0x64] sm:$0xf]
      %v206 = vld [vmem:[%s1 + $0x68] sm:$0xf]
      %v207 = vld [vmem:[%s1 + $0x6c] sm:$0xf]
      %v208 = vld [vmem:[%s1 + $0x70] sm:$0xf]
      %v209 = vld [vmem:[%s1 + $0x74] sm:$0xf]
      %v210 = vld [vmem:[%s1 + $0x78] sm:$0xf]
      %v211 = vld [vmem:[%s1 + $0x7c] sm:$0xf]
      %v212 = vld [vmem:[%s1 + $0x80] sm:$0xf]
      %v213 = vld [vmem:[%s1 + $0x84] sm:$0xf]
      %v214 = vld [vmem:[%s1 + $0x88] sm:$0xf]
      %v215 = vld [vmem:[%s1 + $0x8c] sm:$0xf]
      %v216 = vld [vmem:[%s1 + $0x90] sm:$0xf]
      %v217 = vld [vmem:[%s1 + $0x94] sm:$0xf]
      %v218 = vld [vmem:[%s1 + $0x98] sm:$0xf]
      %v219 = vld [vmem:[%s1 + $0x9c] sm:$0xf]
      %v220 = vld [vmem:[%s1 + $0xa0] sm:$0xf]
      %v221 = vld [vmem:[%s1 + $0xa4] sm:$0xf]
      %v222 = vld [vmem:[%s1 + $0xa8] sm:$0xf]
      %v223 = vld [vmem:[%s1 + $0xac] sm:$0xf]
      %v224 = vld [vmem:[%s1 + $0xb0] sm:$0xf]
      %v225 = vld [vmem:[%s1 + $0xb4] sm:$0xf]
      %v226 = vld [vmem:[%s1 + $0xb8] sm:$0xf]
      %v227 = vld [vmem:[%s1 + $0xbc] sm:$0xf]
      %v228 = vld [vmem:[%s1 + $0xc0] sm:$0xf]
      %v229 = vld [vmem:[%s1 + $0xc4] sm:$0xf]
      %v230 = vld [vmem:[%s1 + $0xc8] sm:$0xf]
      %v231 = vld [vmem:[%s1 + $0xcc] sm:$0xf]
      %v232 = vld [vmem:[%s1 + $0xd0] sm:$0xf]
      %v233 = vld [vmem:[%s1 + $0xd4] sm:$0xf]
      %v234 = vld [vmem:[%s1 + $0xd8] sm:$0xf]
      %v235 = vld [vmem:[%s1 + $0xdc] sm:$0xf]
      %v236 = vld [vmem:[%s1 + $0xe0] sm:$0xf]
      %v237 = vld [vmem:[%s1 + $0xe4] sm:$0xf]
      %v238 = vld [vmem:[%s1 + $0xe8] sm:$0xf]
      %v239 = vld [vmem:[%s1 + $0xec] sm:$0xf]
      %v240 = vld [vmem:[%s1 + $0xf0] sm:$0xf]
      %v241 = vld [vmem:[%s1 + $0xf4] sm:$0xf]
      %v242 = vld [vmem:[%s1 + $0xf8] sm:$0xf]
      %v243 = vld [vmem:[%s1 + $0xfc] sm:$0xf]
      %v244 = vld [vmem:[%s1 + $0x100] sm:$0xf]
      %v245 = vld [vmem:[%s1 + $0x104] sm:$0xf]
      %v246 = vld [vmem:[%s1 + $0x108] sm:$0xf]
      %v247 = vld [vmem:[%s1 + $0x10c] sm:$0xf]
      %v248 = vld [vmem:[%s1 + $0x110] sm:$0xf]
      %v249 = vld [vmem:[%s1 + $0x114] sm:$0xf]
      %v250 = vld [vmem:[%s1 + $0x118] sm:$0xf]
      %v251 = vld [vmem:[%s1 + $0x11c] sm:$0xf]
      %v252 = vld [vmem:[%s1 + $0x120] sm:$0xf]
      %v253 = vld [vmem:[%s1 + $0x124] sm:$0xf]
      %v254 = vld [vmem:[%s1 + $0x128] sm:$0xf]
      %v255 = vld [vmem:[%s1 + $0x12c] sm:$0xf]
      %v256 = vld [vmem:[%s1 + $0x130] sm:$0xf]
      %v257 = vld [vmem:[%s1 + $0x134] sm:$0xf]
      %v258 = vld [vmem:[%s1 + $0x138] sm:$0xf]
      %v259 = vld [vmem:[%s1 + $0x13c] sm:$0xf]
      %v260 = vld [vmem:[%s1 + $0x140] sm:$0xf]
      %v261 = vld [vmem:[%s1 + $0x144] sm:$0xf]
      %v262 = vld [vmem:[%s1 + $0x148] sm:$0xf]
      %v263 = vld [vmem:[%s1 + $0x14c] sm:$0xf]
      %v264 = vld [vmem:[%s1 + $0x150] sm:$0xf]
      %v265 = vld [vmem:[%s1 + $0x154] sm:$0xf]
      %v266 = vld [vmem:[%s1 + $0x158] sm:$0xf]
      %v267 = vld [vmem:[%s1 + $0x15c] sm:$0xf]
      %v268 = vld [vmem:[%s1 + $0x160] sm:$0xf]
      %v269 = vld [vmem:[%s1 + $0x164] sm:$0xf]
      %v270 = vld [vmem:[%s1 + $0x168] sm:$0xf]
      %v271 = vld [vmem:[%s1 + $0x16c] sm:$0xf]
      %v272 = vld [vmem:[%s1 + $0x170] sm:$0xf]
      %v273 = vld [vmem:[%s1 + $0x174] sm:$0xf]
      %v274 = vld [vmem:[%s1 + $0x178] sm:$0xf]
      %v275 = vld [vmem:[%s1 + $0x17c] sm:$0xf]
      %v276 = vld [vmem:[%s1 + $0x180] sm:$0xf]
      %v277 = vld [vmem:[%s1 + $0x184] sm:$0xf]
      %v278 = vld [vmem:[%s1 + $0x188] sm:$0xf]
      %v279 = vld [vmem:[%s1 + $0x18c] sm:$0xf]
      %v280 = vld [vmem:[%s1 + $0x190] sm:$0xf]
      %v281 = vld [vmem:[%s1 + $0x194] sm:$0xf]
      %v282 = vld [vmem:[%s1 + $0x198] sm:$0xf]
      %v283 = vld [vmem:[%s1 + $0x19c] sm:$0xf]
      %v284 = vld [vmem:[%s1 + $0x1a0] sm:$0xf]
      %v285 = vld [vmem:[%s1 + $0x1a4] sm:$0xf]
      %v286 = vld [vmem:[%s1 + $0x1a8] sm:$0xf]
      %v287 = vld [vmem:[%s1 + $0x1ac] sm:$0xf]
      %v288 = vld [vmem:[%s1 + $0x1b0] sm:$0xf]
      %v289 = vld [vmem:[%s1 + $0x1b4] sm:$0xf]
      %v290 = vld [vmem:[%s1 + $0x1b8] sm:$0xf]
      %v291 = vld [vmem:[%s1 + $0x1bc] sm:$0xf]
      %v292 = vld [vmem:[%s1 + $0x1c0] sm:$0xf]
      %v293 = vld [vmem:[%s1 + $0x1c4] sm:$0xf]
      %v294 = vld [vmem:[%s1 + $0x1c8] sm:$0xf]
      %v295 = vld [vmem:[%s1 + $0x1cc] sm:$0xf]
      %v296 = vld [vmem:[%s1 + $0x1d0] sm:$0xf]
      %v297 = vld [vmem:[%s1 + $0x1d4] sm:$0xf]
      %v298 = vld [vmem:[%s1 + $0x1d8] sm:$0xf]
      %v299 = vld [vmem:[%s1 + $0x1dc] sm:$0xf]
      %v300 = vld [vmem:[%s1 + $0x1e0] sm:$0xf]
      %v301 = vld [vmem:[%s1 + $0x1e4] sm:$0xf]
      %v302 = vld [vmem:[%s1 + $0x1e8] sm:$0xf]
      %v303 = vld [vmem:[%s1 + $0x1ec] sm:$0xf]
      %v304 = vld [vmem:[%s1 + $0x1f0] sm:$0xf]
      %v305 = vld [vmem:[%s1 + $0x1f4] sm:$0xf]
      %v306 = vld [vmem:[%s1 + $0x1f8] sm:$0xf]
      %v307 = vld [vmem:[%s1 + $0x1fc] sm:$0xf]
      %v324 = vunpack.c.l.b16 %v164
      %v325 = vunpack.c.h.b16 %v164
      %v326 = vunpack.c.l.b16 %v165
      %v327 = vunpack.c.h.b16 %v165
      %v328 = vunpack.c.l.b16 %v166
      %v329 = vunpack.c.h.b16 %v166
      %v330 = vunpack.c.l.b16 %v167
      %v331 = vunpack.c.h.b16 %v167
      %v332 = vunpack.c.l.b16 %v168
      %v333 = vunpack.c.h.b16 %v168
      %v334 = vunpack.c.l.b16 %v169
      %v335 = vunpack.c.h.b16 %v169
      %v336 = vunpack.c.l.b16 %v170
      %v337 = vunpack.c.h.b16 %v170
      %v338 = vunpack.c.l.b16 %v171
      %v339 = vunpack.c.h.b16 %v171
      %v340 = vunpack.c.l.b16 %v172
      %v341 = vunpack.c.h.b16 %v172
      %v342 = vunpack.c.l.b16 %v173
      %v343 = vunpack.c.h.b16 %v173
      %v344 = vunpack.c.l.b16 %v174
      %v345 = vunpack.c.h.b16 %v174
      %v346 = vunpack.c.l.b16 %v175
      %v347 = vunpack.c.h.b16 %v175
      %v348 = vunpack.c.l.b16 %v176
      %v349 = vunpack.c.h.b16 %v176
      %v350 = vunpack.c.l.b16 %v177
      %v351 = vunpack.c.h.b16 %v177
      %v352 = vunpack.c.l.b16 %v178
      %v353 = vunpack.c.h.b16 %v178
      %v354 = vunpack.c.l.b16 %v179
      %v355 = vunpack.c.h.b16 %v179
      %v356 = vpack.c.b16 %v332, %v324
      %v357 = vpack.c.b16 %v333, %v325
      %v358 = vpack.c.b16 %v334, %v326
      %v359 = vpack.c.b16 %v335, %v327
      %v360 = vpack.c.b16 %v336, %v328
      %v361 = vpack.c.b16 %v337, %v329
      %v362 = vpack.c.b16 %v338, %v330
      %v363 = vpack.c.b16 %v339, %v331
      %v364 = vpack.c.b16 %v348, %v340
      %v365 = vpack.c.b16 %v349, %v341
      %v366 = vpack.c.b16 %v350, %v342
      %v367 = vpack.c.b16 %v351, %v343
      %v368 = vpack.c.b16 %v352, %v344
      %v369 = vpack.c.b16 %v353, %v345
      %v370 = vpack.c.b16 %v354, %v346
      %v371 = vpack.c.b16 %v355, %v347
      %v516 = vunpack.c.l.b16 %v180
      %v517 = vunpack.c.l.b16 %v181
      %v518 = vunpack.c.l.b16 %v182
      %v519 = vunpack.c.l.b16 %v183
      %v520 = vunpack.c.l.b16 %v184
      %v521 = vunpack.c.l.b16 %v185
      %v522 = vunpack.c.l.b16 %v186
      %v523 = vunpack.c.l.b16 %v187
      %v524 = vunpack.c.l.b16 %v188
      %v525 = vunpack.c.l.b16 %v189
      %v526 = vunpack.c.l.b16 %v190
      %v527 = vunpack.c.l.b16 %v191
      %v528 = vunpack.c.l.b16 %v192
      %v529 = vunpack.c.l.b16 %v193
      %v530 = vunpack.c.l.b16 %v194
      %v531 = vunpack.c.l.b16 %v195
      %v532 = vunpack.c.l.b16 %v196
      %v533 = vunpack.c.l.b16 %v197
      %v534 = vunpack.c.l.b16 %v198
      %v535 = vunpack.c.l.b16 %v199
      %v536 = vunpack.c.l.b16 %v200
      %v537 = vunpack.c.l.b16 %v201
      %v538 = vunpack.c.l.b16 %v202
      %v539 = vunpack.c.l.b16 %v203
      %v540 = vunpack.c.l.b16 %v204
      %v541 = vunpack.c.l.b16 %v205
      %v542 = vunpack.c.l.b16 %v206
      %v543 = vunpack.c.l.b16 %v207
      %v544 = vunpack.c.l.b16 %v208
      %v545 = vunpack.c.l.b16 %v209
      %v546 = vunpack.c.l.b16 %v210
      %v547 = vunpack.c.l.b16 %v211
      %v548 = vunpack.c.l.b16 %v212
      %v549 = vunpack.c.l.b16 %v213
      %v550 = vunpack.c.l.b16 %v214
      %v551 = vunpack.c.l.b16 %v215
      %v552 = vunpack.c.l.b16 %v216
      %v553 = vunpack.c.l.b16 %v217
      %v554 = vunpack.c.l.b16 %v218
      %v555 = vunpack.c.l.b16 %v219
      %v556 = vunpack.c.l.b16 %v220
      %v557 = vunpack.c.l.b16 %v221
      %v558 = vunpack.c.l.b16 %v222
      %v559 = vunpack.c.l.b16 %v223
      %v560 = vunpack.c.l.b16 %v224
      %v561 = vunpack.c.l.b16 %v225
      %v562 = vunpack.c.l.b16 %v226
      %v563 = vunpack.c.l.b16 %v227
      %v564 = vunpack.c.l.b16 %v228
      %v565 = vunpack.c.l.b16 %v229
      %v566 = vunpack.c.l.b16 %v230
      %v567 = vunpack.c.l.b16 %v231
      %v568 = vunpack.c.l.b16 %v232
      %v569 = vunpack.c.l.b16 %v233
      %v570 = vunpack.c.l.b16 %v234
      %v571 = vunpack.c.l.b16 %v235
      %v572 = vunpack.c.l.b16 %v236
      %v573 = vunpack.c.l.b16 %v237
      %v574 = vunpack.c.l.b16 %v238
      %v575 = vunpack.c.l.b16 %v239
      %v576 = vunpack.c.l.b16 %v240
      %v577 = vunpack.c.l.b16 %v241
      %v578 = vunpack.c.l.b16 %v242
      %v579 = vunpack.c.l.b16 %v243
      %v580 = vunpack.c.l.b16 %v244
      %v581 = vunpack.c.l.b16 %v245
      %v582 = vunpack.c.l.b16 %v246
      %v583 = vunpack.c.l.b16 %v247
      %v584 = vunpack.c.l.b16 %v248
      %v585 = vunpack.c.l.b16 %v249
      %v586 = vunpack.c.l.b16 %v250
      %v587 = vunpack.c.l.b16 %v251
      %v588 = vunpack.c.l.b16 %v252
      %v589 = vunpack.c.l.b16 %v253
      %v590 = vunpack.c.l.b16 %v254
      %v591 = vunpack.c.l.b16 %v255
      %v592 = vunpack.c.l.b16 %v256
      %v593 = vunpack.c.l.b16 %v257
      %v594 = vunpack.c.l.b16 %v258
      %v595 = vunpack.c.l.b16 %v259
      %v596 = vunpack.c.l.b16 %v260
      %v597 = vunpack.c.l.b16 %v261
      %v598 = vunpack.c.l.b16 %v262
      %v599 = vunpack.c.l.b16 %v263
      %v600 = vunpack.c.l.b16 %v264
      %v601 = vunpack.c.l.b16 %v265
      %v602 = vunpack.c.l.b16 %v266
      %v603 = vunpack.c.l.b16 %v267
      %v604 = vunpack.c.l.b16 %v268
      %v605 = vunpack.c.l.b16 %v269
      %v606 = vunpack.c.l.b16 %v270
      %v607 = vunpack.c.l.b16 %v271
      %v608 = vunpack.c.l.b16 %v272
      %v609 = vunpack.c.l.b16 %v273
      %v610 = vunpack.c.l.b16 %v274
      %v611 = vunpack.c.l.b16 %v275
      %v612 = vunpack.c.l.b16 %v276
      %v613 = vunpack.c.l.b16 %v277
      %v614 = vunpack.c.l.b16 %v278
      %v615 = vunpack.c.l.b16 %v279
      %v616 = vunpack.c.l.b16 %v280
      %v617 = vunpack.c.l.b16 %v281
      %v618 = vunpack.c.l.b16 %v282
      %v619 = vunpack.c.l.b16 %v283
      %v620 = vunpack.c.l.b16 %v284
      %v621 = vunpack.c.l.b16 %v285
      %v622 = vunpack.c.l.b16 %v286
      %v623 = vunpack.c.l.b16 %v287
      %v624 = vunpack.c.l.b16 %v288
      %v625 = vunpack.c.l.b16 %v289
      %v626 = vunpack.c.l.b16 %v290
      %v627 = vunpack.c.l.b16 %v291
      %v628 = vunpack.c.l.b16 %v292
      %v629 = vunpack.c.l.b16 %v293
      %v630 = vunpack.c.l.b16 %v294
      %v631 = vunpack.c.l.b16 %v295
      %v632 = vunpack.c.l.b16 %v296
      %v633 = vunpack.c.l.b16 %v297
      %v634 = vunpack.c.l.b16 %v298
      %v635 = vunpack.c.l.b16 %v299
      %v636 = vunpack.c.l.b16 %v300
      %v637 = vunpack.c.l.b16 %v301
      %v638 = vunpack.c.l.b16 %v302
      %v639 = vunpack.c.l.b16 %v303
      %v640 = vunpack.c.l.b16 %v304
      %v641 = vunpack.c.l.b16 %v305
      %v642 = vunpack.c.l.b16 %v306
      %v643 = vunpack.c.l.b16 %v307
      %v644 = vpack.c.b16 %v517, %v516
      %v645 = vpack.c.b16 %v519, %v518
      %v646 = vpack.c.b16 %v521, %v520
      %v647 = vpack.c.b16 %v523, %v522
      %v648 = vpack.c.b16 %v525, %v524
      %v649 = vpack.c.b16 %v527, %v526
      %v650 = vpack.c.b16 %v529, %v528
      %v651 = vpack.c.b16 %v531, %v530
      %v652 = vpack.c.b16 %v533, %v532
      %v653 = vpack.c.b16 %v535, %v534
      %v654 = vpack.c.b16 %v537, %v536
      %v655 = vpack.c.b16 %v539, %v538
      %v656 = vpack.c.b16 %v541, %v540
      %v657 = vpack.c.b16 %v543, %v542
      %v658 = vpack.c.b16 %v545, %v544
      %v659 = vpack.c.b16 %v547, %v546
      %v660 = vpack.c.b16 %v549, %v548
      %v661 = vpack.c.b16 %v551, %v550
      %v662 = vpack.c.b16 %v553, %v552
      %v663 = vpack.c.b16 %v555, %v554
      %v664 = vpack.c.b16 %v557, %v556
      %v665 = vpack.c.b16 %v559, %v558
      %v666 = vpack.c.b16 %v561, %v560
      %v667 = vpack.c.b16 %v563, %v562
      %v668 = vpack.c.b16 %v565, %v564
      %v669 = vpack.c.b16 %v567, %v566
      %v670 = vpack.c.b16 %v569, %v568
      %v671 = vpack.c.b16 %v571, %v570
      %v672 = vpack.c.b16 %v573, %v572
      %v673 = vpack.c.b16 %v575, %v574
      %v674 = vpack.c.b16 %v577, %v576
      %v675 = vpack.c.b16 %v579, %v578
      %v676 = vpack.c.b16 %v581, %v580
      %v677 = vpack.c.b16 %v583, %v582
      %v678 = vpack.c.b16 %v585, %v584
      %v679 = vpack.c.b16 %v587, %v586
      %v680 = vpack.c.b16 %v589, %v588
      %v681 = vpack.c.b16 %v591, %v590
      %v682 = vpack.c.b16 %v593, %v592
      %v683 = vpack.c.b16 %v595, %v594
      %v684 = vpack.c.b16 %v597, %v596
      %v685 = vpack.c.b16 %v599, %v598
      %v686 = vpack.c.b16 %v601, %v600
      %v687 = vpack.c.b16 %v603, %v602
      %v688 = vpack.c.b16 %v605, %v604
      %v689 = vpack.c.b16 %v607, %v606
      %v690 = vpack.c.b16 %v609, %v608
      %v691 = vpack.c.b16 %v611, %v610
      %v692 = vpack.c.b16 %v613, %v612
      %v693 = vpack.c.b16 %v615, %v614
      %v694 = vpack.c.b16 %v617, %v616
      %v695 = vpack.c.b16 %v619, %v618
      %v696 = vpack.c.b16 %v621, %v620
      %v697 = vpack.c.b16 %v623, %v622
      %v698 = vpack.c.b16 %v625, %v624
      %v699 = vpack.c.b16 %v627, %v626
      %v700 = vpack.c.b16 %v629, %v628
      %v701 = vpack.c.b16 %v631, %v630
      %v702 = vpack.c.b16 %v633, %v632
      %v703 = vpack.c.b16 %v635, %v634
      %v704 = vpack.c.b16 %v637, %v636
      %v705 = vpack.c.b16 %v639, %v638
      %v706 = vpack.c.b16 %v641, %v640
      %v707 = vpack.c.b16 %v643, %v642
      %772 = vmatprep.subr.bf16.mxu0 0
      %773 = vmatpush1.bf16.msra.mxu0 %v644
      %774 = vmatprep.subr.bf16.mxu0 0
      %775 = vmatpush1.bf16.msra.mxu0 %v645
      %776 = vmatprep.subr.bf16.mxu0 0
      %777 = vmatpush1.bf16.msra.mxu0 %v646
      %778 = vmatprep.subr.bf16.mxu0 0
      %779 = vmatpush1.bf16.msra.mxu0 %v647
      %780 = vmatprep.subr.bf16.mxu0 0
      %781 = vmatpush1.bf16.msra.mxu0 %v648
      %782 = vmatprep.subr.bf16.mxu0 0
      %783 = vmatpush1.bf16.msra.mxu0 %v649
      %784 = vmatprep.subr.bf16.mxu0 0
      %785 = vmatpush1.bf16.msra.mxu0 %v650
      %786 = vmatprep.subr.bf16.mxu0 0
      %787 = vmatpush1.bf16.msra.mxu0 %v651
      %788 = vmatprep.subr.bf16.mxu0 0
      %789 = vmatpush1.bf16.msra.mxu0 %v652
      %790 = vmatprep.subr.bf16.mxu0 0
      %791 = vmatpush1.bf16.msra.mxu0 %v653
      %792 = vmatprep.subr.bf16.mxu0 0
      %793 = vmatpush1.bf16.msra.mxu0 %v654
      %794 = vmatprep.subr.bf16.mxu0 0
      %795 = vmatpush1.bf16.msra.mxu0 %v655
      %796 = vmatprep.subr.bf16.mxu0 0
      %797 = vmatpush1.bf16.msra.mxu0 %v656
      %798 = vmatprep.subr.bf16.mxu0 0
      %799 = vmatpush1.bf16.msra.mxu0 %v657
      %800 = vmatprep.subr.bf16.mxu0 0
      %801 = vmatpush1.bf16.msra.mxu0 %v658
      %802 = vmatprep.subr.bf16.mxu0 0
      %803 = vmatpush1.bf16.msra.mxu0 %v659
      %804 = vmatprep.mubr.bf16.mxu0 %v357
      %805 = vmatmul.mubr.bf16.gmra.mrb[0].mxu0 %v356
      %v806 = vpop.f32.mrb[0].mxu0
      %v807 = vadd.f32 0.0, %v806
      %v808 = vpop.f32.mrb[0].mxu0
      %v809 = vpop.f32.mrb[0].mxu0
      %v810 = vadd.f32 0.0, %v809
      %v811 = vpop.f32.mrb[0].mxu0
      %812 = vmatprep.mubr.bf16.mxu0 %v365
      %813 = vmatmul.mubr.bf16.gmra.mrb[0].mxu0 %v364
      %v814 = vpop.f32.mrb[0].mxu0
      %v815 = vadd.f32 0.0, %v814
      %v816 = vpop.f32.mrb[0].mxu0
      %v817 = vpop.f32.mrb[0].mxu0
      %v818 = vadd.f32 0.0, %v817
      %v819 = vpop.f32.mrb[0].mxu0
      %820 = vdwg.mxu0
      %821 = vmatprep.subr.bf16.mxu0 0
      %822 = vmatpush1.bf16.msra.mxu0 %v660
      %823 = vmatprep.subr.bf16.mxu0 0
      %824 = vmatpush1.bf16.msra.mxu0 %v661
      %825 = vmatprep.subr.bf16.mxu0 0
      %826 = vmatpush1.bf16.msra.mxu0 %v662
      %827 = vmatprep.subr.bf16.mxu0 0
      %828 = vmatpush1.bf16.msra.mxu0 %v663
      %829 = vmatprep.subr.bf16.mxu0 0
      %830 = vmatpush1.bf16.msra.mxu0 %v664
      %831 = vmatprep.subr.bf16.mxu0 0
      %832 = vmatpush1.bf16.msra.mxu0 %v665
      %833 = vmatprep.subr.bf16.mxu0 0
      %834 = vmatpush1.bf16.msra.mxu0 %v666
      %835 = vmatprep.subr.bf16.mxu0 0
      %836 = vmatpush1.bf16.msra.mxu0 %v667
      %837 = vmatprep.subr.bf16.mxu0 0
      %838 = vmatpush1.bf16.msra.mxu0 %v668
      %839 = vmatprep.subr.bf16.mxu0 0
      %840 = vmatpush1.bf16.msra.mxu0 %v669
      %841 = vmatprep.subr.bf16.mxu0 0
      %842 = vmatpush1.bf16.msra.mxu0 %v670
      %843 = vmatprep.subr.bf16.mxu0 0
      %844 = vmatpush1.bf16.msra.mxu0 %v671
      %845 = vmatprep.subr.bf16.mxu0 0
      %846 = vmatpush1.bf16.msra.mxu0 %v672
      %847 = vmatprep.subr.bf16.mxu0 0
      %848 = vmatpush1.bf16.msra.mxu0 %v673
      %849 = vmatprep.subr.bf16.mxu0 0
      %850 = vmatpush1.bf16.msra.mxu0 %v674
      %851 = vmatprep.subr.bf16.mxu0 0
      %852 = vmatpush1.bf16.msra.mxu0 %v675
      %853 = vmatprep.mubr.bf16.mxu0 %v359
      %854 = vmatmul.mubr.bf16.gmra.mrb[0].mxu0 %v358
      %v855 = vpop.f32.mrb[0].mxu0
      %v856 = vadd.f32 %v807, %v855
      %v857 = vpop.f32.mrb[0].mxu0
      %v858 = vpop.f32.mrb[0].mxu0
      %v859 = vadd.f32 %v810, %v858
      %v860 = vpop.f32.mrb[0].mxu0
      %861 = vmatprep.mubr.bf16.mxu0 %v367
      %862 = vmatmul.mubr.bf16.gmra.mrb[0].mxu0 %v366
      %v863 = vpop.f32.mrb[0].mxu0
      %v864 = vadd.f32 %v815, %v863
      %v865 = vpop.f32.mrb[0].mxu0
      %v866 = vpop.f32.mrb[0].mxu0
      %v867 = vadd.f32 %v818, %v866
      %v868 = vpop.f32.mrb[0].mxu0
      %869 = vdwg.mxu0
      %870 = vmatprep.subr.bf16.mxu0 0
      %871 = vmatpush1.bf16.msra.mxu0 %v676
      %872 = vmatprep.subr.bf16.mxu0 0
      %873 = vmatpush1.bf16.msra.mxu0 %v677
      %874 = vmatprep.subr.bf16.mxu0 0
      %875 = vmatpush1.bf16.msra.mxu0 %v678
      %876 = vmatprep.subr.bf16.mxu0 0
      %877 = vmatpush1.bf16.msra.mxu0 %v679
      %878 = vmatprep.subr.bf16.mxu0 0
      %879 = vmatpush1.bf16.msra.mxu0 %v680
      %880 = vmatprep.subr.bf16.mxu0 0
      %881 = vmatpush1.bf16.msra.mxu0 %v681
      %882 = vmatprep.subr.bf16.mxu0 0
      %883 = vmatpush1.bf16.msra.mxu0 %v682
      %884 = vmatprep.subr.bf16.mxu0 0
      %885 = vmatpush1.bf16.msra.mxu0 %v683
      %886 = vmatprep.subr.bf16.mxu0 0
      %887 = vmatpush1.bf16.msra.mxu0 %v684
      %888 = vmatprep.subr.bf16.mxu0 0
      %889 = vmatpush1.bf16.msra.mxu0 %v685
      %890 = vmatprep.subr.bf16.mxu0 0
      %891 = vmatpush1.bf16.msra.mxu0 %v686
      %892 = vmatprep.subr.bf16.mxu0 0
      %893 = vmatpush1.bf16.msra.mxu0 %v687
      %894 = vmatprep.subr.bf16.mxu0 0
      %895 = vmatpush1.bf16.msra.mxu0 %v688
      %896 = vmatprep.subr.bf16.mxu0 0
      %897 = vmatpush1.bf16.msra.mxu0 %v689
      %898 = vmatprep.subr.bf16.mxu0 0
      %899 = vmatpush1.bf16.msra.mxu0 %v690
      %900 = vmatprep.subr.bf16.mxu0 0
      %901 = vmatpush1.bf16.msra.mxu0 %v691
      %902 = vmatprep.mubr.bf16.mxu0 %v361
      %903 = vmatmul.mubr.bf16.gmra.mrb[0].mxu0 %v360
      %v904 = vpop.f32.mrb[0].mxu0
      %v905 = vadd.f32 %v856, %v904
      %v906 = vpop.f32.mrb[0].mxu0
      %v907 = vpop.f32.mrb[0].mxu0
      %v908 = vadd.f32 %v859, %v907
      %v909 = vpop.f32.mrb[0].mxu0
      %910 = vmatprep.mubr.bf16.mxu0 %v369
      %911 = vmatmul.mubr.bf16.gmra.mrb[0].mxu0 %v368
      %v912 = vpop.f32.mrb[0].mxu0
      %v913 = vadd.f32 %v864, %v912
      %v914 = vpop.f32.mrb[0].mxu0
      %v915 = vpop.f32.mrb[0].mxu0
      %v916 = vadd.f32 %v867, %v915
      %v917 = vpop.f32.mrb[0].mxu0
      %918 = vdwg.mxu0
      %919 = vmatprep.subr.bf16.mxu0 0
      %920 = vmatpush1.bf16.msra.mxu0 %v692
      %921 = vmatprep.subr.bf16.mxu0 0
      %922 = vmatpush1.bf16.msra.mxu0 %v693
      %923 = vmatprep.subr.bf16.mxu0 0
      %924 = vmatpush1.bf16.msra.mxu0 %v694
      %925 = vmatprep.subr.bf16.mxu0 0
      %926 = vmatpush1.bf16.msra.mxu0 %v695
      %927 = vmatprep.subr.bf16.mxu0 0
      %928 = vmatpush1.bf16.msra.mxu0 %v696
      %929 = vmatprep.subr.bf16.mxu0 0
      %930 = vmatpush1.bf16.msra.mxu0 %v697
      %931 = vmatprep.subr.bf16.mxu0 0
      %932 = vmatpush1.bf16.msra.mxu0 %v698
      %933 = vmatprep.subr.bf16.mxu0 0
      %934 = vmatpush1.bf16.msra.mxu0 %v699
      %935 = vmatprep.subr.bf16.mxu0 0
      %936 = vmatpush1.bf16.msra.mxu0 %v700
      %937 = vmatprep.subr.bf16.mxu0 0
      %938 = vmatpush1.bf16.msra.mxu0 %v701
      %939 = vmatprep.subr.bf16.mxu0 0
      %940 = vmatpush1.bf16.msra.mxu0 %v702
      %941 = vmatprep.subr.bf16.mxu0 0
      %942 = vmatpush1.bf16.msra.mxu0 %v703
      %943 = vmatprep.subr.bf16.mxu0 0
      %944 = vmatpush1.bf16.msra.mxu0 %v704
      %945 = vmatprep.subr.bf16.mxu0 0
      %946 = vmatpush1.bf16.msra.mxu0 %v705
      %947 = vmatprep.subr.bf16.mxu0 0
      %948 = vmatpush1.bf16.msra.mxu0 %v706
      %949 = vmatprep.subr.bf16.mxu0 0
      %950 = vmatpush1.bf16.msra.mxu0 %v707
      %951 = vmatprep.mubr.bf16.mxu0 %v363
      %952 = vmatmul.mubr.bf16.gmra.mrb[0].mxu0 %v362
      %v953 = vpop.f32.mrb[0].mxu0
      %v954 = vadd.f32 %v905, %v953
      %v955 = vpop.f32.mrb[0].mxu0
      %v956 = vpop.f32.mrb[0].mxu0
      %v957 = vadd.f32 %v908, %v956
      %v958 = vpop.f32.mrb[0].mxu0
      %959 = vmatprep.mubr.bf16.mxu0 %v371
      %960 = vmatmul.mubr.bf16.gmra.mrb[0].mxu0 %v370
      %v961 = vpop.f32.mrb[0].mxu0
      %v962 = vadd.f32 %v913, %v961
      %v963 = vpop.f32.mrb[0].mxu0
      %v964 = vpop.f32.mrb[0].mxu0
      %v965 = vadd.f32 %v916, %v964
      %v966 = vpop.f32.mrb[0].mxu0
      %967 = vdwg.mxu0
      %p968 = scmp.eq.s32.totalorder %s18, 0
      %p969 = pnand %p163, %p968
      %p970 = pneg %p969
      // Predicated region
      $region29: #{discriminator_forward.8} parent=27 // pred_check
        _
      $region30: #{discriminator_forward.8} parent=27 // pred_check_branch
        %972 = sbr.rel (%p969) target = $region32
      $region31: #{discriminator_forward.8} parent=27 // pred_region
        %973 = vst [vmem:[#allocation2] sm:$0x1] 0.0
        %974 = vst [vmem:[#allocation3] sm:$0x1] 0.0
      $region32: #{discriminator_forward.8} parent=27 // pred_fallthru
        _
      // Predicated region
      $region33: #{discriminator_forward.8} parent=27 // pred_check
        %p975 = pneg %p163
      $region34: #{discriminator_forward.8} parent=27 // pred_check_branch
        %977 = sbr.rel (%p975) target = $region36
      $region35: #{discriminator_forward.8} parent=27 // pred_region
        %v978 = vld [vmem:[#allocation2] sm:$0x1]
        %v979 = vadd.f32 %v954, %v957
        %v980 = vadd.f32 %v979, %v962
        %v981 = vadd.f32 %v980, %v965
        %v982 = vrot.slane %v981, 4
        %v983 = vadd.f32 %v981, %v982
        %v984 = vrot.slane %v983, 2
        %v985 = vadd.f32 %v983, %v984
        %v986 = vrot.slane %v985, 1
        %v987 = vadd.f32 %v985, %v986
        %v988 = vadd.f32 %v978, %v987
        %989 = vst [vmem:[#allocation2] sm:$0x1] %v988
        %v990 = vld [vmem:[#allocation3] sm:$0x1]
        %v991 = vmul.f32 %v954, %v954
        %v992 = vmul.f32 %v957, %v957
        %v993 = vmul.f32 %v962, %v962
        %v994 = vmul.f32 %v965, %v965
        %v995 = vadd.f32 %v991, %v992
        %v996 = vadd.f32 %v995, %v993
        %v997 = vadd.f32 %v996, %v994
        %v998 = vrot.slane %v997, 4
        %v999 = vadd.f32 %v997, %v998
        %v1000 = vrot.slane %v999, 2
        %v1001 = vadd.f32 %v999, %v1000
        %v1002 = vrot.slane %v1001, 1
        %v1003 = vadd.f32 %v1001, %v1002
        %v1004 = vadd.f32 %v990, %v1003
        %1005 = vst [vmem:[#allocation3] sm:$0x1] %v1004
      $region36: #{discriminator_forward.8} parent=27 // pred_fallthru
        _
      // Predicated region
      $region37: #{discriminator_forward.8} parent=27 // pred_check
        _
      $region38: #{discriminator_forward.8} parent=27 // pred_check_branch
        %1007 = sbr.rel (%p969) target = $region40
      $region39: #{discriminator_forward.8} parent=27 // pred_region
        %v1008 = vld [vmem:[#allocation2] sm:$0x1]
        %v1009 = vmul.f32 %v1008, 0.03125
        %v1010 = vld [vmem:[#allocation3] sm:$0x1]
        %v1011 = vmul.f32 %v1010, 0.03125
        %v1012 = vmul.f32 %v1009, %v1009
        %v1013 = vsub.f32 %v1011, %v1012
        %v1014 = vmax.f32 %v1013, 0.0
        %1015 = vst [vmem:[#allocation2] sm:$0x1] %v1009
        %v1016 = vadd.f32 %v1014, 1e-05
        %v1017 = vrsqrt.pop %v1016
        %1018 = vst [vmem:[#allocation3] sm:$0x1] %v1017
      $region40: #{discriminator_forward.8} parent=27 // pred_fallthru
        _
      %p1019 = scmp.ne.s32.totalorder %s17, 0
      // Predicated region
      $region41: #{discriminator_forward.8} parent=27 // pred_check
        %p1020 = pneg %p1019
      $region42: #{discriminator_forward.8} parent=27 // pred_check_branch
        %1022 = sbr.rel (%p1020) target = $region44
      $region43: #{discriminator_forward.8} parent=27 // pred_region
        %v1023 = vld [vmem:[#allocation2] sm:$0x1]
        %v1025 = vlaneseq
        %v1026 = vshrl.u32 %v1025, 7
        %v1027 = vsub.s32 0, %v1026
        %v1028 = vrot.slane %v1023, %v1027
        %v1030 = vsub.f32 %v954, %v1028
        %v1031 = vsub.f32 %v957, %v1028
        %v1032 = vsub.f32 %v962, %v1028
        %v1033 = vsub.f32 %v965, %v1028
        %v1034 = vld [vmem:[#allocation3] sm:$0x1]
        %v1036 = vlaneseq
        %v1037 = vshrl.u32 %v1036, 7
        %v1038 = vsub.s32 0, %v1037
        %v1039 = vrot.slane %v1034, %v1038
        %v1041 = vmul.f32 %v1030, %v1039
        %v1042 = vmul.f32 %v1031, %v1039
        %v1043 = vmul.f32 %v1032, %v1039
        %v1044 = vmul.f32 %v1033, %v1039
        %vm1045 = vcmp.gt.f32.partialorder %v1041, 0.0
        %vm1046 = vcmp.gt.f32.partialorder %v1042, 0.0
        %vm1047 = vcmp.gt.f32.partialorder %v1043, 0.0
        %vm1048 = vcmp.gt.f32.partialorder %v1044, 0.0
        %v1049 = vmul.f32 %v1041, 0.2
        %v1050 = vmul.f32 %v1042, 0.2
        %v1051 = vmul.f32 %v1043, 0.2
        %v1052 = vmul.f32 %v1044, 0.2
        %v1053 = vsel %vm1045, %v1041, %v1049
        %v1054 = vsel %vm1046, %v1042, %v1050
        %v1055 = vsel %vm1047, %v1043, %v1051
        %v1056 = vsel %vm1048, %v1044, %v1052
        %v1057 = vpack.c.bf16 %v1054, %v1053
        %v1058 = vpack.c.bf16 %v1056, %v1055
        %v1061 = vunpack.c.l.b16 %v1057
        %v1062 = vunpack.c.h.b16 %v1057
        %v1063 = vunpack.c.l.b16 %v1058
        %v1064 = vunpack.c.h.b16 %v1058
        %v1065 = vpack.c.b16 %v1061, %v1061
        %v1066 = vpack.c.b16 %v1062, %v1062
        %v1067 = vpack.c.b16 %v1063, %v1063
        %v1068 = vpack.c.b16 %v1064, %v1064
        %1073 = vst [vmem:[%s160] sm:$0xf] %v1065
        %1074 = vst [vmem:[%s160 + $0x4] sm:$0xf] %v1066
        %1075 = vst [vmem:[%s160 + $0x8] sm:$0xf] %v1067
        %1076 = vst [vmem:[%s160 + $0xc] sm:$0xf] %v1068
      $region44: #{discriminator_forward.8} parent=27 // pred_fallthru
        _
      %s1077 = smul.u32 4, %s18
      %p1078 = scmp.lt.s32.totalorder %s1077, 3
      %s1079 = scalar_select %p1078, %s1077, 3
      %s1080 = smul.addr %s1079, 4
      %s1081 = scalar_lea.vmem %s2, %s1080
      // Predicated region
      $region45: #{discriminator_forward.8} parent=27 // pred_check
        %p1082 = pneg %p90
      $region46: #{discriminator_forward.8} parent=27 // pred_check_branch
        %1084 = sbr.rel (%p1082) target = $region48
      $region47: #{discriminator_forward.8} parent=27 // pred_region
        %s1085 = smul.u32 4, %s18
      $region48: #{discriminator_forward.8} parent=27 // pred_fallthru
        _
      // Predicated region
      $region49: #{discriminator_forward.8} parent=27 // pred_check
        %p1086 = pneg %p90
      $region50: #{discriminator_forward.8} parent=27 // pred_check_branch
        %1088 = sbr.rel (%p1086) target = $region52
      $region51: #{discriminator_forward.8} parent=27 // pred_region
        %s1089 = smul.u32 4, %s18
        %p1090 = scmp.lt.s32.totalorder %s1089, 3
        %s1091 = scalar_select %p1090, %s1089, 3
        %s1092 = smul.addr %s1091, 4
        %s1093 = scalar_lea.vmem %s2, %s1092
      $region52: #{discriminator_forward.8} parent=27 // pred_fallthru
        _
    $region28: #{discriminator_forward.8} parent=5 // pred_fallthru
      _
    %p1094 = scmp.le.s32.totalorder 2, %s8
    // Predicated region
    $region53: #{discriminator_forward.8} parent=5 // pred_check
      %p1095 = pneg %p1094
    $region54: #{discriminator_forward.8} parent=5 // pred_check_branch
      %1097 = sbr.rel (%p1095) target = $region56
    $region55: #{discriminator_forward.8} parent=5 // pred_region
      %s1098 = ssub.s32 %s8, 2
    $region56: #{discriminator_forward.8} parent=5 // pred_fallthru
      _
  $region6: #{discriminator_forward.8} parent=0 // loop_footer
    %s12 = sadd.s32 1, %s8
  $region7: #{discriminator_forward.8} parent=0 // loop_footer_branch
    %7 = sbr.rel target = $region3
  $region8: #{discriminator_forward.8} parent=0 // loop_exit
    _

// kernel: discriminator_forward.9
$region0: #{discriminator_forward.9}
  #allocation0 [shape = 'u32[]', space=smem, size = 0x4, offset = 0x4, fixed_abs, tag = 'smem constant byte address 0x4 - core index']
  #allocation1 [shape = 'u32[144,128]{1,0:T(1,128)}', space=vmem, size = 0x12000, scoped, tag = 'internal scratch']
  %s0 = inlined_call_operand.vmem [shape: bf16[2,2048], index: 0, kind: input, shape index: {}]
  %s1 = inlined_call_operand.vmem [shape: bf16[2048,128], index: 1, kind: input, shape index: {}]
  %s2 = inlined_call_operand.vmem [shape: f32[2,128], index: 2, kind: output, shape index: {}]
  %s3 = sld [smem:[#allocation0]]
  $region18: #{discriminator_forward.9} parent=0
    _
  %s5 = ssub.s32 1, %s3
  %s6 = scalar_select 0, %s5, %s3
  // Predicated region
  $region2: #{discriminator_forward.9} parent=0 // pred_check
    _
  $region3: #{discriminator_forward.9} parent=0 // pred_check_branch
    %8 = sbr.rel (0) target = $region5
  $region4: #{discriminator_forward.9} parent=0 // pred_region
    _
  $region5: #{discriminator_forward.9} parent=0 // pred_fallthru
    _
  // Predicated region
  $region6: #{discriminator_forward.9} parent=0 // pred_check
    _
  $region7: #{discriminator_forward.9} parent=0 // pred_check_branch
    %10 = sbr.rel (0) target = $region9
  $region8: #{discriminator_forward.9} parent=0 // pred_region
    _
  $region9: #{discriminator_forward.9} parent=0 // pred_fallthru
    _
  %v12 = vld [vmem:[%s0] sm:$0xff]
  %v13 = vld [vmem:[%s0 + $0x8] sm:$0xff]
  %v14 = vld [vmem:[%s1] sm:$0xf]
  %v15 = vld [vmem:[%s1 + $0x4] sm:$0xf]
  %v16 = vld [vmem:[%s1 + $0x8] sm:$0xf]
  %v17 = vld [vmem:[%s1 + $0xc] sm:$0xf]
  %v18 = vld [vmem:[%s1 + $0x10] sm:$0xf]
  %v19 = vld [vmem:[%s1 + $0x14] sm:$0xf]
  %v20 = vld [vmem:[%s1 + $0x18] sm:$0xf]
  %v21 = vld [vmem:[%s1 + $0x1c] sm:$0xf]
  %v22 = vld [vmem:[%s1 + $0x20] sm:$0xf]
  %v23 = vld [vmem:[%s1 + $0x24] sm:$0xf]
  %v24 = vld [vmem:[%s1 + $0x28] sm:$0xf]
  %v25 = vld [vmem:[%s1 + $0x2c] sm:$0xf]
  %v26 = vld [vmem:[%s1 + $0x30] sm:$0xf]
  %v27 = vld [vmem:[%s1 + $0x34] sm:$0xf]
  %v28 = vld [vmem:[%s1 + $0x38] sm:$0xf]
  %v29 = vld [vmem:[%s1 + $0x3c] sm:$0xf]
  %v30 = vld [vmem:[%s1 + $0x40] sm:$0xf]
  %v31 = vld [vmem:[%s1 + $0x44] sm:$0xf]
  %v32 = vld [vmem:[%s1 + $0x48] sm:$0xf]
  %v33 = vld [vmem:[%s1 + $0x4c] sm:$0xf]
  %v34 = vld [vmem:[%s1 + $0x50] sm:$0xf]
  %v35 = vld [vmem:[%s1 + $0x54] sm:$0xf]
  %v36 = vld [vmem:[%s1 + $0x58] sm:$0xf]
  %v37 = vld [vmem:[%s1 + $0x5c] sm:$0xf]
  %v38 = vld [vmem:[%s1 + $0x60] sm:$0xf]
  %v39 = vld [vmem:[%s1 + $0x64] sm:$0xf]
  %v40 = vld [vmem:[%s1 + $0x68] sm:$0xf]
  %v41 = vld [vmem:[%s1 + $0x6c] sm:$0xf]
  %v42 = vld [vmem:[%s1 + $0x70] sm:$0xf]
  %v43 = vld [vmem:[%s1 + $0x74] sm:$0xf]
  %v44 = vld [vmem:[%s1 + $0x78] sm:$0xf]
  %v45 = vld [vmem:[%s1 + $0x7c] sm:$0xf]
  %v46 = vld [vmem:[%s1 + $0x80] sm:$0xf]
  %v47 = vld [vmem:[%s1 + $0x84] sm:$0xf]
  %v48 = vld [vmem:[%s1 + $0x88] sm:$0xf]
  %v49 = vld [vmem:[%s1 + $0x8c] sm:$0xf]
  %v50 = vld [vmem:[%s1 + $0x90] sm:$0xf]
  %v51 = vld [vmem:[%s1 + $0x94] sm:$0xf]
  %v52 = vld [vmem:[%s1 + $0x98] sm:$0xf]
  %v53 = vld [vmem:[%s1 + $0x9c] sm:$0xf]
  %v54 = vld [vmem:[%s1 + $0xa0] sm:$0xf]
  %v55 = vld [vmem:[%s1 + $0xa4] sm:$0xf]
  %v56 = vld [vmem:[%s1 + $0xa8] sm:$0xf]
  %v57 = vld [vmem:[%s1 + $0xac] sm:$0xf]
  %v58 = vld [vmem:[%s1 + $0xb0] sm:$0xf]
  %v59 = vld [vmem:[%s1 + $0xb4] sm:$0xf]
  %v60 = vld [vmem:[%s1 + $0xb8] sm:$0xf]
  %v61 = vld [vmem:[%s1 + $0xbc] sm:$0xf]
  %v62 = vld [vmem:[%s1 + $0xc0] sm:$0xf]
  %v63 = vld [vmem:[%s1 + $0xc4] sm:$0xf]
  %v64 = vld [vmem:[%s1 + $0xc8] sm:$0xf]
  %v65 = vld [vmem:[%s1 + $0xcc] sm:$0xf]
  %v66 = vld [vmem:[%s1 + $0xd0] sm:$0xf]
  %v67 = vld [vmem:[%s1 + $0xd4] sm:$0xf]
  %v68 = vld [vmem:[%s1 + $0xd8] sm:$0xf]
  %v69 = vld [vmem:[%s1 + $0xdc] sm:$0xf]
  %v70 = vld [vmem:[%s1 + $0xe0] sm:$0xf]
  %v71 = vld [vmem:[%s1 + $0xe4] sm:$0xf]
  %v72 = vld [vmem:[%s1 + $0xe8] sm:$0xf]
  %v73 = vld [vmem:[%s1 + $0xec] sm:$0xf]
  %v74 = vld [vmem:[%s1 + $0xf0] sm:$0xf]
  %v75 = vld [vmem:[%s1 + $0xf4] sm:$0xf]
  %v76 = vld [vmem:[%s1 + $0xf8] sm:$0xf]
  %v77 = vld [vmem:[%s1 + $0xfc] sm:$0xf]
  %v78 = vld [vmem:[%s1 + $0x100] sm:$0xf]
  %v79 = vld [vmem:[%s1 + $0x104] sm:$0xf]
  %v80 = vld [vmem:[%s1 + $0x108] sm:$0xf]
  %v81 = vld [vmem:[%s1 + $0x10c] sm:$0xf]
  %v82 = vld [vmem:[%s1 + $0x110] sm:$0xf]
  %v83 = vld [vmem:[%s1 + $0x114] sm:$0xf]
  %v84 = vld [vmem:[%s1 + $0x118] sm:$0xf]
  %v85 = vld [vmem:[%s1 + $0x11c] sm:$0xf]
  %v86 = vld [vmem:[%s1 + $0x120] sm:$0xf]
  %v87 = vld [vmem:[%s1 + $0x124] sm:$0xf]
  %v88 = vld [vmem:[%s1 + $0x128] sm:$0xf]
  %v89 = vld [vmem:[%s1 + $0x12c] sm:$0xf]
  %v90 = vld [vmem:[%s1 + $0x130] sm:$0xf]
  %v91 = vld [vmem:[%s1 + $0x134] sm:$0xf]
  %v92 = vld [vmem:[%s1 + $0x138] sm:$0xf]
  %v93 = vld [vmem:[%s1 + $0x13c] sm:$0xf]
  %v94 = vld [vmem:[%s1 + $0x140] sm:$0xf]
  %v95 = vld [vmem:[%s1 + $0x144] sm:$0xf]
  %v96 = vld [vmem:[%s1 + $0x148] sm:$0xf]
  %v97 = vld [vmem:[%s1 + $0x14c] sm:$0xf]
  %v98 = vld [vmem:[%s1 + $0x150] sm:$0xf]
  %v99 = vld [vmem:[%s1 + $0x154] sm:$0xf]
  %v100 = vld [vmem:[%s1 + $0x158] sm:$0xf]
  %v101 = vld [vmem:[%s1 + $0x15c] sm:$0xf]
  %v102 = vld [vmem:[%s1 + $0x160] sm:$0xf]
  %v103 = vld [vmem:[%s1 + $0x164] sm:$0xf]
  %v104 = vld [vmem:[%s1 + $0x168] sm:$0xf]
  %v105 = vld [vmem:[%s1 + $0x16c] sm:$0xf]
  %v106 = vld [vmem:[%s1 + $0x170] sm:$0xf]
  %v107 = vld [vmem:[%s1 + $0x174] sm:$0xf]
  %v108 = vld [vmem:[%s1 + $0x178] sm:$0xf]
  %v109 = vld [vmem:[%s1 + $0x17c] sm:$0xf]
  %v110 = vld [vmem:[%s1 + $0x180] sm:$0xf]
  %v111 = vld [vmem:[%s1 + $0x184] sm:$0xf]
  %v112 = vld [vmem:[%s1 + $0x188] sm:$0xf]
  %v113 = vld [vmem:[%s1 + $0x18c] sm:$0xf]
  %v114 = vld [vmem:[%s1 + $0x190] sm:$0xf]
  %v115 = vld [vmem:[%s1 + $0x194] sm:$0xf]
  %v116 = vld [vmem:[%s1 + $0x198] sm:$0xf]
  %v117 = vld [vmem:[%s1 + $0x19c] sm:$0xf]
  %v118 = vld [vmem:[%s1 + $0x1a0] sm:$0xf]
  %v119 = vld [vmem:[%s1 + $0x1a4] sm:$0xf]
  %v120 = vld [vmem:[%s1 + $0x1a8] sm:$0xf]
  %v121 = vld [vmem:[%s1 + $0x1ac] sm:$0xf]
  %v122 = vld [vmem:[%s1 + $0x1b0] sm:$0xf]
  %v123 = vld [vmem:[%s1 + $0x1b4] sm:$0xf]
  %v124 = vld [vmem:[%s1 + $0x1b8] sm:$0xf]
  %v125 = vld [vmem:[%s1 + $0x1bc] sm:$0xf]
  %v126 = vld [vmem:[%s1 + $0x1c0] sm:$0xf]
  %v127 = vld [vmem:[%s1 + $0x1c4] sm:$0xf]
  %v128 = vld [vmem:[%s1 + $0x1c8] sm:$0xf]
  %v129 = vld [vmem:[%s1 + $0x1cc] sm:$0xf]
  %v130 = vld [vmem:[%s1 + $0x1d0] sm:$0xf]
  %v131 = vld [vmem:[%s1 + $0x1d4] sm:$0xf]
  %v132 = vld [vmem:[%s1 + $0x1d8] sm:$0xf]
  %v133 = vld [vmem:[%s1 + $0x1dc] sm:$0xf]
  %v134 = vld [vmem:[%s1 + $0x1e0] sm:$0xf]
  %v135 = vld [vmem:[%s1 + $0x1e4] sm:$0xf]
  %v136 = vld [vmem:[%s1 + $0x1e8] sm:$0xf]
  %v137 = vld [vmem:[%s1 + $0x1ec] sm:$0xf]
  %v138 = vld [vmem:[%s1 + $0x1f0] sm:$0xf]
  %v139 = vld [vmem:[%s1 + $0x1f4] sm:$0xf]
  %v140 = vld [vmem:[%s1 + $0x1f8] sm:$0xf]
  %v141 = vld [vmem:[%s1 + $0x1fc] sm:$0xf]
  %v142 = vld [vmem:[%s1 + $0x200] sm:$0xf]
  %v143 = vld [vmem:[%s1 + $0x204] sm:$0xf]
  %v144 = vld [vmem:[%s1 + $0x208] sm:$0xf]
  %v145 = vld [vmem:[%s1 + $0x20c] sm:$0xf]
  %v146 = vld [vmem:[%s1 + $0x210] sm:$0xf]
  %v147 = vld [vmem:[%s1 + $0x214] sm:$0xf]
  %v148 = vld [vmem:[%s1 + $0x218] sm:$0xf]
  %v149 = vld [vmem:[%s1 + $0x21c] sm:$0xf]
  %v150 = vld [vmem:[%s1 + $0x220] sm:$0xf]
  %v151 = vld [vmem:[%s1 + $0x224] sm:$0xf]
  %v152 = vld [vmem:[%s1 + $0x228] sm:$0xf]
  %v153 = vld [vmem:[%s1 + $0x22c] sm:$0xf]
  %v154 = vld [vmem:[%s1 + $0x230] sm:$0xf]
  %v155 = vld [vmem:[%s1 + $0x234] sm:$0xf]
  %v156 = vld [vmem:[%s1 + $0x238] sm:$0xf]
  %v157 = vld [vmem:[%s1 + $0x23c] sm:$0xf]
  %v158 = vld [vmem:[%s1 + $0x240] sm:$0xf]
  %v159 = vld [vmem:[%s1 + $0x244] sm:$0xf]
  %v160 = vld [vmem:[%s1 + $0x248] sm:$0xf]
  %v161 = vld [vmem:[%s1 + $0x24c] sm:$0xf]
  %v162 = vld [vmem:[%s1 + $0x250] sm:$0xf]
  %v163 = vld [vmem:[%s1 + $0x254] sm:$0xf]
  %v164 = vld [vmem:[%s1 + $0x258] sm:$0xf]
  %v165 = vld [vmem:[%s1 + $0x25c] sm:$0xf]
  %v166 = vld [vmem:[%s1 + $0x260] sm:$0xf]
  %v167 = vld [vmem:[%s1 + $0x264] sm:$0xf]
  %v168 = vld [vmem:[%s1 + $0x268] sm:$0xf]
  %v169 = vld [vmem:[%s1 + $0x26c] sm:$0xf]
  %v170 = vld [vmem:[%s1 + $0x270] sm:$0xf]
  %v171 = vld [vmem:[%s1 + $0x274] sm:$0xf]
  %v172 = vld [vmem:[%s1 + $0x278] sm:$0xf]
  %v173 = vld [vmem:[%s1 + $0x27c] sm:$0xf]
  %v174 = vld [vmem:[%s1 + $0x280] sm:$0xf]
  %v175 = vld [vmem:[%s1 + $0x284] sm:$0xf]
  %v176 = vld [vmem:[%s1 + $0x288] sm:$0xf]
  %v177 = vld [vmem:[%s1 + $0x28c] sm:$0xf]
  %v178 = vld [vmem:[%s1 + $0x290] sm:$0xf]
  %v179 = vld [vmem:[%s1 + $0x294] sm:$0xf]
  %v180 = vld [vmem:[%s1 + $0x298] sm:$0xf]
  %v181 = vld [vmem:[%s1 + $0x29c] sm:$0xf]
  %v182 = vld [vmem:[%s1 + $0x2a0] sm:$0xf]
  %v183 = vld [vmem:[%s1 + $0x2a4] sm:$0xf]
  %v184 = vld [vmem:[%s1 + $0x2a8] sm:$0xf]
  %v185 = vld [vmem:[%s1 + $0x2ac] sm:$0xf]
  %v186 = vld [vmem:[%s1 + $0x2b0] sm:$0xf]
  %v187 = vld [vmem:[%s1 + $0x2b4] sm:$0xf]
  %v188 = vld [vmem:[%s1 + $0x2b8] sm:$0xf]
  %v189 = vld [vmem:[%s1 + $0x2bc] sm:$0xf]
  %v190 = vld [vmem:[%s1 + $0x2c0] sm:$0xf]
  %v191 = vld [vmem:[%s1 + $0x2c4] sm:$0xf]
  %v192 = vld [vmem:[%s1 + $0x2c8] sm:$0xf]
  %v193 = vld [vmem:[%s1 + $0x2cc] sm:$0xf]
  %v194 = vld [vmem:[%s1 + $0x2d0] sm:$0xf]
  %v195 = vld [vmem:[%s1 + $0x2d4] sm:$0xf]
  %v196 = vld [vmem:[%s1 + $0x2d8] sm:$0xf]
  %v197 = vld [vmem:[%s1 + $0x2dc] sm:$0xf]
  %v198 = vld [vmem:[%s1 + $0x2e0] sm:$0xf]
  %v199 = vld [vmem:[%s1 + $0x2e4] sm:$0xf]
  %v200 = vld [vmem:[%s1 + $0x2e8] sm:$0xf]
  %v201 = vld [vmem:[%s1 + $0x2ec] sm:$0xf]
  %v202 = vld [vmem:[%s1 + $0x2f0] sm:$0xf]
  %v203 = vld [vmem:[%s1 + $0x2f4] sm:$0xf]
  %v204 = vld [vmem:[%s1 + $0x2f8] sm:$0xf]
  %v205 = vld [vmem:[%s1 + $0x2fc] sm:$0xf]
  %v206 = vld [vmem:[%s1 + $0x300] sm:$0xf]
  %v207 = vld [vmem:[%s1 + $0x304] sm:$0xf]
  %v208 = vld [vmem:[%s1 + $0x308] sm:$0xf]
  %v209 = vld [vmem:[%s1 + $0x30c] sm:$0xf]
  %v210 = vld [vmem:[%s1 + $0x310] sm:$0xf]
  %v211 = vld [vmem:[%s1 + $0x314] sm:$0xf]
  %v212 = vld [vmem:[%s1 + $0x318] sm:$0xf]
  %v213 = vld [vmem:[%s1 + $0x31c] sm:$0xf]
  %v214 = vld [vmem:[%s1 + $0x320] sm:$0xf]
  %v215 = vld [vmem:[%s1 + $0x324] sm:$0xf]
  %v216 = vld [vmem:[%s1 + $0x328] sm:$0xf]
  %v217 = vld [vmem:[%s1 + $0x32c] sm:$0xf]
  %v218 = vld [vmem:[%s1 + $0x330] sm:$0xf]
  %v219 = vld [vmem:[%s1 + $0x334] sm:$0xf]
  %v220 = vld [vmem:[%s1 + $0x338] sm:$0xf]
  %v221 = vld [vmem:[%s1 + $0x33c] sm:$0xf]
  %v222 = vld [vmem:[%s1 + $0x340] sm:$0xf]
  %v223 = vld [vmem:[%s1 + $0x344] sm:$0xf]
  %v224 = vld [vmem:[%s1 + $0x348] sm:$0xf]
  %v225 = vld [vmem:[%s1 + $0x34c] sm:$0xf]
  %v226 = vld [vmem:[%s1 + $0x350] sm:$0xf]
  %v227 = vld [vmem:[%s1 + $0x354] sm:$0xf]
  %v228 = vld [vmem:[%s1 + $0x358] sm:$0xf]
  %v229 = vld [vmem:[%s1 + $0x35c] sm:$0xf]
  %v230 = vld [vmem:[%s1 + $0x360] sm:$0xf]
  %v231 = vld [vmem:[%s1 + $0x364] sm:$0xf]
  %v232 = vld [vmem:[%s1 + $0x368] sm:$0xf]
  %v233 = vld [vmem:[%s1 + $0x36c] sm:$0xf]
  %v234 = vld [vmem:[%s1 + $0x370] sm:$0xf]
  %v235 = vld [vmem:[%s1 + $0x374] sm:$0xf]
  %v236 = vld [vmem:[%s1 + $0x378] sm:$0xf]
  %v237 = vld [vmem:[%s1 + $0x37c] sm:$0xf]
  %v238 = vld [vmem:[%s1 + $0x380] sm:$0xf]
  %v239 = vld [vmem:[%s1 + $0x384] sm:$0xf]
  %v240 = vld [vmem:[%s1 + $0x388] sm:$0xf]
  %v241 = vld [vmem:[%s1 + $0x38c] sm:$0xf]
  %v242 = vld [vmem:[%s1 + $0x390] sm:$0xf]
  %v243 = vld [vmem:[%s1 + $0x394] sm:$0xf]
  %v244 = vld [vmem:[%s1 + $0x398] sm:$0xf]
  %v245 = vld [vmem:[%s1 + $0x39c] sm:$0xf]
  %v246 = vld [vmem:[%s1 + $0x3a0] sm:$0xf]
  %v247 = vld [vmem:[%s1 + $0x3a4] sm:$0xf]
  %v248 = vld [vmem:[%s1 + $0x3a8] sm:$0xf]
  %v249 = vld [vmem:[%s1 + $0x3ac] sm:$0xf]
  %v250 = vld [vmem:[%s1 + $0x3b0] sm:$0xf]
  %v251 = vld [vmem:[%s1 + $0x3b4] sm:$0xf]
  %v252 = vld [vmem:[%s1 + $0x3b8] sm:$0xf]
  %v253 = vld [vmem:[%s1 + $0x3bc] sm:$0xf]
  %v254 = vld [vmem:[%s1 + $0x3c0] sm:$0xf]
  %v255 = vld [vmem:[%s1 + $0x3c4] sm:$0xf]
  %v256 = vld [vmem:[%s1 + $0x3c8] sm:$0xf]
  %v257 = vld [vmem:[%s1 + $0x3cc] sm:$0xf]
  %v258 = vld [vmem:[%s1 + $0x3d0] sm:$0xf]
  %v259 = vld [vmem:[%s1 + $0x3d4] sm:$0xf]
  %v260 = vld [vmem:[%s1 + $0x3d8] sm:$0xf]
  %v261 = vld [vmem:[%s1 + $0x3dc] sm:$0xf]
  %v262 = vld [vmem:[%s1 + $0x3e0] sm:$0xf]
  %v263 = vld [vmem:[%s1 + $0x3e4] sm:$0xf]
  %v264 = vld [vmem:[%s1 + $0x3e8] sm:$0xf]
  %v265 = vld [vmem:[%s1 + $0x3ec] sm:$0xf]
  %v266 = vld [vmem:[%s1 + $0x3f0] sm:$0xf]
  %v267 = vld [vmem:[%s1 + $0x3f4] sm:$0xf]
  %v268 = vld [vmem:[%s1 + $0x3f8] sm:$0xf]
  %v269 = vld [vmem:[%s1 + $0x3fc] sm:$0xf]
  %v272 = vcombine.high %v12, %v12
  %v274 = vunpack.c.l.s4 1966171168
  %v275 = vunpack.c.0.s8 %v274
  %v276 = vlaneseq
  %v277 = vshrl.u32 %v276, 7
  %v278 = vsub.s32 %v275, %v277
  %v279 = vrot.slane %v12, %v278
  %v281 = vunpack.c.l.s4 1966171168
  %v282 = vunpack.c.0.s8 %v281
  %v283 = vlaneseq
  %v284 = vshrl.u32 %v283, 7
  %v285 = vsub.s32 %v282, %v284
  %v286 = vrot.slane %v272, %v285
  %v287 = vcombine.high %v279, %v279
  %v288 = vcombine.high %v286, %v286
  %v290 = vunpack.c.l.s4 1966171168
  %v291 = vunpack.c.0.s8 %v290
  %v292 = vlaneseq
  %v293 = vshrl.u32 %v292, 7
  %v294 = vsub.s32 %v291, %v293
  %v295 = vrot.slane %v279, %v294
  %v297 = vunpack.c.l.s4 1966171168
  %v298 = vunpack.c.0.s8 %v297
  %v299 = vlaneseq
  %v300 = vshrl.u32 %v299, 7
  %v301 = vsub.s32 %v298, %v300
  %v302 = vrot.slane %v286, %v301
  %v304 = vunpack.c.l.s4 1966171168
  %v305 = vunpack.c.0.s8 %v304
  %v306 = vlaneseq
  %v307 = vshrl.u32 %v306, 7
  %v308 = vsub.s32 %v305, %v307
  %v309 = vrot.slane %v287, %v308
  %v311 = vunpack.c.l.s4 1966171168
  %v312 = vunpack.c.0.s8 %v311
  %v313 = vlaneseq
  %v314 = vshrl.u32 %v313, 7
  %v315 = vsub.s32 %v312, %v314
  %v316 = vrot.slane %v288, %v315
  %v317 = vcombine.high %v295, %v295
  %v318 = vcombine.high %v302, %v302
  %v319 = vcombine.high %v309, %v309
  %v320 = vcombine.high %v316, %v316
  %v321 = vcombine.high %v13, %v13
  %v323 = vunpack.c.l.s4 1966171168
  %v324 = vunpack.c.0.s8 %v323
  %v325 = vlaneseq
  %v326 = vshrl.u32 %v325, 7
  %v327 = vsub.s32 %v324, %v326
  %v328 = vrot.slane %v13, %v327
  %v330 = vunpack.c.l.s4 1966171168
  %v331 = vunpack.c.0.s8 %v330
  %v332 = vlaneseq
  %v333 = vshrl.u32 %v332, 7
  %v334 = vsub.s32 %v331, %v333
  %v335 = vrot.slane %v321, %v334
  %v336 = vcombine.high %v328, %v328
  %v337 = vcombine.high %v335, %v335
  %v339 = vunpack.c.l.s4 1966171168
  %v340 = vunpack.c.0.s8 %v339
  %v341 = vlaneseq
  %v342 = vshrl.u32 %v341, 7
  %v343 = vsub.s32 %v340, %v342
  %v344 = vrot.slane %v328, %v343
  %v346 = vunpack.c.l.s4 1966171168
  %v347 = vunpack.c.0.s8 %v346
  %v348 = vlaneseq
  %v349 = vshrl.u32 %v348, 7
  %v350 = vsub.s32 %v347, %v349
  %v351 = vrot.slane %v335, %v350
  %v353 = vunpack.c.l.s4 1966171168
  %v354 = vunpack.c.0.s8 %v353
  %v355 = vlaneseq
  %v356 = vshrl.u32 %v355, 7
  %v357 = vsub.s32 %v354, %v356
  %v358 = vrot.slane %v336, %v357
  %v360 = vunpack.c.l.s4 1966171168
  %v361 = vunpack.c.0.s8 %v360
  %v362 = vlaneseq
  %v363 = vshrl.u32 %v362, 7
  %v364 = vsub.s32 %v361, %v363
  %v365 = vrot.slane %v337, %v364
  %v366 = vcombine.high %v344, %v344
  %v367 = vcombine.high %v351, %v351
  %v368 = vcombine.high %v358, %v358
  %v369 = vcombine.high %v365, %v365
  %v642 = vunpack.c.l.b16 %v14
  %v643 = vunpack.c.l.b16 %v15
  %v644 = vunpack.c.l.b16 %v16
  %v645 = vunpack.c.l.b16 %v17
  %v646 = vunpack.c.l.b16 %v18
  %v647 = vunpack.c.l.b16 %v19
  %v648 = vunpack.c.l.b16 %v20
  %v649 = vunpack.c.l.b16 %v21
  %v650 = vunpack.c.l.b16 %v22
  %v651 = vunpack.c.l.b16 %v23
  %v652 = vunpack.c.l.b16 %v24
  %v653 = vunpack.c.l.b16 %v25
  %v654 = vunpack.c.l.b16 %v26
  %v655 = vunpack.c.l.b16 %v27
  %v656 = vunpack.c.l.b16 %v28
  %v657 = vunpack.c.l.b16 %v29
  %v658 = vunpack.c.l.b16 %v30
  %v659 = vunpack.c.l.b16 %v31
  %v660 = vunpack.c.l.b16 %v32
  %v661 = vunpack.c.l.b16 %v33
  %v662 = vunpack.c.l.b16 %v34
  %v663 = vunpack.c.l.b16 %v35
  %v664 = vunpack.c.l.b16 %v36
  %v665 = vunpack.c.l.b16 %v37
  %v666 = vunpack.c.l.b16 %v38
  %v667 = vunpack.c.l.b16 %v39
  %v668 = vunpack.c.l.b16 %v40
  %v669 = vunpack.c.l.b16 %v41
  %v670 = vunpack.c.l.b16 %v42
  %v671 = vunpack.c.l.b16 %v43
  %v672 = vunpack.c.l.b16 %v44
  %v673 = vunpack.c.l.b16 %v45
  %v674 = vunpack.c.l.b16 %v46
  %v675 = vunpack.c.l.b16 %v47
  %v676 = vunpack.c.l.b16 %v48
  %v677 = vunpack.c.l.b16 %v49
  %v678 = vunpack.c.l.b16 %v50
  %v679 = vunpack.c.l.b16 %v51
  %v680 = vunpack.c.l.b16 %v52
  %v681 = vunpack.c.l.b16 %v53
  %v682 = vunpack.c.l.b16 %v54
  %v683 = vunpack.c.l.b16 %v55
  %v684 = vunpack.c.l.b16 %v56
  %v685 = vunpack.c.l.b16 %v57
  %v686 = vunpack.c.l.b16 %v58
  %v687 = vunpack.c.l.b16 %v59
  %v688 = vunpack.c.l.b16 %v60
  %v689 = vunpack.c.l.b16 %v61
  %v690 = vunpack.c.l.b16 %v62
  %v691 = vunpack.c.l.b16 %v63
  %v692 = vunpack.c.l.b16 %v64
  %v693 = vunpack.c.l.b16 %v65
  %v694 = vunpack.c.l.b16 %v66
  %v695 = vunpack.c.l.b16 %v67
  %v696 = vunpack.c.l.b16 %v68
  %v697 = vunpack.c.l.b16 %v69
  %v698 = vunpack.c.l.b16 %v70
  %v699 = vunpack.c.l.b16 %v71
  %v700 = vunpack.c.l.b16 %v72
  %v701 = vunpack.c.l.b16 %v73
  %v702 = vunpack.c.l.b16 %v74
  %v703 = vunpack.c.l.b16 %v75
  %v704 = vunpack.c.l.b16 %v76
  %v705 = vunpack.c.l.b16 %v77
  %v706 = vunpack.c.l.b16 %v78
  %v707 = vunpack.c.l.b16 %v79
  %v708 = vunpack.c.l.b16 %v80
  %v709 = vunpack.c.l.b16 %v81
  %v710 = vunpack.c.l.b16 %v82
  %v711 = vunpack.c.l.b16 %v83
  %v712 = vunpack.c.l.b16 %v84
  %v713 = vunpack.c.l.b16 %v85
  %v714 = vunpack.c.l.b16 %v86
  %v715 = vunpack.c.l.b16 %v87
  %v716 = vunpack.c.l.b16 %v88
  %v717 = vunpack.c.l.b16 %v89
  %v718 = vunpack.c.l.b16 %v90
  %v719 = vunpack.c.l.b16 %v91
  %v720 = vunpack.c.l.b16 %v92
  %v721 = vunpack.c.l.b16 %v93
  %v722 = vunpack.c.l.b16 %v94
  %v723 = vunpack.c.l.b16 %v95
  %v724 = vunpack.c.l.b16 %v96
  %v725 = vunpack.c.l.b16 %v97
  %v726 = vunpack.c.l.b16 %v98
  %v727 = vunpack.c.l.b16 %v99
  %v728 = vunpack.c.l.b16 %v100
  %v729 = vunpack.c.l.b16 %v101
  %v730 = vunpack.c.l.b16 %v102
  %v731 = vunpack.c.l.b16 %v103
  %v732 = vunpack.c.l.b16 %v104
  %v733 = vunpack.c.l.b16 %v105
  %v734 = vunpack.c.l.b16 %v106
  %v735 = vunpack.c.l.b16 %v107
  %v736 = vunpack.c.l.b16 %v108
  %v737 = vunpack.c.l.b16 %v109
  %v738 = vunpack.c.l.b16 %v110
  %v739 = vunpack.c.l.b16 %v111
  %v740 = vunpack.c.l.b16 %v112
  %v741 = vunpack.c.l.b16 %v113
  %v742 = vunpack.c.l.b16 %v114
  %v743 = vunpack.c.l.b16 %v115
  %v744 = vunpack.c.l.b16 %v116
  %v745 = vunpack.c.l.b16 %v117
  %v746 = vunpack.c.l.b16 %v118
  %v747 = vunpack.c.l.b16 %v119
  %v748 = vunpack.c.l.b16 %v120
  %v749 = vunpack.c.l.b16 %v121
  %v750 = vunpack.c.l.b16 %v122
  %v751 = vunpack.c.l.b16 %v123
  %v752 = vunpack.c.l.b16 %v124
  %v753 = vunpack.c.l.b16 %v125
  %v754 = vunpack.c.l.b16 %v126
  %v755 = vunpack.c.l.b16 %v127
  %v756 = vunpack.c.l.b16 %v128
  %v757 = vunpack.c.l.b16 %v129
  %v758 = vunpack.c.l.b16 %v130
  %v759 = vunpack.c.l.b16 %v131
  %v760 = vunpack.c.l.b16 %v132
  %v761 = vunpack.c.l.b16 %v133
  %v762 = vunpack.c.l.b16 %v134
  %v763 = vunpack.c.l.b16 %v135
  %v764 = vunpack.c.l.b16 %v136
  %v765 = vunpack.c.l.b16 %v137
  %v766 = vunpack.c.l.b16 %v138
  %v767 = vunpack.c.l.b16 %v139
  %v768 = vunpack.c.l.b16 %v140
  %v769 = vunpack.c.l.b16 %v141
  %v770 = vunpack.c.l.b16 %v142
  %v771 = vunpack.c.l.b16 %v143
  %v772 = vunpack.c.l.b16 %v144
  %v773 = vunpack.c.l.b16 %v145
  %v774 = vunpack.c.l.b16 %v146
  %v775 = vunpack.c.l.b16 %v147
  %v776 = vunpack.c.l.b16 %v148
  %v777 = vunpack.c.l.b16 %v149
  %v778 = vunpack.c.l.b16 %v150
  %v779 = vunpack.c.l.b16 %v151
  %v780 = vunpack.c.l.b16 %v152
  %v781 = vunpack.c.l.b16 %v153
  %v782 = vunpack.c.l.b16 %v154
  %v783 = vunpack.c.l.b16 %v155
  %v784 = vunpack.c.l.b16 %v156
  %v785 = vunpack.c.l.b16 %v157
  %v786 = vunpack.c.l.b16 %v158
  %v787 = vunpack.c.l.b16 %v159
  %v788 = vunpack.c.l.b16 %v160
  %v789 = vunpack.c.l.b16 %v161
  %v790 = vunpack.c.l.b16 %v162
  %v791 = vunpack.c.l.b16 %v163
  %v792 = vunpack.c.l.b16 %v164
  %v793 = vunpack.c.l.b16 %v165
  %v794 = vunpack.c.l.b16 %v166
  %v795 = vunpack.c.l.b16 %v167
  %v796 = vunpack.c.l.b16 %v168
  %v797 = vunpack.c.l.b16 %v169
  %v798 = vunpack.c.l.b16 %v170
  %v799 = vunpack.c.l.b16 %v171
  %v800 = vunpack.c.l.b16 %v172
  %v801 = vunpack.c.l.b16 %v173
  %v802 = vunpack.c.l.b16 %v174
  %v803 = vunpack.c.l.b16 %v175
  %v804 = vunpack.c.l.b16 %v176
  %v805 = vunpack.c.l.b16 %v177
  %v806 = vunpack.c.l.b16 %v178
  %v807 = vunpack.c.l.b16 %v179
  %v808 = vunpack.c.l.b16 %v180
  %v809 = vunpack.c.l.b16 %v181
  %v810 = vunpack.c.l.b16 %v182
  %v811 = vunpack.c.l.b16 %v183
  %v812 = vunpack.c.l.b16 %v184
  %v813 = vunpack.c.l.b16 %v185
  %v814 = vunpack.c.l.b16 %v186
  %v815 = vunpack.c.l.b16 %v187
  %v816 = vunpack.c.l.b16 %v188
  %v817 = vunpack.c.l.b16 %v189
  %v818 = vunpack.c.l.b16 %v190
  %v819 = vunpack.c.l.b16 %v191
  %v820 = vunpack.c.l.b16 %v192
  %v821 = vunpack.c.l.b16 %v193
  %v822 = vunpack.c.l.b16 %v194
  %v823 = vunpack.c.l.b16 %v195
  %v824 = vunpack.c.l.b16 %v196
  %v825 = vunpack.c.l.b16 %v197
  %v826 = vunpack.c.l.b16 %v198
  %v827 = vunpack.c.l.b16 %v199
  %v828 = vunpack.c.l.b16 %v200
  %v829 = vunpack.c.l.b16 %v201
  %v830 = vunpack.c.l.b16 %v202
  %v831 = vunpack.c.l.b16 %v203
  %v832 = vunpack.c.l.b16 %v204
  %v833 = vunpack.c.l.b16 %v205
  %v834 = vunpack.c.l.b16 %v206
  %v835 = vunpack.c.l.b16 %v207
  %v836 = vunpack.c.l.b16 %v208
  %v837 = vunpack.c.l.b16 %v209
  %v838 = vunpack.c.l.b16 %v210
  %v839 = vunpack.c.l.b16 %v211
  %v840 = vunpack.c.l.b16 %v212
  %v841 = vunpack.c.l.b16 %v213
  %v842 = vunpack.c.l.b16 %v214
  %v843 = vunpack.c.l.b16 %v215
  %v844 = vunpack.c.l.b16 %v216
  %v845 = vunpack.c.l.b16 %v217
  %v846 = vunpack.c.l.b16 %v218
  %v847 = vunpack.c.l.b16 %v219
  %v848 = vunpack.c.l.b16 %v220
  %v849 = vunpack.c.l.b16 %v221
  %v850 = vunpack.c.l.b16 %v222
  %v851 = vunpack.c.l.b16 %v223
  %v852 = vunpack.c.l.b16 %v224
  %v853 = vunpack.c.l.b16 %v225
  %v854 = vunpack.c.l.b16 %v226
  %v855 = vunpack.c.l.b16 %v227
  %v856 = vunpack.c.l.b16 %v228
  %v857 = vunpack.c.l.b16 %v229
  %v858 = vunpack.c.l.b16 %v230
  %v859 = vunpack.c.l.b16 %v231
  %v860 = vunpack.c.l.b16 %v232
  %v861 = vunpack.c.l.b16 %v233
  %v862 = vunpack.c.l.b16 %v234
  %v863 = vunpack.c.l.b16 %v235
  %v864 = vunpack.c.l.b16 %v236
  %v865 = vunpack.c.l.b16 %v237
  %v866 = vunpack.c.l.b16 %v238
  %v867 = vunpack.c.l.b16 %v239
  %v868 = vunpack.c.l.b16 %v240
  %v869 = vunpack.c.l.b16 %v241
  %v870 = vunpack.c.l.b16 %v242
  %v871 = vunpack.c.l.b16 %v243
  %v872 = vunpack.c.l.b16 %v244
  %v873 = vunpack.c.l.b16 %v245
  %v874 = vunpack.c.l.b16 %v246
  %v875 = vunpack.c.l.b16 %v247
  %v876 = vunpack.c.l.b16 %v248
  %v877 = vunpack.c.l.b16 %v249
  %v878 = vunpack.c.l.b16 %v250
  %v879 = vunpack.c.l.b16 %v251
  %v880 = vunpack.c.l.b16 %v252
  %v881 = vunpack.c.l.b16 %v253
  %v882 = vunpack.c.l.b16 %v254
  %v883 = vunpack.c.l.b16 %v255
  %v884 = vunpack.c.l.b16 %v256
  %v885 = vunpack.c.l.b16 %v257
  %v886 = vunpack.c.l.b16 %v258
  %v887 = vunpack.c.l.b16 %v259
  %v888 = vunpack.c.l.b16 %v260
  %v889 = vunpack.c.l.b16 %v261
  %v890 = vunpack.c.l.b16 %v262
  %v891 = vunpack.c.l.b16 %v263
  %v892 = vunpack.c.l.b16 %v264
  %v893 = vunpack.c.l.b16 %v265
  %v894 = vunpack.c.l.b16 %v266
  %v895 = vunpack.c.l.b16 %v267
  %v896 = vunpack.c.l.b16 %v268
  %v897 = vunpack.c.l.b16 %v269
  %v898 = vpack.c.b16 %v643, %v642
  %v899 = vpack.c.b16 %v645, %v644
  %v900 = vpack.c.b16 %v647, %v646
  %v901 = vpack.c.b16 %v649, %v648
  %v902 = vpack.c.b16 %v651, %v650
  %v903 = vpack.c.b16 %v653, %v652
  %v904 = vpack.c.b16 %v655, %v654
  %v905 = vpack.c.b16 %v657, %v656
  %v906 = vpack.c.b16 %v659, %v658
  %v907 = vpack.c.b16 %v661, %v660
  %v908 = vpack.c.b16 %v663, %v662
  %v909 = vpack.c.b16 %v665, %v664
  %v910 = vpack.c.b16 %v667, %v666
  %v911 = vpack.c.b16 %v669, %v668
  %v912 = vpack.c.b16 %v671, %v670
  %v913 = vpack.c.b16 %v673, %v672
  %v914 = vpack.c.b16 %v675, %v674
  %v915 = vpack.c.b16 %v677, %v676
  %v916 = vpack.c.b16 %v679, %v678
  %v917 = vpack.c.b16 %v681, %v680
  %v918 = vpack.c.b16 %v683, %v682
  %v919 = vpack.c.b16 %v685, %v684
  %v920 = vpack.c.b16 %v687, %v686
  %v921 = vpack.c.b16 %v689, %v688
  %v922 = vpack.c.b16 %v691, %v690
  %v923 = vpack.c.b16 %v693, %v692
  %v924 = vpack.c.b16 %v695, %v694
  %v925 = vpack.c.b16 %v697, %v696
  %v926 = vpack.c.b16 %v699, %v698
  %v927 = vpack.c.b16 %v701, %v700
  %v928 = vpack.c.b16 %v703, %v702
  %v929 = vpack.c.b16 %v705, %v704
  %v930 = vpack.c.b16 %v707, %v706
  %v931 = vpack.c.b16 %v709, %v708
  %v932 = vpack.c.b16 %v711, %v710
  %v933 = vpack.c.b16 %v713, %v712
  %v934 = vpack.c.b16 %v715, %v714
  %v935 = vpack.c.b16 %v717, %v716
  %v936 = vpack.c.b16 %v719, %v718
  %v937 = vpack.c.b16 %v721, %v720
  %v938 = vpack.c.b16 %v723, %v722
  %v939 = vpack.c.b16 %v725, %v724
  %v940 = vpack.c.b16 %v727, %v726
  %v941 = vpack.c.b16 %v729, %v728
  %v942 = vpack.c.b16 %v731, %v730
  %v943 = vpack.c.b16 %v733, %v732
  %v944 = vpack.c.b16 %v735, %v734
  %v945 = vpack.c.b16 %v737, %v736
  %v946 = vpack.c.b16 %v739, %v738
  %v947 = vpack.c.b16 %v741, %v740
  %v948 = vpack.c.b16 %v743, %v742
  %v949 = vpack.c.b16 %v745, %v744
  %v950 = vpack.c.b16 %v747, %v746
  %v951 = vpack.c.b16 %v749, %v748
  %v952 = vpack.c.b16 %v751, %v750
  %v953 = vpack.c.b16 %v753, %v752
  %v954 = vpack.c.b16 %v755, %v754
  %v955 = vpack.c.b16 %v757, %v756
  %v956 = vpack.c.b16 %v759, %v758
  %v957 = vpack.c.b16 %v761, %v760
  %v958 = vpack.c.b16 %v763, %v762
  %v959 = vpack.c.b16 %v765, %v764
  %v960 = vpack.c.b16 %v767, %v766
  %v961 = vpack.c.b16 %v769, %v768
  %v962 = vpack.c.b16 %v771, %v770
  %v963 = vpack.c.b16 %v773, %v772
  %v964 = vpack.c.b16 %v775, %v774
  %v965 = vpack.c.b16 %v777, %v776
  %v966 = vpack.c.b16 %v779, %v778
  %v967 = vpack.c.b16 %v781, %v780
  %v968 = vpack.c.b16 %v783, %v782
  %v969 = vpack.c.b16 %v785, %v784
  %v970 = vpack.c.b16 %v787, %v786
  %v971 = vpack.c.b16 %v789, %v788
  %v972 = vpack.c.b16 %v791, %v790
  %v973 = vpack.c.b16 %v793, %v792
  %v974 = vpack.c.b16 %v795, %v794
  %v975 = vpack.c.b16 %v797, %v796
  %v976 = vpack.c.b16 %v799, %v798
  %v977 = vpack.c.b16 %v801, %v800
  %v978 = vpack.c.b16 %v803, %v802
  %v979 = vpack.c.b16 %v805, %v804
  %v980 = vpack.c.b16 %v807, %v806
  %v981 = vpack.c.b16 %v809, %v808
  %v982 = vpack.c.b16 %v811, %v810
  %v983 = vpack.c.b16 %v813, %v812
  %v984 = vpack.c.b16 %v815, %v814
  %v985 = vpack.c.b16 %v817, %v816
  %v986 = vpack.c.b16 %v819, %v818
  %v987 = vpack.c.b16 %v821, %v820
  %v988 = vpack.c.b16 %v823, %v822
  %v989 = vpack.c.b16 %v825, %v824
  %v990 = vpack.c.b16 %v827, %v826
  %v991 = vpack.c.b16 %v829, %v828
  %v992 = vpack.c.b16 %v831, %v830
  %v993 = vpack.c.b16 %v833, %v832
  %v994 = vpack.c.b16 %v835, %v834
  %v995 = vpack.c.b16 %v837, %v836
  %v996 = vpack.c.b16 %v839, %v838
  %v997 = vpack.c.b16 %v841, %v840
  %v998 = vpack.c.b16 %v843, %v842
  %v999 = vpack.c.b16 %v845, %v844
  %v1000 = vpack.c.b16 %v847, %v846
  %v1001 = vpack.c.b16 %v849, %v848
  %v1002 = vpack.c.b16 %v851, %v850
  %v1003 = vpack.c.b16 %v853, %v852
  %v1004 = vpack.c.b16 %v855, %v854
  %v1005 = vpack.c.b16 %v857, %v856
  %v1006 = vpack.c.b16 %v859, %v858
  %v1007 = vpack.c.b16 %v861, %v860
  %v1008 = vpack.c.b16 %v863, %v862
  %v1009 = vpack.c.b16 %v865, %v864
  %v1010 = vpack.c.b16 %v867, %v866
  %v1011 = vpack.c.b16 %v869, %v868
  %v1012 = vpack.c.b16 %v871, %v870
  %v1013 = vpack.c.b16 %v873, %v872
  %v1014 = vpack.c.b16 %v875, %v874
  %v1015 = vpack.c.b16 %v877, %v876
  %v1016 = vpack.c.b16 %v879, %v878
  %v1017 = vpack.c.b16 %v881, %v880
  %v1018 = vpack.c.b16 %v883, %v882
  %v1019 = vpack.c.b16 %v885, %v884
  %v1020 = vpack.c.b16 %v887, %v886
  %v1021 = vpack.c.b16 %v889, %v888
  %v1022 = vpack.c.b16 %v891, %v890
  %v1023 = vpack.c.b16 %v893, %v892
  %v1024 = vpack.c.b16 %v895, %v894
  %v1025 = vpack.c.b16 %v897, %v896
  %1154 = vmatprep.subr.bf16.mxu0 0
  %1155 = vmatpush1.bf16.msra.mxu0 %v898
  %1156 = vmatprep.subr.bf16.mxu0 0
  %1157 = vmatpush1.bf16.msra.mxu0 %v899
  %1158 = vmatprep.subr.bf16.mxu0 0
  %1159 = vmatpush1.bf16.msra.mxu0 %v900
  %1160 = vmatprep.subr.bf16.mxu0 0
  %1161 = vmatpush1.bf16.msra.mxu0 %v901
  %1162 = vmatprep.subr.bf16.mxu0 0
  %1163 = vmatpush1.bf16.msra.mxu0 %v902
  %1164 = vmatprep.subr.bf16.mxu0 0
  %1165 = vmatpush1.bf16.msra.mxu0 %v903
  %1166 = vmatprep.subr.bf16.mxu0 0
  %1167 = vmatpush1.bf16.msra.mxu0 %v904
  %1168 = vmatprep.subr.bf16.mxu0 0
  %1169 = vmatpush1.bf16.msra.mxu0 %v905
  %1170 = vmatprep.subr.bf16.mxu0 0
  %1171 = vmatpush1.bf16.msra.mxu0 %v906
  %1172 = vmatprep.subr.bf16.mxu0 0
  %1173 = vmatpush1.bf16.msra.mxu0 %v907
  %1174 = vmatprep.subr.bf16.mxu0 0
  %1175 = vmatpush1.bf16.msra.mxu0 %v908
  %1176 = vmatprep.subr.bf16.mxu0 0
  %1177 = vmatpush1.bf16.msra.mxu0 %v909
  %1178 = vmatprep.subr.bf16.mxu0 0
  %1179 = vmatpush1.bf16.msra.mxu0 %v910
  %1180 = vmatprep.subr.bf16.mxu0 0
  %1181 = vmatpush1.bf16.msra.mxu0 %v911
  %1182 = vmatprep.subr.bf16.mxu0 0
  %1183 = vmatpush1.bf16.msra.mxu0 %v912
  %1184 = vmatprep.subr.bf16.mxu0 0
  %1185 = vmatpush1.bf16.msra.mxu0 %v913
  %1186 = vmatprep.mubr.bf16.mxu0 %v309
  %1187 = vmatmul.mubr.bf16.gmra.mrb[0].mxu0 %v295
  %v1188 = vpop.f32.mrb[0].mxu0
  %v1189 = vadd.f32 0.0, %v1188
  %v1190 = vpop.f32.mrb[0].mxu0
  %v1191 = vpop.f32.mrb[0].mxu0
  %v1192 = vpop.f32.mrb[0].mxu0
  %1193 = vdwg.mxu0
  %1194 = vmatprep.subr.bf16.mxu0 0
  %1195 = vmatpush1.bf16.msra.mxu0 %v914
  %1196 = vmatprep.subr.bf16.mxu0 0
  %1197 = vmatpush1.bf16.msra.mxu0 %v915
  %1198 = vmatprep.subr.bf16.mxu0 0
  %1199 = vmatpush1.bf16.msra.mxu0 %v916
  %1200 = vmatprep.subr.bf16.mxu0 0
  %1201 = vmatpush1.bf16.msra.mxu0 %v917
  %1202 = vmatprep.subr.bf16.mxu0 0
  %1203 = vmatpush1.bf16.msra.mxu0 %v918
  %1204 = vmatprep.subr.bf16.mxu0 0
  %1205 = vmatpush1.bf16.msra.mxu0 %v919
  %1206 = vmatprep.subr.bf16.mxu0 0
  %1207 = vmatpush1.bf16.msra.mxu0 %v920
  %1208 = vmatprep.subr.bf16.mxu0 0
  %1209 = vmatpush1.bf16.msra.mxu0 %v921
  %1210 = vmatprep.subr.bf16.mxu0 0
  %1211 = vmatpush1.bf16.msra.mxu0 %v922
  %1212 = vmatprep.subr.bf16.mxu0 0
  %1213 = vmatpush1.bf16.msra.mxu0 %v923
  %1214 = vmatprep.subr.bf16.mxu0 0
  %1215 = vmatpush1.bf16.msra.mxu0 %v924
  %1216 = vmatprep.subr.bf16.mxu0 0
  %1217 = vmatpush1.bf16.msra.mxu0 %v925
  %1218 = vmatprep.subr.bf16.mxu0 0
  %1219 = vmatpush1.bf16.msra.mxu0 %v926
  %1220 = vmatprep.subr.bf16.mxu0 0
  %1221 = vmatpush1.bf16.msra.mxu0 %v927
  %1222 = vmatprep.subr.bf16.mxu0 0
  %1223 = vmatpush1.bf16.msra.mxu0 %v928
  %1224 = vmatprep.subr.bf16.mxu0 0
  %1225 = vmatpush1.bf16.msra.mxu0 %v929
  %1226 = vmatprep.mubr.bf16.mxu0 %v319
  %1227 = vmatmul.mubr.bf16.gmra.mrb[0].mxu0 %v317
  %v1228 = vpop.f32.mrb[0].mxu0
  %v1229 = vadd.f32 %v1189, %v1228
  %v1230 = vpop.f32.mrb[0].mxu0
  %v1231 = vpop.f32.mrb[0].mxu0
  %v1232 = vpop.f32.mrb[0].mxu0
  %1233 = vdwg.mxu0
  %1234 = vmatprep.subr.bf16.mxu0 0
  %1235 = vmatpush1.bf16.msra.mxu0 %v930
  %1236 = vmatprep.subr.bf16.mxu0 0
  %1237 = vmatpush1.bf16.msra.mxu0 %v931
  %1238 = vmatprep.subr.bf16.mxu0 0
  %1239 = vmatpush1.bf16.msra.mxu0 %v932
  %1240 = vmatprep.subr.bf16.mxu0 0
  %1241 = vmatpush1.bf16.msra.mxu0 %v933
  %1242 = vmatprep.subr.bf16.mxu0 0
  %1243 = vmatpush1.bf16.msra.mxu0 %v934
  %1244 = vmatprep.subr.bf16.mxu0 0
  %1245 = vmatpush1.bf16.msra.mxu0 %v935
  %1246 = vmatprep.subr.bf16.mxu0 0
  %1247 = vmatpush1.bf16.msra.mxu0 %v936
  %1248 = vmatprep.subr.bf16.mxu0 0
  %1249 = vmatpush1.bf16.msra.mxu0 %v937
  %1250 = vmatprep.subr.bf16.mxu0 0
  %1251 = vmatpush1.bf16.msra.mxu0 %v938
  %1252 = vmatprep.subr.bf16.mxu0 0
  %1253 = vmatpush1.bf16.msra.mxu0 %v939
  %1254 = vmatprep.subr.bf16.mxu0 0
  %1255 = vmatpush1.bf16.msra.mxu0 %v940
  %1256 = vmatprep.subr.bf16.mxu0 0
  %1257 = vmatpush1.bf16.msra.mxu0 %v941
  %1258 = vmatprep.subr.bf16.mxu0 0
  %1259 = vmatpush1.bf16.msra.mxu0 %v942
  %1260 = vmatprep.subr.bf16.mxu0 0
  %1261 = vmatpush1.bf16.msra.mxu0 %v943
  %1262 = vmatprep.subr.bf16.mxu0 0
  %1263 = vmatpush1.bf16.msra.mxu0 %v944
  %1264 = vmatprep.subr.bf16.mxu0 0
  %1265 = vmatpush1.bf16.msra.mxu0 %v945
  %1266 = vmatprep.mubr.bf16.mxu0 %v316
  %1267 = vmatmul.mubr.bf16.gmra.mrb[0].mxu0 %v302
  %v1268 = vpop.f32.mrb[0].mxu0
  %v1269 = vadd.f32 %v1229, %v1268
  %v1270 = vpop.f32.mrb[0].mxu0
  %v1271 = vpop.f32.mrb[0].mxu0
  %v1272 = vpop.f32.mrb[0].mxu0
  %1273 = vdwg.mxu0
  %1274 = vmatprep.subr.bf16.mxu0 0
  %1275 = vmatpush1.bf16.msra.mxu0 %v946
  %1276 = vmatprep.subr.bf16.mxu0 0
  %1277 = vmatpush1.bf16.msra.mxu0 %v947
  %1278 = vmatprep.subr.bf16.mxu0 0
  %1279 = vmatpush1.bf16.msra.mxu0 %v948
  %1280 = vmatprep.subr.bf16.mxu0 0
  %1281 = vmatpush1.bf16.msra.mxu0 %v949
  %1282 = vmatprep.subr.bf16.mxu0 0
  %1283 = vmatpush1.bf16.msra.mxu0 %v950
  %1284 = vmatprep.subr.bf16.mxu0 0
  %1285 = vmatpush1.bf16.msra.mxu0 %v951
  %1286 = vmatprep.subr.bf16.mxu0 0
  %1287 = vmatpush1.bf16.msra.mxu0 %v952
  %1288 = vmatprep.subr.bf16.mxu0 0
  %1289 = vmatpush1.bf16.msra.mxu0 %v953
  %1290 = vmatprep.subr.bf16.mxu0 0
  %1291 = vmatpush1.bf16.msra.mxu0 %v954
  %1292 = vmatprep.subr.bf16.mxu0 0
  %1293 = vmatpush1.bf16.msra.mxu0 %v955
  %1294 = vmatprep.subr.bf16.mxu0 0
  %1295 = vmatpush1.bf16.msra.mxu0 %v956
  %1296 = vmatprep.subr.bf16.mxu0 0
  %1297 = vmatpush1.bf16.msra.mxu0 %v957
  %1298 = vmatprep.subr.bf16.mxu0 0
  %1299 = vmatpush1.bf16.msra.mxu0 %v958
  %1300 = vmatprep.subr.bf16.mxu0 0
  %1301 = vmatpush1.bf16.msra.mxu0 %v959
  %1302 = vmatprep.subr.bf16.mxu0 0
  %1303 = vmatpush1.bf16.msra.mxu0 %v960
  %1304 = vmatprep.subr.bf16.mxu0 0
  %1305 = vmatpush1.bf16.msra.mxu0 %v961
  %1306 = vmatprep.mubr.bf16.mxu0 %v320
  %1307 = vmatmul.mubr.bf16.gmra.mrb[0].mxu0 %v318
  %v1308 = vpop.f32.mrb[0].mxu0
  %v1309 = vadd.f32 %v1269, %v1308
  %v1310 = vpop.f32.mrb[0].mxu0
  %v1311 = vpop.f32.mrb[0].mxu0
  %v1312 = vpop.f32.mrb[0].mxu0
  %1313 = vdwg.mxu0
  %1314 = vmatprep.subr.bf16.mxu0 0
  %1315 = vmatpush1.bf16.msra.mxu0 %v962
  %1316 = vmatprep.subr.bf16.mxu0 0
  %1317 = vmatpush1.bf16.msra.mxu0 %v963
  %1318 = vmatprep.subr.bf16.mxu0 0
  %1319 = vmatpush1.bf16.msra.mxu0 %v964
  %1320 = vmatprep.subr.bf16.mxu0 0
  %1321 = vmatpush1.bf16.msra.mxu0 %v965
  %1322 = vmatprep.subr.bf16.mxu0 0
  %1323 = vmatpush1.bf16.msra.mxu0 %v966
  %1324 = vmatprep.subr.bf16.mxu0 0
  %1325 = vmatpush1.bf16.msra.mxu0 %v967
  %1326 = vmatprep.subr.bf16.mxu0 0
  %1327 = vmatpush1.bf16.msra.mxu0 %v968
  %1328 = vmatprep.subr.bf16.mxu0 0
  %1329 = vmatpush1.bf16.msra.mxu0 %v969
  %1330 = vmatprep.subr.bf16.mxu0 0
  %1331 = vmatpush1.bf16.msra.mxu0 %v970
  %1332 = vmatprep.subr.bf16.mxu0 0
  %1333 = vmatpush1.bf16.msra.mxu0 %v971
  %1334 = vmatprep.subr.bf16.mxu0 0
  %1335 = vmatpush1.bf16.msra.mxu0 %v972
  %1336 = vmatprep.subr.bf16.mxu0 0
  %1337 = vmatpush1.bf16.msra.mxu0 %v973
  %1338 = vmatprep.subr.bf16.mxu0 0
  %1339 = vmatpush1.bf16.msra.mxu0 %v974
  %1340 = vmatprep.subr.bf16.mxu0 0
  %1341 = vmatpush1.bf16.msra.mxu0 %v975
  %1342 = vmatprep.subr.bf16.mxu0 0
  %1343 = vmatpush1.bf16.msra.mxu0 %v976
  %1344 = vmatprep.subr.bf16.mxu0 0
  %1345 = vmatpush1.bf16.msra.mxu0 %v977
  %1346 = vmatprep.mubr.bf16.mxu0 %v358
  %1347 = vmatmul.mubr.bf16.gmra.mrb[0].mxu0 %v344
  %v1348 = vpop.f32.mrb[0].mxu0
  %v1349 = vadd.f32 %v1309, %v1348
  %v1350 = vpop.f32.mrb[0].mxu0
  %v1351 = vpop.f32.mrb[0].mxu0
  %v1352 = vpop.f32.mrb[0].mxu0
  %1353 = vdwg.mxu0
  %1354 = vmatprep.subr.bf16.mxu0 0
  %1355 = vmatpush1.bf16.msra.mxu0 %v978
  %1356 = vmatprep.subr.bf16.mxu0 0
  %1357 = vmatpush1.bf16.msra.mxu0 %v979
  %1358 = vmatprep.subr.bf16.mxu0 0
  %1359 = vmatpush1.bf16.msra.mxu0 %v980
  %1360 = vmatprep.subr.bf16.mxu0 0
  %1361 = vmatpush1.bf16.msra.mxu0 %v981
  %1362 = vmatprep.subr.bf16.mxu0 0
  %1363 = vmatpush1.bf16.msra.mxu0 %v982
  %1364 = vmatprep.subr.bf16.mxu0 0
  %1365 = vmatpush1.bf16.msra.mxu0 %v983
  %1366 = vmatprep.subr.bf16.mxu0 0
  %1367 = vmatpush1.bf16.msra.mxu0 %v984
  %1368 = vmatprep.subr.bf16.mxu0 0
  %1369 = vmatpush1.bf16.msra.mxu0 %v985
  %1370 = vmatprep.subr.bf16.mxu0 0
  %1371 = vmatpush1.bf16.msra.mxu0 %v986
  %1372 = vmatprep.subr.bf16.mxu0 0
  %1373 = vmatpush1.bf16.msra.mxu0 %v987
  %1374 = vmatprep.subr.bf16.mxu0 0
  %1375 = vmatpush1.bf16.msra.mxu0 %v988
  %1376 = vmatprep.subr.bf16.mxu0 0
  %1377 = vmatpush1.bf16.msra.mxu0 %v989
  %1378 = vmatprep.subr.bf16.mxu0 0
  %1379 = vmatpush1.bf16.msra.mxu0 %v990
  %1380 = vmatprep.subr.bf16.mxu0 0
  %1381 = vmatpush1.bf16.msra.mxu0 %v991
  %1382 = vmatprep.subr.bf16.mxu0 0
  %1383 = vmatpush1.bf16.msra.mxu0 %v992
  %1384 = vmatprep.subr.bf16.mxu0 0
  %1385 = vmatpush1.bf16.msra.mxu0 %v993
  %1386 = vmatprep.mubr.bf16.mxu0 %v368
  %1387 = vmatmul.mubr.bf16.gmra.mrb[0].mxu0 %v366
  %v1388 = vpop.f32.mrb[0].mxu0
  %v1389 = vadd.f32 %v1349, %v1388
  %v1390 = vpop.f32.mrb[0].mxu0
  %v1391 = vpop.f32.mrb[0].mxu0
  %v1392 = vpop.f32.mrb[0].mxu0
  %1393 = vdwg.mxu0
  %1394 = vmatprep.subr.bf16.mxu0 0
  %1395 = vmatpush1.bf16.msra.mxu0 %v994
  %1396 = vmatprep.subr.bf16.mxu0 0
  %1397 = vmatpush1.bf16.msra.mxu0 %v995
  %1398 = vmatprep.subr.bf16.mxu0 0
  %1399 = vmatpush1.bf16.msra.mxu0 %v996
  %1400 = vmatprep.subr.bf16.mxu0 0
  %1401 = vmatpush1.bf16.msra.mxu0 %v997
  %1402 = vmatprep.subr.bf16.mxu0 0
  %1403 = vmatpush1.bf16.msra.mxu0 %v998
  %1404 = vmatprep.subr.bf16.mxu0 0
  %1405 = vmatpush1.bf16.msra.mxu0 %v999
  %1406 = vmatprep.subr.bf16.mxu0 0
  %1407 = vmatpush1.bf16.msra.mxu0 %v1000
  %1408 = vmatprep.subr.bf16.mxu0 0
  %1409 = vmatpush1.bf16.msra.mxu0 %v1001
  %1410 = vmatprep.subr.bf16.mxu0 0
  %1411 = vmatpush1.bf16.msra.mxu0 %v1002
  %1412 = vmatprep.subr.bf16.mxu0 0
  %1413 = vmatpush1.bf16.msra.mxu0 %v1003
  %1414 = vmatprep.subr.bf16.mxu0 0
  %1415 = vmatpush1.bf16.msra.mxu0 %v1004
  %1416 = vmatprep.subr.bf16.mxu0 0
  %1417 = vmatpush1.bf16.msra.mxu0 %v1005
  %1418 = vmatprep.subr.bf16.mxu0 0
  %1419 = vmatpush1.bf16.msra.mxu0 %v1006
  %1420 = vmatprep.subr.bf16.mxu0 0
  %1421 = vmatpush1.bf16.msra.mxu0 %v1007
  %1422 = vmatprep.subr.bf16.mxu0 0
  %1423 = vmatpush1.bf16.msra.mxu0 %v1008
  %1424 = vmatprep.subr.bf16.mxu0 0
  %1425 = vmatpush1.bf16.msra.mxu0 %v1009
  %1426 = vmatprep.mubr.bf16.mxu0 %v365
  %1427 = vmatmul.mubr.bf16.gmra.mrb[0].mxu0 %v351
  %v1428 = vpop.f32.mrb[0].mxu0
  %v1429 = vadd.f32 %v1389, %v1428
  %v1430 = vpop.f32.mrb[0].mxu0
  %v1431 = vpop.f32.mrb[0].mxu0
  %v1432 = vpop.f32.mrb[0].mxu0
  %1433 = vdwg.mxu0
  %1434 = vmatprep.subr.bf16.mxu0 0
  %1435 = vmatpush1.bf16.msra.mxu0 %v1010
  %1436 = vmatprep.subr.bf16.mxu0 0
  %1437 = vmatpush1.bf16.msra.mxu0 %v1011
  %1438 = vmatprep.subr.bf16.mxu0 0
  %1439 = vmatpush1.bf16.msra.mxu0 %v1012
  %1440 = vmatprep.subr.bf16.mxu0 0
  %1441 = vmatpush1.bf16.msra.mxu0 %v1013
  %1442 = vmatprep.subr.bf16.mxu0 0
  %1443 = vmatpush1.bf16.msra.mxu0 %v1014
  %1444 = vmatprep.subr.bf16.mxu0 0
  %1445 = vmatpush1.bf16.msra.mxu0 %v1015
  %1446 = vmatprep.subr.bf16.mxu0 0
  %1447 = vmatpush1.bf16.msra.mxu0 %v1016
  %1448 = vmatprep.subr.bf16.mxu0 0
  %1449 = vmatpush1.bf16.msra.mxu0 %v1017
  %1450 = vmatprep.subr.bf16.mxu0 0
  %1451 = vmatpush1.bf16.msra.mxu0 %v1018
  %1452 = vmatprep.subr.bf16.mxu0 0
  %1453 = vmatpush1.bf16.msra.mxu0 %v1019
  %1454 = vmatprep.subr.bf16.mxu0 0
  %1455 = vmatpush1.bf16.msra.mxu0 %v1020
  %1456 = vmatprep.subr.bf16.mxu0 0
  %1457 = vmatpush1.bf16.msra.mxu0 %v1021
  %1458 = vmatprep.subr.bf16.mxu0 0
  %1459 = vmatpush1.bf16.msra.mxu0 %v1022
  %1460 = vmatprep.subr.bf16.mxu0 0
  %1461 = vmatpush1.bf16.msra.mxu0 %v1023
  %1462 = vmatprep.subr.bf16.mxu0 0
  %1463 = vmatpush1.bf16.msra.mxu0 %v1024
  %1464 = vmatprep.subr.bf16.mxu0 0
  %1465 = vmatpush1.bf16.msra.mxu0 %v1025
  %1466 = vmatprep.mubr.bf16.mxu0 %v369
  %1467 = vmatmul.mubr.bf16.gmra.mrb[0].mxu0 %v367
  %v1468 = vpop.f32.mrb[0].mxu0
  %v1469 = vadd.f32 %v1429, %v1468
  %v1470 = vpop.f32.mrb[0].mxu0
  %v1471 = vpop.f32.mrb[0].mxu0
  %v1472 = vpop.f32.mrb[0].mxu0
  %1473 = vdwg.mxu0
  %v1474 = vsub.f32 0.0, %v1469
  %v1475 = vmul.f32 %v1474, 1.442695
  %v1476 = vpow.pop %v1475
  %v1477 = vadd.f32 %v1476, 1.0
  %v1478 = vrcp.pop %v1477
  %1479 = vst [vmem:[%s2] sm:$0x3] %v1478
  // Predicated region
  $region10: #{discriminator_forward.9} parent=0 // pred_check
    _
  $region11: #{discriminator_forward.9} parent=0 // pred_check_branch
    %1481 = sbr.rel (0) target = $region13
  $region12: #{discriminator_forward.9} parent=0 // pred_region
    _
  $region13: #{discriminator_forward.9} parent=0 // pred_fallthru
    _
  // Predicated region
  $region14: #{discriminator_forward.9} parent=0 // pred_check
    _
  $region15: #{discriminator_forward.9} parent=0 // pred_check_branch
    %1483 = sbr.rel (0) target = $region17
  $region16: #{discriminator_forward.9} parent=0 // pred_region
    _
  $region17: #{discriminator_forward.9} parent=0 // pred_fallthru
    _

</llo_original>
